<compile_context>
chip_gen: v6e
topology: v6e:2x2x1
jax: 0.10.0
libtpu: 0.0.40
codegen_flags: <defaults>
</compile_context>

<pallas_src>
import numpy as np
import jax
import jax.numpy as jnp
from jax.experimental import pallas as pl
from jax.experimental.pallas import tpu as pltpu


# ----------------------------------------------------------------------------
# Glue: normalized Laplacian (host-side, mirrors calculate_normalized_laplacian)
# ----------------------------------------------------------------------------
def normalized_laplacian(adj):
    adj = np.asarray(adj, dtype=np.float64)
    d = adj.sum(1)
    with np.errstate(divide="ignore"):
        d_inv_sqrt = np.power(d, -0.5)
    d_inv_sqrt[np.isinf(d_inv_sqrt)] = 0.0
    d_mat = np.diag(d_inv_sqrt)
    lap = (adj @ d_mat).T @ d_mat      # D^-1/2 A^T D^-1/2 (== sym. for sym. A)
    return lap.astype(np.float32)


# ----------------------------------------------------------------------------
# Glue: build the (K, N, N) support stack (Chebyshev + optional adaptive graph)
# ----------------------------------------------------------------------------
def build_supports(node_emb, lap, cheb_k, add_apt):
    n = node_emb.shape[0]
    supports = [jnp.eye(n, dtype=jnp.float32), lap]
    for _ in range(2, cheb_k):
        supports.append(2.0 * lap @ supports[-1] - supports[-2])
    if add_apt:
        sim = jax.nn.relu(node_emb @ node_emb.T)
        supports.append(jax.nn.softmax(sim, axis=1))
    return jnp.stack(supports, axis=0)


# ----------------------------------------------------------------------------
# Pallas kernel: one AGCRN layer (whole time recurrence, grid over T)
# ----------------------------------------------------------------------------
def make_layer_kernel(B, N, H, K, D, last_only):
    BN = B * N

    def kernel(x_ref, sup_ref, e2_ref,
               gwx_ref, gwh_ref, gb_ref,
               uwx_ref, uwh_ref, ub_ref,
               out_ref, state_scr):
        t = pl.program_id(0)

        @pl.when(t == 0)
        def _init():
            # h0 is always zeros in the reference model
            state_scr[...] = jnp.zeros_like(state_scr)

        x2 = x_ref[0]              # (B*N, C)
        state2 = state_scr[...]    # (B*N, H)
        e2 = e2_ref[...]           # (B*N, D)   node embeddings (tiled over B)

        # Broadcast the supports to the batch once per step; reused 3*K times.
        sup_b = [jnp.broadcast_to(sup_ref[k][None], (B, N, N)) for k in range(K)]

        def agg(v2):
            # v2: (B*N, F) -> list of K aggregated (B*N, F) tensors.
            # MXU batched matmul: y[b,n,f] = sum_m supports[k,n,m] * v[b,m,f]
            f = v2.shape[-1]
            v3 = v2.reshape(B, N, f)
            return [
                jnp.einsum("bnm,bmf->bnf", sup_b[k], v3,
                           preferred_element_type=jnp.float32).reshape(BN, f)
                for k in range(K)
            ]

        yx = agg(x2)               # reused by gate and candidate
        ys = agg(state2)

        def combine(t2, bias2, o_dim):
            # Fold the embedding dim: out[:, o] = bias + sum_d E[:, d] * t2[:, d*o_dim + o]
            acc = bias2
            for d in range(D):
                acc = acc + t2[:, d * o_dim:(d + 1) * o_dim] * e2[:, d:d + 1]
            return acc

        # ---- gate: z, r = sigmoid(gconv(cat(x, state))) ----
        O2 = 2 * H
        tg = jnp.zeros((BN, D * O2), jnp.float32)
        for k in range(K):
            tg = tg + jnp.dot(yx[k], gwx_ref[k], preferred_element_type=jnp.float32)
            tg = tg + jnp.dot(ys[k], gwh_ref[k], preferred_element_type=jnp.float32)
        z_r = jax.nn.sigmoid(combine(tg, gb_ref[...], O2))
        z = z_r[:, :H]
        r = z_r[:, H:]

        # ---- candidate: hc = tanh(gconv(cat(x, z*state))) ----
        yzs = agg(z * state2)
        tc = jnp.zeros((BN, D * H), jnp.float32)
        for k in range(K):
            tc = tc + jnp.dot(yx[k], uwx_ref[k], preferred_element_type=jnp.float32)
            tc = tc + jnp.dot(yzs[k], uwh_ref[k], preferred_element_type=jnp.float32)
        hc = jnp.tanh(combine(tc, ub_ref[...], H))

        h = r * state2 + (1.0 - r) * hc
        state_scr[...] = h
        if last_only:
            out_ref[...] = h       # constant out block -> written back once
        else:
            out_ref[0] = h

    return kernel


def run_layer(x_seq, supports, e2, gwx, gwh, gb, uwx, uwh, ub,
              *, B, N, H, last_only):
    T, BN, C = x_seq.shape
    K = supports.shape[0]
    D = e2.shape[-1]
    kernel = make_layer_kernel(B, N, H, K, D, last_only)

    if last_only:
        out_shape = jax.ShapeDtypeStruct((BN, H), jnp.float32)
        out_spec = pl.BlockSpec((BN, H), lambda t: (0, 0))
    else:
        out_shape = jax.ShapeDtypeStruct((T, BN, H), jnp.float32)
        out_spec = pl.BlockSpec((1, BN, H), lambda t: (t, 0, 0))

    const2 = lambda t: (0, 0)
    const3 = lambda t: (0, 0, 0)

    return pl.pallas_call(
        kernel,
        grid=(T,),
        in_specs=[
            pl.BlockSpec((1, BN, C), lambda t: (t, 0, 0)),   # x_t slab
            pl.BlockSpec(supports.shape, const3),            # (K, N, N)
            pl.BlockSpec(e2.shape, const2),                  # (B*N, D)
            pl.BlockSpec(gwx.shape, const3),                 # (K, C, D*2H)
            pl.BlockSpec(gwh.shape, const3),                 # (K, H, D*2H)
            pl.BlockSpec(gb.shape, const2),                  # (B*N, 2H)
            pl.BlockSpec(uwx.shape, const3),                 # (K, C, D*H)
            pl.BlockSpec(uwh.shape, const3),                 # (K, H, D*H)
            pl.BlockSpec(ub.shape, const2),                  # (B*N, H)
        ],
        out_specs=out_spec,
        out_shape=out_shape,
        scratch_shapes=[pltpu.VMEM((BN, H), jnp.float32)],
        compiler_params=pltpu.CompilerParams(
            dimension_semantics=("arbitrary",)),
    )(x_seq, supports, e2, gwx, gwh, gb, uwx, uwh, ub)


# ----------------------------------------------------------------------------
# Pallas kernel: end_conv  (Conv2d(1, OW, kernel=(1,H)) == per-node linear H->OW)
# ----------------------------------------------------------------------------
def end_conv_kernel(h_ref, w_ref, b_ref, out_ref):
    out_ref[...] = (jnp.dot(h_ref[...], w_ref[...],
                            preferred_element_type=jnp.float32)
                    + b_ref[...])


def end_conv(h2, w, b):
    # h2: (B*N, H), w: (OW, H), b: (OW,) -> (B*N, OW)
    BN, _ = h2.shape
    OW = w.shape[0]
    return pl.pallas_call(
        end_conv_kernel,
        in_specs=[pl.BlockSpec(memory_space=pltpu.MemorySpace.VMEM)] * 3,
        out_specs=pl.BlockSpec(memory_space=pltpu.MemorySpace.VMEM),
        out_shape=jax.ShapeDtypeStruct((BN, OW), jnp.float32),
    )(h2, jnp.transpose(w), b.reshape(1, OW))


# ----------------------------------------------------------------------------
# Parameter init (deterministic, synthetic) and full forward
# ----------------------------------------------------------------------------
def init_params(key, cfg):
    N, D, H = cfg["capacity"], cfg["embed_dim"], cfg["hidden_dim"]
    feat = 2 if cfg["data_diff"] else 1
    K = cfg["gcn_k"] + (1 if cfg["add_apt"] else 0)
    OW = cfg["output_len"]
    keys = jax.random.split(key, 4 * cfg["layers"] + 3)

    def u(k, shape, scale=0.2):
        return jax.random.uniform(k, shape, jnp.float32, -scale, scale)

    layers = []
    ki = 0
    for l in range(cfg["layers"]):
        dim_in = feat if l == 0 else H
        layers.append(dict(
            gate_w=u(keys[ki + 0], (D, K, dim_in + H, 2 * H)),
            gate_b=u(keys[ki + 1], (D, 2 * H)),
            upd_w=u(keys[ki + 2], (D, K, dim_in + H, H)),
            upd_b=u(keys[ki + 3], (D, H)),
        ))
        ki += 4
    return dict(
        layers=layers,
        node_emb=u(keys[ki], (N, D), 0.5),
        end_w=u(keys[ki + 1], (OW, H)),
        end_b=u(keys[ki + 2], (OW,)),
    )


def agcrn_forward(batch_x, params, lap, cfg):
    B, T, N = batch_x.shape
    H = cfg["hidden_dim"]
    inputs = batch_x[..., None].astype(jnp.float32)           # (B, T, N, 1)
    if cfg["data_diff"]:
        dif = inputs[:, 1:, :, -1:] - inputs[:, :-1, :, -1:]
        dif = jnp.concatenate([jnp.zeros((B, 1, N, 1), jnp.float32), dif], axis=1)
        inputs = jnp.concatenate([inputs, dif], axis=3)

    E = params["node_emb"]                                    # (N, D)
    D = E.shape[1]
    supports = build_supports(E, lap, cfg["gcn_k"], cfg["add_apt"])
    K = supports.shape[0]
    e2 = jnp.tile(E, (B, 1))                                  # (B*N, D)

    # time-major, nodes folded into the sublane axis: (T, B*N, C)
    x_seq = jnp.transpose(inputs, (1, 0, 2, 3)).reshape(T, B * N, inputs.shape[-1])

    n_layers = len(params["layers"])
    for li, lp in enumerate(params["layers"]):
        C = x_seq.shape[-1]

        def split_pool(pool, o_dim):
            # (D, K, C+H, O) -> x-part (K, C, D*O), h-part (K, H, D*O)
            px = jnp.transpose(pool[:, :, :C, :], (1, 2, 0, 3)).reshape(K, C, D * o_dim)
            ph = jnp.transpose(pool[:, :, C:, :], (1, 2, 0, 3)).reshape(K, H, D * o_dim)
            return px, ph

        gwx, gwh = split_pool(lp["gate_w"], 2 * H)
        uwx, uwh = split_pool(lp["upd_w"], H)
        gb = jnp.tile(E @ lp["gate_b"], (B, 1))               # (B*N, 2H)
        ub = jnp.tile(E @ lp["upd_b"], (B, 1))                # (B*N, H)

        x_seq = run_layer(x_seq, supports, e2, gwx, gwh, gb, uwx, uwh, ub,
                          B=B, N=N, H=H, last_only=(li == n_layers - 1))

    h_last = x_seq                                            # (B*N, H)  (last layer emits only t==T-1)
    out2 = end_conv(h_last, params["end_w"], params["end_b"])  # (B*N, OW)
    OW = params["end_w"].shape[0]
    return out2.reshape(B, N, OW).transpose(0, 2, 1)          # (B, OW, N)


# ----------------------------------------------------------------------------
# Pure-JAX reference (mirrors the PyTorch graph exactly) for validation
# ----------------------------------------------------------------------------
def reference_forward(batch_x, params, lap, cfg):
    B, T, N = batch_x.shape
    H = cfg["hidden_dim"]
    inputs = batch_x[..., None].astype(jnp.float32)
    if cfg["data_diff"]:
        dif = inputs[:, 1:, :, -1:] - inputs[:, :-1, :, -1:]
        dif = jnp.concatenate([jnp.zeros((B, 1, N, 1), jnp.float32), dif], axis=1)
        inputs = jnp.concatenate([inputs, dif], axis=3)

    E = params["node_emb"]
    supports = build_supports(E, lap, cfg["gcn_k"], cfg["add_apt"])

    def gconv(x, wpool, bpool):
        w = jnp.einsum("nd,dkio->nkio", E, wpool)
        b = E @ bpool
        x_g = jnp.einsum("knm,bmc->bknc", supports, x)
        x_g = jnp.transpose(x_g, (0, 2, 1, 3))
        return jnp.einsum("bnki,nkio->bno", x_g, w) + b

    cur = inputs
    for lp in params["layers"]:
        state = jnp.zeros((B, N, H), jnp.float32)
        outs = []
        for t in range(T):
            x_t = cur[:, t]
            cat = jnp.concatenate([x_t, state], axis=-1)
            z_r = jax.nn.sigmoid(gconv(cat, lp["gate_w"], lp["gate_b"]))
            z, r = z_r[..., :H], z_r[..., H:]
            cand = jnp.concatenate([x_t, z * state], axis=-1)
            hc = jnp.tanh(gconv(cand, lp["upd_w"], lp["upd_b"]))
            state = r * state + (1.0 - r) * hc
            outs.append(state)
        cur = jnp.stack(outs, axis=1)

    last = cur[:, -1, :, :]                                   # (B, N, H)
    w, b = params["end_w"], params["end_b"]
    return jnp.einsum("bnh,oh->bon", last, w) + b[None, :, None]   # (B, OW, N)


# ----------------------------------------------------------------------------
if __name__ == "__main__":
    cfg = dict(
        var_len=1, input_len=8, output_len=4, capacity=16, data_diff=False,
        hidden_dim=32, embed_dim=8, layers=2, gcn_k=2, dropout=0.0, add_apt=True,
    )
    # NOTE: dropout=0 -> the nn.Dropout branches in the PyTorch module are no-ops.

    key = jax.random.PRNGKey(0)
    k_param, k_x = jax.random.split(key)

    # deterministic ring adjacency (each node connected to +-1, +-2 neighbours)
    N = cfg["capacity"]
    adj = np.zeros((N, N), np.float32)
    for i in range(N):
        for off in (1, 2):
            adj[i, (i + off) % N] = 1.0
            adj[i, (i - off) % N] = 1.0
    lap = jnp.asarray(normalized_laplacian(adj))

    params = init_params(k_param, cfg)

    B, T = 2, cfg["input_len"]
    batch_x = jax.random.normal(k_x, (B, T, N), dtype=jnp.float32)

    fwd = jax.jit(lambda x: agcrn_forward(x, params, lap, cfg))
    out = fwd(batch_x)
    out = jax.block_until_ready(out)

    ref = jax.block_until_ready(reference_forward(batch_x, params, lap, cfg))
    np.testing.assert_allclose(np.asarray(out), np.asarray(ref),
                               rtol=2e-2, atol=2e-2)
    assert out.shape == (B, cfg["output_len"], N)
    print("KERNEL_OK")
</pallas_src>

<mosaic_0001>
module attributes {stable_mosaic.version = 11 : i64} {
  func.func @kernel(%arg0: i32, %arg1: memref<1x32x1xf32, #tpu.memory_space<vmem>>, %arg2: memref<3x16x16xf32, #tpu.memory_space<vmem>>, %arg3: memref<32x8xf32, #tpu.memory_space<vmem>>, %arg4: memref<3x1x512xf32, #tpu.memory_space<vmem>>, %arg5: memref<3x32x512xf32, #tpu.memory_space<vmem>>, %arg6: memref<32x64xf32, #tpu.memory_space<vmem>>, %arg7: memref<3x1x256xf32, #tpu.memory_space<vmem>>, %arg8: memref<3x32x256xf32, #tpu.memory_space<vmem>>, %arg9: memref<32x32xf32, #tpu.memory_space<vmem>>, %arg10: memref<1x32x32xf32, #tpu.memory_space<vmem>>, %arg11: memref<32x32xf32, #tpu.memory_space<vmem>>) attributes {dimension_semantics = [#tpu.dimension_semantics<arbitrary>], iteration_bounds = array<i64: 8>, scalar_prefetch = 0 : i64, scratch_operands = 1 : i64, tpu.core_type = #tpu.core_type<tc>, window_params = [{transform_indices = @transform_0, window_bounds = array<i64: 1, 32, 1>}, {pipeline_mode = #tpu.pipeline_mode<synchronous>, transform_indices = @transform_1, window_bounds = array<i64: 3, 16, 16>}, {pipeline_mode = #tpu.pipeline_mode<synchronous>, transform_indices = @transform_2, window_bounds = array<i64: 32, 8>}, {pipeline_mode = #tpu.pipeline_mode<synchronous>, transform_indices = @transform_3, window_bounds = array<i64: 3, 1, 512>}, {pipeline_mode = #tpu.pipeline_mode<synchronous>, transform_indices = @transform_4, window_bounds = array<i64: 3, 32, 512>}, {pipeline_mode = #tpu.pipeline_mode<synchronous>, transform_indices = @transform_5, window_bounds = array<i64: 32, 64>}, {pipeline_mode = #tpu.pipeline_mode<synchronous>, transform_indices = @transform_6, window_bounds = array<i64: 3, 1, 256>}, {pipeline_mode = #tpu.pipeline_mode<synchronous>, transform_indices = @transform_7, window_bounds = array<i64: 3, 32, 256>}, {pipeline_mode = #tpu.pipeline_mode<synchronous>, transform_indices = @transform_8, window_bounds = array<i64: 32, 32>}, {transform_indices = @transform_9, window_bounds = array<i64: 1, 32, 32>}]} {
    %c0_i32 = arith.constant 0 : i32
    %0 = arith.cmpi eq, %arg0, %c0_i32 : i32
    %1 = arith.extui %0 : i1 to i32
    %c0_i32_0 = arith.constant 0 : i32
    %2 = arith.cmpi ne, %1, %c0_i32_0 : i32
    scf.if %2 {
      %cst_83 = arith.constant 0.000000e+00 : f32
      %193 = vector.broadcast %cst_83 : f32 to vector<32x32xf32>
      %c0_84 = arith.constant 0 : index
      %c0_85 = arith.constant 0 : index
      %194 = vector.load %arg11[%c0_84, %c0_85] : memref<32x32xf32, #tpu.memory_space<vmem>>, vector<32x32xf32>
      tpu.vector_store %arg11[%c0_84, %c0_85], %193 {strides = array<i32>} : memref<32x32xf32, #tpu.memory_space<vmem>>, vector<32x32xf32>,
    } else {
    }
    %c0 = arith.constant 0 : index
    %c0_1 = arith.constant 0 : index
    %c0_2 = arith.constant 0 : index
    %3 = vector.load %arg1[%c0, %c0_1, %c0_2] : memref<1x32x1xf32, #tpu.memory_space<vmem>>, vector<1x32x1xf32>
    %4 = vector.shape_cast %3 : vector<1x32x1xf32> to vector<32x1xf32>
    %c0_3 = arith.constant 0 : index
    %c0_4 = arith.constant 0 : index
    %5 = vector.load %arg11[%c0_3, %c0_4] : memref<32x32xf32, #tpu.memory_space<vmem>>, vector<32x32xf32>
    %c0_5 = arith.constant 0 : index
    %c0_6 = arith.constant 0 : index
    %6 = vector.load %arg3[%c0_5, %c0_6] : memref<32x8xf32, #tpu.memory_space<vmem>>, vector<32x8xf32>
    %c0_7 = arith.constant 0 : index
    %c0_8 = arith.constant 0 : index
    %c0_9 = arith.constant 0 : index
    %7 = vector.load %arg2[%c0_7, %c0_8, %c0_9] : memref<3x16x16xf32, #tpu.memory_space<vmem>>, vector<1x16x16xf32>
    %8 = vector.shape_cast %7 : vector<1x16x16xf32> to vector<16x16xf32>
    %9 = vector.shape_cast %8 : vector<16x16xf32> to vector<1x16x16xf32>
    %10 = vector.shape_cast %9 : vector<1x16x16xf32> to vector<1x16x16xf32>
    %11 = vector.broadcast %10 : vector<1x16x16xf32> to vector<2x16x16xf32>
    %c1 = arith.constant 1 : index
    %c0_10 = arith.constant 0 : index
    %c0_11 = arith.constant 0 : index
    %12 = vector.load %arg2[%c1, %c0_10, %c0_11] : memref<3x16x16xf32, #tpu.memory_space<vmem>>, vector<1x16x16xf32>
    %13 = vector.shape_cast %12 : vector<1x16x16xf32> to vector<16x16xf32>
    %14 = vector.shape_cast %13 : vector<16x16xf32> to vector<1x16x16xf32>
    %15 = vector.shape_cast %14 : vector<1x16x16xf32> to vector<1x16x16xf32>
    %16 = vector.broadcast %15 : vector<1x16x16xf32> to vector<2x16x16xf32>
    %c2 = arith.constant 2 : index
    %c0_12 = arith.constant 0 : index
    %c0_13 = arith.constant 0 : index
    %17 = vector.load %arg2[%c2, %c0_12, %c0_13] : memref<3x16x16xf32, #tpu.memory_space<vmem>>, vector<1x16x16xf32>
    %18 = vector.shape_cast %17 : vector<1x16x16xf32> to vector<16x16xf32>
    %19 = vector.shape_cast %18 : vector<16x16xf32> to vector<1x16x16xf32>
    %20 = vector.shape_cast %19 : vector<1x16x16xf32> to vector<1x16x16xf32>
    %21 = vector.broadcast %20 : vector<1x16x16xf32> to vector<2x16x16xf32>
    %22 = vector.shape_cast %4 : vector<32x1xf32> to vector<2x16x1xf32>
    "tpu.trace_start"() <{level = 10 : i32, message = "bnm,bmf->bnf"}> : () -> ()
    %cst = arith.constant dense<0.000000e+00> : vector<2x16x1xf32>
    %23 = tpu.matmul %11, %22, %cst {dimension_numbers = #tpu.dot_dimension_numbers<[2], [1], [1], [2], [0, 0, 0, 1, 1, 2], [0], [0]>} : vector<2x16x16xf32>, vector<2x16x1xf32>, vector<2x16x1xf32> -> vector<2x16x1xf32>
    "tpu.trace_stop"() : () -> ()
    %24 = vector.shape_cast %23 : vector<2x16x1xf32> to vector<32x1xf32>
    "tpu.trace_start"() <{level = 10 : i32, message = "bnm,bmf->bnf"}> : () -> ()
    %cst_14 = arith.constant dense<0.000000e+00> : vector<2x16x1xf32>
    %25 = tpu.matmul %16, %22, %cst_14 {dimension_numbers = #tpu.dot_dimension_numbers<[2], [1], [1], [2], [0, 0, 0, 1, 1, 2], [0], [0]>} : vector<2x16x16xf32>, vector<2x16x1xf32>, vector<2x16x1xf32> -> vector<2x16x1xf32>
    "tpu.trace_stop"() : () -> ()
    %26 = vector.shape_cast %25 : vector<2x16x1xf32> to vector<32x1xf32>
    "tpu.trace_start"() <{level = 10 : i32, message = "bnm,bmf->bnf"}> : () -> ()
    %cst_15 = arith.constant dense<0.000000e+00> : vector<2x16x1xf32>
    %27 = tpu.matmul %21, %22, %cst_15 {dimension_numbers = #tpu.dot_dimension_numbers<[2], [1], [1], [2], [0, 0, 0, 1, 1, 2], [0], [0]>} : vector<2x16x16xf32>, vector<2x16x1xf32>, vector<2x16x1xf32> -> vector<2x16x1xf32>
    "tpu.trace_stop"() : () -> ()
    %28 = vector.shape_cast %27 : vector<2x16x1xf32> to vector<32x1xf32>
    %29 = vector.shape_cast %5 : vector<32x32xf32> to vector<2x16x32xf32>
    "tpu.trace_start"() <{level = 10 : i32, message = "bnm,bmf->bnf"}> : () -> ()
    %cst_16 = arith.constant dense<0.000000e+00> : vector<2x16x32xf32>
    %30 = tpu.matmul %11, %29, %cst_16 {dimension_numbers = #tpu.dot_dimension_numbers<[2], [1], [1], [2], [0, 0, 0, 1, 1, 2], [0], [0]>} : vector<2x16x16xf32>, vector<2x16x32xf32>, vector<2x16x32xf32> -> vector<2x16x32xf32>
    "tpu.trace_stop"() : () -> ()
    %31 = vector.shape_cast %30 : vector<2x16x32xf32> to vector<32x32xf32>
    "tpu.trace_start"() <{level = 10 : i32, message = "bnm,bmf->bnf"}> : () -> ()
    %cst_17 = arith.constant dense<0.000000e+00> : vector<2x16x32xf32>
    %32 = tpu.matmul %16, %29, %cst_17 {dimension_numbers = #tpu.dot_dimension_numbers<[2], [1], [1], [2], [0, 0, 0, 1, 1, 2], [0], [0]>} : vector<2x16x16xf32>, vector<2x16x32xf32>, vector<2x16x32xf32> -> vector<2x16x32xf32>
    "tpu.trace_stop"() : () -> ()
    %33 = vector.shape_cast %32 : vector<2x16x32xf32> to vector<32x32xf32>
    "tpu.trace_start"() <{level = 10 : i32, message = "bnm,bmf->bnf"}> : () -> ()
    %cst_18 = arith.constant dense<0.000000e+00> : vector<2x16x32xf32>
    %34 = tpu.matmul %21, %29, %cst_18 {dimension_numbers = #tpu.dot_dimension_numbers<[2], [1], [1], [2], [0, 0, 0, 1, 1, 2], [0], [0]>} : vector<2x16x16xf32>, vector<2x16x32xf32>, vector<2x16x32xf32> -> vector<2x16x32xf32>
    "tpu.trace_stop"() : () -> ()
    %35 = vector.shape_cast %34 : vector<2x16x32xf32> to vector<32x32xf32>
    %cst_19 = arith.constant 0.000000e+00 : f32
    %36 = vector.broadcast %cst_19 : f32 to vector<32x512xf32>
    %c0_20 = arith.constant 0 : index
    %c0_21 = arith.constant 0 : index
    %c0_22 = arith.constant 0 : index
    %37 = vector.load %arg4[%c0_20, %c0_21, %c0_22] : memref<3x1x512xf32, #tpu.memory_space<vmem>>, vector<1x1x512xf32>
    %38 = vector.shape_cast %37 : vector<1x1x512xf32> to vector<1x512xf32>
    %cst_23 = arith.constant dense<0.000000e+00> : vector<32x512xf32>
    %39 = tpu.matmul %24, %38, %cst_23 {dimension_numbers = #tpu.dot_dimension_numbers<[1], [0], [0], [1], [0, 0, 1, 1], [], []>} : vector<32x1xf32>, vector<1x512xf32>, vector<32x512xf32> -> vector<32x512xf32>
    %40 = arith.addf %36, %39 : vector<32x512xf32>
    %c0_24 = arith.constant 0 : index
    %c0_25 = arith.constant 0 : index
    %c0_26 = arith.constant 0 : index
    %41 = vector.load %arg5[%c0_24, %c0_25, %c0_26] : memref<3x32x512xf32, #tpu.memory_space<vmem>>, vector<1x32x512xf32>
    %42 = vector.shape_cast %41 : vector<1x32x512xf32> to vector<32x512xf32>
    %cst_27 = arith.constant dense<0.000000e+00> : vector<32x512xf32>
    %43 = tpu.matmul %31, %42, %cst_27 {dimension_numbers = #tpu.dot_dimension_numbers<[1], [0], [0], [1], [0, 0, 1, 1], [], []>} : vector<32x32xf32>, vector<32x512xf32>, vector<32x512xf32> -> vector<32x512xf32>
    %44 = arith.addf %40, %43 : vector<32x512xf32>
    %c1_28 = arith.constant 1 : index
    %c0_29 = arith.constant 0 : index
    %c0_30 = arith.constant 0 : index
    %45 = vector.load %arg4[%c1_28, %c0_29, %c0_30] : memref<3x1x512xf32, #tpu.memory_space<vmem>>, vector<1x1x512xf32>
    %46 = vector.shape_cast %45 : vector<1x1x512xf32> to vector<1x512xf32>
    %cst_31 = arith.constant dense<0.000000e+00> : vector<32x512xf32>
    %47 = tpu.matmul %26, %46, %cst_31 {dimension_numbers = #tpu.dot_dimension_numbers<[1], [0], [0], [1], [0, 0, 1, 1], [], []>} : vector<32x1xf32>, vector<1x512xf32>, vector<32x512xf32> -> vector<32x512xf32>
    %48 = arith.addf %44, %47 : vector<32x512xf32>
    %c1_32 = arith.constant 1 : index
    %c0_33 = arith.constant 0 : index
    %c0_34 = arith.constant 0 : index
    %49 = vector.load %arg5[%c1_32, %c0_33, %c0_34] : memref<3x32x512xf32, #tpu.memory_space<vmem>>, vector<1x32x512xf32>
    %50 = vector.shape_cast %49 : vector<1x32x512xf32> to vector<32x512xf32>
    %cst_35 = arith.constant dense<0.000000e+00> : vector<32x512xf32>
    %51 = tpu.matmul %33, %50, %cst_35 {dimension_numbers = #tpu.dot_dimension_numbers<[1], [0], [0], [1], [0, 0, 1, 1], [], []>} : vector<32x32xf32>, vector<32x512xf32>, vector<32x512xf32> -> vector<32x512xf32>
    %52 = arith.addf %48, %51 : vector<32x512xf32>
    %c2_36 = arith.constant 2 : index
    %c0_37 = arith.constant 0 : index
    %c0_38 = arith.constant 0 : index
    %53 = vector.load %arg4[%c2_36, %c0_37, %c0_38] : memref<3x1x512xf32, #tpu.memory_space<vmem>>, vector<1x1x512xf32>
    %54 = vector.shape_cast %53 : vector<1x1x512xf32> to vector<1x512xf32>
    %cst_39 = arith.constant dense<0.000000e+00> : vector<32x512xf32>
    %55 = tpu.matmul %28, %54, %cst_39 {dimension_numbers = #tpu.dot_dimension_numbers<[1], [0], [0], [1], [0, 0, 1, 1], [], []>} : vector<32x1xf32>, vector<1x512xf32>, vector<32x512xf32> -> vector<32x512xf32>
    %56 = arith.addf %52, %55 : vector<32x512xf32>
    %c2_40 = arith.constant 2 : index
    %c0_41 = arith.constant 0 : index
    %c0_42 = arith.constant 0 : index
    %57 = vector.load %arg5[%c2_40, %c0_41, %c0_42] : memref<3x32x512xf32, #tpu.memory_space<vmem>>, vector<1x32x512xf32>
    %58 = vector.shape_cast %57 : vector<1x32x512xf32> to vector<32x512xf32>
    %cst_43 = arith.constant dense<0.000000e+00> : vector<32x512xf32>
    %59 = tpu.matmul %35, %58, %cst_43 {dimension_numbers = #tpu.dot_dimension_numbers<[1], [0], [0], [1], [0, 0, 1, 1], [], []>} : vector<32x32xf32>, vector<32x512xf32>, vector<32x512xf32> -> vector<32x512xf32>
    %60 = arith.addf %56, %59 : vector<32x512xf32>
    %c0_44 = arith.constant 0 : index
    %c0_45 = arith.constant 0 : index
    %61 = vector.load %arg6[%c0_44, %c0_45] : memref<32x64xf32, #tpu.memory_space<vmem>>, vector<32x64xf32>
    %62 = vector.extract_strided_slice %60 {offsets = [0, 0], sizes = [32, 64], strides = [1, 1]} : vector<32x512xf32> to vector<32x64xf32>
    %63 = vector.extract_strided_slice %6 {offsets = [0, 0], sizes = [32, 1], strides = [1, 1]} : vector<32x8xf32> to vector<32x1xf32>
    %64 = vector.broadcast %63 : vector<32x1xf32> to vector<32x64xf32>
    %65 = arith.mulf %62, %64 : vector<32x64xf32>
    %66 = arith.addf %61, %65 : vector<32x64xf32>
    %67 = vector.extract_strided_slice %60 {offsets = [0, 64], sizes = [32, 64], strides = [1, 1]} : vector<32x512xf32> to vector<32x64xf32>
    %68 = vector.extract_strided_slice %6 {offsets = [0, 1], sizes = [32, 1], strides = [1, 1]} : vector<32x8xf32> to vector<32x1xf32>
    %69 = vector.broadcast %68 : vector<32x1xf32> to vector<32x64xf32>
    %70 = arith.mulf %67, %69 : vector<32x64xf32>
    %71 = arith.addf %66, %70 : vector<32x64xf32>
    %72 = vector.extract_strided_slice %60 {offsets = [0, 128], sizes = [32, 64], strides = [1, 1]} : vector<32x512xf32> to vector<32x64xf32>
    %73 = vector.extract_strided_slice %6 {offsets = [0, 2], sizes = [32, 1], strides = [1, 1]} : vector<32x8xf32> to vector<32x1xf32>
    %74 = vector.broadcast %73 : vector<32x1xf32> to vector<32x64xf32>
    %75 = arith.mulf %72, %74 : vector<32x64xf32>
    %76 = arith.addf %71, %75 : vector<32x64xf32>
    %77 = vector.extract_strided_slice %60 {offsets = [0, 192], sizes = [32, 64], strides = [1, 1]} : vector<32x512xf32> to vector<32x64xf32>
    %78 = vector.extract_strided_slice %6 {offsets = [0, 3], sizes = [32, 1], strides = [1, 1]} : vector<32x8xf32> to vector<32x1xf32>
    %79 = vector.broadcast %78 : vector<32x1xf32> to vector<32x64xf32>
    %80 = arith.mulf %77, %79 : vector<32x64xf32>
    %81 = arith.addf %76, %80 : vector<32x64xf32>
    %82 = vector.extract_strided_slice %60 {offsets = [0, 256], sizes = [32, 64], strides = [1, 1]} : vector<32x512xf32> to vector<32x64xf32>
    %83 = vector.extract_strided_slice %6 {offsets = [0, 4], sizes = [32, 1], strides = [1, 1]} : vector<32x8xf32> to vector<32x1xf32>
    %84 = vector.broadcast %83 : vector<32x1xf32> to vector<32x64xf32>
    %85 = arith.mulf %82, %84 : vector<32x64xf32>
    %86 = arith.addf %81, %85 : vector<32x64xf32>
    %87 = vector.extract_strided_slice %60 {offsets = [0, 320], sizes = [32, 64], strides = [1, 1]} : vector<32x512xf32> to vector<32x64xf32>
    %88 = vector.extract_strided_slice %6 {offsets = [0, 5], sizes = [32, 1], strides = [1, 1]} : vector<32x8xf32> to vector<32x1xf32>
    %89 = vector.broadcast %88 : vector<32x1xf32> to vector<32x64xf32>
    %90 = arith.mulf %87, %89 : vector<32x64xf32>
    %91 = arith.addf %86, %90 : vector<32x64xf32>
    %92 = vector.extract_strided_slice %60 {offsets = [0, 384], sizes = [32, 64], strides = [1, 1]} : vector<32x512xf32> to vector<32x64xf32>
    %93 = vector.extract_strided_slice %6 {offsets = [0, 6], sizes = [32, 1], strides = [1, 1]} : vector<32x8xf32> to vector<32x1xf32>
    %94 = vector.broadcast %93 : vector<32x1xf32> to vector<32x64xf32>
    %95 = arith.mulf %92, %94 : vector<32x64xf32>
    %96 = arith.addf %91, %95 : vector<32x64xf32>
    %97 = vector.extract_strided_slice %60 {offsets = [0, 448], sizes = [32, 64], strides = [1, 1]} : vector<32x512xf32> to vector<32x64xf32>
    %98 = vector.extract_strided_slice %6 {offsets = [0, 7], sizes = [32, 1], strides = [1, 1]} : vector<32x8xf32> to vector<32x1xf32>
    %99 = vector.broadcast %98 : vector<32x1xf32> to vector<32x64xf32>
    %100 = arith.mulf %97, %99 : vector<32x64xf32>
    %101 = arith.addf %96, %100 : vector<32x64xf32>
    %102 = arith.negf %101 : vector<32x64xf32>
    %103 = math.exp %102 : vector<32x64xf32>
    %cst_46 = arith.constant 1.000000e+00 : f32
    %104 = vector.broadcast %cst_46 : f32 to vector<32x64xf32>
    %105 = arith.addf %104, %103 : vector<32x64xf32>
    %106 = arith.divf %104, %105 : vector<32x64xf32>
    %107 = vector.extract_strided_slice %106 {offsets = [0, 0], sizes = [32, 32], strides = [1, 1]} : vector<32x64xf32> to vector<32x32xf32>
    %108 = vector.extract_strided_slice %106 {offsets = [0, 32], sizes = [32, 32], strides = [1, 1]} : vector<32x64xf32> to vector<32x32xf32>
    %109 = arith.mulf %107, %5 : vector<32x32xf32>
    %110 = vector.shape_cast %109 : vector<32x32xf32> to vector<2x16x32xf32>
    "tpu.trace_start"() <{level = 10 : i32, message = "bnm,bmf->bnf"}> : () -> ()
    %cst_47 = arith.constant dense<0.000000e+00> : vector<2x16x32xf32>
    %111 = tpu.matmul %11, %110, %cst_47 {dimension_numbers = #tpu.dot_dimension_numbers<[2], [1], [1], [2], [0, 0, 0, 1, 1, 2], [0], [0]>} : vector<2x16x16xf32>, vector<2x16x32xf32>, vector<2x16x32xf32> -> vector<2x16x32xf32>
    "tpu.trace_stop"() : () -> ()
    %112 = vector.shape_cast %111 : vector<2x16x32xf32> to vector<32x32xf32>
    "tpu.trace_start"() <{level = 10 : i32, message = "bnm,bmf->bnf"}> : () -> ()
    %cst_48 = arith.constant dense<0.000000e+00> : vector<2x16x32xf32>
    %113 = tpu.matmul %16, %110, %cst_48 {dimension_numbers = #tpu.dot_dimension_numbers<[2], [1], [1], [2], [0, 0, 0, 1, 1, 2], [0], [0]>} : vector<2x16x16xf32>, vector<2x16x32xf32>, vector<2x16x32xf32> -> vector<2x16x32xf32>
    "tpu.trace_stop"() : () -> ()
    %114 = vector.shape_cast %113 : vector<2x16x32xf32> to vector<32x32xf32>
    "tpu.trace_start"() <{level = 10 : i32, message = "bnm,bmf->bnf"}> : () -> ()
    %cst_49 = arith.constant dense<0.000000e+00> : vector<2x16x32xf32>
    %115 = tpu.matmul %21, %110, %cst_49 {dimension_numbers = #tpu.dot_dimension_numbers<[2], [1], [1], [2], [0, 0, 0, 1, 1, 2], [0], [0]>} : vector<2x16x16xf32>, vector<2x16x32xf32>, vector<2x16x32xf32> -> vector<2x16x32xf32>
    "tpu.trace_stop"() : () -> ()
    %116 = vector.shape_cast %115 : vector<2x16x32xf32> to vector<32x32xf32>
    %cst_50 = arith.constant 0.000000e+00 : f32
    %117 = vector.broadcast %cst_50 : f32 to vector<32x256xf32>
    %c0_51 = arith.constant 0 : index
    %c0_52 = arith.constant 0 : index
    %c0_53 = arith.constant 0 : index
    %118 = vector.load %arg7[%c0_51, %c0_52, %c0_53] : memref<3x1x256xf32, #tpu.memory_space<vmem>>, vector<1x1x256xf32>
    %119 = vector.shape_cast %118 : vector<1x1x256xf32> to vector<1x256xf32>
    %cst_54 = arith.constant dense<0.000000e+00> : vector<32x256xf32>
    %120 = tpu.matmul %24, %119, %cst_54 {dimension_numbers = #tpu.dot_dimension_numbers<[1], [0], [0], [1], [0, 0, 1, 1], [], []>} : vector<32x1xf32>, vector<1x256xf32>, vector<32x256xf32> -> vector<32x256xf32>
    %121 = arith.addf %117, %120 : vector<32x256xf32>
    %c0_55 = arith.constant 0 : index
    %c0_56 = arith.constant 0 : index
    %c0_57 = arith.constant 0 : index
    %122 = vector.load %arg8[%c0_55, %c0_56, %c0_57] : memref<3x32x256xf32, #tpu.memory_space<vmem>>, vector<1x32x256xf32>
    %123 = vector.shape_cast %122 : vector<1x32x256xf32> to vector<32x256xf32>
    %cst_58 = arith.constant dense<0.000000e+00> : vector<32x256xf32>
    %124 = tpu.matmul %112, %123, %cst_58 {dimension_numbers = #tpu.dot_dimension_numbers<[1], [0], [0], [1], [0, 0, 1, 1], [], []>} : vector<32x32xf32>, vector<32x256xf32>, vector<32x256xf32> -> vector<32x256xf32>
    %125 = arith.addf %121, %124 : vector<32x256xf32>
    %c1_59 = arith.constant 1 : index
    %c0_60 = arith.constant 0 : index
    %c0_61 = arith.constant 0 : index
    %126 = vector.load %arg7[%c1_59, %c0_60, %c0_61] : memref<3x1x256xf32, #tpu.memory_space<vmem>>, vector<1x1x256xf32>
    %127 = vector.shape_cast %126 : vector<1x1x256xf32> to vector<1x256xf32>
    %cst_62 = arith.constant dense<0.000000e+00> : vector<32x256xf32>
    %128 = tpu.matmul %26, %127, %cst_62 {dimension_numbers = #tpu.dot_dimension_numbers<[1], [0], [0], [1], [0, 0, 1, 1], [], []>} : vector<32x1xf32>, vector<1x256xf32>, vector<32x256xf32> -> vector<32x256xf32>
    %129 = arith.addf %125, %128 : vector<32x256xf32>
    %c1_63 = arith.constant 1 : index
    %c0_64 = arith.constant 0 : index
    %c0_65 = arith.constant 0 : index
    %130 = vector.load %arg8[%c1_63, %c0_64, %c0_65] : memref<3x32x256xf32, #tpu.memory_space<vmem>>, vector<1x32x256xf32>
    %131 = vector.shape_cast %130 : vector<1x32x256xf32> to vector<32x256xf32>
    %cst_66 = arith.constant dense<0.000000e+00> : vector<32x256xf32>
    %132 = tpu.matmul %114, %131, %cst_66 {dimension_numbers = #tpu.dot_dimension_numbers<[1], [0], [0], [1], [0, 0, 1, 1], [], []>} : vector<32x32xf32>, vector<32x256xf32>, vector<32x256xf32> -> vector<32x256xf32>
    %133 = arith.addf %129, %132 : vector<32x256xf32>
    %c2_67 = arith.constant 2 : index
    %c0_68 = arith.constant 0 : index
    %c0_69 = arith.constant 0 : index
    %134 = vector.load %arg7[%c2_67, %c0_68, %c0_69] : memref<3x1x256xf32, #tpu.memory_space<vmem>>, vector<1x1x256xf32>
    %135 = vector.shape_cast %134 : vector<1x1x256xf32> to vector<1x256xf32>
    %cst_70 = arith.constant dense<0.000000e+00> : vector<32x256xf32>
    %136 = tpu.matmul %28, %135, %cst_70 {dimension_numbers = #tpu.dot_dimension_numbers<[1], [0], [0], [1], [0, 0, 1, 1], [], []>} : vector<32x1xf32>, vector<1x256xf32>, vector<32x256xf32> -> vector<32x256xf32>
    %137 = arith.addf %133, %136 : vector<32x256xf32>
    %c2_71 = arith.constant 2 : index
    %c0_72 = arith.constant 0 : index
    %c0_73 = arith.constant 0 : index
    %138 = vector.load %arg8[%c2_71, %c0_72, %c0_73] : memref<3x32x256xf32, #tpu.memory_space<vmem>>, vector<1x32x256xf32>
    %139 = vector.shape_cast %138 : vector<1x32x256xf32> to vector<32x256xf32>
    %cst_74 = arith.constant dense<0.000000e+00> : vector<32x256xf32>
    %140 = tpu.matmul %116, %139, %cst_74 {dimension_numbers = #tpu.dot_dimension_numbers<[1], [0], [0], [1], [0, 0, 1, 1], [], []>} : vector<32x32xf32>, vector<32x256xf32>, vector<32x256xf32> -> vector<32x256xf32>
    %141 = arith.addf %137, %140 : vector<32x256xf32>
    %c0_75 = arith.constant 0 : index
    %c0_76 = arith.constant 0 : index
    %142 = vector.load %arg9[%c0_75, %c0_76] : memref<32x32xf32, #tpu.memory_space<vmem>>, vector<32x32xf32>
    %143 = vector.extract_strided_slice %141 {offsets = [0, 0], sizes = [32, 32], strides = [1, 1]} : vector<32x256xf32> to vector<32x32xf32>
    %144 = vector.extract_strided_slice %6 {offsets = [0, 0], sizes = [32, 1], strides = [1, 1]} : vector<32x8xf32> to vector<32x1xf32>
    %145 = vector.broadcast %144 : vector<32x1xf32> to vector<32x32xf32>
    %146 = arith.mulf %143, %145 : vector<32x32xf32>
    %147 = arith.addf %142, %146 : vector<32x32xf32>
    %148 = vector.extract_strided_slice %141 {offsets = [0, 32], sizes = [32, 32], strides = [1, 1]} : vector<32x256xf32> to vector<32x32xf32>
    %149 = vector.extract_strided_slice %6 {offsets = [0, 1], sizes = [32, 1], strides = [1, 1]} : vector<32x8xf32> to vector<32x1xf32>
    %150 = vector.broadcast %149 : vector<32x1xf32> to vector<32x32xf32>
    %151 = arith.mulf %148, %150 : vector<32x32xf32>
    %152 = arith.addf %147, %151 : vector<32x32xf32>
    %153 = vector.extract_strided_slice %141 {offsets = [0, 64], sizes = [32, 32], strides = [1, 1]} : vector<32x256xf32> to vector<32x32xf32>
    %154 = vector.extract_strided_slice %6 {offsets = [0, 2], sizes = [32, 1], strides = [1, 1]} : vector<32x8xf32> to vector<32x1xf32>
    %155 = vector.broadcast %154 : vector<32x1xf32> to vector<32x32xf32>
    %156 = arith.mulf %153, %155 : vector<32x32xf32>
    %157 = arith.addf %152, %156 : vector<32x32xf32>
    %158 = vector.extract_strided_slice %141 {offsets = [0, 96], sizes = [32, 32], strides = [1, 1]} : vector<32x256xf32> to vector<32x32xf32>
    %159 = vector.extract_strided_slice %6 {offsets = [0, 3], sizes = [32, 1], strides = [1, 1]} : vector<32x8xf32> to vector<32x1xf32>
    %160 = vector.broadcast %159 : vector<32x1xf32> to vector<32x32xf32>
    %161 = arith.mulf %158, %160 : vector<32x32xf32>
    %162 = arith.addf %157, %161 : vector<32x32xf32>
    %163 = vector.extract_strided_slice %141 {offsets = [0, 128], sizes = [32, 32], strides = [1, 1]} : vector<32x256xf32> to vector<32x32xf32>
    %164 = vector.extract_strided_slice %6 {offsets = [0, 4], sizes = [32, 1], strides = [1, 1]} : vector<32x8xf32> to vector<32x1xf32>
    %165 = vector.broadcast %164 : vector<32x1xf32> to vector<32x32xf32>
    %166 = arith.mulf %163, %165 : vector<32x32xf32>
    %167 = arith.addf %162, %166 : vector<32x32xf32>
    %168 = vector.extract_strided_slice %141 {offsets = [0, 160], sizes = [32, 32], strides = [1, 1]} : vector<32x256xf32> to vector<32x32xf32>
    %169 = vector.extract_strided_slice %6 {offsets = [0, 5], sizes = [32, 1], strides = [1, 1]} : vector<32x8xf32> to vector<32x1xf32>
    %170 = vector.broadcast %169 : vector<32x1xf32> to vector<32x32xf32>
    %171 = arith.mulf %168, %170 : vector<32x32xf32>
    %172 = arith.addf %167, %171 : vector<32x32xf32>
    %173 = vector.extract_strided_slice %141 {offsets = [0, 192], sizes = [32, 32], strides = [1, 1]} : vector<32x256xf32> to vector<32x32xf32>
    %174 = vector.extract_strided_slice %6 {offsets = [0, 6], sizes = [32, 1], strides = [1, 1]} : vector<32x8xf32> to vector<32x1xf32>
    %175 = vector.broadcast %174 : vector<32x1xf32> to vector<32x32xf32>
    %176 = arith.mulf %173, %175 : vector<32x32xf32>
    %177 = arith.addf %172, %176 : vector<32x32xf32>
    %178 = vector.extract_strided_slice %141 {offsets = [0, 224], sizes = [32, 32], strides = [1, 1]} : vector<32x256xf32> to vector<32x32xf32>
    %179 = vector.extract_strided_slice %6 {offsets = [0, 7], sizes = [32, 1], strides = [1, 1]} : vector<32x8xf32> to vector<32x1xf32>
    %180 = vector.broadcast %179 : vector<32x1xf32> to vector<32x32xf32>
    %181 = arith.mulf %178, %180 : vector<32x32xf32>
    %182 = arith.addf %177, %181 : vector<32x32xf32>
    %183 = math.tanh %182 : vector<32x32xf32>
    %184 = arith.mulf %108, %5 : vector<32x32xf32>
    %cst_77 = arith.constant 1.000000e+00 : f32
    %185 = vector.broadcast %cst_77 : f32 to vector<32x32xf32>
    %186 = arith.subf %185, %108 : vector<32x32xf32>
    %187 = arith.mulf %186, %183 : vector<32x32xf32>
    %188 = arith.addf %184, %187 : vector<32x32xf32>
    %c0_78 = arith.constant 0 : index
    %c0_79 = arith.constant 0 : index
    %189 = vector.load %arg11[%c0_78, %c0_79] : memref<32x32xf32, #tpu.memory_space<vmem>>, vector<32x32xf32>
    tpu.vector_store %arg11[%c0_78, %c0_79], %188 {strides = array<i32>} : memref<32x32xf32, #tpu.memory_space<vmem>>, vector<32x32xf32>,
    %c0_80 = arith.constant 0 : index
    %c0_81 = arith.constant 0 : index
    %c0_82 = arith.constant 0 : index
    %190 = vector.load %arg10[%c0_80, %c0_81, %c0_82] : memref<1x32x32xf32, #tpu.memory_space<vmem>>, vector<1x32x32xf32>
    %191 = vector.shape_cast %190 : vector<1x32x32xf32> to vector<32x32xf32>
    %192 = vector.shape_cast %188 : vector<32x32xf32> to vector<1x32x32xf32>
    tpu.vector_store %arg10[%c0_80, %c0_81, %c0_82], %192 {strides = array<i32>} : memref<1x32x32xf32, #tpu.memory_space<vmem>>, vector<1x32x32xf32>,
    return
  }
  func.func @transform_0(%arg0: i32) -> (i32, i32, i32) {
    %c0_i32 = arith.constant 0 : i32
    %c0_i32_0 = arith.constant 0 : i32
    %c0_i32_1 = arith.constant 0 : i32
    return %arg0, %c0_i32, %c0_i32_0 : i32, i32, i32
  }
  func.func @transform_1(%arg0: i32) -> (i32, i32, i32) {
    %c0_i32 = arith.constant 0 : i32
    %c0_i32_0 = arith.constant 0 : i32
    %c0_i32_1 = arith.constant 0 : i32
    %c0_i32_2 = arith.constant 0 : i32
    return %c0_i32, %c0_i32_0, %c0_i32_1 : i32, i32, i32
  }
  func.func @transform_2(%arg0: i32) -> (i32, i32) {
    %c0_i32 = arith.constant 0 : i32
    %c0_i32_0 = arith.constant 0 : i32
    %c0_i32_1 = arith.constant 0 : i32
    return %c0_i32, %c0_i32_0 : i32, i32
  }
  func.func @transform_3(%arg0: i32) -> (i32, i32, i32) {
    %c0_i32 = arith.constant 0 : i32
    %c0_i32_0 = arith.constant 0 : i32
    %c0_i32_1 = arith.constant 0 : i32
    %c0_i32_2 = arith.constant 0 : i32
    return %c0_i32, %c0_i32_0, %c0_i32_1 : i32, i32, i32
  }
  func.func @transform_4(%arg0: i32) -> (i32, i32, i32) {
    %c0_i32 = arith.constant 0 : i32
    %c0_i32_0 = arith.constant 0 : i32
    %c0_i32_1 = arith.constant 0 : i32
    %c0_i32_2 = arith.constant 0 : i32
    return %c0_i32, %c0_i32_0, %c0_i32_1 : i32, i32, i32
  }
  func.func @transform_5(%arg0: i32) -> (i32, i32) {
    %c0_i32 = arith.constant 0 : i32
    %c0_i32_0 = arith.constant 0 : i32
    %c0_i32_1 = arith.constant 0 : i32
    return %c0_i32, %c0_i32_0 : i32, i32
  }
  func.func @transform_6(%arg0: i32) -> (i32, i32, i32) {
    %c0_i32 = arith.constant 0 : i32
    %c0_i32_0 = arith.constant 0 : i32
    %c0_i32_1 = arith.constant 0 : i32
    %c0_i32_2 = arith.constant 0 : i32
    return %c0_i32, %c0_i32_0, %c0_i32_1 : i32, i32, i32
  }
  func.func @transform_7(%arg0: i32) -> (i32, i32, i32) {
    %c0_i32 = arith.constant 0 : i32
    %c0_i32_0 = arith.constant 0 : i32
    %c0_i32_1 = arith.constant 0 : i32
    %c0_i32_2 = arith.constant 0 : i32
    return %c0_i32, %c0_i32_0, %c0_i32_1 : i32, i32, i32
  }
  func.func @transform_8(%arg0: i32) -> (i32, i32) {
    %c0_i32 = arith.constant 0 : i32
    %c0_i32_0 = arith.constant 0 : i32
    %c0_i32_1 = arith.constant 0 : i32
    return %c0_i32, %c0_i32_0 : i32, i32
  }
  func.func @transform_9(%arg0: i32) -> (i32, i32, i32) {
    %c0_i32 = arith.constant 0 : i32
    %c0_i32_0 = arith.constant 0 : i32
    %c0_i32_1 = arith.constant 0 : i32
    return %arg0, %c0_i32, %c0_i32_0 : i32, i32, i32
  }
}

module attributes {stable_mosaic.version = 11 : i64} {
  func.func @kernel(%arg0: i32, %arg1: memref<1x32x32xf32, #tpu.memory_space<vmem>>, %arg2: memref<3x16x16xf32, #tpu.memory_space<vmem>>, %arg3: memref<32x8xf32, #tpu.memory_space<vmem>>, %arg4: memref<3x32x512xf32, #tpu.memory_space<vmem>>, %arg5: memref<3x32x512xf32, #tpu.memory_space<vmem>>, %arg6: memref<32x64xf32, #tpu.memory_space<vmem>>, %arg7: memref<3x32x256xf32, #tpu.memory_space<vmem>>, %arg8: memref<3x32x256xf32, #tpu.memory_space<vmem>>, %arg9: memref<32x32xf32, #tpu.memory_space<vmem>>, %arg10: memref<32x32xf32, #tpu.memory_space<vmem>>, %arg11: memref<32x32xf32, #tpu.memory_space<vmem>>) attributes {dimension_semantics = [#tpu.dimension_semantics<arbitrary>], iteration_bounds = array<i64: 8>, scalar_prefetch = 0 : i64, scratch_operands = 1 : i64, tpu.core_type = #tpu.core_type<tc>, window_params = [{transform_indices = @transform_0, window_bounds = array<i64: 1, 32, 32>}, {pipeline_mode = #tpu.pipeline_mode<synchronous>, transform_indices = @transform_1, window_bounds = array<i64: 3, 16, 16>}, {pipeline_mode = #tpu.pipeline_mode<synchronous>, transform_indices = @transform_2, window_bounds = array<i64: 32, 8>}, {pipeline_mode = #tpu.pipeline_mode<synchronous>, transform_indices = @transform_3, window_bounds = array<i64: 3, 32, 512>}, {pipeline_mode = #tpu.pipeline_mode<synchronous>, transform_indices = @transform_4, window_bounds = array<i64: 3, 32, 512>}, {pipeline_mode = #tpu.pipeline_mode<synchronous>, transform_indices = @transform_5, window_bounds = array<i64: 32, 64>}, {pipeline_mode = #tpu.pipeline_mode<synchronous>, transform_indices = @transform_6, window_bounds = array<i64: 3, 32, 256>}, {pipeline_mode = #tpu.pipeline_mode<synchronous>, transform_indices = @transform_7, window_bounds = array<i64: 3, 32, 256>}, {pipeline_mode = #tpu.pipeline_mode<synchronous>, transform_indices = @transform_8, window_bounds = array<i64: 32, 32>}, {pipeline_mode = #tpu.pipeline_mode<synchronous>, transform_indices = @transform_9, window_bounds = array<i64: 32, 32>}]} {
    %c0_i32 = arith.constant 0 : i32
    %0 = arith.cmpi eq, %arg0, %c0_i32 : i32
    %1 = arith.extui %0 : i1 to i32
    %c0_i32_0 = arith.constant 0 : i32
    %2 = arith.cmpi ne, %1, %c0_i32_0 : i32
    scf.if %2 {
      %cst_82 = arith.constant 0.000000e+00 : f32
      %191 = vector.broadcast %cst_82 : f32 to vector<32x32xf32>
      %c0_83 = arith.constant 0 : index
      %c0_84 = arith.constant 0 : index
      %192 = vector.load %arg11[%c0_83, %c0_84] : memref<32x32xf32, #tpu.memory_space<vmem>>, vector<32x32xf32>
      tpu.vector_store %arg11[%c0_83, %c0_84], %191 {strides = array<i32>} : memref<32x32xf32, #tpu.memory_space<vmem>>, vector<32x32xf32>,
    } else {
    }
    %c0 = arith.constant 0 : index
    %c0_1 = arith.constant 0 : index
    %c0_2 = arith.constant 0 : index
    %3 = vector.load %arg1[%c0, %c0_1, %c0_2] : memref<1x32x32xf32, #tpu.memory_space<vmem>>, vector<1x32x32xf32>
    %4 = vector.shape_cast %3 : vector<1x32x32xf32> to vector<32x32xf32>
    %c0_3 = arith.constant 0 : index
    %c0_4 = arith.constant 0 : index
    %5 = vector.load %arg11[%c0_3, %c0_4] : memref<32x32xf32, #tpu.memory_space<vmem>>, vector<32x32xf32>
    %c0_5 = arith.constant 0 : index
    %c0_6 = arith.constant 0 : index
    %6 = vector.load %arg3[%c0_5, %c0_6] : memref<32x8xf32, #tpu.memory_space<vmem>>, vector<32x8xf32>
    %c0_7 = arith.constant 0 : index
    %c0_8 = arith.constant 0 : index
    %c0_9 = arith.constant 0 : index
    %7 = vector.load %arg2[%c0_7, %c0_8, %c0_9] : memref<3x16x16xf32, #tpu.memory_space<vmem>>, vector<1x16x16xf32>
    %8 = vector.shape_cast %7 : vector<1x16x16xf32> to vector<16x16xf32>
    %9 = vector.shape_cast %8 : vector<16x16xf32> to vector<1x16x16xf32>
    %10 = vector.shape_cast %9 : vector<1x16x16xf32> to vector<1x16x16xf32>
    %11 = vector.broadcast %10 : vector<1x16x16xf32> to vector<2x16x16xf32>
    %c1 = arith.constant 1 : index
    %c0_10 = arith.constant 0 : index
    %c0_11 = arith.constant 0 : index
    %12 = vector.load %arg2[%c1, %c0_10, %c0_11] : memref<3x16x16xf32, #tpu.memory_space<vmem>>, vector<1x16x16xf32>
    %13 = vector.shape_cast %12 : vector<1x16x16xf32> to vector<16x16xf32>
    %14 = vector.shape_cast %13 : vector<16x16xf32> to vector<1x16x16xf32>
    %15 = vector.shape_cast %14 : vector<1x16x16xf32> to vector<1x16x16xf32>
    %16 = vector.broadcast %15 : vector<1x16x16xf32> to vector<2x16x16xf32>
    %c2 = arith.constant 2 : index
    %c0_12 = arith.constant 0 : index
    %c0_13 = arith.constant 0 : index
    %17 = vector.load %arg2[%c2, %c0_12, %c0_13] : memref<3x16x16xf32, #tpu.memory_space<vmem>>, vector<1x16x16xf32>
    %18 = vector.shape_cast %17 : vector<1x16x16xf32> to vector<16x16xf32>
    %19 = vector.shape_cast %18 : vector<16x16xf32> to vector<1x16x16xf32>
    %20 = vector.shape_cast %19 : vector<1x16x16xf32> to vector<1x16x16xf32>
    %21 = vector.broadcast %20 : vector<1x16x16xf32> to vector<2x16x16xf32>
    %22 = vector.shape_cast %4 : vector<32x32xf32> to vector<2x16x32xf32>
    "tpu.trace_start"() <{level = 10 : i32, message = "bnm,bmf->bnf"}> : () -> ()
    %cst = arith.constant dense<0.000000e+00> : vector<2x16x32xf32>
    %23 = tpu.matmul %11, %22, %cst {dimension_numbers = #tpu.dot_dimension_numbers<[2], [1], [1], [2], [0, 0, 0, 1, 1, 2], [0], [0]>} : vector<2x16x16xf32>, vector<2x16x32xf32>, vector<2x16x32xf32> -> vector<2x16x32xf32>
    "tpu.trace_stop"() : () -> ()
    %24 = vector.shape_cast %23 : vector<2x16x32xf32> to vector<32x32xf32>
    "tpu.trace_start"() <{level = 10 : i32, message = "bnm,bmf->bnf"}> : () -> ()
    %cst_14 = arith.constant dense<0.000000e+00> : vector<2x16x32xf32>
    %25 = tpu.matmul %16, %22, %cst_14 {dimension_numbers = #tpu.dot_dimension_numbers<[2], [1], [1], [2], [0, 0, 0, 1, 1, 2], [0], [0]>} : vector<2x16x16xf32>, vector<2x16x32xf32>, vector<2x16x32xf32> -> vector<2x16x32xf32>
    "tpu.trace_stop"() : () -> ()
    %26 = vector.shape_cast %25 : vector<2x16x32xf32> to vector<32x32xf32>
    "tpu.trace_start"() <{level = 10 : i32, message = "bnm,bmf->bnf"}> : () -> ()
    %cst_15 = arith.constant dense<0.000000e+00> : vector<2x16x32xf32>
    %27 = tpu.matmul %21, %22, %cst_15 {dimension_numbers = #tpu.dot_dimension_numbers<[2], [1], [1], [2], [0, 0, 0, 1, 1, 2], [0], [0]>} : vector<2x16x16xf32>, vector<2x16x32xf32>, vector<2x16x32xf32> -> vector<2x16x32xf32>
    "tpu.trace_stop"() : () -> ()
    %28 = vector.shape_cast %27 : vector<2x16x32xf32> to vector<32x32xf32>
    %29 = vector.shape_cast %5 : vector<32x32xf32> to vector<2x16x32xf32>
    "tpu.trace_start"() <{level = 10 : i32, message = "bnm,bmf->bnf"}> : () -> ()
    %cst_16 = arith.constant dense<0.000000e+00> : vector<2x16x32xf32>
    %30 = tpu.matmul %11, %29, %cst_16 {dimension_numbers = #tpu.dot_dimension_numbers<[2], [1], [1], [2], [0, 0, 0, 1, 1, 2], [0], [0]>} : vector<2x16x16xf32>, vector<2x16x32xf32>, vector<2x16x32xf32> -> vector<2x16x32xf32>
    "tpu.trace_stop"() : () -> ()
    %31 = vector.shape_cast %30 : vector<2x16x32xf32> to vector<32x32xf32>
    "tpu.trace_start"() <{level = 10 : i32, message = "bnm,bmf->bnf"}> : () -> ()
    %cst_17 = arith.constant dense<0.000000e+00> : vector<2x16x32xf32>
    %32 = tpu.matmul %16, %29, %cst_17 {dimension_numbers = #tpu.dot_dimension_numbers<[2], [1], [1], [2], [0, 0, 0, 1, 1, 2], [0], [0]>} : vector<2x16x16xf32>, vector<2x16x32xf32>, vector<2x16x32xf32> -> vector<2x16x32xf32>
    "tpu.trace_stop"() : () -> ()
    %33 = vector.shape_cast %32 : vector<2x16x32xf32> to vector<32x32xf32>
    "tpu.trace_start"() <{level = 10 : i32, message = "bnm,bmf->bnf"}> : () -> ()
    %cst_18 = arith.constant dense<0.000000e+00> : vector<2x16x32xf32>
    %34 = tpu.matmul %21, %29, %cst_18 {dimension_numbers = #tpu.dot_dimension_numbers<[2], [1], [1], [2], [0, 0, 0, 1, 1, 2], [0], [0]>} : vector<2x16x16xf32>, vector<2x16x32xf32>, vector<2x16x32xf32> -> vector<2x16x32xf32>
    "tpu.trace_stop"() : () -> ()
    %35 = vector.shape_cast %34 : vector<2x16x32xf32> to vector<32x32xf32>
    %cst_19 = arith.constant 0.000000e+00 : f32
    %36 = vector.broadcast %cst_19 : f32 to vector<32x512xf32>
    %c0_20 = arith.constant 0 : index
    %c0_21 = arith.constant 0 : index
    %c0_22 = arith.constant 0 : index
    %37 = vector.load %arg4[%c0_20, %c0_21, %c0_22] : memref<3x32x512xf32, #tpu.memory_space<vmem>>, vector<1x32x512xf32>
    %38 = vector.shape_cast %37 : vector<1x32x512xf32> to vector<32x512xf32>
    %cst_23 = arith.constant dense<0.000000e+00> : vector<32x512xf32>
    %39 = tpu.matmul %24, %38, %cst_23 {dimension_numbers = #tpu.dot_dimension_numbers<[1], [0], [0], [1], [0, 0, 1, 1], [], []>} : vector<32x32xf32>, vector<32x512xf32>, vector<32x512xf32> -> vector<32x512xf32>
    %40 = arith.addf %36, %39 : vector<32x512xf32>
    %c0_24 = arith.constant 0 : index
    %c0_25 = arith.constant 0 : index
    %c0_26 = arith.constant 0 : index
    %41 = vector.load %arg5[%c0_24, %c0_25, %c0_26] : memref<3x32x512xf32, #tpu.memory_space<vmem>>, vector<1x32x512xf32>
    %42 = vector.shape_cast %41 : vector<1x32x512xf32> to vector<32x512xf32>
    %cst_27 = arith.constant dense<0.000000e+00> : vector<32x512xf32>
    %43 = tpu.matmul %31, %42, %cst_27 {dimension_numbers = #tpu.dot_dimension_numbers<[1], [0], [0], [1], [0, 0, 1, 1], [], []>} : vector<32x32xf32>, vector<32x512xf32>, vector<32x512xf32> -> vector<32x512xf32>
    %44 = arith.addf %40, %43 : vector<32x512xf32>
    %c1_28 = arith.constant 1 : index
    %c0_29 = arith.constant 0 : index
    %c0_30 = arith.constant 0 : index
    %45 = vector.load %arg4[%c1_28, %c0_29, %c0_30] : memref<3x32x512xf32, #tpu.memory_space<vmem>>, vector<1x32x512xf32>
    %46 = vector.shape_cast %45 : vector<1x32x512xf32> to vector<32x512xf32>
    %cst_31 = arith.constant dense<0.000000e+00> : vector<32x512xf32>
    %47 = tpu.matmul %26, %46, %cst_31 {dimension_numbers = #tpu.dot_dimension_numbers<[1], [0], [0], [1], [0, 0, 1, 1], [], []>} : vector<32x32xf32>, vector<32x512xf32>, vector<32x512xf32> -> vector<32x512xf32>
    %48 = arith.addf %44, %47 : vector<32x512xf32>
    %c1_32 = arith.constant 1 : index
    %c0_33 = arith.constant 0 : index
    %c0_34 = arith.constant 0 : index
    %49 = vector.load %arg5[%c1_32, %c0_33, %c0_34] : memref<3x32x512xf32, #tpu.memory_space<vmem>>, vector<1x32x512xf32>
    %50 = vector.shape_cast %49 : vector<1x32x512xf32> to vector<32x512xf32>
    %cst_35 = arith.constant dense<0.000000e+00> : vector<32x512xf32>
    %51 = tpu.matmul %33, %50, %cst_35 {dimension_numbers = #tpu.dot_dimension_numbers<[1], [0], [0], [1], [0, 0, 1, 1], [], []>} : vector<32x32xf32>, vector<32x512xf32>, vector<32x512xf32> -> vector<32x512xf32>
    %52 = arith.addf %48, %51 : vector<32x512xf32>
    %c2_36 = arith.constant 2 : index
    %c0_37 = arith.constant 0 : index
    %c0_38 = arith.constant 0 : index
    %53 = vector.load %arg4[%c2_36, %c0_37, %c0_38] : memref<3x32x512xf32, #tpu.memory_space<vmem>>, vector<1x32x512xf32>
    %54 = vector.shape_cast %53 : vector<1x32x512xf32> to vector<32x512xf32>
    %cst_39 = arith.constant dense<0.000000e+00> : vector<32x512xf32>
    %55 = tpu.matmul %28, %54, %cst_39 {dimension_numbers = #tpu.dot_dimension_numbers<[1], [0], [0], [1], [0, 0, 1, 1], [], []>} : vector<32x32xf32>, vector<32x512xf32>, vector<32x512xf32> -> vector<32x512xf32>
    %56 = arith.addf %52, %55 : vector<32x512xf32>
    %c2_40 = arith.constant 2 : index
    %c0_41 = arith.constant 0 : index
    %c0_42 = arith.constant 0 : index
    %57 = vector.load %arg5[%c2_40, %c0_41, %c0_42] : memref<3x32x512xf32, #tpu.memory_space<vmem>>, vector<1x32x512xf32>
    %58 = vector.shape_cast %57 : vector<1x32x512xf32> to vector<32x512xf32>
    %cst_43 = arith.constant dense<0.000000e+00> : vector<32x512xf32>
    %59 = tpu.matmul %35, %58, %cst_43 {dimension_numbers = #tpu.dot_dimension_numbers<[1], [0], [0], [1], [0, 0, 1, 1], [], []>} : vector<32x32xf32>, vector<32x512xf32>, vector<32x512xf32> -> vector<32x512xf32>
    %60 = arith.addf %56, %59 : vector<32x512xf32>
    %c0_44 = arith.constant 0 : index
    %c0_45 = arith.constant 0 : index
    %61 = vector.load %arg6[%c0_44, %c0_45] : memref<32x64xf32, #tpu.memory_space<vmem>>, vector<32x64xf32>
    %62 = vector.extract_strided_slice %60 {offsets = [0, 0], sizes = [32, 64], strides = [1, 1]} : vector<32x512xf32> to vector<32x64xf32>
    %63 = vector.extract_strided_slice %6 {offsets = [0, 0], sizes = [32, 1], strides = [1, 1]} : vector<32x8xf32> to vector<32x1xf32>
    %64 = vector.broadcast %63 : vector<32x1xf32> to vector<32x64xf32>
    %65 = arith.mulf %62, %64 : vector<32x64xf32>
    %66 = arith.addf %61, %65 : vector<32x64xf32>
    %67 = vector.extract_strided_slice %60 {offsets = [0, 64], sizes = [32, 64], strides = [1, 1]} : vector<32x512xf32> to vector<32x64xf32>
    %68 = vector.extract_strided_slice %6 {offsets = [0, 1], sizes = [32, 1], strides = [1, 1]} : vector<32x8xf32> to vector<32x1xf32>
    %69 = vector.broadcast %68 : vector<32x1xf32> to vector<32x64xf32>
    %70 = arith.mulf %67, %69 : vector<32x64xf32>
    %71 = arith.addf %66, %70 : vector<32x64xf32>
    %72 = vector.extract_strided_slice %60 {offsets = [0, 128], sizes = [32, 64], strides = [1, 1]} : vector<32x512xf32> to vector<32x64xf32>
    %73 = vector.extract_strided_slice %6 {offsets = [0, 2], sizes = [32, 1], strides = [1, 1]} : vector<32x8xf32> to vector<32x1xf32>
    %74 = vector.broadcast %73 : vector<32x1xf32> to vector<32x64xf32>
    %75 = arith.mulf %72, %74 : vector<32x64xf32>
    %76 = arith.addf %71, %75 : vector<32x64xf32>
    %77 = vector.extract_strided_slice %60 {offsets = [0, 192], sizes = [32, 64], strides = [1, 1]} : vector<32x512xf32> to vector<32x64xf32>
    %78 = vector.extract_strided_slice %6 {offsets = [0, 3], sizes = [32, 1], strides = [1, 1]} : vector<32x8xf32> to vector<32x1xf32>
    %79 = vector.broadcast %78 : vector<32x1xf32> to vector<32x64xf32>
    %80 = arith.mulf %77, %79 : vector<32x64xf32>
    %81 = arith.addf %76, %80 : vector<32x64xf32>
    %82 = vector.extract_strided_slice %60 {offsets = [0, 256], sizes = [32, 64], strides = [1, 1]} : vector<32x512xf32> to vector<32x64xf32>
    %83 = vector.extract_strided_slice %6 {offsets = [0, 4], sizes = [32, 1], strides = [1, 1]} : vector<32x8xf32> to vector<32x1xf32>
    %84 = vector.broadcast %83 : vector<32x1xf32> to vector<32x64xf32>
    %85 = arith.mulf %82, %84 : vector<32x64xf32>
    %86 = arith.addf %81, %85 : vector<32x64xf32>
    %87 = vector.extract_strided_slice %60 {offsets = [0, 320], sizes = [32, 64], strides = [1, 1]} : vector<32x512xf32> to vector<32x64xf32>
    %88 = vector.extract_strided_slice %6 {offsets = [0, 5], sizes = [32, 1], strides = [1, 1]} : vector<32x8xf32> to vector<32x1xf32>
    %89 = vector.broadcast %88 : vector<32x1xf32> to vector<32x64xf32>
    %90 = arith.mulf %87, %89 : vector<32x64xf32>
    %91 = arith.addf %86, %90 : vector<32x64xf32>
    %92 = vector.extract_strided_slice %60 {offsets = [0, 384], sizes = [32, 64], strides = [1, 1]} : vector<32x512xf32> to vector<32x64xf32>
    %93 = vector.extract_strided_slice %6 {offsets = [0, 6], sizes = [32, 1], strides = [1, 1]} : vector<32x8xf32> to vector<32x1xf32>
    %94 = vector.broadcast %93 : vector<32x1xf32> to vector<32x64xf32>
    %95 = arith.mulf %92, %94 : vector<32x64xf32>
    %96 = arith.addf %91, %95 : vector<32x64xf32>
    %97 = vector.extract_strided_slice %60 {offsets = [0, 448], sizes = [32, 64], strides = [1, 1]} : vector<32x512xf32> to vector<32x64xf32>
    %98 = vector.extract_strided_slice %6 {offsets = [0, 7], sizes = [32, 1], strides = [1, 1]} : vector<32x8xf32> to vector<32x1xf32>
    %99 = vector.broadcast %98 : vector<32x1xf32> to vector<32x64xf32>
    %100 = arith.mulf %97, %99 : vector<32x64xf32>
    %101 = arith.addf %96, %100 : vector<32x64xf32>
    %102 = arith.negf %101 : vector<32x64xf32>
    %103 = math.exp %102 : vector<32x64xf32>
    %cst_46 = arith.constant 1.000000e+00 : f32
    %104 = vector.broadcast %cst_46 : f32 to vector<32x64xf32>
    %105 = arith.addf %104, %103 : vector<32x64xf32>
    %106 = arith.divf %104, %105 : vector<32x64xf32>
    %107 = vector.extract_strided_slice %106 {offsets = [0, 0], sizes = [32, 32], strides = [1, 1]} : vector<32x64xf32> to vector<32x32xf32>
    %108 = vector.extract_strided_slice %106 {offsets = [0, 32], sizes = [32, 32], strides = [1, 1]} : vector<32x64xf32> to vector<32x32xf32>
    %109 = arith.mulf %107, %5 : vector<32x32xf32>
    %110 = vector.shape_cast %109 : vector<32x32xf32> to vector<2x16x32xf32>
    "tpu.trace_start"() <{level = 10 : i32, message = "bnm,bmf->bnf"}> : () -> ()
    %cst_47 = arith.constant dense<0.000000e+00> : vector<2x16x32xf32>
    %111 = tpu.matmul %11, %110, %cst_47 {dimension_numbers = #tpu.dot_dimension_numbers<[2], [1], [1], [2], [0, 0, 0, 1, 1, 2], [0], [0]>} : vector<2x16x16xf32>, vector<2x16x32xf32>, vector<2x16x32xf32> -> vector<2x16x32xf32>
    "tpu.trace_stop"() : () -> ()
    %112 = vector.shape_cast %111 : vector<2x16x32xf32> to vector<32x32xf32>
    "tpu.trace_start"() <{level = 10 : i32, message = "bnm,bmf->bnf"}> : () -> ()
    %cst_48 = arith.constant dense<0.000000e+00> : vector<2x16x32xf32>
    %113 = tpu.matmul %16, %110, %cst_48 {dimension_numbers = #tpu.dot_dimension_numbers<[2], [1], [1], [2], [0, 0, 0, 1, 1, 2], [0], [0]>} : vector<2x16x16xf32>, vector<2x16x32xf32>, vector<2x16x32xf32> -> vector<2x16x32xf32>
    "tpu.trace_stop"() : () -> ()
    %114 = vector.shape_cast %113 : vector<2x16x32xf32> to vector<32x32xf32>
    "tpu.trace_start"() <{level = 10 : i32, message = "bnm,bmf->bnf"}> : () -> ()
    %cst_49 = arith.constant dense<0.000000e+00> : vector<2x16x32xf32>
    %115 = tpu.matmul %21, %110, %cst_49 {dimension_numbers = #tpu.dot_dimension_numbers<[2], [1], [1], [2], [0, 0, 0, 1, 1, 2], [0], [0]>} : vector<2x16x16xf32>, vector<2x16x32xf32>, vector<2x16x32xf32> -> vector<2x16x32xf32>
    "tpu.trace_stop"() : () -> ()
    %116 = vector.shape_cast %115 : vector<2x16x32xf32> to vector<32x32xf32>
    %cst_50 = arith.constant 0.000000e+00 : f32
    %117 = vector.broadcast %cst_50 : f32 to vector<32x256xf32>
    %c0_51 = arith.constant 0 : index
    %c0_52 = arith.constant 0 : index
    %c0_53 = arith.constant 0 : index
    %118 = vector.load %arg7[%c0_51, %c0_52, %c0_53] : memref<3x32x256xf32, #tpu.memory_space<vmem>>, vector<1x32x256xf32>
    %119 = vector.shape_cast %118 : vector<1x32x256xf32> to vector<32x256xf32>
    %cst_54 = arith.constant dense<0.000000e+00> : vector<32x256xf32>
    %120 = tpu.matmul %24, %119, %cst_54 {dimension_numbers = #tpu.dot_dimension_numbers<[1], [0], [0], [1], [0, 0, 1, 1], [], []>} : vector<32x32xf32>, vector<32x256xf32>, vector<32x256xf32> -> vector<32x256xf32>
    %121 = arith.addf %117, %120 : vector<32x256xf32>
    %c0_55 = arith.constant 0 : index
    %c0_56 = arith.constant 0 : index
    %c0_57 = arith.constant 0 : index
    %122 = vector.load %arg8[%c0_55, %c0_56, %c0_57] : memref<3x32x256xf32, #tpu.memory_space<vmem>>, vector<1x32x256xf32>
    %123 = vector.shape_cast %122 : vector<1x32x256xf32> to vector<32x256xf32>
    %cst_58 = arith.constant dense<0.000000e+00> : vector<32x256xf32>
    %124 = tpu.matmul %112, %123, %cst_58 {dimension_numbers = #tpu.dot_dimension_numbers<[1], [0], [0], [1], [0, 0, 1, 1], [], []>} : vector<32x32xf32>, vector<32x256xf32>, vector<32x256xf32> -> vector<32x256xf32>
    %125 = arith.addf %121, %124 : vector<32x256xf32>
    %c1_59 = arith.constant 1 : index
    %c0_60 = arith.constant 0 : index
    %c0_61 = arith.constant 0 : index
    %126 = vector.load %arg7[%c1_59, %c0_60, %c0_61] : memref<3x32x256xf32, #tpu.memory_space<vmem>>, vector<1x32x256xf32>
    %127 = vector.shape_cast %126 : vector<1x32x256xf32> to vector<32x256xf32>
    %cst_62 = arith.constant dense<0.000000e+00> : vector<32x256xf32>
    %128 = tpu.matmul %26, %127, %cst_62 {dimension_numbers = #tpu.dot_dimension_numbers<[1], [0], [0], [1], [0, 0, 1, 1], [], []>} : vector<32x32xf32>, vector<32x256xf32>, vector<32x256xf32> -> vector<32x256xf32>
    %129 = arith.addf %125, %128 : vector<32x256xf32>
    %c1_63 = arith.constant 1 : index
    %c0_64 = arith.constant 0 : index
    %c0_65 = arith.constant 0 : index
    %130 = vector.load %arg8[%c1_63, %c0_64, %c0_65] : memref<3x32x256xf32, #tpu.memory_space<vmem>>, vector<1x32x256xf32>
    %131 = vector.shape_cast %130 : vector<1x32x256xf32> to vector<32x256xf32>
    %cst_66 = arith.constant dense<0.000000e+00> : vector<32x256xf32>
    %132 = tpu.matmul %114, %131, %cst_66 {dimension_numbers = #tpu.dot_dimension_numbers<[1], [0], [0], [1], [0, 0, 1, 1], [], []>} : vector<32x32xf32>, vector<32x256xf32>, vector<32x256xf32> -> vector<32x256xf32>
    %133 = arith.addf %129, %132 : vector<32x256xf32>
    %c2_67 = arith.constant 2 : index
    %c0_68 = arith.constant 0 : index
    %c0_69 = arith.constant 0 : index
    %134 = vector.load %arg7[%c2_67, %c0_68, %c0_69] : memref<3x32x256xf32, #tpu.memory_space<vmem>>, vector<1x32x256xf32>
    %135 = vector.shape_cast %134 : vector<1x32x256xf32> to vector<32x256xf32>
    %cst_70 = arith.constant dense<0.000000e+00> : vector<32x256xf32>
    %136 = tpu.matmul %28, %135, %cst_70 {dimension_numbers = #tpu.dot_dimension_numbers<[1], [0], [0], [1], [0, 0, 1, 1], [], []>} : vector<32x32xf32>, vector<32x256xf32>, vector<32x256xf32> -> vector<32x256xf32>
    %137 = arith.addf %133, %136 : vector<32x256xf32>
    %c2_71 = arith.constant 2 : index
    %c0_72 = arith.constant 0 : index
    %c0_73 = arith.constant 0 : index
    %138 = vector.load %arg8[%c2_71, %c0_72, %c0_73] : memref<3x32x256xf32, #tpu.memory_space<vmem>>, vector<1x32x256xf32>
    %139 = vector.shape_cast %138 : vector<1x32x256xf32> to vector<32x256xf32>
    %cst_74 = arith.constant dense<0.000000e+00> : vector<32x256xf32>
    %140 = tpu.matmul %116, %139, %cst_74 {dimension_numbers = #tpu.dot_dimension_numbers<[1], [0], [0], [1], [0, 0, 1, 1], [], []>} : vector<32x32xf32>, vector<32x256xf32>, vector<32x256xf32> -> vector<32x256xf32>
    %141 = arith.addf %137, %140 : vector<32x256xf32>
    %c0_75 = arith.constant 0 : index
    %c0_76 = arith.constant 0 : index
    %142 = vector.load %arg9[%c0_75, %c0_76] : memref<32x32xf32, #tpu.memory_space<vmem>>, vector<32x32xf32>
    %143 = vector.extract_strided_slice %141 {offsets = [0, 0], sizes = [32, 32], strides = [1, 1]} : vector<32x256xf32> to vector<32x32xf32>
    %144 = vector.extract_strided_slice %6 {offsets = [0, 0], sizes = [32, 1], strides = [1, 1]} : vector<32x8xf32> to vector<32x1xf32>
    %145 = vector.broadcast %144 : vector<32x1xf32> to vector<32x32xf32>
    %146 = arith.mulf %143, %145 : vector<32x32xf32>
    %147 = arith.addf %142, %146 : vector<32x32xf32>
    %148 = vector.extract_strided_slice %141 {offsets = [0, 32], sizes = [32, 32], strides = [1, 1]} : vector<32x256xf32> to vector<32x32xf32>
    %149 = vector.extract_strided_slice %6 {offsets = [0, 1], sizes = [32, 1], strides = [1, 1]} : vector<32x8xf32> to vector<32x1xf32>
    %150 = vector.broadcast %149 : vector<32x1xf32> to vector<32x32xf32>
    %151 = arith.mulf %148, %150 : vector<32x32xf32>
    %152 = arith.addf %147, %151 : vector<32x32xf32>
    %153 = vector.extract_strided_slice %141 {offsets = [0, 64], sizes = [32, 32], strides = [1, 1]} : vector<32x256xf32> to vector<32x32xf32>
    %154 = vector.extract_strided_slice %6 {offsets = [0, 2], sizes = [32, 1], strides = [1, 1]} : vector<32x8xf32> to vector<32x1xf32>
    %155 = vector.broadcast %154 : vector<32x1xf32> to vector<32x32xf32>
    %156 = arith.mulf %153, %155 : vector<32x32xf32>
    %157 = arith.addf %152, %156 : vector<32x32xf32>
    %158 = vector.extract_strided_slice %141 {offsets = [0, 96], sizes = [32, 32], strides = [1, 1]} : vector<32x256xf32> to vector<32x32xf32>
    %159 = vector.extract_strided_slice %6 {offsets = [0, 3], sizes = [32, 1], strides = [1, 1]} : vector<32x8xf32> to vector<32x1xf32>
    %160 = vector.broadcast %159 : vector<32x1xf32> to vector<32x32xf32>
    %161 = arith.mulf %158, %160 : vector<32x32xf32>
    %162 = arith.addf %157, %161 : vector<32x32xf32>
    %163 = vector.extract_strided_slice %141 {offsets = [0, 128], sizes = [32, 32], strides = [1, 1]} : vector<32x256xf32> to vector<32x32xf32>
    %164 = vector.extract_strided_slice %6 {offsets = [0, 4], sizes = [32, 1], strides = [1, 1]} : vector<32x8xf32> to vector<32x1xf32>
    %165 = vector.broadcast %164 : vector<32x1xf32> to vector<32x32xf32>
    %166 = arith.mulf %163, %165 : vector<32x32xf32>
    %167 = arith.addf %162, %166 : vector<32x32xf32>
    %168 = vector.extract_strided_slice %141 {offsets = [0, 160], sizes = [32, 32], strides = [1, 1]} : vector<32x256xf32> to vector<32x32xf32>
    %169 = vector.extract_strided_slice %6 {offsets = [0, 5], sizes = [32, 1], strides = [1, 1]} : vector<32x8xf32> to vector<32x1xf32>
    %170 = vector.broadcast %169 : vector<32x1xf32> to vector<32x32xf32>
    %171 = arith.mulf %168, %170 : vector<32x32xf32>
    %172 = arith.addf %167, %171 : vector<32x32xf32>
    %173 = vector.extract_strided_slice %141 {offsets = [0, 192], sizes = [32, 32], strides = [1, 1]} : vector<32x256xf32> to vector<32x32xf32>
    %174 = vector.extract_strided_slice %6 {offsets = [0, 6], sizes = [32, 1], strides = [1, 1]} : vector<32x8xf32> to vector<32x1xf32>
    %175 = vector.broadcast %174 : vector<32x1xf32> to vector<32x32xf32>
    %176 = arith.mulf %173, %175 : vector<32x32xf32>
    %177 = arith.addf %172, %176 : vector<32x32xf32>
    %178 = vector.extract_strided_slice %141 {offsets = [0, 224], sizes = [32, 32], strides = [1, 1]} : vector<32x256xf32> to vector<32x32xf32>
    %179 = vector.extract_strided_slice %6 {offsets = [0, 7], sizes = [32, 1], strides = [1, 1]} : vector<32x8xf32> to vector<32x1xf32>
    %180 = vector.broadcast %179 : vector<32x1xf32> to vector<32x32xf32>
    %181 = arith.mulf %178, %180 : vector<32x32xf32>
    %182 = arith.addf %177, %181 : vector<32x32xf32>
    %183 = math.tanh %182 : vector<32x32xf32>
    %184 = arith.mulf %108, %5 : vector<32x32xf32>
    %cst_77 = arith.constant 1.000000e+00 : f32
    %185 = vector.broadcast %cst_77 : f32 to vector<32x32xf32>
    %186 = arith.subf %185, %108 : vector<32x32xf32>
    %187 = arith.mulf %186, %183 : vector<32x32xf32>
    %188 = arith.addf %184, %187 : vector<32x32xf32>
    %c0_78 = arith.constant 0 : index
    %c0_79 = arith.constant 0 : index
    %189 = vector.load %arg11[%c0_78, %c0_79] : memref<32x32xf32, #tpu.memory_space<vmem>>, vector<32x32xf32>
    tpu.vector_store %arg11[%c0_78, %c0_79], %188 {strides = array<i32>} : memref<32x32xf32, #tpu.memory_space<vmem>>, vector<32x32xf32>,
    %c0_80 = arith.constant 0 : index
    %c0_81 = arith.constant 0 : index
    %190 = vector.load %arg10[%c0_80, %c0_81] : memref<32x32xf32, #tpu.memory_space<vmem>>, vector<32x32xf32>
    tpu.vector_store %arg10[%c0_80, %c0_81], %188 {strides = array<i32>} : memref<32x32xf32, #tpu.memory_space<vmem>>, vector<32x32xf32>,
    return
  }
  func.func @transform_0(%arg0: i32) -> (i32, i32, i32) {
    %c0_i32 = arith.constant 0 : i32
    %c0_i32_0 = arith.constant 0 : i32
    %c0_i32_1 = arith.constant 0 : i32
    return %arg0, %c0_i32, %c0_i32_0 : i32, i32, i32
  }
  func.func @transform_1(%arg0: i32) -> (i32, i32, i32) {
    %c0_i32 = arith.constant 0 : i32
    %c0_i32_0 = arith.constant 0 : i32
    %c0_i32_1 = arith.constant 0 : i32
    %c0_i32_2 = arith.constant 0 : i32
    return %c0_i32, %c0_i32_0, %c0_i32_1 : i32, i32, i32
  }
  func.func @transform_2(%arg0: i32) -> (i32, i32) {
    %c0_i32 = arith.constant 0 : i32
    %c0_i32_0 = arith.constant 0 : i32
    %c0_i32_1 = arith.constant 0 : i32
    return %c0_i32, %c0_i32_0 : i32, i32
  }
  func.func @transform_3(%arg0: i32) -> (i32, i32, i32) {
    %c0_i32 = arith.constant 0 : i32
    %c0_i32_0 = arith.constant 0 : i32
    %c0_i32_1 = arith.constant 0 : i32
    %c0_i32_2 = arith.constant 0 : i32
    return %c0_i32, %c0_i32_0, %c0_i32_1 : i32, i32, i32
  }
  func.func @transform_4(%arg0: i32) -> (i32, i32, i32) {
    %c0_i32 = arith.constant 0 : i32
    %c0_i32_0 = arith.constant 0 : i32
    %c0_i32_1 = arith.constant 0 : i32
    %c0_i32_2 = arith.constant 0 : i32
    return %c0_i32, %c0_i32_0, %c0_i32_1 : i32, i32, i32
  }
  func.func @transform_5(%arg0: i32) -> (i32, i32) {
    %c0_i32 = arith.constant 0 : i32
    %c0_i32_0 = arith.constant 0 : i32
    %c0_i32_1 = arith.constant 0 : i32
    return %c0_i32, %c0_i32_0 : i32, i32
  }
  func.func @transform_6(%arg0: i32) -> (i32, i32, i32) {
    %c0_i32 = arith.constant 0 : i32
    %c0_i32_0 = arith.constant 0 : i32
    %c0_i32_1 = arith.constant 0 : i32
    %c0_i32_2 = arith.constant 0 : i32
    return %c0_i32, %c0_i32_0, %c0_i32_1 : i32, i32, i32
  }
  func.func @transform_7(%arg0: i32) -> (i32, i32, i32) {
    %c0_i32 = arith.constant 0 : i32
    %c0_i32_0 = arith.constant 0 : i32
    %c0_i32_1 = arith.constant 0 : i32
    %c0_i32_2 = arith.constant 0 : i32
    return %c0_i32, %c0_i32_0, %c0_i32_1 : i32, i32, i32
  }
  func.func @transform_8(%arg0: i32) -> (i32, i32) {
    %c0_i32 = arith.constant 0 : i32
    %c0_i32_0 = arith.constant 0 : i32
    %c0_i32_1 = arith.constant 0 : i32
    return %c0_i32, %c0_i32_0 : i32, i32
  }
  func.func @transform_9(%arg0: i32) -> (i32, i32) {
    %c0_i32 = arith.constant 0 : i32
    %c0_i32_0 = arith.constant 0 : i32
    %c0_i32_1 = arith.constant 0 : i32
    return %c0_i32, %c0_i32_0 : i32, i32
  }
}

module attributes {stable_mosaic.version = 11 : i64} {
  func.func @end_conv_kernel(%arg0: memref<32x32xf32, #tpu.memory_space<vmem>>, %arg1: memref<32x4xf32, #tpu.memory_space<vmem>>, %arg2: memref<1x4xf32, #tpu.memory_space<vmem>>, %arg3: memref<32x4xf32, #tpu.memory_space<vmem>>) attributes {dimension_semantics = [], scalar_prefetch = 0 : i64, scratch_operands = 0 : i64, tpu.core_type = #tpu.core_type<tc>} {
    %c0 = arith.constant 0 : index
    %c0_0 = arith.constant 0 : index
    %0 = vector.load %arg0[%c0, %c0_0] : memref<32x32xf32, #tpu.memory_space<vmem>>, vector<32x32xf32>
    %c0_1 = arith.constant 0 : index
    %c0_2 = arith.constant 0 : index
    %1 = vector.load %arg1[%c0_1, %c0_2] : memref<32x4xf32, #tpu.memory_space<vmem>>, vector<32x4xf32>
    %cst = arith.constant dense<0.000000e+00> : vector<32x4xf32>
    %2 = tpu.matmul %0, %1, %cst {dimension_numbers = #tpu.dot_dimension_numbers<[1], [0], [0], [1], [0, 0, 1, 1], [], []>} : vector<32x32xf32>, vector<32x4xf32>, vector<32x4xf32> -> vector<32x4xf32>
    %c0_3 = arith.constant 0 : index
    %c0_4 = arith.constant 0 : index
    %3 = vector.load %arg2[%c0_3, %c0_4] : memref<1x4xf32, #tpu.memory_space<vmem>>, vector<1x4xf32>
    %4 = vector.broadcast %3 : vector<1x4xf32> to vector<32x4xf32>
    %5 = arith.addf %2, %4 : vector<32x4xf32>
    %c0_5 = arith.constant 0 : index
    %c0_6 = arith.constant 0 : index
    %6 = vector.load %arg3[%c0_5, %c0_6] : memref<32x4xf32, #tpu.memory_space<vmem>>, vector<32x4xf32>
    tpu.vector_store %arg3[%c0_5, %c0_6], %5 {strides = array<i32>} : memref<32x4xf32, #tpu.memory_space<vmem>>, vector<32x4xf32>,
    return
  }
}

</mosaic_0001>

<llo_original>
// kernel: _lambda_.5
$region0: #{_lambda_.5}
  #allocation0 [shape = 'u32[]', space=smem, size = 0x4, offset = 0x4, fixed_abs, tag = 'smem constant byte address 0x4 - core index']
  #allocation1 [shape = 'u32[144,128]{1,0:T(1,128)}', space=vmem, size = 0x12000, scoped, tag = 'internal scratch']
  %s0 = inlined_call_operand.vmem [shape: f32[32,32], index: 0, kind: input, shape index: {}]
  %s1 = inlined_call_operand.vmem [shape: f32[32,4], index: 1, kind: input, shape index: {}]
  %s2 = inlined_call_operand.vmem [shape: f32[1,4], index: 2, kind: input, shape index: {}]
  %s3 = inlined_call_operand.vmem [shape: f32[32,4], index: 3, kind: output, shape index: {}]
  %s4 = sld [smem:[#allocation0]]
  $region22: #{_lambda_.5} parent=0
    _
  %s6 = ssub.s32 1, %s4
  %s7 = scalar_select 0, %s6, %s4
  // Predicated region
  $region2: #{_lambda_.5} parent=0 // pred_check
    _
  $region3: #{_lambda_.5} parent=0 // pred_check_branch
    %9 = sbr.rel (0) target = $region5
  $region4: #{_lambda_.5} parent=0 // pred_region
    _
  $region5: #{_lambda_.5} parent=0 // pred_fallthru
    _
  // Predicated region
  $region6: #{_lambda_.5} parent=0 // pred_check
    _
  $region7: #{_lambda_.5} parent=0 // pred_check_branch
    %11 = sbr.rel (0) target = $region9
  $region8: #{_lambda_.5} parent=0 // pred_region
    _
  $region9: #{_lambda_.5} parent=0 // pred_fallthru
    _
  // Predicated region
  $region10: #{_lambda_.5} parent=0 // pred_check
    _
  $region11: #{_lambda_.5} parent=0 // pred_check_branch
    %13 = sbr.rel (0) target = $region13
  $region12: #{_lambda_.5} parent=0 // pred_region
    _
  $region13: #{_lambda_.5} parent=0 // pred_fallthru
    _
  %v14 = vld [vmem:[%s0] sm:$0xff]
  %v15 = vld [vmem:[%s0 + $0x8] sm:$0xff]
  %v16 = vld [vmem:[%s0 + $0x10] sm:$0xff]
  %v17 = vld [vmem:[%s0 + $0x18] sm:$0xff]
  %v18 = vld [vmem:[%s1] sm:$0xff]
  %v19 = vld [vmem:[%s1 + $0x8] sm:$0xff]
  %v20 = vld [vmem:[%s1 + $0x10] sm:$0xff]
  %v21 = vld [vmem:[%s1 + $0x18] sm:$0xff]
  %v22 = vld [vmem:[%s2] sm:$0x1]
  %v24 = vlaneseq
  %v25 = vshrl.u32 %v24, 7
  %v26 = vsub.s32 0, %v25
  %v27 = vrot.slane %v22, %v26
  %vm29 = vcmask 261120
  %v31 = vsel %vm29, %v14, 0
  %v34 = vsel %vm29, %v15, 0
  %v37 = vsel %vm29, %v16, 0
  %v40 = vsel %vm29, %v17, 0
  %42 = vmatprep.subr.mxu0 0.0
  %43 = vmatpush1.msra.mxu0 0.0
  %44 = vmatprep.subr.mxu0 0.0
  %45 = vmatpush1.msra.mxu0 0.0
  %46 = vmatprep.subr.mxu0 0.0
  %47 = vmatpush1.msra.mxu0 0.0
  %48 = vmatprep.subr.mxu0 0.0
  %49 = vmatpush1.msra.mxu0 0.0
  %50 = vmatprep.subr.mxu0 0.0
  %51 = vmatpush1.msra.mxu0 0.0
  %52 = vmatprep.subr.mxu0 0.0
  %53 = vmatpush1.msra.mxu0 0.0
  %54 = vmatprep.subr.mxu0 0.0
  %55 = vmatpush1.msra.mxu0 0.0
  %56 = vmatprep.subr.mxu0 0.0
  %57 = vmatpush1.msra.mxu0 0.0
  %58 = vmatprep.subr.mxu0 0.0
  %59 = vmatpush1.msra.mxu0 0.0
  %60 = vmatprep.subr.mxu0 0.0
  %61 = vmatpush1.msra.mxu0 0.0
  %62 = vmatprep.subr.mxu0 0.0
  %63 = vmatpush1.msra.mxu0 0.0
  %64 = vmatprep.subr.mxu0 0.0
  %65 = vmatpush1.msra.mxu0 0.0
  %66 = vmatprep.subr.mxu0 0.0
  %67 = vmatpush1.msra.mxu0 %v21
  %68 = vmatprep.subr.mxu0 0.0
  %69 = vmatpush1.msra.mxu0 %v20
  %70 = vmatprep.subr.mxu0 0.0
  %71 = vmatpush1.msra.mxu0 %v19
  %72 = vmatprep.subr.mxu0 0.0
  %73 = vmatpush1.msra.mxu0 %v18
  %74 = vmatprep.subr.mxu0 0.0
  %75 = vmatpush2.msra.mxu0 0.0
  %76 = vmatprep.subr.mxu0 0.0
  %77 = vmatpush2.msra.mxu0 0.0
  %78 = vmatprep.subr.mxu0 0.0
  %79 = vmatpush2.msra.mxu0 0.0
  %80 = vmatprep.subr.mxu0 0.0
  %81 = vmatpush2.msra.mxu0 0.0
  %82 = vmatprep.subr.mxu0 0.0
  %83 = vmatpush2.msra.mxu0 0.0
  %84 = vmatprep.subr.mxu0 0.0
  %85 = vmatpush2.msra.mxu0 0.0
  %86 = vmatprep.subr.mxu0 0.0
  %87 = vmatpush2.msra.mxu0 0.0
  %88 = vmatprep.subr.mxu0 0.0
  %89 = vmatpush2.msra.mxu0 0.0
  %90 = vmatprep.subr.mxu0 0.0
  %91 = vmatpush2.msra.mxu0 0.0
  %92 = vmatprep.subr.mxu0 0.0
  %93 = vmatpush2.msra.mxu0 0.0
  %94 = vmatprep.subr.mxu0 0.0
  %95 = vmatpush2.msra.mxu0 0.0
  %96 = vmatprep.subr.mxu0 0.0
  %97 = vmatpush2.msra.mxu0 0.0
  %98 = vmatprep.subr.mxu0 0.0
  %99 = vmatpush2.msra.mxu0 0.0
  %100 = vmatprep.subr.mxu0 0.0
  %101 = vmatpush2.msra.mxu0 0.0
  %102 = vmatprep.subr.mxu0 0.0
  %103 = vmatpush2.msra.mxu0 0.0
  %104 = vmatprep.subr.mxu0 0.0
  %105 = vmatpush2.msra.mxu0 0.0
  %106 = vmatprep.mubr.f32.mxu0 0.0
  %107 = vmatmul.mubr.f32.gmra.mxu0 %v31
  %v108 = vpop.f32.mrf.mxu0
  %v109 = vadd.f32 %v27, %v108
  %v110 = vpop.f32.mrf.mxu0
  %111 = vmatprep.mubr.f32.mxu0 0.0
  %112 = vmatmul.mubr.f32.gmra.mxu0 %v34
  %v113 = vpop.f32.mrf.mxu0
  %v114 = vadd.f32 %v27, %v113
  %v115 = vpop.f32.mrf.mxu0
  %116 = vmatprep.mubr.f32.mxu0 0.0
  %117 = vmatmul.mubr.f32.gmra.mxu0 %v37
  %v118 = vpop.f32.mrf.mxu0
  %v119 = vadd.f32 %v27, %v118
  %v120 = vpop.f32.mrf.mxu0
  %121 = vmatprep.mubr.f32.mxu0 0.0
  %122 = vmatmul.mubr.f32.gmra.mxu0 %v40
  %v123 = vpop.f32.mrf.mxu0
  %v124 = vadd.f32 %v27, %v123
  %v125 = vpop.f32.mrf.mxu0
  %126 = vdwg.mxu0
  %vm127 = vcmask 31744
  %128 = vst.msk [vmem:[%s3] sm:$0xff] %vm127, %v109
  %129 = vst.msk [vmem:[%s3 + $0x8] sm:$0xff] %vm127, %v114
  %130 = vst.msk [vmem:[%s3 + $0x10] sm:$0xff] %vm127, %v119
  %131 = vst.msk [vmem:[%s3 + $0x18] sm:$0xff] %vm127, %v124
  // Predicated region
  $region14: #{_lambda_.5} parent=0 // pred_check
    _
  $region15: #{_lambda_.5} parent=0 // pred_check_branch
    %133 = sbr.rel (0) target = $region17
  $region16: #{_lambda_.5} parent=0 // pred_region
    _
  $region17: #{_lambda_.5} parent=0 // pred_fallthru
    _
  // Predicated region
  $region18: #{_lambda_.5} parent=0 // pred_check
    _
  $region19: #{_lambda_.5} parent=0 // pred_check_branch
    %135 = sbr.rel (0) target = $region21
  $region20: #{_lambda_.5} parent=0 // pred_region
    _
  $region21: #{_lambda_.5} parent=0 // pred_fallthru
    _

// kernel: _lambda_.3
$region0: #{_lambda_.3}
  #allocation0 [shape = 'u32[]', space=smem, size = 0x4, offset = 0x4, fixed_abs, tag = 'smem constant byte address 0x4 - core index']
  #allocation1 [shape = 'u32[144,128]{1,0:T(1,128)}', space=vmem, size = 0x12000, scoped, tag = 'internal scratch']
  #allocation2 [shape = 'f32[32,32]{1,0:T(8,128)}', space=vmem, size = 0x4000, scoped, tag = 'scratch operand']
  %s0 = inlined_call_operand.vmem [shape: f32[8,32,1], index: 0, kind: input, shape index: {}]
  %s1 = inlined_call_operand.vmem [shape: f32[3,16,16], index: 1, kind: input, shape index: {}]
  %s2 = inlined_call_operand.vmem [shape: f32[32,8], index: 2, kind: input, shape index: {}]
  %s3 = inlined_call_operand.hbm [shape: f32[3,1,512], index: 3, kind: input, shape index: {}]
  %s4 = inlined_call_operand.vmem [shape: f32[3,32,512], index: 4, kind: input, shape index: {}]
  %s5 = inlined_call_operand.vmem [shape: f32[32,64], index: 5, kind: input, shape index: {}]
  %s6 = inlined_call_operand.hbm [shape: f32[3,1,256], index: 6, kind: input, shape index: {}]
  %s7 = inlined_call_operand.vmem [shape: f32[3,32,256], index: 7, kind: input, shape index: {}]
  %s8 = inlined_call_operand.vmem [shape: f32[32,32], index: 8, kind: input, shape index: {}]
  %s9 = inlined_call_operand.vmem [shape: f32[8,32,32], index: 9, kind: output, shape index: {}]
  %s10 = sld [smem:[#allocation0]]
  $region81: #{_lambda_.3} parent=0
    _
  %s12 = ssub.s32 1, %s10
  %s13 = scalar_select 0, %s12, %s10
  $region1: #{_lambda_.3} parent=0
    #allocation3 [shape = 'u8[6144]{0}', space=vmem, size = 0x1800, scoped, tag = 'input window, operand 3, single buffered']
    #allocation4 [shape = 's32[2]{0}', space=sflag, size = 0x8, scoped, tag = 'scoped memory for _lambda_.3']
    #allocation5 [shape = 'u8[3072]{0}', space=vmem, size = 0xc00, scoped, tag = 'input window, operand 6, single buffered']
    #allocation6 [shape = 's32[1]{0}', space=sflag, size = 0x4, scoped, tag = 'scoped memory for _lambda_.3']
    %14 = vsyncpa [#allocation4], 0
    %15 = vsyncpa [#allocation6], 0
    loop: start=0, step=1, limit=10
    $region2: #{_lambda_.3} parent=1 // loop_pre_header
      _
    $region3: #{_lambda_.3} parent=1 // loop_header
      %s17 = sphi 0, %s21
      %p18 = scmp.ge.s32.totalorder %s17, 10
      %s27 = sphi 0, %s29
      %s30 = sphi 0, %s27
      %s31 = sphi 0, %s30
      %s47 = sphi 0, %s31
      %s51 = sphi 0, %s51
      %s53 = sphi 0, %s51
      %s54 = sphi 0, %s53
      %s68 = sphi 0, %s54
      %s72 = sphi 0, %s72
      %s74 = sphi 0, %s72
      %s75 = sphi 0, %s74
      %s89 = sphi 0, %s75
      %s93 = sphi 0, %s93
      %s95 = sphi 0, %s93
      %s96 = sphi 0, %s95
      %s110 = sphi 0, %s96
      %s114 = sphi 0, %s114
      %s116 = sphi 0, %s114
      %s117 = sphi 0, %s116
      %s131 = sphi 0, %s117
      %s135 = sphi 0, %s135
      %s137 = sphi 0, %s135
      %s138 = sphi 0, %s137
      %s152 = sphi 0, %s138
      %s156 = sphi 0, %s156
      %s158 = sphi 0, %s156
      %s159 = sphi 0, %s158
      %s173 = sphi 0, %s159
      %s177 = sphi 0, %s177
      %s179 = sphi 0, %s177
      %s180 = sphi 0, %s179
      %s194 = sphi 0, %s180
      %s198 = sphi 0, %s198
      %s200 = sphi 0, %s198
      %s201 = sphi 0, %s200
      %s215 = sphi 0, %s201
      %s221 = sphi 0, %s223
      %s224 = sphi 0, %s221
      %s225 = sphi 0, %s224
      %s241 = sphi 0, %s225
    $region4: #{_lambda_.3} parent=1 // loop_header_branch
      %20 = sbr.rel (%p18) target = $region8
    $region5: #{_lambda_.3} parent=1 // loop_body
      %s22 = ssub.s32 %s17, 1
      %s23 = ssub.s32 %s17, 2
      %s24 = sadd.s32 %s17, 1
      %s25 = ssub.s32 %s17, %s24
      %p26 = scmp.eq.s32.totalorder %s25, 0
      %s28 = sadd.s32 %s27, 1
      %s29 = scalar_select %p26, %s27, %s28
      %p32 = pneg %p26
      %p33 = scmp.eq.s32.totalorder %s17, 7
      %p34 = por %p32, %p33
      %p35 = scmp.ne.s32.totalorder %s27, %s30
      %p36 = scmp.eq.s32.totalorder %s17, 0
      %p37 = por %p35, %p36
      %p38 = scmp.ne.s32.totalorder %s27, %s30
      %p39 = scmp.eq.s32.totalorder %s22, 7
      %p40 = por %p38, %p39
      %p41 = scmp.ne.s32.totalorder %s30, %s31
      %p42 = scmp.eq.s32.totalorder %s22, 0
      %p43 = por %p41, %p42
      %p44 = scmp.ne.s32.totalorder %s30, %s31
      %p45 = scmp.eq.s32.totalorder %s23, 7
      %p46 = por %p44, %p45
      %p48 = scmp.ne.s32.totalorder %s31, %s47
      %p49 = scmp.eq.s32.totalorder %s23, 0
      %p50 = por %p48, %p49
      %s52 = sadd.s32 %s51, 1
      %p55 = scmp.eq.s32.totalorder %s17, 7
      %p56 = scmp.ne.s32.totalorder %s51, %s53
      %p57 = scmp.eq.s32.totalorder %s17, 0
      %p58 = por %p56, %p57
      %p59 = scmp.ne.s32.totalorder %s51, %s53
      %p60 = scmp.eq.s32.totalorder %s22, 7
      %p61 = por %p59, %p60
      %p62 = scmp.ne.s32.totalorder %s53, %s54
      %p63 = scmp.eq.s32.totalorder %s22, 0
      %p64 = por %p62, %p63
      %p65 = scmp.ne.s32.totalorder %s53, %s54
      %p66 = scmp.eq.s32.totalorder %s23, 7
      %p67 = por %p65, %p66
      %p69 = scmp.ne.s32.totalorder %s54, %s68
      %p70 = scmp.eq.s32.totalorder %s23, 0
      %p71 = por %p69, %p70
      %s73 = sadd.s32 %s72, 1
      %p76 = scmp.eq.s32.totalorder %s17, 7
      %p77 = scmp.ne.s32.totalorder %s72, %s74
      %p78 = scmp.eq.s32.totalorder %s17, 0
      %p79 = por %p77, %p78
      %p80 = scmp.ne.s32.totalorder %s72, %s74
      %p81 = scmp.eq.s32.totalorder %s22, 7
      %p82 = por %p80, %p81
      %p83 = scmp.ne.s32.totalorder %s74, %s75
      %p84 = scmp.eq.s32.totalorder %s22, 0
      %p85 = por %p83, %p84
      %p86 = scmp.ne.s32.totalorder %s74, %s75
      %p87 = scmp.eq.s32.totalorder %s23, 7
      %p88 = por %p86, %p87
      %p90 = scmp.ne.s32.totalorder %s75, %s89
      %p91 = scmp.eq.s32.totalorder %s23, 0
      %p92 = por %p90, %p91
      %s94 = sadd.s32 %s93, 1
      %p97 = scmp.eq.s32.totalorder %s17, 7
      %p98 = scmp.ne.s32.totalorder %s93, %s95
      %p99 = scmp.eq.s32.totalorder %s17, 0
      %p100 = por %p98, %p99
      %p101 = scmp.ne.s32.totalorder %s93, %s95
      %p102 = scmp.eq.s32.totalorder %s22, 7
      %p103 = por %p101, %p102
      %p104 = scmp.ne.s32.totalorder %s95, %s96
      %p105 = scmp.eq.s32.totalorder %s22, 0
      %p106 = por %p104, %p105
      %p107 = scmp.ne.s32.totalorder %s95, %s96
      %p108 = scmp.eq.s32.totalorder %s23, 7
      %p109 = por %p107, %p108
      %p111 = scmp.ne.s32.totalorder %s96, %s110
      %p112 = scmp.eq.s32.totalorder %s23, 0
      %p113 = por %p111, %p112
      %s115 = sadd.s32 %s114, 1
      %p118 = scmp.eq.s32.totalorder %s17, 7
      %p119 = scmp.ne.s32.totalorder %s114, %s116
      %p120 = scmp.eq.s32.totalorder %s17, 0
      %p121 = por %p119, %p120
      %p122 = scmp.ne.s32.totalorder %s114, %s116
      %p123 = scmp.eq.s32.totalorder %s22, 7
      %p124 = por %p122, %p123
      %p125 = scmp.ne.s32.totalorder %s116, %s117
      %p126 = scmp.eq.s32.totalorder %s22, 0
      %p127 = por %p125, %p126
      %p128 = scmp.ne.s32.totalorder %s116, %s117
      %p129 = scmp.eq.s32.totalorder %s23, 7
      %p130 = por %p128, %p129
      %p132 = scmp.ne.s32.totalorder %s117, %s131
      %p133 = scmp.eq.s32.totalorder %s23, 0
      %p134 = por %p132, %p133
      %s136 = sadd.s32 %s135, 1
      %p139 = scmp.eq.s32.totalorder %s17, 7
      %p140 = scmp.ne.s32.totalorder %s135, %s137
      %p141 = scmp.eq.s32.totalorder %s17, 0
      %p142 = por %p140, %p141
      %p143 = scmp.ne.s32.totalorder %s135, %s137
      %p144 = scmp.eq.s32.totalorder %s22, 7
      %p145 = por %p143, %p144
      %p146 = scmp.ne.s32.totalorder %s137, %s138
      %p147 = scmp.eq.s32.totalorder %s22, 0
      %p148 = por %p146, %p147
      %p149 = scmp.ne.s32.totalorder %s137, %s138
      %p150 = scmp.eq.s32.totalorder %s23, 7
      %p151 = por %p149, %p150
      %p153 = scmp.ne.s32.totalorder %s138, %s152
      %p154 = scmp.eq.s32.totalorder %s23, 0
      %p155 = por %p153, %p154
      %s157 = sadd.s32 %s156, 1
      %p160 = scmp.eq.s32.totalorder %s17, 7
      %p161 = scmp.ne.s32.totalorder %s156, %s158
      %p162 = scmp.eq.s32.totalorder %s17, 0
      %p163 = por %p161, %p162
      %p164 = scmp.ne.s32.totalorder %s156, %s158
      %p165 = scmp.eq.s32.totalorder %s22, 7
      %p166 = por %p164, %p165
      %p167 = scmp.ne.s32.totalorder %s158, %s159
      %p168 = scmp.eq.s32.totalorder %s22, 0
      %p169 = por %p167, %p168
      %p170 = scmp.ne.s32.totalorder %s158, %s159
      %p171 = scmp.eq.s32.totalorder %s23, 7
      %p172 = por %p170, %p171
      %p174 = scmp.ne.s32.totalorder %s159, %s173
      %p175 = scmp.eq.s32.totalorder %s23, 0
      %p176 = por %p174, %p175
      %s178 = sadd.s32 %s177, 1
      %p181 = scmp.eq.s32.totalorder %s17, 7
      %p182 = scmp.ne.s32.totalorder %s177, %s179
      %p183 = scmp.eq.s32.totalorder %s17, 0
      %p184 = por %p182, %p183
      %p185 = scmp.ne.s32.totalorder %s177, %s179
      %p186 = scmp.eq.s32.totalorder %s22, 7
      %p187 = por %p185, %p186
      %p188 = scmp.ne.s32.totalorder %s179, %s180
      %p189 = scmp.eq.s32.totalorder %s22, 0
      %p190 = por %p188, %p189
      %p191 = scmp.ne.s32.totalorder %s179, %s180
      %p192 = scmp.eq.s32.totalorder %s23, 7
      %p193 = por %p191, %p192
      %p195 = scmp.ne.s32.totalorder %s180, %s194
      %p196 = scmp.eq.s32.totalorder %s23, 0
      %p197 = por %p195, %p196
      %s199 = sadd.s32 %s198, 1
      %p202 = scmp.eq.s32.totalorder %s17, 7
      %p203 = scmp.ne.s32.totalorder %s198, %s200
      %p204 = scmp.eq.s32.totalorder %s17, 0
      %p205 = por %p203, %p204
      %p206 = scmp.ne.s32.totalorder %s198, %s200
      %p207 = scmp.eq.s32.totalorder %s22, 7
      %p208 = por %p206, %p207
      %p209 = scmp.ne.s32.totalorder %s200, %s201
      %p210 = scmp.eq.s32.totalorder %s22, 0
      %p211 = por %p209, %p210
      %p212 = scmp.ne.s32.totalorder %s200, %s201
      %p213 = scmp.eq.s32.totalorder %s23, 7
      %p214 = por %p212, %p213
      %p216 = scmp.ne.s32.totalorder %s201, %s215
      %p217 = scmp.eq.s32.totalorder %s23, 0
      %p218 = por %p216, %p217
      %s219 = ssub.s32 %s17, %s24
      %p220 = scmp.eq.s32.totalorder %s219, 0
      %s222 = sadd.s32 %s221, 1
      %s223 = scalar_select %p220, %s221, %s222
      %p226 = pneg %p220
      %p227 = scmp.eq.s32.totalorder %s17, 7
      %p228 = por %p226, %p227
      %p229 = scmp.ne.s32.totalorder %s221, %s224
      %p230 = scmp.eq.s32.totalorder %s17, 0
      %p231 = por %p229, %p230
      %p232 = scmp.ne.s32.totalorder %s221, %s224
      %p233 = scmp.eq.s32.totalorder %s22, 7
      %p234 = por %p232, %p233
      %p235 = scmp.ne.s32.totalorder %s224, %s225
      %p236 = scmp.eq.s32.totalorder %s22, 0
      %p237 = por %p235, %p236
      %p238 = scmp.ne.s32.totalorder %s224, %s225
      %p239 = scmp.eq.s32.totalorder %s23, 7
      %p240 = por %p238, %p239
      %p242 = scmp.ne.s32.totalorder %s225, %s241
      %p243 = scmp.eq.s32.totalorder %s23, 0
      %p244 = por %p242, %p243
      %p245 = scmp.le.s32.totalorder 1, %s17
      %p246 = scmp.lt.s32.totalorder %s17, 9
      %p247 = pnand %p245, %p246
      %p248 = pneg %p247
      // Predicated region
      $region9: #{_lambda_.3} parent=5 // pred_check
        _
      $region10: #{_lambda_.3} parent=5 // pred_check_branch
        %250 = sbr.rel (%p247) target = $region12
      $region11: #{_lambda_.3} parent=5 // pred_region
        %s251 = ssub.s32 %s17, 1
        // Predicated region
        $region13: #{_lambda_.3} parent=11 // pred_check
          %p252 = pneg %p64
        $region14: #{_lambda_.3} parent=11 // pred_check_branch
          %254 = sbr.rel (%p252) target = $region16
        $region15: #{_lambda_.3} parent=11 // pred_region
          _
        $region16: #{_lambda_.3} parent=11 // pred_fallthru
          _
        // Predicated region
        $region17: #{_lambda_.3} parent=11 // pred_check
          %p255 = pneg %p85
        $region18: #{_lambda_.3} parent=11 // pred_check_branch
          %257 = sbr.rel (%p255) target = $region20
        $region19: #{_lambda_.3} parent=11 // pred_region
          _
        $region20: #{_lambda_.3} parent=11 // pred_fallthru
          _
        // Predicated region
        $region21: #{_lambda_.3} parent=11 // pred_check
          %p258 = pneg %p106
        $region22: #{_lambda_.3} parent=11 // pred_check_branch
          %260 = sbr.rel (%p258) target = $region24
        $region23: #{_lambda_.3} parent=11 // pred_region
          %s262 = ssub.s32 192, 192
          %263 = vsyncadd [#allocation4], %s262
          %s264 = sshll.u32 [#allocation3], 4
          %s265 = int_to_ptr.vmem [resolvable:$true] %s264
          %270 = dma.hbm_to_vmem [thread:$0]  %s3, 192, %s265, [#allocation4], 64, 64, 4
        $region24: #{_lambda_.3} parent=11 // pred_fallthru
          _
        // Predicated region
        $region25: #{_lambda_.3} parent=11 // pred_check
          %p271 = pneg %p127
        $region26: #{_lambda_.3} parent=11 // pred_check_branch
          %273 = sbr.rel (%p271) target = $region28
        $region27: #{_lambda_.3} parent=11 // pred_region
          _
        $region28: #{_lambda_.3} parent=11 // pred_fallthru
          _
        // Predicated region
        $region29: #{_lambda_.3} parent=11 // pred_check
          %p274 = pneg %p148
        $region30: #{_lambda_.3} parent=11 // pred_check_branch
          %276 = sbr.rel (%p274) target = $region32
        $region31: #{_lambda_.3} parent=11 // pred_region
          _
        $region32: #{_lambda_.3} parent=11 // pred_fallthru
          _
        // Predicated region
        $region33: #{_lambda_.3} parent=11 // pred_check
          %p277 = pneg %p169
        $region34: #{_lambda_.3} parent=11 // pred_check_branch
          %279 = sbr.rel (%p277) target = $region36
        $region35: #{_lambda_.3} parent=11 // pred_region
          %s281 = ssub.s32 96, 96
          %282 = vsyncadd [#allocation6], %s281
          %s283 = sshll.u32 [#allocation5], 4
          %s284 = int_to_ptr.vmem [resolvable:$true] %s283
          %289 = dma.hbm_to_vmem [thread:$0]  %s6, 96, %s284, [#allocation6], 32, 32, 2
        $region36: #{_lambda_.3} parent=11 // pred_fallthru
          _
        // Predicated region
        $region37: #{_lambda_.3} parent=11 // pred_check
          %p290 = pneg %p190
        $region38: #{_lambda_.3} parent=11 // pred_check_branch
          %292 = sbr.rel (%p290) target = $region40
        $region39: #{_lambda_.3} parent=11 // pred_region
          _
        $region40: #{_lambda_.3} parent=11 // pred_fallthru
          _
        // Predicated region
        $region41: #{_lambda_.3} parent=11 // pred_check
          %p293 = pneg %p211
        $region42: #{_lambda_.3} parent=11 // pred_check_branch
          %295 = sbr.rel (%p293) target = $region44
        $region43: #{_lambda_.3} parent=11 // pred_region
          _
        $region44: #{_lambda_.3} parent=11 // pred_fallthru
          _
      $region12: #{_lambda_.3} parent=5 // pred_fallthru
        _
      %p296 = scmp.lt.s32.totalorder %s17, 8
      // Predicated region
      $region45: #{_lambda_.3} parent=5 // pred_check
        %p297 = pneg %p296
      $region46: #{_lambda_.3} parent=5 // pred_check_branch
        %299 = sbr.rel (%p297) target = $region48
      $region47: #{_lambda_.3} parent=5 // pred_region
        // Predicated region
        $region49: #{_lambda_.3} parent=47 // pred_check
          %p300 = pneg %p37
        $region50: #{_lambda_.3} parent=47 // pred_check_branch
          %302 = sbr.rel (%p300) target = $region52
        $region51: #{_lambda_.3} parent=47 // pred_region
          %p303 = scmp.lt.s32.totalorder %s17, 7
          %s304 = scalar_select %p303, %s17, 7
          %s305 = smul.addr %s304, 4
          %s306 = smul.addr %s305, 8
          %s307 = scalar_lea.vmem %s0, %s306
        $region52: #{_lambda_.3} parent=47 // pred_fallthru
          _
      $region48: #{_lambda_.3} parent=5 // pred_fallthru
        _
      %p308 = scmp.le.s32.totalorder 1, %s17
      %p309 = scmp.lt.s32.totalorder %s17, 9
      %p310 = pnand %p308, %p309
      %p311 = pneg %p310
      // Predicated region
      $region53: #{_lambda_.3} parent=5 // pred_check
        _
      $region54: #{_lambda_.3} parent=5 // pred_check_branch
        %313 = sbr.rel (%p310) target = $region56
      $region55: #{_lambda_.3} parent=5 // pred_region
        %s314 = ssub.s32 %s17, 1
        // Predicated region
        $region57: #{_lambda_.3} parent=55 // pred_check
          %p315 = pneg %p106
        $region58: #{_lambda_.3} parent=55 // pred_check_branch
          %317 = sbr.rel (%p315) target = $region60
        $region59: #{_lambda_.3} parent=55 // pred_region
          %318 = dma.done [#allocation4], 192
        $region60: #{_lambda_.3} parent=55 // pred_fallthru
          _
        // Predicated region
        $region61: #{_lambda_.3} parent=55 // pred_check
          %p319 = pneg %p169
        $region62: #{_lambda_.3} parent=55 // pred_check_branch
          %321 = sbr.rel (%p319) target = $region64
        $region63: #{_lambda_.3} parent=55 // pred_region
          %322 = dma.done [#allocation6], 96
        $region64: #{_lambda_.3} parent=55 // pred_fallthru
          _
        %p323 = scmp.lt.s32.totalorder %s22, 7
        %s324 = scalar_select %p323, %s22, 7
        %s325 = smul.addr %s324, 4
        %s326 = smul.addr %s325, 8
        %s327 = scalar_lea.vmem %s0, %s326
        %p328 = pneg %p43
        %p329 = pneg %p40
        %p330 = pneg %p64
        %p331 = pneg %p61
        %p332 = pneg %p85
        %p333 = pneg %p82
        %p334 = pneg %p106
        %p335 = pneg %p103
        %p336 = pneg %p127
        %p337 = pneg %p124
        %p338 = pneg %p148
        %p339 = pneg %p145
        %p340 = pneg %p169
        %p341 = pneg %p166
        %p342 = pneg %p190
        %p343 = pneg %p187
        %p344 = pneg %p211
        %p345 = pneg %p208
        %p346 = pneg %p237
        %p347 = pneg %p234
        %p348 = scmp.lt.s32.totalorder %s22, 7
        %s349 = scalar_select %p348, %s22, 7
        %s350 = smul.addr %s349, 4
        %s351 = smul.addr %s350, 8
        %s352 = scalar_lea.vmem %s9, %s351
        %p353 = scmp.lt.s32.totalorder %s22, 7
        %s354 = scalar_select %p353, %s22, 7
        %s355 = smul.addr %s354, 4
        %s356 = smul.addr %s355, 8
        %s357 = scalar_lea.vmem %s0, %s356
        %p358 = scmp.lt.s32.totalorder %s22, 7
        %s359 = scalar_select %p358, %s22, 7
        %s360 = smul.addr %s359, 4
        %s361 = smul.addr %s360, 8
        %s362 = scalar_lea.vmem %s9, %s361
        %p363 = scmp.eq.s32.totalorder %s22, 0
        // Predicated region
        $region65: #{_lambda_.3} parent=55 // pred_check
          %p364 = pneg %p363
        $region66: #{_lambda_.3} parent=55 // pred_check_branch
          %366 = sbr.rel (%p364) target = $region68
        $region67: #{_lambda_.3} parent=55 // pred_region
          %vm367 = vcmask 261120
          %368 = vst.msk [vmem:[#allocation2] sm:$0xff] %vm367, 0.0
          %369 = vst.msk [vmem:[#allocation2 + $0x8] sm:$0xff] %vm367, 0.0
          %370 = vst.msk [vmem:[#allocation2 + $0x10] sm:$0xff] %vm367, 0.0
          %371 = vst.msk [vmem:[#allocation2 + $0x18] sm:$0xff] %vm367, 0.0
        $region68: #{_lambda_.3} parent=55 // pred_fallthru
          _
        %v372 = vld [vmem:[%s357] sm:$0xff]
        %v373 = vld [vmem:[%s357 + $0x8] sm:$0xff]
        %v374 = vld [vmem:[%s357 + $0x10] sm:$0xff]
        %v375 = vld [vmem:[%s357 + $0x18] sm:$0xff]
        %v376 = vld [vmem:[#allocation2] sm:$0xff]
        %v377 = vld [vmem:[#allocation2 + $0x8] sm:$0xff]
        %v378 = vld [vmem:[#allocation2 + $0x10] sm:$0xff]
        %v379 = vld [vmem:[#allocation2 + $0x18] sm:$0xff]
        %v380 = vld [vmem:[%s2] sm:$0xff]
        %v381 = vld [vmem:[%s2 + $0x8] sm:$0xff]
        %v382 = vld [vmem:[%s2 + $0x10] sm:$0xff]
        %v383 = vld [vmem:[%s2 + $0x18] sm:$0xff]
        %v384 = vld [vmem:[%s1] sm:$0xff]
        %v385 = vld [vmem:[%s1 + $0x8] sm:$0xff]
        %s386 = scalar_lea.vmem %s1, 16
        %v387 = vld [vmem:[%s386] sm:$0xff]
        %v388 = vld [vmem:[%s386 + $0x8] sm:$0xff]
        %s389 = scalar_lea.vmem %s1, 32
        %v390 = vld [vmem:[%s389] sm:$0xff]
        %v391 = vld [vmem:[%s389 + $0x8] sm:$0xff]
        %vm392 = vcmask 130048
        %v394 = vsel %vm392, %v384, 0
        %v397 = vsel %vm392, %v385, 0
        %399 = vmatprep.subr.mxu0 0.0
        %400 = vmatpush1.msra.mxu0 0.0
        %401 = vmatprep.subr.mxu0 0.0
        %402 = vmatpush1.msra.mxu0 0.0
        %403 = vmatprep.subr.mxu0 0.0
        %404 = vmatpush1.msra.mxu0 0.0
        %405 = vmatprep.subr.mxu0 0.0
        %406 = vmatpush1.msra.mxu0 0.0
        %407 = vmatprep.subr.mxu0 0.0
        %408 = vmatpush1.msra.mxu0 0.0
        %409 = vmatprep.subr.mxu0 0.0
        %410 = vmatpush1.msra.mxu0 0.0
        %411 = vmatprep.subr.mxu0 0.0
        %412 = vmatpush1.msra.mxu0 0.0
        %413 = vmatprep.subr.mxu0 0.0
        %414 = vmatpush1.msra.mxu0 0.0
        %415 = vmatprep.subr.mxu0 0.0
        %416 = vmatpush1.msra.mxu0 0.0
        %417 = vmatprep.subr.mxu0 0.0
        %418 = vmatpush1.msra.mxu0 0.0
        %419 = vmatprep.subr.mxu0 0.0
        %420 = vmatpush1.msra.mxu0 0.0
        %421 = vmatprep.subr.mxu0 0.0
        %422 = vmatpush1.msra.mxu0 0.0
        %423 = vmatprep.subr.mxu0 0.0
        %424 = vmatpush1.msra.mxu0 0.0
        %425 = vmatprep.subr.mxu0 0.0
        %426 = vmatpush1.msra.mxu0 0.0
        %427 = vmatprep.subr.mxu0 0.0
        %428 = vmatpush1.msra.mxu0 %v373
        %429 = vmatprep.subr.mxu0 0.0
        %430 = vmatpush1.msra.mxu0 %v372
        %431 = vmatprep.subr.mxu0 0.0
        %432 = vmatpush2.msra.mxu0 0.0
        %433 = vmatprep.subr.mxu0 0.0
        %434 = vmatpush2.msra.mxu0 0.0
        %435 = vmatprep.subr.mxu0 0.0
        %436 = vmatpush2.msra.mxu0 0.0
        %437 = vmatprep.subr.mxu0 0.0
        %438 = vmatpush2.msra.mxu0 0.0
        %439 = vmatprep.subr.mxu0 0.0
        %440 = vmatpush2.msra.mxu0 0.0
        %441 = vmatprep.subr.mxu0 0.0
        %442 = vmatpush2.msra.mxu0 0.0
        %443 = vmatprep.subr.mxu0 0.0
        %444 = vmatpush2.msra.mxu0 0.0
        %445 = vmatprep.subr.mxu0 0.0
        %446 = vmatpush2.msra.mxu0 0.0
        %447 = vmatprep.subr.mxu0 0.0
        %448 = vmatpush2.msra.mxu0 0.0
        %449 = vmatprep.subr.mxu0 0.0
        %450 = vmatpush2.msra.mxu0 0.0
        %451 = vmatprep.subr.mxu0 0.0
        %452 = vmatpush2.msra.mxu0 0.0
        %453 = vmatprep.subr.mxu0 0.0
        %454 = vmatpush2.msra.mxu0 0.0
        %455 = vmatprep.subr.mxu0 0.0
        %456 = vmatpush2.msra.mxu0 0.0
        %457 = vmatprep.subr.mxu0 0.0
        %458 = vmatpush2.msra.mxu0 0.0
        %459 = vmatprep.subr.mxu0 0.0
        %460 = vmatpush2.msra.mxu0 0.0
        %461 = vmatprep.subr.mxu0 0.0
        %462 = vmatpush2.msra.mxu0 0.0
        %463 = vmatprep.mubr.f32.mxu0 0.0
        %464 = vmatmul.mubr.f32.gmra.mxu0 %v394
        %v465 = vpop.f32.mrf.mxu0
        %v466 = vadd.f32 0.0, %v465
        %v467 = vpop.f32.mrf.mxu0
        %468 = vmatprep.mubr.f32.mxu0 0.0
        %469 = vmatmul.mubr.f32.gmra.mxu0 %v397
        %v470 = vpop.f32.mrf.mxu0
        %v471 = vadd.f32 0.0, %v470
        %v472 = vpop.f32.mrf.mxu0
        %473 = vdwg.mxu0
        %474 = vmatprep.subr.mxu0 0.0
        %475 = vmatpush1.msra.mxu0 0.0
        %476 = vmatprep.subr.mxu0 0.0
        %477 = vmatpush1.msra.mxu0 0.0
        %478 = vmatprep.subr.mxu0 0.0
        %479 = vmatpush1.msra.mxu0 0.0
        %480 = vmatprep.subr.mxu0 0.0
        %481 = vmatpush1.msra.mxu0 0.0
        %482 = vmatprep.subr.mxu0 0.0
        %483 = vmatpush1.msra.mxu0 0.0
        %484 = vmatprep.subr.mxu0 0.0
        %485 = vmatpush1.msra.mxu0 0.0
        %486 = vmatprep.subr.mxu0 0.0
        %487 = vmatpush1.msra.mxu0 0.0
        %488 = vmatprep.subr.mxu0 0.0
        %489 = vmatpush1.msra.mxu0 0.0
        %490 = vmatprep.subr.mxu0 0.0
        %491 = vmatpush1.msra.mxu0 0.0
        %492 = vmatprep.subr.mxu0 0.0
        %493 = vmatpush1.msra.mxu0 0.0
        %494 = vmatprep.subr.mxu0 0.0
        %495 = vmatpush1.msra.mxu0 0.0
        %496 = vmatprep.subr.mxu0 0.0
        %497 = vmatpush1.msra.mxu0 0.0
        %498 = vmatprep.subr.mxu0 0.0
        %499 = vmatpush1.msra.mxu0 0.0
        %500 = vmatprep.subr.mxu0 0.0
        %501 = vmatpush1.msra.mxu0 0.0
        %502 = vmatprep.subr.mxu0 0.0
        %503 = vmatpush1.msra.mxu0 %v375
        %504 = vmatprep.subr.mxu0 0.0
        %505 = vmatpush1.msra.mxu0 %v374
        %506 = vmatprep.subr.mxu0 0.0
        %507 = vmatpush2.msra.mxu0 0.0
        %508 = vmatprep.subr.mxu0 0.0
        %509 = vmatpush2.msra.mxu0 0.0
        %510 = vmatprep.subr.mxu0 0.0
        %511 = vmatpush2.msra.mxu0 0.0
        %512 = vmatprep.subr.mxu0 0.0
        %513 = vmatpush2.msra.mxu0 0.0
        %514 = vmatprep.subr.mxu0 0.0
        %515 = vmatpush2.msra.mxu0 0.0
        %516 = vmatprep.subr.mxu0 0.0
        %517 = vmatpush2.msra.mxu0 0.0
        %518 = vmatprep.subr.mxu0 0.0
        %519 = vmatpush2.msra.mxu0 0.0
        %520 = vmatprep.subr.mxu0 0.0
        %521 = vmatpush2.msra.mxu0 0.0
        %522 = vmatprep.subr.mxu0 0.0
        %523 = vmatpush2.msra.mxu0 0.0
        %524 = vmatprep.subr.mxu0 0.0
        %525 = vmatpush2.msra.mxu0 0.0
        %526 = vmatprep.subr.mxu0 0.0
        %527 = vmatpush2.msra.mxu0 0.0
        %528 = vmatprep.subr.mxu0 0.0
        %529 = vmatpush2.msra.mxu0 0.0
        %530 = vmatprep.subr.mxu0 0.0
        %531 = vmatpush2.msra.mxu0 0.0
        %532 = vmatprep.subr.mxu0 0.0
        %533 = vmatpush2.msra.mxu0 0.0
        %534 = vmatprep.subr.mxu0 0.0
        %535 = vmatpush2.msra.mxu0 0.0
        %536 = vmatprep.subr.mxu0 0.0
        %537 = vmatpush2.msra.mxu0 0.0
        %538 = vmatprep.mubr.f32.mxu0 0.0
        %539 = vmatmul.mubr.f32.gmra.mxu0 %v394
        %v540 = vpop.f32.mrf.mxu0
        %v541 = vadd.f32 0.0, %v540
        %v542 = vpop.f32.mrf.mxu0
        %543 = vmatprep.mubr.f32.mxu0 0.0
        %544 = vmatmul.mubr.f32.gmra.mxu0 %v397
        %v545 = vpop.f32.mrf.mxu0
        %v546 = vadd.f32 0.0, %v545
        %v547 = vpop.f32.mrf.mxu0
        %548 = vdwg.mxu0
        %v550 = vsel %vm392, %v387, 0
        %v553 = vsel %vm392, %v388, 0
        %555 = vmatprep.subr.mxu0 0.0
        %556 = vmatpush1.msra.mxu0 0.0
        %557 = vmatprep.subr.mxu0 0.0
        %558 = vmatpush1.msra.mxu0 0.0
        %559 = vmatprep.subr.mxu0 0.0
        %560 = vmatpush1.msra.mxu0 0.0
        %561 = vmatprep.subr.mxu0 0.0
        %562 = vmatpush1.msra.mxu0 0.0
        %563 = vmatprep.subr.mxu0 0.0
        %564 = vmatpush1.msra.mxu0 0.0
        %565 = vmatprep.subr.mxu0 0.0
        %566 = vmatpush1.msra.mxu0 0.0
        %567 = vmatprep.subr.mxu0 0.0
        %568 = vmatpush1.msra.mxu0 0.0
        %569 = vmatprep.subr.mxu0 0.0
        %570 = vmatpush1.msra.mxu0 0.0
        %571 = vmatprep.subr.mxu0 0.0
        %572 = vmatpush1.msra.mxu0 0.0
        %573 = vmatprep.subr.mxu0 0.0
        %574 = vmatpush1.msra.mxu0 0.0
        %575 = vmatprep.subr.mxu0 0.0
        %576 = vmatpush1.msra.mxu0 0.0
        %577 = vmatprep.subr.mxu0 0.0
        %578 = vmatpush1.msra.mxu0 0.0
        %579 = vmatprep.subr.mxu0 0.0
        %580 = vmatpush1.msra.mxu0 0.0
        %581 = vmatprep.subr.mxu0 0.0
        %582 = vmatpush1.msra.mxu0 0.0
        %583 = vmatprep.subr.mxu0 0.0
        %584 = vmatpush1.msra.mxu0 %v373
        %585 = vmatprep.subr.mxu0 0.0
        %586 = vmatpush1.msra.mxu0 %v372
        %587 = vmatprep.subr.mxu0 0.0
        %588 = vmatpush2.msra.mxu0 0.0
        %589 = vmatprep.subr.mxu0 0.0
        %590 = vmatpush2.msra.mxu0 0.0
        %591 = vmatprep.subr.mxu0 0.0
        %592 = vmatpush2.msra.mxu0 0.0
        %593 = vmatprep.subr.mxu0 0.0
        %594 = vmatpush2.msra.mxu0 0.0
        %595 = vmatprep.subr.mxu0 0.0
        %596 = vmatpush2.msra.mxu0 0.0
        %597 = vmatprep.subr.mxu0 0.0
        %598 = vmatpush2.msra.mxu0 0.0
        %599 = vmatprep.subr.mxu0 0.0
        %600 = vmatpush2.msra.mxu0 0.0
        %601 = vmatprep.subr.mxu0 0.0
        %602 = vmatpush2.msra.mxu0 0.0
        %603 = vmatprep.subr.mxu0 0.0
        %604 = vmatpush2.msra.mxu0 0.0
        %605 = vmatprep.subr.mxu0 0.0
        %606 = vmatpush2.msra.mxu0 0.0
        %607 = vmatprep.subr.mxu0 0.0
        %608 = vmatpush2.msra.mxu0 0.0
        %609 = vmatprep.subr.mxu0 0.0
        %610 = vmatpush2.msra.mxu0 0.0
        %611 = vmatprep.subr.mxu0 0.0
        %612 = vmatpush2.msra.mxu0 0.0
        %613 = vmatprep.subr.mxu0 0.0
        %614 = vmatpush2.msra.mxu0 0.0
        %615 = vmatprep.subr.mxu0 0.0
        %616 = vmatpush2.msra.mxu0 0.0
        %617 = vmatprep.subr.mxu0 0.0
        %618 = vmatpush2.msra.mxu0 0.0
        %619 = vmatprep.mubr.f32.mxu0 0.0
        %620 = vmatmul.mubr.f32.gmra.mxu0 %v550
        %v621 = vpop.f32.mrf.mxu0
        %v622 = vadd.f32 0.0, %v621
        %v623 = vpop.f32.mrf.mxu0
        %624 = vmatprep.mubr.f32.mxu0 0.0
        %625 = vmatmul.mubr.f32.gmra.mxu0 %v553
        %v626 = vpop.f32.mrf.mxu0
        %v627 = vadd.f32 0.0, %v626
        %v628 = vpop.f32.mrf.mxu0
        %629 = vdwg.mxu0
        %630 = vmatprep.subr.mxu0 0.0
        %631 = vmatpush1.msra.mxu0 0.0
        %632 = vmatprep.subr.mxu0 0.0
        %633 = vmatpush1.msra.mxu0 0.0
        %634 = vmatprep.subr.mxu0 0.0
        %635 = vmatpush1.msra.mxu0 0.0
        %636 = vmatprep.subr.mxu0 0.0
        %637 = vmatpush1.msra.mxu0 0.0
        %638 = vmatprep.subr.mxu0 0.0
        %639 = vmatpush1.msra.mxu0 0.0
        %640 = vmatprep.subr.mxu0 0.0
        %641 = vmatpush1.msra.mxu0 0.0
        %642 = vmatprep.subr.mxu0 0.0
        %643 = vmatpush1.msra.mxu0 0.0
        %644 = vmatprep.subr.mxu0 0.0
        %645 = vmatpush1.msra.mxu0 0.0
        %646 = vmatprep.subr.mxu0 0.0
        %647 = vmatpush1.msra.mxu0 0.0
        %648 = vmatprep.subr.mxu0 0.0
        %649 = vmatpush1.msra.mxu0 0.0
        %650 = vmatprep.subr.mxu0 0.0
        %651 = vmatpush1.msra.mxu0 0.0
        %652 = vmatprep.subr.mxu0 0.0
        %653 = vmatpush1.msra.mxu0 0.0
        %654 = vmatprep.subr.mxu0 0.0
        %655 = vmatpush1.msra.mxu0 0.0
        %656 = vmatprep.subr.mxu0 0.0
        %657 = vmatpush1.msra.mxu0 0.0
        %658 = vmatprep.subr.mxu0 0.0
        %659 = vmatpush1.msra.mxu0 %v375
        %660 = vmatprep.subr.mxu0 0.0
        %661 = vmatpush1.msra.mxu0 %v374
        %662 = vmatprep.subr.mxu0 0.0
        %663 = vmatpush2.msra.mxu0 0.0
        %664 = vmatprep.subr.mxu0 0.0
        %665 = vmatpush2.msra.mxu0 0.0
        %666 = vmatprep.subr.mxu0 0.0
        %667 = vmatpush2.msra.mxu0 0.0
        %668 = vmatprep.subr.mxu0 0.0
        %669 = vmatpush2.msra.mxu0 0.0
        %670 = vmatprep.subr.mxu0 0.0
        %671 = vmatpush2.msra.mxu0 0.0
        %672 = vmatprep.subr.mxu0 0.0
        %673 = vmatpush2.msra.mxu0 0.0
        %674 = vmatprep.subr.mxu0 0.0
        %675 = vmatpush2.msra.mxu0 0.0
        %676 = vmatprep.subr.mxu0 0.0
        %677 = vmatpush2.msra.mxu0 0.0
        %678 = vmatprep.subr.mxu0 0.0
        %679 = vmatpush2.msra.mxu0 0.0
        %680 = vmatprep.subr.mxu0 0.0
        %681 = vmatpush2.msra.mxu0 0.0
        %682 = vmatprep.subr.mxu0 0.0
        %683 = vmatpush2.msra.mxu0 0.0
        %684 = vmatprep.subr.mxu0 0.0
        %685 = vmatpush2.msra.mxu0 0.0
        %686 = vmatprep.subr.mxu0 0.0
        %687 = vmatpush2.msra.mxu0 0.0
        %688 = vmatprep.subr.mxu0 0.0
        %689 = vmatpush2.msra.mxu0 0.0
        %690 = vmatprep.subr.mxu0 0.0
        %691 = vmatpush2.msra.mxu0 0.0
        %692 = vmatprep.subr.mxu0 0.0
        %693 = vmatpush2.msra.mxu0 0.0
        %694 = vmatprep.mubr.f32.mxu0 0.0
        %695 = vmatmul.mubr.f32.gmra.mxu0 %v550
        %v696 = vpop.f32.mrf.mxu0
        %v697 = vadd.f32 0.0, %v696
        %v698 = vpop.f32.mrf.mxu0
        %699 = vmatprep.mubr.f32.mxu0 0.0
        %700 = vmatmul.mubr.f32.gmra.mxu0 %v553
        %v701 = vpop.f32.mrf.mxu0
        %v702 = vadd.f32 0.0, %v701
        %v703 = vpop.f32.mrf.mxu0
        %704 = vdwg.mxu0
        %v706 = vsel %vm392, %v390, 0
        %v709 = vsel %vm392, %v391, 0
        %711 = vmatprep.subr.mxu0 0.0
        %712 = vmatpush1.msra.mxu0 0.0
        %713 = vmatprep.subr.mxu0 0.0
        %714 = vmatpush1.msra.mxu0 0.0
        %715 = vmatprep.subr.mxu0 0.0
        %716 = vmatpush1.msra.mxu0 0.0
        %717 = vmatprep.subr.mxu0 0.0
        %718 = vmatpush1.msra.mxu0 0.0
        %719 = vmatprep.subr.mxu0 0.0
        %720 = vmatpush1.msra.mxu0 0.0
        %721 = vmatprep.subr.mxu0 0.0
        %722 = vmatpush1.msra.mxu0 0.0
        %723 = vmatprep.subr.mxu0 0.0
        %724 = vmatpush1.msra.mxu0 0.0
        %725 = vmatprep.subr.mxu0 0.0
        %726 = vmatpush1.msra.mxu0 0.0
        %727 = vmatprep.subr.mxu0 0.0
        %728 = vmatpush1.msra.mxu0 0.0
        %729 = vmatprep.subr.mxu0 0.0
        %730 = vmatpush1.msra.mxu0 0.0
        %731 = vmatprep.subr.mxu0 0.0
        %732 = vmatpush1.msra.mxu0 0.0
        %733 = vmatprep.subr.mxu0 0.0
        %734 = vmatpush1.msra.mxu0 0.0
        %735 = vmatprep.subr.mxu0 0.0
        %736 = vmatpush1.msra.mxu0 0.0
        %737 = vmatprep.subr.mxu0 0.0
        %738 = vmatpush1.msra.mxu0 0.0
        %739 = vmatprep.subr.mxu0 0.0
        %740 = vmatpush1.msra.mxu0 %v373
        %741 = vmatprep.subr.mxu0 0.0
        %742 = vmatpush1.msra.mxu0 %v372
        %743 = vmatprep.subr.mxu0 0.0
        %744 = vmatpush2.msra.mxu0 0.0
        %745 = vmatprep.subr.mxu0 0.0
        %746 = vmatpush2.msra.mxu0 0.0
        %747 = vmatprep.subr.mxu0 0.0
        %748 = vmatpush2.msra.mxu0 0.0
        %749 = vmatprep.subr.mxu0 0.0
        %750 = vmatpush2.msra.mxu0 0.0
        %751 = vmatprep.subr.mxu0 0.0
        %752 = vmatpush2.msra.mxu0 0.0
        %753 = vmatprep.subr.mxu0 0.0
        %754 = vmatpush2.msra.mxu0 0.0
        %755 = vmatprep.subr.mxu0 0.0
        %756 = vmatpush2.msra.mxu0 0.0
        %757 = vmatprep.subr.mxu0 0.0
        %758 = vmatpush2.msra.mxu0 0.0
        %759 = vmatprep.subr.mxu0 0.0
        %760 = vmatpush2.msra.mxu0 0.0
        %761 = vmatprep.subr.mxu0 0.0
        %762 = vmatpush2.msra.mxu0 0.0
        %763 = vmatprep.subr.mxu0 0.0
        %764 = vmatpush2.msra.mxu0 0.0
        %765 = vmatprep.subr.mxu0 0.0
        %766 = vmatpush2.msra.mxu0 0.0
        %767 = vmatprep.subr.mxu0 0.0
        %768 = vmatpush2.msra.mxu0 0.0
        %769 = vmatprep.subr.mxu0 0.0
        %770 = vmatpush2.msra.mxu0 0.0
        %771 = vmatprep.subr.mxu0 0.0
        %772 = vmatpush2.msra.mxu0 0.0
        %773 = vmatprep.subr.mxu0 0.0
        %774 = vmatpush2.msra.mxu0 0.0
        %775 = vmatprep.mubr.f32.mxu0 0.0
        %776 = vmatmul.mubr.f32.gmra.mxu0 %v706
        %v777 = vpop.f32.mrf.mxu0
        %v778 = vadd.f32 0.0, %v777
        %v779 = vpop.f32.mrf.mxu0
        %780 = vmatprep.mubr.f32.mxu0 0.0
        %781 = vmatmul.mubr.f32.gmra.mxu0 %v709
        %v782 = vpop.f32.mrf.mxu0
        %v783 = vadd.f32 0.0, %v782
        %v784 = vpop.f32.mrf.mxu0
        %785 = vdwg.mxu0
        %786 = vmatprep.subr.mxu0 0.0
        %787 = vmatpush1.msra.mxu0 0.0
        %788 = vmatprep.subr.mxu0 0.0
        %789 = vmatpush1.msra.mxu0 0.0
        %790 = vmatprep.subr.mxu0 0.0
        %791 = vmatpush1.msra.mxu0 0.0
        %792 = vmatprep.subr.mxu0 0.0
        %793 = vmatpush1.msra.mxu0 0.0
        %794 = vmatprep.subr.mxu0 0.0
        %795 = vmatpush1.msra.mxu0 0.0
        %796 = vmatprep.subr.mxu0 0.0
        %797 = vmatpush1.msra.mxu0 0.0
        %798 = vmatprep.subr.mxu0 0.0
        %799 = vmatpush1.msra.mxu0 0.0
        %800 = vmatprep.subr.mxu0 0.0
        %801 = vmatpush1.msra.mxu0 0.0
        %802 = vmatprep.subr.mxu0 0.0
        %803 = vmatpush1.msra.mxu0 0.0
        %804 = vmatprep.subr.mxu0 0.0
        %805 = vmatpush1.msra.mxu0 0.0
        %806 = vmatprep.subr.mxu0 0.0
        %807 = vmatpush1.msra.mxu0 0.0
        %808 = vmatprep.subr.mxu0 0.0
        %809 = vmatpush1.msra.mxu0 0.0
        %810 = vmatprep.subr.mxu0 0.0
        %811 = vmatpush1.msra.mxu0 0.0
        %812 = vmatprep.subr.mxu0 0.0
        %813 = vmatpush1.msra.mxu0 0.0
        %814 = vmatprep.subr.mxu0 0.0
        %815 = vmatpush1.msra.mxu0 %v375
        %816 = vmatprep.subr.mxu0 0.0
        %817 = vmatpush1.msra.mxu0 %v374
        %818 = vmatprep.subr.mxu0 0.0
        %819 = vmatpush2.msra.mxu0 0.0
        %820 = vmatprep.subr.mxu0 0.0
        %821 = vmatpush2.msra.mxu0 0.0
        %822 = vmatprep.subr.mxu0 0.0
        %823 = vmatpush2.msra.mxu0 0.0
        %824 = vmatprep.subr.mxu0 0.0
        %825 = vmatpush2.msra.mxu0 0.0
        %826 = vmatprep.subr.mxu0 0.0
        %827 = vmatpush2.msra.mxu0 0.0
        %828 = vmatprep.subr.mxu0 0.0
        %829 = vmatpush2.msra.mxu0 0.0
        %830 = vmatprep.subr.mxu0 0.0
        %831 = vmatpush2.msra.mxu0 0.0
        %832 = vmatprep.subr.mxu0 0.0
        %833 = vmatpush2.msra.mxu0 0.0
        %834 = vmatprep.subr.mxu0 0.0
        %835 = vmatpush2.msra.mxu0 0.0
        %836 = vmatprep.subr.mxu0 0.0
        %837 = vmatpush2.msra.mxu0 0.0
        %838 = vmatprep.subr.mxu0 0.0
        %839 = vmatpush2.msra.mxu0 0.0
        %840 = vmatprep.subr.mxu0 0.0
        %841 = vmatpush2.msra.mxu0 0.0
        %842 = vmatprep.subr.mxu0 0.0
        %843 = vmatpush2.msra.mxu0 0.0
        %844 = vmatprep.subr.mxu0 0.0
        %845 = vmatpush2.msra.mxu0 0.0
        %846 = vmatprep.subr.mxu0 0.0
        %847 = vmatpush2.msra.mxu0 0.0
        %848 = vmatprep.subr.mxu0 0.0
        %849 = vmatpush2.msra.mxu0 0.0
        %850 = vmatprep.mubr.f32.mxu0 0.0
        %851 = vmatmul.mubr.f32.gmra.mxu0 %v706
        %v852 = vpop.f32.mrf.mxu0
        %v853 = vadd.f32 0.0, %v852
        %v854 = vpop.f32.mrf.mxu0
        %855 = vmatprep.mubr.f32.mxu0 0.0
        %856 = vmatmul.mubr.f32.gmra.mxu0 %v709
        %v857 = vpop.f32.mrf.mxu0
        %v858 = vadd.f32 0.0, %v857
        %v859 = vpop.f32.mrf.mxu0
        %860 = vdwg.mxu0
        %861 = vmatprep.subr.mxu0 0.0
        %862 = vmatpush1.msra.mxu0 0.0
        %863 = vmatprep.subr.mxu0 0.0
        %864 = vmatpush1.msra.mxu0 0.0
        %865 = vmatprep.subr.mxu0 0.0
        %866 = vmatpush1.msra.mxu0 0.0
        %867 = vmatprep.subr.mxu0 0.0
        %868 = vmatpush1.msra.mxu0 0.0
        %869 = vmatprep.subr.mxu0 0.0
        %870 = vmatpush1.msra.mxu0 0.0
        %871 = vmatprep.subr.mxu0 0.0
        %872 = vmatpush1.msra.mxu0 0.0
        %873 = vmatprep.subr.mxu0 0.0
        %874 = vmatpush1.msra.mxu0 0.0
        %875 = vmatprep.subr.mxu0 0.0
        %876 = vmatpush1.msra.mxu0 0.0
        %877 = vmatprep.subr.mxu0 0.0
        %878 = vmatpush1.msra.mxu0 0.0
        %879 = vmatprep.subr.mxu0 0.0
        %880 = vmatpush1.msra.mxu0 0.0
        %881 = vmatprep.subr.mxu0 0.0
        %882 = vmatpush1.msra.mxu0 0.0
        %883 = vmatprep.subr.mxu0 0.0
        %884 = vmatpush1.msra.mxu0 0.0
        %885 = vmatprep.subr.mxu0 0.0
        %886 = vmatpush1.msra.mxu0 0.0
        %887 = vmatprep.subr.mxu0 0.0
        %888 = vmatpush1.msra.mxu0 0.0
        %889 = vmatprep.subr.mxu0 0.0
        %890 = vmatpush1.msra.mxu0 %v377
        %891 = vmatprep.subr.mxu0 0.0
        %892 = vmatpush1.msra.mxu0 %v376
        %893 = vmatprep.subr.mxu0 0.0
        %894 = vmatpush2.msra.mxu0 0.0
        %895 = vmatprep.subr.mxu0 0.0
        %896 = vmatpush2.msra.mxu0 0.0
        %897 = vmatprep.subr.mxu0 0.0
        %898 = vmatpush2.msra.mxu0 0.0
        %899 = vmatprep.subr.mxu0 0.0
        %900 = vmatpush2.msra.mxu0 0.0
        %901 = vmatprep.subr.mxu0 0.0
        %902 = vmatpush2.msra.mxu0 0.0
        %903 = vmatprep.subr.mxu0 0.0
        %904 = vmatpush2.msra.mxu0 0.0
        %905 = vmatprep.subr.mxu0 0.0
        %906 = vmatpush2.msra.mxu0 0.0
        %907 = vmatprep.subr.mxu0 0.0
        %908 = vmatpush2.msra.mxu0 0.0
        %909 = vmatprep.subr.mxu0 0.0
        %910 = vmatpush2.msra.mxu0 0.0
        %911 = vmatprep.subr.mxu0 0.0
        %912 = vmatpush2.msra.mxu0 0.0
        %913 = vmatprep.subr.mxu0 0.0
        %914 = vmatpush2.msra.mxu0 0.0
        %915 = vmatprep.subr.mxu0 0.0
        %916 = vmatpush2.msra.mxu0 0.0
        %917 = vmatprep.subr.mxu0 0.0
        %918 = vmatpush2.msra.mxu0 0.0
        %919 = vmatprep.subr.mxu0 0.0
        %920 = vmatpush2.msra.mxu0 0.0
        %921 = vmatprep.subr.mxu0 0.0
        %922 = vmatpush2.msra.mxu0 0.0
        %923 = vmatprep.subr.mxu0 0.0
        %924 = vmatpush2.msra.mxu0 0.0
        %925 = vmatprep.mubr.f32.mxu0 0.0
        %926 = vmatmul.mubr.f32.gmra.mxu0 %v394
        %v927 = vpop.f32.mrf.mxu0
        %v928 = vadd.f32 0.0, %v927
        %v929 = vpop.f32.mrf.mxu0
        %930 = vmatprep.mubr.f32.mxu0 0.0
        %931 = vmatmul.mubr.f32.gmra.mxu0 %v397
        %v932 = vpop.f32.mrf.mxu0
        %v933 = vadd.f32 0.0, %v932
        %v934 = vpop.f32.mrf.mxu0
        %935 = vdwg.mxu0
        %936 = vmatprep.subr.mxu0 0.0
        %937 = vmatpush1.msra.mxu0 0.0
        %938 = vmatprep.subr.mxu0 0.0
        %939 = vmatpush1.msra.mxu0 0.0
        %940 = vmatprep.subr.mxu0 0.0
        %941 = vmatpush1.msra.mxu0 0.0
        %942 = vmatprep.subr.mxu0 0.0
        %943 = vmatpush1.msra.mxu0 0.0
        %944 = vmatprep.subr.mxu0 0.0
        %945 = vmatpush1.msra.mxu0 0.0
        %946 = vmatprep.subr.mxu0 0.0
        %947 = vmatpush1.msra.mxu0 0.0
        %948 = vmatprep.subr.mxu0 0.0
        %949 = vmatpush1.msra.mxu0 0.0
        %950 = vmatprep.subr.mxu0 0.0
        %951 = vmatpush1.msra.mxu0 0.0
        %952 = vmatprep.subr.mxu0 0.0
        %953 = vmatpush1.msra.mxu0 0.0
        %954 = vmatprep.subr.mxu0 0.0
        %955 = vmatpush1.msra.mxu0 0.0
        %956 = vmatprep.subr.mxu0 0.0
        %957 = vmatpush1.msra.mxu0 0.0
        %958 = vmatprep.subr.mxu0 0.0
        %959 = vmatpush1.msra.mxu0 0.0
        %960 = vmatprep.subr.mxu0 0.0
        %961 = vmatpush1.msra.mxu0 0.0
        %962 = vmatprep.subr.mxu0 0.0
        %963 = vmatpush1.msra.mxu0 0.0
        %964 = vmatprep.subr.mxu0 0.0
        %965 = vmatpush1.msra.mxu0 %v379
        %966 = vmatprep.subr.mxu0 0.0
        %967 = vmatpush1.msra.mxu0 %v378
        %968 = vmatprep.subr.mxu0 0.0
        %969 = vmatpush2.msra.mxu0 0.0
        %970 = vmatprep.subr.mxu0 0.0
        %971 = vmatpush2.msra.mxu0 0.0
        %972 = vmatprep.subr.mxu0 0.0
        %973 = vmatpush2.msra.mxu0 0.0
        %974 = vmatprep.subr.mxu0 0.0
        %975 = vmatpush2.msra.mxu0 0.0
        %976 = vmatprep.subr.mxu0 0.0
        %977 = vmatpush2.msra.mxu0 0.0
        %978 = vmatprep.subr.mxu0 0.0
        %979 = vmatpush2.msra.mxu0 0.0
        %980 = vmatprep.subr.mxu0 0.0
        %981 = vmatpush2.msra.mxu0 0.0
        %982 = vmatprep.subr.mxu0 0.0
        %983 = vmatpush2.msra.mxu0 0.0
        %984 = vmatprep.subr.mxu0 0.0
        %985 = vmatpush2.msra.mxu0 0.0
        %986 = vmatprep.subr.mxu0 0.0
        %987 = vmatpush2.msra.mxu0 0.0
        %988 = vmatprep.subr.mxu0 0.0
        %989 = vmatpush2.msra.mxu0 0.0
        %990 = vmatprep.subr.mxu0 0.0
        %991 = vmatpush2.msra.mxu0 0.0
        %992 = vmatprep.subr.mxu0 0.0
        %993 = vmatpush2.msra.mxu0 0.0
        %994 = vmatprep.subr.mxu0 0.0
        %995 = vmatpush2.msra.mxu0 0.0
        %996 = vmatprep.subr.mxu0 0.0
        %997 = vmatpush2.msra.mxu0 0.0
        %998 = vmatprep.subr.mxu0 0.0
        %999 = vmatpush2.msra.mxu0 0.0
        %1000 = vmatprep.mubr.f32.mxu0 0.0
        %1001 = vmatmul.mubr.f32.gmra.mxu0 %v394
        %v1002 = vpop.f32.mrf.mxu0
        %v1003 = vadd.f32 0.0, %v1002
        %v1004 = vpop.f32.mrf.mxu0
        %1005 = vmatprep.mubr.f32.mxu0 0.0
        %1006 = vmatmul.mubr.f32.gmra.mxu0 %v397
        %v1007 = vpop.f32.mrf.mxu0
        %v1008 = vadd.f32 0.0, %v1007
        %v1009 = vpop.f32.mrf.mxu0
        %1010 = vdwg.mxu0
        %1011 = vmatprep.subr.mxu0 0.0
        %1012 = vmatpush1.msra.mxu0 0.0
        %1013 = vmatprep.subr.mxu0 0.0
        %1014 = vmatpush1.msra.mxu0 0.0
        %1015 = vmatprep.subr.mxu0 0.0
        %1016 = vmatpush1.msra.mxu0 0.0
        %1017 = vmatprep.subr.mxu0 0.0
        %1018 = vmatpush1.msra.mxu0 0.0
        %1019 = vmatprep.subr.mxu0 0.0
        %1020 = vmatpush1.msra.mxu0 0.0
        %1021 = vmatprep.subr.mxu0 0.0
        %1022 = vmatpush1.msra.mxu0 0.0
        %1023 = vmatprep.subr.mxu0 0.0
        %1024 = vmatpush1.msra.mxu0 0.0
        %1025 = vmatprep.subr.mxu0 0.0
        %1026 = vmatpush1.msra.mxu0 0.0
        %1027 = vmatprep.subr.mxu0 0.0
        %1028 = vmatpush1.msra.mxu0 0.0
        %1029 = vmatprep.subr.mxu0 0.0
        %1030 = vmatpush1.msra.mxu0 0.0
        %1031 = vmatprep.subr.mxu0 0.0
        %1032 = vmatpush1.msra.mxu0 0.0
        %1033 = vmatprep.subr.mxu0 0.0
        %1034 = vmatpush1.msra.mxu0 0.0
        %1035 = vmatprep.subr.mxu0 0.0
        %1036 = vmatpush1.msra.mxu0 0.0
        %1037 = vmatprep.subr.mxu0 0.0
        %1038 = vmatpush1.msra.mxu0 0.0
        %1039 = vmatprep.subr.mxu0 0.0
        %1040 = vmatpush1.msra.mxu0 %v377
        %1041 = vmatprep.subr.mxu0 0.0
        %1042 = vmatpush1.msra.mxu0 %v376
        %1043 = vmatprep.subr.mxu0 0.0
        %1044 = vmatpush2.msra.mxu0 0.0
        %1045 = vmatprep.subr.mxu0 0.0
        %1046 = vmatpush2.msra.mxu0 0.0
        %1047 = vmatprep.subr.mxu0 0.0
        %1048 = vmatpush2.msra.mxu0 0.0
        %1049 = vmatprep.subr.mxu0 0.0
        %1050 = vmatpush2.msra.mxu0 0.0
        %1051 = vmatprep.subr.mxu0 0.0
        %1052 = vmatpush2.msra.mxu0 0.0
        %1053 = vmatprep.subr.mxu0 0.0
        %1054 = vmatpush2.msra.mxu0 0.0
        %1055 = vmatprep.subr.mxu0 0.0
        %1056 = vmatpush2.msra.mxu0 0.0
        %1057 = vmatprep.subr.mxu0 0.0
        %1058 = vmatpush2.msra.mxu0 0.0
        %1059 = vmatprep.subr.mxu0 0.0
        %1060 = vmatpush2.msra.mxu0 0.0
        %1061 = vmatprep.subr.mxu0 0.0
        %1062 = vmatpush2.msra.mxu0 0.0
        %1063 = vmatprep.subr.mxu0 0.0
        %1064 = vmatpush2.msra.mxu0 0.0
        %1065 = vmatprep.subr.mxu0 0.0
        %1066 = vmatpush2.msra.mxu0 0.0
        %1067 = vmatprep.subr.mxu0 0.0
        %1068 = vmatpush2.msra.mxu0 0.0
        %1069 = vmatprep.subr.mxu0 0.0
        %1070 = vmatpush2.msra.mxu0 0.0
        %1071 = vmatprep.subr.mxu0 0.0
        %1072 = vmatpush2.msra.mxu0 0.0
        %1073 = vmatprep.subr.mxu0 0.0
        %1074 = vmatpush2.msra.mxu0 0.0
        %1075 = vmatprep.mubr.f32.mxu0 0.0
        %1076 = vmatmul.mubr.f32.gmra.mxu0 %v550
        %v1077 = vpop.f32.mrf.mxu0
        %v1078 = vadd.f32 0.0, %v1077
        %v1079 = vpop.f32.mrf.mxu0
        %1080 = vmatprep.mubr.f32.mxu0 0.0
        %1081 = vmatmul.mubr.f32.gmra.mxu0 %v553
        %v1082 = vpop.f32.mrf.mxu0
        %v1083 = vadd.f32 0.0, %v1082
        %v1084 = vpop.f32.mrf.mxu0
        %1085 = vdwg.mxu0
        %1086 = vmatprep.subr.mxu0 0.0
        %1087 = vmatpush1.msra.mxu0 0.0
        %1088 = vmatprep.subr.mxu0 0.0
        %1089 = vmatpush1.msra.mxu0 0.0
        %1090 = vmatprep.subr.mxu0 0.0
        %1091 = vmatpush1.msra.mxu0 0.0
        %1092 = vmatprep.subr.mxu0 0.0
        %1093 = vmatpush1.msra.mxu0 0.0
        %1094 = vmatprep.subr.mxu0 0.0
        %1095 = vmatpush1.msra.mxu0 0.0
        %1096 = vmatprep.subr.mxu0 0.0
        %1097 = vmatpush1.msra.mxu0 0.0
        %1098 = vmatprep.subr.mxu0 0.0
        %1099 = vmatpush1.msra.mxu0 0.0
        %1100 = vmatprep.subr.mxu0 0.0
        %1101 = vmatpush1.msra.mxu0 0.0
        %1102 = vmatprep.subr.mxu0 0.0
        %1103 = vmatpush1.msra.mxu0 0.0
        %1104 = vmatprep.subr.mxu0 0.0
        %1105 = vmatpush1.msra.mxu0 0.0
        %1106 = vmatprep.subr.mxu0 0.0
        %1107 = vmatpush1.msra.mxu0 0.0
        %1108 = vmatprep.subr.mxu0 0.0
        %1109 = vmatpush1.msra.mxu0 0.0
        %1110 = vmatprep.subr.mxu0 0.0
        %1111 = vmatpush1.msra.mxu0 0.0
        %1112 = vmatprep.subr.mxu0 0.0
        %1113 = vmatpush1.msra.mxu0 0.0
        %1114 = vmatprep.subr.mxu0 0.0
        %1115 = vmatpush1.msra.mxu0 %v379
        %1116 = vmatprep.subr.mxu0 0.0
        %1117 = vmatpush1.msra.mxu0 %v378
        %1118 = vmatprep.subr.mxu0 0.0
        %1119 = vmatpush2.msra.mxu0 0.0
        %1120 = vmatprep.subr.mxu0 0.0
        %1121 = vmatpush2.msra.mxu0 0.0
        %1122 = vmatprep.subr.mxu0 0.0
        %1123 = vmatpush2.msra.mxu0 0.0
        %1124 = vmatprep.subr.mxu0 0.0
        %1125 = vmatpush2.msra.mxu0 0.0
        %1126 = vmatprep.subr.mxu0 0.0
        %1127 = vmatpush2.msra.mxu0 0.0
        %1128 = vmatprep.subr.mxu0 0.0
        %1129 = vmatpush2.msra.mxu0 0.0
        %1130 = vmatprep.subr.mxu0 0.0
        %1131 = vmatpush2.msra.mxu0 0.0
        %1132 = vmatprep.subr.mxu0 0.0
        %1133 = vmatpush2.msra.mxu0 0.0
        %1134 = vmatprep.subr.mxu0 0.0
        %1135 = vmatpush2.msra.mxu0 0.0
        %1136 = vmatprep.subr.mxu0 0.0
        %1137 = vmatpush2.msra.mxu0 0.0
        %1138 = vmatprep.subr.mxu0 0.0
        %1139 = vmatpush2.msra.mxu0 0.0
        %1140 = vmatprep.subr.mxu0 0.0
        %1141 = vmatpush2.msra.mxu0 0.0
        %1142 = vmatprep.subr.mxu0 0.0
        %1143 = vmatpush2.msra.mxu0 0.0
        %1144 = vmatprep.subr.mxu0 0.0
        %1145 = vmatpush2.msra.mxu0 0.0
        %1146 = vmatprep.subr.mxu0 0.0
        %1147 = vmatpush2.msra.mxu0 0.0
        %1148 = vmatprep.subr.mxu0 0.0
        %1149 = vmatpush2.msra.mxu0 0.0
        %1150 = vmatprep.mubr.f32.mxu0 0.0
        %1151 = vmatmul.mubr.f32.gmra.mxu0 %v550
        %v1152 = vpop.f32.mrf.mxu0
        %v1153 = vadd.f32 0.0, %v1152
        %v1154 = vpop.f32.mrf.mxu0
        %1155 = vmatprep.mubr.f32.mxu0 0.0
        %1156 = vmatmul.mubr.f32.gmra.mxu0 %v553
        %v1157 = vpop.f32.mrf.mxu0
        %v1158 = vadd.f32 0.0, %v1157
        %v1159 = vpop.f32.mrf.mxu0
        %1160 = vdwg.mxu0
        %1161 = vmatprep.subr.mxu0 0.0
        %1162 = vmatpush1.msra.mxu0 0.0
        %1163 = vmatprep.subr.mxu0 0.0
        %1164 = vmatpush1.msra.mxu0 0.0
        %1165 = vmatprep.subr.mxu0 0.0
        %1166 = vmatpush1.msra.mxu0 0.0
        %1167 = vmatprep.subr.mxu0 0.0
        %1168 = vmatpush1.msra.mxu0 0.0
        %1169 = vmatprep.subr.mxu0 0.0
        %1170 = vmatpush1.msra.mxu0 0.0
        %1171 = vmatprep.subr.mxu0 0.0
        %1172 = vmatpush1.msra.mxu0 0.0
        %1173 = vmatprep.subr.mxu0 0.0
        %1174 = vmatpush1.msra.mxu0 0.0
        %1175 = vmatprep.subr.mxu0 0.0
        %1176 = vmatpush1.msra.mxu0 0.0
        %1177 = vmatprep.subr.mxu0 0.0
        %1178 = vmatpush1.msra.mxu0 0.0
        %1179 = vmatprep.subr.mxu0 0.0
        %1180 = vmatpush1.msra.mxu0 0.0
        %1181 = vmatprep.subr.mxu0 0.0
        %1182 = vmatpush1.msra.mxu0 0.0
        %1183 = vmatprep.subr.mxu0 0.0
        %1184 = vmatpush1.msra.mxu0 0.0
        %1185 = vmatprep.subr.mxu0 0.0
        %1186 = vmatpush1.msra.mxu0 0.0
        %1187 = vmatprep.subr.mxu0 0.0
        %1188 = vmatpush1.msra.mxu0 0.0
        %1189 = vmatprep.subr.mxu0 0.0
        %1190 = vmatpush1.msra.mxu0 %v377
        %1191 = vmatprep.subr.mxu0 0.0
        %1192 = vmatpush1.msra.mxu0 %v376
        %1193 = vmatprep.subr.mxu0 0.0
        %1194 = vmatpush2.msra.mxu0 0.0
        %1195 = vmatprep.subr.mxu0 0.0
        %1196 = vmatpush2.msra.mxu0 0.0
        %1197 = vmatprep.subr.mxu0 0.0
        %1198 = vmatpush2.msra.mxu0 0.0
        %1199 = vmatprep.subr.mxu0 0.0
        %1200 = vmatpush2.msra.mxu0 0.0
        %1201 = vmatprep.subr.mxu0 0.0
        %1202 = vmatpush2.msra.mxu0 0.0
        %1203 = vmatprep.subr.mxu0 0.0
        %1204 = vmatpush2.msra.mxu0 0.0
        %1205 = vmatprep.subr.mxu0 0.0
        %1206 = vmatpush2.msra.mxu0 0.0
        %1207 = vmatprep.subr.mxu0 0.0
        %1208 = vmatpush2.msra.mxu0 0.0
        %1209 = vmatprep.subr.mxu0 0.0
        %1210 = vmatpush2.msra.mxu0 0.0
        %1211 = vmatprep.subr.mxu0 0.0
        %1212 = vmatpush2.msra.mxu0 0.0
        %1213 = vmatprep.subr.mxu0 0.0
        %1214 = vmatpush2.msra.mxu0 0.0
        %1215 = vmatprep.subr.mxu0 0.0
        %1216 = vmatpush2.msra.mxu0 0.0
        %1217 = vmatprep.subr.mxu0 0.0
        %1218 = vmatpush2.msra.mxu0 0.0
        %1219 = vmatprep.subr.mxu0 0.0
        %1220 = vmatpush2.msra.mxu0 0.0
        %1221 = vmatprep.subr.mxu0 0.0
        %1222 = vmatpush2.msra.mxu0 0.0
        %1223 = vmatprep.subr.mxu0 0.0
        %1224 = vmatpush2.msra.mxu0 0.0
        %1225 = vmatprep.mubr.f32.mxu0 0.0
        %1226 = vmatmul.mubr.f32.gmra.mxu0 %v706
        %v1227 = vpop.f32.mrf.mxu0
        %v1228 = vadd.f32 0.0, %v1227
        %v1229 = vpop.f32.mrf.mxu0
        %1230 = vmatprep.mubr.f32.mxu0 0.0
        %1231 = vmatmul.mubr.f32.gmra.mxu0 %v709
        %v1232 = vpop.f32.mrf.mxu0
        %v1233 = vadd.f32 0.0, %v1232
        %v1234 = vpop.f32.mrf.mxu0
        %1235 = vdwg.mxu0
        %1236 = vmatprep.subr.mxu0 0.0
        %1237 = vmatpush1.msra.mxu0 0.0
        %1238 = vmatprep.subr.mxu0 0.0
        %1239 = vmatpush1.msra.mxu0 0.0
        %1240 = vmatprep.subr.mxu0 0.0
        %1241 = vmatpush1.msra.mxu0 0.0
        %1242 = vmatprep.subr.mxu0 0.0
        %1243 = vmatpush1.msra.mxu0 0.0
        %1244 = vmatprep.subr.mxu0 0.0
        %1245 = vmatpush1.msra.mxu0 0.0
        %1246 = vmatprep.subr.mxu0 0.0
        %1247 = vmatpush1.msra.mxu0 0.0
        %1248 = vmatprep.subr.mxu0 0.0
        %1249 = vmatpush1.msra.mxu0 0.0
        %1250 = vmatprep.subr.mxu0 0.0
        %1251 = vmatpush1.msra.mxu0 0.0
        %1252 = vmatprep.subr.mxu0 0.0
        %1253 = vmatpush1.msra.mxu0 0.0
        %1254 = vmatprep.subr.mxu0 0.0
        %1255 = vmatpush1.msra.mxu0 0.0
        %1256 = vmatprep.subr.mxu0 0.0
        %1257 = vmatpush1.msra.mxu0 0.0
        %1258 = vmatprep.subr.mxu0 0.0
        %1259 = vmatpush1.msra.mxu0 0.0
        %1260 = vmatprep.subr.mxu0 0.0
        %1261 = vmatpush1.msra.mxu0 0.0
        %1262 = vmatprep.subr.mxu0 0.0
        %1263 = vmatpush1.msra.mxu0 0.0
        %1264 = vmatprep.subr.mxu0 0.0
        %1265 = vmatpush1.msra.mxu0 %v379
        %1266 = vmatprep.subr.mxu0 0.0
        %1267 = vmatpush1.msra.mxu0 %v378
        %1268 = vmatprep.subr.mxu0 0.0
        %1269 = vmatpush2.msra.mxu0 0.0
        %1270 = vmatprep.subr.mxu0 0.0
        %1271 = vmatpush2.msra.mxu0 0.0
        %1272 = vmatprep.subr.mxu0 0.0
        %1273 = vmatpush2.msra.mxu0 0.0
        %1274 = vmatprep.subr.mxu0 0.0
        %1275 = vmatpush2.msra.mxu0 0.0
        %1276 = vmatprep.subr.mxu0 0.0
        %1277 = vmatpush2.msra.mxu0 0.0
        %1278 = vmatprep.subr.mxu0 0.0
        %1279 = vmatpush2.msra.mxu0 0.0
        %1280 = vmatprep.subr.mxu0 0.0
        %1281 = vmatpush2.msra.mxu0 0.0
        %1282 = vmatprep.subr.mxu0 0.0
        %1283 = vmatpush2.msra.mxu0 0.0
        %1284 = vmatprep.subr.mxu0 0.0
        %1285 = vmatpush2.msra.mxu0 0.0
        %1286 = vmatprep.subr.mxu0 0.0
        %1287 = vmatpush2.msra.mxu0 0.0
        %1288 = vmatprep.subr.mxu0 0.0
        %1289 = vmatpush2.msra.mxu0 0.0
        %1290 = vmatprep.subr.mxu0 0.0
        %1291 = vmatpush2.msra.mxu0 0.0
        %1292 = vmatprep.subr.mxu0 0.0
        %1293 = vmatpush2.msra.mxu0 0.0
        %1294 = vmatprep.subr.mxu0 0.0
        %1295 = vmatpush2.msra.mxu0 0.0
        %1296 = vmatprep.subr.mxu0 0.0
        %1297 = vmatpush2.msra.mxu0 0.0
        %1298 = vmatprep.subr.mxu0 0.0
        %1299 = vmatpush2.msra.mxu0 0.0
        %1300 = vmatprep.mubr.f32.mxu0 0.0
        %1301 = vmatmul.mubr.f32.gmra.mxu0 %v706
        %v1302 = vpop.f32.mrf.mxu0
        %v1303 = vadd.f32 0.0, %v1302
        %v1304 = vpop.f32.mrf.mxu0
        %1305 = vmatprep.mubr.f32.mxu0 0.0
        %1306 = vmatmul.mubr.f32.gmra.mxu0 %v709
        %v1307 = vpop.f32.mrf.mxu0
        %v1308 = vadd.f32 0.0, %v1307
        %v1309 = vpop.f32.mrf.mxu0
        %1310 = vdwg.mxu0
        %v1311 = vld [vmem:[#allocation3] sm:$0xf]
        %v1312 = vld [vmem:[%s4] sm:$0xff]
        %v1313 = vld [vmem:[%s4 + $0x8] sm:$0xff]
        %v1314 = vld [vmem:[%s4 + $0x10] sm:$0xff]
        %v1315 = vld [vmem:[%s4 + $0x18] sm:$0xff]
        %v1316 = vld [vmem:[%s4 + $0x20] sm:$0xff]
        %v1317 = vld [vmem:[%s4 + $0x28] sm:$0xff]
        %v1318 = vld [vmem:[%s4 + $0x30] sm:$0xff]
        %v1319 = vld [vmem:[%s4 + $0x38] sm:$0xff]
        %v1320 = vld [vmem:[%s4 + $0x40] sm:$0xff]
        %v1321 = vld [vmem:[%s4 + $0x48] sm:$0xff]
        %v1322 = vld [vmem:[%s4 + $0x50] sm:$0xff]
        %v1323 = vld [vmem:[%s4 + $0x58] sm:$0xff]
        %v1324 = vld [vmem:[%s4 + $0x60] sm:$0xff]
        %v1325 = vld [vmem:[%s4 + $0x68] sm:$0xff]
        %v1326 = vld [vmem:[%s4 + $0x70] sm:$0xff]
        %v1327 = vld [vmem:[%s4 + $0x78] sm:$0xff]
        %vm1328 = vcmask 261120
        %v1330 = vsel %vm1328, %v928, 0
        %v1333 = vsel %vm1328, %v933, 0
        %v1336 = vsel %vm1328, %v1003, 0
        %v1339 = vsel %vm1328, %v1008, 0
        %1341 = vmatprep.subr.mxu0 0.0
        %1342 = vmatpush1.msra.mxu0 0.0
        %1343 = vmatprep.subr.mxu0 0.0
        %1344 = vmatpush1.msra.mxu0 0.0
        %1345 = vmatprep.subr.mxu0 0.0
        %1346 = vmatpush1.msra.mxu0 0.0
        %1347 = vmatprep.subr.mxu0 0.0
        %1348 = vmatpush1.msra.mxu0 0.0
        %1349 = vmatprep.subr.mxu0 0.0
        %1350 = vmatpush1.msra.mxu0 0.0
        %1351 = vmatprep.subr.mxu0 0.0
        %1352 = vmatpush1.msra.mxu0 0.0
        %1353 = vmatprep.subr.mxu0 0.0
        %1354 = vmatpush1.msra.mxu0 0.0
        %1355 = vmatprep.subr.mxu0 0.0
        %1356 = vmatpush1.msra.mxu0 0.0
        %1357 = vmatprep.subr.mxu0 0.0
        %1358 = vmatpush1.msra.mxu0 0.0
        %1359 = vmatprep.subr.mxu0 0.0
        %1360 = vmatpush1.msra.mxu0 0.0
        %1361 = vmatprep.subr.mxu0 0.0
        %1362 = vmatpush1.msra.mxu0 0.0
        %1363 = vmatprep.subr.mxu0 0.0
        %1364 = vmatpush1.msra.mxu0 0.0
        %1365 = vmatprep.subr.mxu0 %v1325
        %1366 = vmatpush1.msra.mxu0 %v1324
        %1367 = vmatprep.subr.mxu0 %v1321
        %1368 = vmatpush1.msra.mxu0 %v1320
        %1369 = vmatprep.subr.mxu0 %v1317
        %1370 = vmatpush1.msra.mxu0 %v1316
        %1371 = vmatprep.subr.mxu0 %v1313
        %1372 = vmatpush1.msra.mxu0 %v1312
        %1373 = vmatprep.subr.mxu0 0.0
        %1374 = vmatpush2.msra.mxu0 0.0
        %1375 = vmatprep.subr.mxu0 0.0
        %1376 = vmatpush2.msra.mxu0 0.0
        %1377 = vmatprep.subr.mxu0 0.0
        %1378 = vmatpush2.msra.mxu0 0.0
        %1379 = vmatprep.subr.mxu0 0.0
        %1380 = vmatpush2.msra.mxu0 0.0
        %1381 = vmatprep.subr.mxu0 0.0
        %1382 = vmatpush2.msra.mxu0 0.0
        %1383 = vmatprep.subr.mxu0 0.0
        %1384 = vmatpush2.msra.mxu0 0.0
        %1385 = vmatprep.subr.mxu0 0.0
        %1386 = vmatpush2.msra.mxu0 0.0
        %1387 = vmatprep.subr.mxu0 0.0
        %1388 = vmatpush2.msra.mxu0 0.0
        %1389 = vmatprep.subr.mxu0 0.0
        %1390 = vmatpush2.msra.mxu0 0.0
        %1391 = vmatprep.subr.mxu0 0.0
        %1392 = vmatpush2.msra.mxu0 0.0
        %1393 = vmatprep.subr.mxu0 0.0
        %1394 = vmatpush2.msra.mxu0 0.0
        %1395 = vmatprep.subr.mxu0 0.0
        %1396 = vmatpush2.msra.mxu0 0.0
        %1397 = vmatprep.subr.mxu0 0.0
        %1398 = vmatpush2.msra.mxu0 0.0
        %1399 = vmatprep.subr.mxu0 0.0
        %1400 = vmatpush2.msra.mxu0 0.0
        %1401 = vmatprep.subr.mxu0 0.0
        %1402 = vmatpush2.msra.mxu0 0.0
        %1403 = vmatprep.subr.mxu0 0.0
        %1404 = vmatpush2.msra.mxu0 0.0
        %1405 = vmatprep.mubr.f32.mxu0 0.0
        %1406 = vmatmul.mubr.f32.gmra.mxu0 %v1330
        %v1407 = vpop.f32.mrf.mxu0
        %v1408 = vadd.f32 0.0, %v1407
        %v1409 = vpop.f32.mrf.mxu0
        %v1410 = vadd.f32 0.0, %v1409
        %1411 = vmatprep.mubr.f32.mxu0 0.0
        %1412 = vmatmul.mubr.f32.gmra.mxu0 %v1333
        %v1413 = vpop.f32.mrf.mxu0
        %v1414 = vadd.f32 0.0, %v1413
        %v1415 = vpop.f32.mrf.mxu0
        %v1416 = vadd.f32 0.0, %v1415
        %1417 = vmatprep.mubr.f32.mxu0 0.0
        %1418 = vmatmul.mubr.f32.gmra.mxu0 %v1336
        %v1419 = vpop.f32.mrf.mxu0
        %v1420 = vadd.f32 0.0, %v1419
        %v1421 = vpop.f32.mrf.mxu0
        %v1422 = vadd.f32 0.0, %v1421
        %1423 = vmatprep.mubr.f32.mxu0 0.0
        %1424 = vmatmul.mubr.f32.gmra.mxu0 %v1339
        %v1425 = vpop.f32.mrf.mxu0
        %v1426 = vadd.f32 0.0, %v1425
        %v1427 = vpop.f32.mrf.mxu0
        %v1428 = vadd.f32 0.0, %v1427
        %1429 = vdwg.mxu0
        %1430 = vmatprep.subr.mxu0 0.0
        %1431 = vmatpush1.msra.mxu0 0.0
        %1432 = vmatprep.subr.mxu0 0.0
        %1433 = vmatpush1.msra.mxu0 0.0
        %1434 = vmatprep.subr.mxu0 0.0
        %1435 = vmatpush1.msra.mxu0 0.0
        %1436 = vmatprep.subr.mxu0 0.0
        %1437 = vmatpush1.msra.mxu0 0.0
        %1438 = vmatprep.subr.mxu0 0.0
        %1439 = vmatpush1.msra.mxu0 0.0
        %1440 = vmatprep.subr.mxu0 0.0
        %1441 = vmatpush1.msra.mxu0 0.0
        %1442 = vmatprep.subr.mxu0 0.0
        %1443 = vmatpush1.msra.mxu0 0.0
        %1444 = vmatprep.subr.mxu0 0.0
        %1445 = vmatpush1.msra.mxu0 0.0
        %1446 = vmatprep.subr.mxu0 0.0
        %1447 = vmatpush1.msra.mxu0 0.0
        %1448 = vmatprep.subr.mxu0 0.0
        %1449 = vmatpush1.msra.mxu0 0.0
        %1450 = vmatprep.subr.mxu0 0.0
        %1451 = vmatpush1.msra.mxu0 0.0
        %1452 = vmatprep.subr.mxu0 0.0
        %1453 = vmatpush1.msra.mxu0 0.0
        %1454 = vmatprep.subr.mxu0 %v1327
        %1455 = vmatpush1.msra.mxu0 %v1326
        %1456 = vmatprep.subr.mxu0 %v1323
        %1457 = vmatpush1.msra.mxu0 %v1322
        %1458 = vmatprep.subr.mxu0 %v1319
        %1459 = vmatpush1.msra.mxu0 %v1318
        %1460 = vmatprep.subr.mxu0 %v1315
        %1461 = vmatpush1.msra.mxu0 %v1314
        %1462 = vmatprep.subr.mxu0 0.0
        %1463 = vmatpush2.msra.mxu0 0.0
        %1464 = vmatprep.subr.mxu0 0.0
        %1465 = vmatpush2.msra.mxu0 0.0
        %1466 = vmatprep.subr.mxu0 0.0
        %1467 = vmatpush2.msra.mxu0 0.0
        %1468 = vmatprep.subr.mxu0 0.0
        %1469 = vmatpush2.msra.mxu0 0.0
        %1470 = vmatprep.subr.mxu0 0.0
        %1471 = vmatpush2.msra.mxu0 0.0
        %1472 = vmatprep.subr.mxu0 0.0
        %1473 = vmatpush2.msra.mxu0 0.0
        %1474 = vmatprep.subr.mxu0 0.0
        %1475 = vmatpush2.msra.mxu0 0.0
        %1476 = vmatprep.subr.mxu0 0.0
        %1477 = vmatpush2.msra.mxu0 0.0
        %1478 = vmatprep.subr.mxu0 0.0
        %1479 = vmatpush2.msra.mxu0 0.0
        %1480 = vmatprep.subr.mxu0 0.0
        %1481 = vmatpush2.msra.mxu0 0.0
        %1482 = vmatprep.subr.mxu0 0.0
        %1483 = vmatpush2.msra.mxu0 0.0
        %1484 = vmatprep.subr.mxu0 0.0
        %1485 = vmatpush2.msra.mxu0 0.0
        %1486 = vmatprep.subr.mxu0 0.0
        %1487 = vmatpush2.msra.mxu0 0.0
        %1488 = vmatprep.subr.mxu0 0.0
        %1489 = vmatpush2.msra.mxu0 0.0
        %1490 = vmatprep.subr.mxu0 0.0
        %1491 = vmatpush2.msra.mxu0 0.0
        %1492 = vmatprep.subr.mxu0 0.0
        %1493 = vmatpush2.msra.mxu0 0.0
        %1494 = vmatprep.mubr.f32.mxu0 0.0
        %1495 = vmatmul.mubr.f32.gmra.mxu0 %v1330
        %v1496 = vpop.f32.mrf.mxu0
        %v1497 = vadd.f32 0.0, %v1496
        %v1498 = vpop.f32.mrf.mxu0
        %v1499 = vadd.f32 0.0, %v1498
        %1500 = vmatprep.mubr.f32.mxu0 0.0
        %1501 = vmatmul.mubr.f32.gmra.mxu0 %v1333
        %v1502 = vpop.f32.mrf.mxu0
        %v1503 = vadd.f32 0.0, %v1502
        %v1504 = vpop.f32.mrf.mxu0
        %v1505 = vadd.f32 0.0, %v1504
        %1506 = vmatprep.mubr.f32.mxu0 0.0
        %1507 = vmatmul.mubr.f32.gmra.mxu0 %v1336
        %v1508 = vpop.f32.mrf.mxu0
        %v1509 = vadd.f32 0.0, %v1508
        %v1510 = vpop.f32.mrf.mxu0
        %v1511 = vadd.f32 0.0, %v1510
        %1512 = vmatprep.mubr.f32.mxu0 0.0
        %1513 = vmatmul.mubr.f32.gmra.mxu0 %v1339
        %v1514 = vpop.f32.mrf.mxu0
        %v1515 = vadd.f32 0.0, %v1514
        %v1516 = vpop.f32.mrf.mxu0
        %v1517 = vadd.f32 0.0, %v1516
        %1518 = vdwg.mxu0
        %v1520 = vlaneseq
        %v1521 = vshrl.u32 %v1520, 7
        %v1522 = vsub.s32 0, %v1521
        %v1523 = vrot.slane %v1311, %v1522
        %v1524 = vlaneseq
        %v1525 = vshrl.u32 %v1524, 7
        %v1526 = vsub.s32 1, %v1525
        %v1527 = vrot.slane %v1311, %v1526
        %v1528 = vlaneseq
        %v1529 = vshrl.u32 %v1528, 7
        %v1530 = vsub.s32 2, %v1529
        %v1531 = vrot.slane %v1311, %v1530
        %v1532 = vlaneseq
        %v1533 = vshrl.u32 %v1532, 7
        %v1534 = vsub.s32 3, %v1533
        %v1535 = vrot.slane %v1311, %v1534
        %vm1536 = vcmask 7168
        %v1538 = vsel %vm1536, %v466, 0
        %v1541 = vsel %vm1536, %v471, 0
        %v1544 = vsel %vm1536, %v541, 0
        %v1547 = vsel %vm1536, %v546, 0
        %vm1549 = vcmask 1040384
        %v1550 = vsel %vm1549, %v1523, 0
        %v1552 = vsel %vm1549, %v1527, 0
        %v1554 = vsel %vm1549, %v1531, 0
        %v1556 = vsel %vm1549, %v1535, 0
        %1558 = vmatprep.subr.mxu0 0.0
        %1559 = vmatpush1.msra.mxu0 0.0
        %1560 = vmatprep.subr.mxu0 0.0
        %1561 = vmatpush1.msra.mxu0 0.0
        %1562 = vmatprep.subr.mxu0 0.0
        %1563 = vmatpush1.msra.mxu0 0.0
        %1564 = vmatprep.subr.mxu0 0.0
        %1565 = vmatpush1.msra.mxu0 0.0
        %1566 = vmatprep.subr.mxu0 0.0
        %1567 = vmatpush1.msra.mxu0 0.0
        %1568 = vmatprep.subr.mxu0 0.0
        %1569 = vmatpush1.msra.mxu0 0.0
        %1570 = vmatprep.subr.mxu0 0.0
        %1571 = vmatpush1.msra.mxu0 0.0
        %1572 = vmatprep.subr.mxu0 0.0
        %1573 = vmatpush1.msra.mxu0 0.0
        %1574 = vmatprep.subr.mxu0 0.0
        %1575 = vmatpush1.msra.mxu0 0.0
        %1576 = vmatprep.subr.mxu0 0.0
        %1577 = vmatpush1.msra.mxu0 0.0
        %1578 = vmatprep.subr.mxu0 0.0
        %1579 = vmatpush1.msra.mxu0 0.0
        %1580 = vmatprep.subr.mxu0 0.0
        %1581 = vmatpush1.msra.mxu0 0.0
        %1582 = vmatprep.subr.mxu0 0.0
        %1583 = vmatpush1.msra.mxu0 0.0
        %1584 = vmatprep.subr.mxu0 0.0
        %1585 = vmatpush1.msra.mxu0 0.0
        %1586 = vmatprep.subr.mxu0 0.0
        %1587 = vmatpush1.msra.mxu0 0.0
        %1588 = vmatprep.subr.mxu0 %v1552
        %1589 = vmatpush1.msra.mxu0 %v1550
        %1590 = vmatprep.subr.mxu0 0.0
        %1591 = vmatpush2.msra.mxu0 0.0
        %1592 = vmatprep.subr.mxu0 0.0
        %1593 = vmatpush2.msra.mxu0 0.0
        %1594 = vmatprep.subr.mxu0 0.0
        %1595 = vmatpush2.msra.mxu0 0.0
        %1596 = vmatprep.subr.mxu0 0.0
        %1597 = vmatpush2.msra.mxu0 0.0
        %1598 = vmatprep.subr.mxu0 0.0
        %1599 = vmatpush2.msra.mxu0 0.0
        %1600 = vmatprep.subr.mxu0 0.0
        %1601 = vmatpush2.msra.mxu0 0.0
        %1602 = vmatprep.subr.mxu0 0.0
        %1603 = vmatpush2.msra.mxu0 0.0
        %1604 = vmatprep.subr.mxu0 0.0
        %1605 = vmatpush2.msra.mxu0 0.0
        %1606 = vmatprep.subr.mxu0 0.0
        %1607 = vmatpush2.msra.mxu0 0.0
        %1608 = vmatprep.subr.mxu0 0.0
        %1609 = vmatpush2.msra.mxu0 0.0
        %1610 = vmatprep.subr.mxu0 0.0
        %1611 = vmatpush2.msra.mxu0 0.0
        %1612 = vmatprep.subr.mxu0 0.0
        %1613 = vmatpush2.msra.mxu0 0.0
        %1614 = vmatprep.subr.mxu0 0.0
        %1615 = vmatpush2.msra.mxu0 0.0
        %1616 = vmatprep.subr.mxu0 0.0
        %1617 = vmatpush2.msra.mxu0 0.0
        %1618 = vmatprep.subr.mxu0 0.0
        %1619 = vmatpush2.msra.mxu0 0.0
        %1620 = vmatprep.subr.mxu0 0.0
        %1621 = vmatpush2.msra.mxu0 0.0
        %1622 = vmatprep.mubr.f32.mxu0 0.0
        %1623 = vmatmul.mubr.f32.gmra.mxu0 %v1538
        %v1624 = vpop.f32.mrf.mxu0
        %v1625 = vadd.f32 %v1408, %v1624
        %v1626 = vpop.f32.mrf.mxu0
        %v1627 = vadd.f32 %v1410, %v1626
        %1628 = vmatprep.mubr.f32.mxu0 0.0
        %1629 = vmatmul.mubr.f32.gmra.mxu0 %v1541
        %v1630 = vpop.f32.mrf.mxu0
        %v1631 = vadd.f32 %v1414, %v1630
        %v1632 = vpop.f32.mrf.mxu0
        %v1633 = vadd.f32 %v1416, %v1632
        %1634 = vmatprep.mubr.f32.mxu0 0.0
        %1635 = vmatmul.mubr.f32.gmra.mxu0 %v1544
        %v1636 = vpop.f32.mrf.mxu0
        %v1637 = vadd.f32 %v1420, %v1636
        %v1638 = vpop.f32.mrf.mxu0
        %v1639 = vadd.f32 %v1422, %v1638
        %1640 = vmatprep.mubr.f32.mxu0 0.0
        %1641 = vmatmul.mubr.f32.gmra.mxu0 %v1547
        %v1642 = vpop.f32.mrf.mxu0
        %v1643 = vadd.f32 %v1426, %v1642
        %v1644 = vpop.f32.mrf.mxu0
        %v1645 = vadd.f32 %v1428, %v1644
        %1646 = vdwg.mxu0
        %1647 = vmatprep.subr.mxu0 0.0
        %1648 = vmatpush1.msra.mxu0 0.0
        %1649 = vmatprep.subr.mxu0 0.0
        %1650 = vmatpush1.msra.mxu0 0.0
        %1651 = vmatprep.subr.mxu0 0.0
        %1652 = vmatpush1.msra.mxu0 0.0
        %1653 = vmatprep.subr.mxu0 0.0
        %1654 = vmatpush1.msra.mxu0 0.0
        %1655 = vmatprep.subr.mxu0 0.0
        %1656 = vmatpush1.msra.mxu0 0.0
        %1657 = vmatprep.subr.mxu0 0.0
        %1658 = vmatpush1.msra.mxu0 0.0
        %1659 = vmatprep.subr.mxu0 0.0
        %1660 = vmatpush1.msra.mxu0 0.0
        %1661 = vmatprep.subr.mxu0 0.0
        %1662 = vmatpush1.msra.mxu0 0.0
        %1663 = vmatprep.subr.mxu0 0.0
        %1664 = vmatpush1.msra.mxu0 0.0
        %1665 = vmatprep.subr.mxu0 0.0
        %1666 = vmatpush1.msra.mxu0 0.0
        %1667 = vmatprep.subr.mxu0 0.0
        %1668 = vmatpush1.msra.mxu0 0.0
        %1669 = vmatprep.subr.mxu0 0.0
        %1670 = vmatpush1.msra.mxu0 0.0
        %1671 = vmatprep.subr.mxu0 0.0
        %1672 = vmatpush1.msra.mxu0 0.0
        %1673 = vmatprep.subr.mxu0 0.0
        %1674 = vmatpush1.msra.mxu0 0.0
        %1675 = vmatprep.subr.mxu0 0.0
        %1676 = vmatpush1.msra.mxu0 0.0
        %1677 = vmatprep.subr.mxu0 %v1556
        %1678 = vmatpush1.msra.mxu0 %v1554
        %1679 = vmatprep.subr.mxu0 0.0
        %1680 = vmatpush2.msra.mxu0 0.0
        %1681 = vmatprep.subr.mxu0 0.0
        %1682 = vmatpush2.msra.mxu0 0.0
        %1683 = vmatprep.subr.mxu0 0.0
        %1684 = vmatpush2.msra.mxu0 0.0
        %1685 = vmatprep.subr.mxu0 0.0
        %1686 = vmatpush2.msra.mxu0 0.0
        %1687 = vmatprep.subr.mxu0 0.0
        %1688 = vmatpush2.msra.mxu0 0.0
        %1689 = vmatprep.subr.mxu0 0.0
        %1690 = vmatpush2.msra.mxu0 0.0
        %1691 = vmatprep.subr.mxu0 0.0
        %1692 = vmatpush2.msra.mxu0 0.0
        %1693 = vmatprep.subr.mxu0 0.0
        %1694 = vmatpush2.msra.mxu0 0.0
        %1695 = vmatprep.subr.mxu0 0.0
        %1696 = vmatpush2.msra.mxu0 0.0
        %1697 = vmatprep.subr.mxu0 0.0
        %1698 = vmatpush2.msra.mxu0 0.0
        %1699 = vmatprep.subr.mxu0 0.0
        %1700 = vmatpush2.msra.mxu0 0.0
        %1701 = vmatprep.subr.mxu0 0.0
        %1702 = vmatpush2.msra.mxu0 0.0
        %1703 = vmatprep.subr.mxu0 0.0
        %1704 = vmatpush2.msra.mxu0 0.0
        %1705 = vmatprep.subr.mxu0 0.0
        %1706 = vmatpush2.msra.mxu0 0.0
        %1707 = vmatprep.subr.mxu0 0.0
        %1708 = vmatpush2.msra.mxu0 0.0
        %1709 = vmatprep.subr.mxu0 0.0
        %1710 = vmatpush2.msra.mxu0 0.0
        %1711 = vmatprep.mubr.f32.mxu0 0.0
        %1712 = vmatmul.mubr.f32.gmra.mxu0 %v1538
        %v1713 = vpop.f32.mrf.mxu0
        %v1714 = vadd.f32 %v1497, %v1713
        %v1715 = vpop.f32.mrf.mxu0
        %v1716 = vadd.f32 %v1499, %v1715
        %1717 = vmatprep.mubr.f32.mxu0 0.0
        %1718 = vmatmul.mubr.f32.gmra.mxu0 %v1541
        %v1719 = vpop.f32.mrf.mxu0
        %v1720 = vadd.f32 %v1503, %v1719
        %v1721 = vpop.f32.mrf.mxu0
        %v1722 = vadd.f32 %v1505, %v1721
        %1723 = vmatprep.mubr.f32.mxu0 0.0
        %1724 = vmatmul.mubr.f32.gmra.mxu0 %v1544
        %v1725 = vpop.f32.mrf.mxu0
        %v1726 = vadd.f32 %v1509, %v1725
        %v1727 = vpop.f32.mrf.mxu0
        %v1728 = vadd.f32 %v1511, %v1727
        %1729 = vmatprep.mubr.f32.mxu0 0.0
        %1730 = vmatmul.mubr.f32.gmra.mxu0 %v1547
        %v1731 = vpop.f32.mrf.mxu0
        %v1732 = vadd.f32 %v1515, %v1731
        %v1733 = vpop.f32.mrf.mxu0
        %v1734 = vadd.f32 %v1517, %v1733
        %1735 = vdwg.mxu0
        %s1736 = scalar_lea.vmem [#allocation3], 4
        %v1737 = vld [vmem:[%s1736] sm:$0xf]
        %v1739 = vlaneseq
        %v1740 = vshrl.u32 %v1739, 7
        %v1741 = vsub.s32 0, %v1740
        %v1742 = vrot.slane %v1737, %v1741
        %v1743 = vlaneseq
        %v1744 = vshrl.u32 %v1743, 7
        %v1745 = vsub.s32 1, %v1744
        %v1746 = vrot.slane %v1737, %v1745
        %v1747 = vlaneseq
        %v1748 = vshrl.u32 %v1747, 7
        %v1749 = vsub.s32 2, %v1748
        %v1750 = vrot.slane %v1737, %v1749
        %v1751 = vlaneseq
        %v1752 = vshrl.u32 %v1751, 7
        %v1753 = vsub.s32 3, %v1752
        %v1754 = vrot.slane %v1737, %v1753
        %v1756 = vsel %vm1536, %v622, 0
        %v1759 = vsel %vm1536, %v627, 0
        %v1762 = vsel %vm1536, %v697, 0
        %v1765 = vsel %vm1536, %v702, 0
        %v1767 = vsel %vm1549, %v1742, 0
        %v1769 = vsel %vm1549, %v1746, 0
        %v1771 = vsel %vm1549, %v1750, 0
        %v1773 = vsel %vm1549, %v1754, 0
        %1775 = vmatprep.subr.mxu0 0.0
        %1776 = vmatpush1.msra.mxu0 0.0
        %1777 = vmatprep.subr.mxu0 0.0
        %1778 = vmatpush1.msra.mxu0 0.0
        %1779 = vmatprep.subr.mxu0 0.0
        %1780 = vmatpush1.msra.mxu0 0.0
        %1781 = vmatprep.subr.mxu0 0.0
        %1782 = vmatpush1.msra.mxu0 0.0
        %1783 = vmatprep.subr.mxu0 0.0
        %1784 = vmatpush1.msra.mxu0 0.0
        %1785 = vmatprep.subr.mxu0 0.0
        %1786 = vmatpush1.msra.mxu0 0.0
        %1787 = vmatprep.subr.mxu0 0.0
        %1788 = vmatpush1.msra.mxu0 0.0
        %1789 = vmatprep.subr.mxu0 0.0
        %1790 = vmatpush1.msra.mxu0 0.0
        %1791 = vmatprep.subr.mxu0 0.0
        %1792 = vmatpush1.msra.mxu0 0.0
        %1793 = vmatprep.subr.mxu0 0.0
        %1794 = vmatpush1.msra.mxu0 0.0
        %1795 = vmatprep.subr.mxu0 0.0
        %1796 = vmatpush1.msra.mxu0 0.0
        %1797 = vmatprep.subr.mxu0 0.0
        %1798 = vmatpush1.msra.mxu0 0.0
        %1799 = vmatprep.subr.mxu0 0.0
        %1800 = vmatpush1.msra.mxu0 0.0
        %1801 = vmatprep.subr.mxu0 0.0
        %1802 = vmatpush1.msra.mxu0 0.0
        %1803 = vmatprep.subr.mxu0 0.0
        %1804 = vmatpush1.msra.mxu0 0.0
        %1805 = vmatprep.subr.mxu0 %v1769
        %1806 = vmatpush1.msra.mxu0 %v1767
        %1807 = vmatprep.subr.mxu0 0.0
        %1808 = vmatpush2.msra.mxu0 0.0
        %1809 = vmatprep.subr.mxu0 0.0
        %1810 = vmatpush2.msra.mxu0 0.0
        %1811 = vmatprep.subr.mxu0 0.0
        %1812 = vmatpush2.msra.mxu0 0.0
        %1813 = vmatprep.subr.mxu0 0.0
        %1814 = vmatpush2.msra.mxu0 0.0
        %1815 = vmatprep.subr.mxu0 0.0
        %1816 = vmatpush2.msra.mxu0 0.0
        %1817 = vmatprep.subr.mxu0 0.0
        %1818 = vmatpush2.msra.mxu0 0.0
        %1819 = vmatprep.subr.mxu0 0.0
        %1820 = vmatpush2.msra.mxu0 0.0
        %1821 = vmatprep.subr.mxu0 0.0
        %1822 = vmatpush2.msra.mxu0 0.0
        %1823 = vmatprep.subr.mxu0 0.0
        %1824 = vmatpush2.msra.mxu0 0.0
        %1825 = vmatprep.subr.mxu0 0.0
        %1826 = vmatpush2.msra.mxu0 0.0
        %1827 = vmatprep.subr.mxu0 0.0
        %1828 = vmatpush2.msra.mxu0 0.0
        %1829 = vmatprep.subr.mxu0 0.0
        %1830 = vmatpush2.msra.mxu0 0.0
        %1831 = vmatprep.subr.mxu0 0.0
        %1832 = vmatpush2.msra.mxu0 0.0
        %1833 = vmatprep.subr.mxu0 0.0
        %1834 = vmatpush2.msra.mxu0 0.0
        %1835 = vmatprep.subr.mxu0 0.0
        %1836 = vmatpush2.msra.mxu0 0.0
        %1837 = vmatprep.subr.mxu0 0.0
        %1838 = vmatpush2.msra.mxu0 0.0
        %1839 = vmatprep.mubr.f32.mxu0 0.0
        %1840 = vmatmul.mubr.f32.gmra.mxu0 %v1756
        %v1841 = vpop.f32.mrf.mxu0
        %v1842 = vadd.f32 0.0, %v1841
        %v1843 = vpop.f32.mrf.mxu0
        %v1844 = vadd.f32 0.0, %v1843
        %1845 = vmatprep.mubr.f32.mxu0 0.0
        %1846 = vmatmul.mubr.f32.gmra.mxu0 %v1759
        %v1847 = vpop.f32.mrf.mxu0
        %v1848 = vadd.f32 0.0, %v1847
        %v1849 = vpop.f32.mrf.mxu0
        %v1850 = vadd.f32 0.0, %v1849
        %1851 = vmatprep.mubr.f32.mxu0 0.0
        %1852 = vmatmul.mubr.f32.gmra.mxu0 %v1762
        %v1853 = vpop.f32.mrf.mxu0
        %v1854 = vadd.f32 0.0, %v1853
        %v1855 = vpop.f32.mrf.mxu0
        %v1856 = vadd.f32 0.0, %v1855
        %1857 = vmatprep.mubr.f32.mxu0 0.0
        %1858 = vmatmul.mubr.f32.gmra.mxu0 %v1765
        %v1859 = vpop.f32.mrf.mxu0
        %v1860 = vadd.f32 0.0, %v1859
        %v1861 = vpop.f32.mrf.mxu0
        %v1862 = vadd.f32 0.0, %v1861
        %1863 = vdwg.mxu0
        %1864 = vmatprep.subr.mxu0 0.0
        %1865 = vmatpush1.msra.mxu0 0.0
        %1866 = vmatprep.subr.mxu0 0.0
        %1867 = vmatpush1.msra.mxu0 0.0
        %1868 = vmatprep.subr.mxu0 0.0
        %1869 = vmatpush1.msra.mxu0 0.0
        %1870 = vmatprep.subr.mxu0 0.0
        %1871 = vmatpush1.msra.mxu0 0.0
        %1872 = vmatprep.subr.mxu0 0.0
        %1873 = vmatpush1.msra.mxu0 0.0
        %1874 = vmatprep.subr.mxu0 0.0
        %1875 = vmatpush1.msra.mxu0 0.0
        %1876 = vmatprep.subr.mxu0 0.0
        %1877 = vmatpush1.msra.mxu0 0.0
        %1878 = vmatprep.subr.mxu0 0.0
        %1879 = vmatpush1.msra.mxu0 0.0
        %1880 = vmatprep.subr.mxu0 0.0
        %1881 = vmatpush1.msra.mxu0 0.0
        %1882 = vmatprep.subr.mxu0 0.0
        %1883 = vmatpush1.msra.mxu0 0.0
        %1884 = vmatprep.subr.mxu0 0.0
        %1885 = vmatpush1.msra.mxu0 0.0
        %1886 = vmatprep.subr.mxu0 0.0
        %1887 = vmatpush1.msra.mxu0 0.0
        %1888 = vmatprep.subr.mxu0 0.0
        %1889 = vmatpush1.msra.mxu0 0.0
        %1890 = vmatprep.subr.mxu0 0.0
        %1891 = vmatpush1.msra.mxu0 0.0
        %1892 = vmatprep.subr.mxu0 0.0
        %1893 = vmatpush1.msra.mxu0 0.0
        %1894 = vmatprep.subr.mxu0 %v1773
        %1895 = vmatpush1.msra.mxu0 %v1771
        %1896 = vmatprep.subr.mxu0 0.0
        %1897 = vmatpush2.msra.mxu0 0.0
        %1898 = vmatprep.subr.mxu0 0.0
        %1899 = vmatpush2.msra.mxu0 0.0
        %1900 = vmatprep.subr.mxu0 0.0
        %1901 = vmatpush2.msra.mxu0 0.0
        %1902 = vmatprep.subr.mxu0 0.0
        %1903 = vmatpush2.msra.mxu0 0.0
        %1904 = vmatprep.subr.mxu0 0.0
        %1905 = vmatpush2.msra.mxu0 0.0
        %1906 = vmatprep.subr.mxu0 0.0
        %1907 = vmatpush2.msra.mxu0 0.0
        %1908 = vmatprep.subr.mxu0 0.0
        %1909 = vmatpush2.msra.mxu0 0.0
        %1910 = vmatprep.subr.mxu0 0.0
        %1911 = vmatpush2.msra.mxu0 0.0
        %1912 = vmatprep.subr.mxu0 0.0
        %1913 = vmatpush2.msra.mxu0 0.0
        %1914 = vmatprep.subr.mxu0 0.0
        %1915 = vmatpush2.msra.mxu0 0.0
        %1916 = vmatprep.subr.mxu0 0.0
        %1917 = vmatpush2.msra.mxu0 0.0
        %1918 = vmatprep.subr.mxu0 0.0
        %1919 = vmatpush2.msra.mxu0 0.0
        %1920 = vmatprep.subr.mxu0 0.0
        %1921 = vmatpush2.msra.mxu0 0.0
        %1922 = vmatprep.subr.mxu0 0.0
        %1923 = vmatpush2.msra.mxu0 0.0
        %1924 = vmatprep.subr.mxu0 0.0
        %1925 = vmatpush2.msra.mxu0 0.0
        %1926 = vmatprep.subr.mxu0 0.0
        %1927 = vmatpush2.msra.mxu0 0.0
        %1928 = vmatprep.mubr.f32.mxu0 0.0
        %1929 = vmatmul.mubr.f32.gmra.mxu0 %v1756
        %v1930 = vpop.f32.mrf.mxu0
        %v1931 = vadd.f32 0.0, %v1930
        %v1932 = vpop.f32.mrf.mxu0
        %v1933 = vadd.f32 0.0, %v1932
        %1934 = vmatprep.mubr.f32.mxu0 0.0
        %1935 = vmatmul.mubr.f32.gmra.mxu0 %v1759
        %v1936 = vpop.f32.mrf.mxu0
        %v1937 = vadd.f32 0.0, %v1936
        %v1938 = vpop.f32.mrf.mxu0
        %v1939 = vadd.f32 0.0, %v1938
        %1940 = vmatprep.mubr.f32.mxu0 0.0
        %1941 = vmatmul.mubr.f32.gmra.mxu0 %v1762
        %v1942 = vpop.f32.mrf.mxu0
        %v1943 = vadd.f32 0.0, %v1942
        %v1944 = vpop.f32.mrf.mxu0
        %v1945 = vadd.f32 0.0, %v1944
        %1946 = vmatprep.mubr.f32.mxu0 0.0
        %1947 = vmatmul.mubr.f32.gmra.mxu0 %v1765
        %v1948 = vpop.f32.mrf.mxu0
        %v1949 = vadd.f32 0.0, %v1948
        %v1950 = vpop.f32.mrf.mxu0
        %v1951 = vadd.f32 0.0, %v1950
        %1952 = vdwg.mxu0
        %v1953 = vadd.f32 %v1625, %v1842
        %v1954 = vadd.f32 %v1627, %v1844
        %v1955 = vadd.f32 %v1714, %v1931
        %v1956 = vadd.f32 %v1716, %v1933
        %v1957 = vadd.f32 %v1631, %v1848
        %v1958 = vadd.f32 %v1633, %v1850
        %v1959 = vadd.f32 %v1720, %v1937
        %v1960 = vadd.f32 %v1722, %v1939
        %v1961 = vadd.f32 %v1637, %v1854
        %v1962 = vadd.f32 %v1639, %v1856
        %v1963 = vadd.f32 %v1726, %v1943
        %v1964 = vadd.f32 %v1728, %v1945
        %v1965 = vadd.f32 %v1643, %v1860
        %v1966 = vadd.f32 %v1645, %v1862
        %v1967 = vadd.f32 %v1732, %v1949
        %v1968 = vadd.f32 %v1734, %v1951
        %s1969 = scalar_lea.vmem %s4, 128
        %v1970 = vld [vmem:[%s1969] sm:$0xff]
        %v1971 = vld [vmem:[%s1969 + $0x8] sm:$0xff]
        %v1972 = vld [vmem:[%s1969 + $0x10] sm:$0xff]
        %v1973 = vld [vmem:[%s1969 + $0x18] sm:$0xff]
        %v1974 = vld [vmem:[%s1969 + $0x20] sm:$0xff]
        %v1975 = vld [vmem:[%s1969 + $0x28] sm:$0xff]
        %v1976 = vld [vmem:[%s1969 + $0x30] sm:$0xff]
        %v1977 = vld [vmem:[%s1969 + $0x38] sm:$0xff]
        %v1978 = vld [vmem:[%s1969 + $0x40] sm:$0xff]
        %v1979 = vld [vmem:[%s1969 + $0x48] sm:$0xff]
        %v1980 = vld [vmem:[%s1969 + $0x50] sm:$0xff]
        %v1981 = vld [vmem:[%s1969 + $0x58] sm:$0xff]
        %v1982 = vld [vmem:[%s1969 + $0x60] sm:$0xff]
        %v1983 = vld [vmem:[%s1969 + $0x68] sm:$0xff]
        %v1984 = vld [vmem:[%s1969 + $0x70] sm:$0xff]
        %v1985 = vld [vmem:[%s1969 + $0x78] sm:$0xff]
        %v1987 = vsel %vm1328, %v1078, 0
        %v1990 = vsel %vm1328, %v1083, 0
        %v1993 = vsel %vm1328, %v1153, 0
        %v1996 = vsel %vm1328, %v1158, 0
        %1998 = vmatprep.subr.mxu0 0.0
        %1999 = vmatpush1.msra.mxu0 0.0
        %2000 = vmatprep.subr.mxu0 0.0
        %2001 = vmatpush1.msra.mxu0 0.0
        %2002 = vmatprep.subr.mxu0 0.0
        %2003 = vmatpush1.msra.mxu0 0.0
        %2004 = vmatprep.subr.mxu0 0.0
        %2005 = vmatpush1.msra.mxu0 0.0
        %2006 = vmatprep.subr.mxu0 0.0
        %2007 = vmatpush1.msra.mxu0 0.0
        %2008 = vmatprep.subr.mxu0 0.0
        %2009 = vmatpush1.msra.mxu0 0.0
        %2010 = vmatprep.subr.mxu0 0.0
        %2011 = vmatpush1.msra.mxu0 0.0
        %2012 = vmatprep.subr.mxu0 0.0
        %2013 = vmatpush1.msra.mxu0 0.0
        %2014 = vmatprep.subr.mxu0 0.0
        %2015 = vmatpush1.msra.mxu0 0.0
        %2016 = vmatprep.subr.mxu0 0.0
        %2017 = vmatpush1.msra.mxu0 0.0
        %2018 = vmatprep.subr.mxu0 0.0
        %2019 = vmatpush1.msra.mxu0 0.0
        %2020 = vmatprep.subr.mxu0 0.0
        %2021 = vmatpush1.msra.mxu0 0.0
        %2022 = vmatprep.subr.mxu0 %v1983
        %2023 = vmatpush1.msra.mxu0 %v1982
        %2024 = vmatprep.subr.mxu0 %v1979
        %2025 = vmatpush1.msra.mxu0 %v1978
        %2026 = vmatprep.subr.mxu0 %v1975
        %2027 = vmatpush1.msra.mxu0 %v1974
        %2028 = vmatprep.subr.mxu0 %v1971
        %2029 = vmatpush1.msra.mxu0 %v1970
        %2030 = vmatprep.subr.mxu0 0.0
        %2031 = vmatpush2.msra.mxu0 0.0
        %2032 = vmatprep.subr.mxu0 0.0
        %2033 = vmatpush2.msra.mxu0 0.0
        %2034 = vmatprep.subr.mxu0 0.0
        %2035 = vmatpush2.msra.mxu0 0.0
        %2036 = vmatprep.subr.mxu0 0.0
        %2037 = vmatpush2.msra.mxu0 0.0
        %2038 = vmatprep.subr.mxu0 0.0
        %2039 = vmatpush2.msra.mxu0 0.0
        %2040 = vmatprep.subr.mxu0 0.0
        %2041 = vmatpush2.msra.mxu0 0.0
        %2042 = vmatprep.subr.mxu0 0.0
        %2043 = vmatpush2.msra.mxu0 0.0
        %2044 = vmatprep.subr.mxu0 0.0
        %2045 = vmatpush2.msra.mxu0 0.0
        %2046 = vmatprep.subr.mxu0 0.0
        %2047 = vmatpush2.msra.mxu0 0.0
        %2048 = vmatprep.subr.mxu0 0.0
        %2049 = vmatpush2.msra.mxu0 0.0
        %2050 = vmatprep.subr.mxu0 0.0
        %2051 = vmatpush2.msra.mxu0 0.0
        %2052 = vmatprep.subr.mxu0 0.0
        %2053 = vmatpush2.msra.mxu0 0.0
        %2054 = vmatprep.subr.mxu0 0.0
        %2055 = vmatpush2.msra.mxu0 0.0
        %2056 = vmatprep.subr.mxu0 0.0
        %2057 = vmatpush2.msra.mxu0 0.0
        %2058 = vmatprep.subr.mxu0 0.0
        %2059 = vmatpush2.msra.mxu0 0.0
        %2060 = vmatprep.subr.mxu0 0.0
        %2061 = vmatpush2.msra.mxu0 0.0
        %2062 = vmatprep.mubr.f32.mxu0 0.0
        %2063 = vmatmul.mubr.f32.gmra.mxu0 %v1987
        %v2064 = vpop.f32.mrf.mxu0
        %v2065 = vadd.f32 0.0, %v2064
        %v2066 = vpop.f32.mrf.mxu0
        %v2067 = vadd.f32 0.0, %v2066
        %2068 = vmatprep.mubr.f32.mxu0 0.0
        %2069 = vmatmul.mubr.f32.gmra.mxu0 %v1990
        %v2070 = vpop.f32.mrf.mxu0
        %v2071 = vadd.f32 0.0, %v2070
        %v2072 = vpop.f32.mrf.mxu0
        %v2073 = vadd.f32 0.0, %v2072
        %2074 = vmatprep.mubr.f32.mxu0 0.0
        %2075 = vmatmul.mubr.f32.gmra.mxu0 %v1993
        %v2076 = vpop.f32.mrf.mxu0
        %v2077 = vadd.f32 0.0, %v2076
        %v2078 = vpop.f32.mrf.mxu0
        %v2079 = vadd.f32 0.0, %v2078
        %2080 = vmatprep.mubr.f32.mxu0 0.0
        %2081 = vmatmul.mubr.f32.gmra.mxu0 %v1996
        %v2082 = vpop.f32.mrf.mxu0
        %v2083 = vadd.f32 0.0, %v2082
        %v2084 = vpop.f32.mrf.mxu0
        %v2085 = vadd.f32 0.0, %v2084
        %2086 = vdwg.mxu0
        %2087 = vmatprep.subr.mxu0 0.0
        %2088 = vmatpush1.msra.mxu0 0.0
        %2089 = vmatprep.subr.mxu0 0.0
        %2090 = vmatpush1.msra.mxu0 0.0
        %2091 = vmatprep.subr.mxu0 0.0
        %2092 = vmatpush1.msra.mxu0 0.0
        %2093 = vmatprep.subr.mxu0 0.0
        %2094 = vmatpush1.msra.mxu0 0.0
        %2095 = vmatprep.subr.mxu0 0.0
        %2096 = vmatpush1.msra.mxu0 0.0
        %2097 = vmatprep.subr.mxu0 0.0
        %2098 = vmatpush1.msra.mxu0 0.0
        %2099 = vmatprep.subr.mxu0 0.0
        %2100 = vmatpush1.msra.mxu0 0.0
        %2101 = vmatprep.subr.mxu0 0.0
        %2102 = vmatpush1.msra.mxu0 0.0
        %2103 = vmatprep.subr.mxu0 0.0
        %2104 = vmatpush1.msra.mxu0 0.0
        %2105 = vmatprep.subr.mxu0 0.0
        %2106 = vmatpush1.msra.mxu0 0.0
        %2107 = vmatprep.subr.mxu0 0.0
        %2108 = vmatpush1.msra.mxu0 0.0
        %2109 = vmatprep.subr.mxu0 0.0
        %2110 = vmatpush1.msra.mxu0 0.0
        %2111 = vmatprep.subr.mxu0 %v1985
        %2112 = vmatpush1.msra.mxu0 %v1984
        %2113 = vmatprep.subr.mxu0 %v1981
        %2114 = vmatpush1.msra.mxu0 %v1980
        %2115 = vmatprep.subr.mxu0 %v1977
        %2116 = vmatpush1.msra.mxu0 %v1976
        %2117 = vmatprep.subr.mxu0 %v1973
        %2118 = vmatpush1.msra.mxu0 %v1972
        %2119 = vmatprep.subr.mxu0 0.0
        %2120 = vmatpush2.msra.mxu0 0.0
        %2121 = vmatprep.subr.mxu0 0.0
        %2122 = vmatpush2.msra.mxu0 0.0
        %2123 = vmatprep.subr.mxu0 0.0
        %2124 = vmatpush2.msra.mxu0 0.0
        %2125 = vmatprep.subr.mxu0 0.0
        %2126 = vmatpush2.msra.mxu0 0.0
        %2127 = vmatprep.subr.mxu0 0.0
        %2128 = vmatpush2.msra.mxu0 0.0
        %2129 = vmatprep.subr.mxu0 0.0
        %2130 = vmatpush2.msra.mxu0 0.0
        %2131 = vmatprep.subr.mxu0 0.0
        %2132 = vmatpush2.msra.mxu0 0.0
        %2133 = vmatprep.subr.mxu0 0.0
        %2134 = vmatpush2.msra.mxu0 0.0
        %2135 = vmatprep.subr.mxu0 0.0
        %2136 = vmatpush2.msra.mxu0 0.0
        %2137 = vmatprep.subr.mxu0 0.0
        %2138 = vmatpush2.msra.mxu0 0.0
        %2139 = vmatprep.subr.mxu0 0.0
        %2140 = vmatpush2.msra.mxu0 0.0
        %2141 = vmatprep.subr.mxu0 0.0
        %2142 = vmatpush2.msra.mxu0 0.0
        %2143 = vmatprep.subr.mxu0 0.0
        %2144 = vmatpush2.msra.mxu0 0.0
        %2145 = vmatprep.subr.mxu0 0.0
        %2146 = vmatpush2.msra.mxu0 0.0
        %2147 = vmatprep.subr.mxu0 0.0
        %2148 = vmatpush2.msra.mxu0 0.0
        %2149 = vmatprep.subr.mxu0 0.0
        %2150 = vmatpush2.msra.mxu0 0.0
        %2151 = vmatprep.mubr.f32.mxu0 0.0
        %2152 = vmatmul.mubr.f32.gmra.mxu0 %v1987
        %v2153 = vpop.f32.mrf.mxu0
        %v2154 = vadd.f32 0.0, %v2153
        %v2155 = vpop.f32.mrf.mxu0
        %v2156 = vadd.f32 0.0, %v2155
        %2157 = vmatprep.mubr.f32.mxu0 0.0
        %2158 = vmatmul.mubr.f32.gmra.mxu0 %v1990
        %v2159 = vpop.f32.mrf.mxu0
        %v2160 = vadd.f32 0.0, %v2159
        %v2161 = vpop.f32.mrf.mxu0
        %v2162 = vadd.f32 0.0, %v2161
        %2163 = vmatprep.mubr.f32.mxu0 0.0
        %2164 = vmatmul.mubr.f32.gmra.mxu0 %v1993
        %v2165 = vpop.f32.mrf.mxu0
        %v2166 = vadd.f32 0.0, %v2165
        %v2167 = vpop.f32.mrf.mxu0
        %v2168 = vadd.f32 0.0, %v2167
        %2169 = vmatprep.mubr.f32.mxu0 0.0
        %2170 = vmatmul.mubr.f32.gmra.mxu0 %v1996
        %v2171 = vpop.f32.mrf.mxu0
        %v2172 = vadd.f32 0.0, %v2171
        %v2173 = vpop.f32.mrf.mxu0
        %v2174 = vadd.f32 0.0, %v2173
        %2175 = vdwg.mxu0
        %v2176 = vadd.f32 %v1953, %v2065
        %v2177 = vadd.f32 %v1954, %v2067
        %v2178 = vadd.f32 %v1955, %v2154
        %v2179 = vadd.f32 %v1956, %v2156
        %v2180 = vadd.f32 %v1957, %v2071
        %v2181 = vadd.f32 %v1958, %v2073
        %v2182 = vadd.f32 %v1959, %v2160
        %v2183 = vadd.f32 %v1960, %v2162
        %v2184 = vadd.f32 %v1961, %v2077
        %v2185 = vadd.f32 %v1962, %v2079
        %v2186 = vadd.f32 %v1963, %v2166
        %v2187 = vadd.f32 %v1964, %v2168
        %v2188 = vadd.f32 %v1965, %v2083
        %v2189 = vadd.f32 %v1966, %v2085
        %v2190 = vadd.f32 %v1967, %v2172
        %v2191 = vadd.f32 %v1968, %v2174
        %s2192 = scalar_lea.vmem [#allocation3], 8
        %v2193 = vld [vmem:[%s2192] sm:$0xf]
        %v2195 = vlaneseq
        %v2196 = vshrl.u32 %v2195, 7
        %v2197 = vsub.s32 0, %v2196
        %v2198 = vrot.slane %v2193, %v2197
        %v2199 = vlaneseq
        %v2200 = vshrl.u32 %v2199, 7
        %v2201 = vsub.s32 1, %v2200
        %v2202 = vrot.slane %v2193, %v2201
        %v2203 = vlaneseq
        %v2204 = vshrl.u32 %v2203, 7
        %v2205 = vsub.s32 2, %v2204
        %v2206 = vrot.slane %v2193, %v2205
        %v2207 = vlaneseq
        %v2208 = vshrl.u32 %v2207, 7
        %v2209 = vsub.s32 3, %v2208
        %v2210 = vrot.slane %v2193, %v2209
        %v2212 = vsel %vm1536, %v778, 0
        %v2215 = vsel %vm1536, %v783, 0
        %v2218 = vsel %vm1536, %v853, 0
        %v2221 = vsel %vm1536, %v858, 0
        %v2223 = vsel %vm1549, %v2198, 0
        %v2225 = vsel %vm1549, %v2202, 0
        %v2227 = vsel %vm1549, %v2206, 0
        %v2229 = vsel %vm1549, %v2210, 0
        %2231 = vmatprep.subr.mxu0 0.0
        %2232 = vmatpush1.msra.mxu0 0.0
        %2233 = vmatprep.subr.mxu0 0.0
        %2234 = vmatpush1.msra.mxu0 0.0
        %2235 = vmatprep.subr.mxu0 0.0
        %2236 = vmatpush1.msra.mxu0 0.0
        %2237 = vmatprep.subr.mxu0 0.0
        %2238 = vmatpush1.msra.mxu0 0.0
        %2239 = vmatprep.subr.mxu0 0.0
        %2240 = vmatpush1.msra.mxu0 0.0
        %2241 = vmatprep.subr.mxu0 0.0
        %2242 = vmatpush1.msra.mxu0 0.0
        %2243 = vmatprep.subr.mxu0 0.0
        %2244 = vmatpush1.msra.mxu0 0.0
        %2245 = vmatprep.subr.mxu0 0.0
        %2246 = vmatpush1.msra.mxu0 0.0
        %2247 = vmatprep.subr.mxu0 0.0
        %2248 = vmatpush1.msra.mxu0 0.0
        %2249 = vmatprep.subr.mxu0 0.0
        %2250 = vmatpush1.msra.mxu0 0.0
        %2251 = vmatprep.subr.mxu0 0.0
        %2252 = vmatpush1.msra.mxu0 0.0
        %2253 = vmatprep.subr.mxu0 0.0
        %2254 = vmatpush1.msra.mxu0 0.0
        %2255 = vmatprep.subr.mxu0 0.0
        %2256 = vmatpush1.msra.mxu0 0.0
        %2257 = vmatprep.subr.mxu0 0.0
        %2258 = vmatpush1.msra.mxu0 0.0
        %2259 = vmatprep.subr.mxu0 0.0
        %2260 = vmatpush1.msra.mxu0 0.0
        %2261 = vmatprep.subr.mxu0 %v2225
        %2262 = vmatpush1.msra.mxu0 %v2223
        %2263 = vmatprep.subr.mxu0 0.0
        %2264 = vmatpush2.msra.mxu0 0.0
        %2265 = vmatprep.subr.mxu0 0.0
        %2266 = vmatpush2.msra.mxu0 0.0
        %2267 = vmatprep.subr.mxu0 0.0
        %2268 = vmatpush2.msra.mxu0 0.0
        %2269 = vmatprep.subr.mxu0 0.0
        %2270 = vmatpush2.msra.mxu0 0.0
        %2271 = vmatprep.subr.mxu0 0.0
        %2272 = vmatpush2.msra.mxu0 0.0
        %2273 = vmatprep.subr.mxu0 0.0
        %2274 = vmatpush2.msra.mxu0 0.0
        %2275 = vmatprep.subr.mxu0 0.0
        %2276 = vmatpush2.msra.mxu0 0.0
        %2277 = vmatprep.subr.mxu0 0.0
        %2278 = vmatpush2.msra.mxu0 0.0
        %2279 = vmatprep.subr.mxu0 0.0
        %2280 = vmatpush2.msra.mxu0 0.0
        %2281 = vmatprep.subr.mxu0 0.0
        %2282 = vmatpush2.msra.mxu0 0.0
        %2283 = vmatprep.subr.mxu0 0.0
        %2284 = vmatpush2.msra.mxu0 0.0
        %2285 = vmatprep.subr.mxu0 0.0
        %2286 = vmatpush2.msra.mxu0 0.0
        %2287 = vmatprep.subr.mxu0 0.0
        %2288 = vmatpush2.msra.mxu0 0.0
        %2289 = vmatprep.subr.mxu0 0.0
        %2290 = vmatpush2.msra.mxu0 0.0
        %2291 = vmatprep.subr.mxu0 0.0
        %2292 = vmatpush2.msra.mxu0 0.0
        %2293 = vmatprep.subr.mxu0 0.0
        %2294 = vmatpush2.msra.mxu0 0.0
        %2295 = vmatprep.mubr.f32.mxu0 0.0
        %2296 = vmatmul.mubr.f32.gmra.mxu0 %v2212
        %v2297 = vpop.f32.mrf.mxu0
        %v2298 = vadd.f32 0.0, %v2297
        %v2299 = vpop.f32.mrf.mxu0
        %v2300 = vadd.f32 0.0, %v2299
        %2301 = vmatprep.mubr.f32.mxu0 0.0
        %2302 = vmatmul.mubr.f32.gmra.mxu0 %v2215
        %v2303 = vpop.f32.mrf.mxu0
        %v2304 = vadd.f32 0.0, %v2303
        %v2305 = vpop.f32.mrf.mxu0
        %v2306 = vadd.f32 0.0, %v2305
        %2307 = vmatprep.mubr.f32.mxu0 0.0
        %2308 = vmatmul.mubr.f32.gmra.mxu0 %v2218
        %v2309 = vpop.f32.mrf.mxu0
        %v2310 = vadd.f32 0.0, %v2309
        %v2311 = vpop.f32.mrf.mxu0
        %v2312 = vadd.f32 0.0, %v2311
        %2313 = vmatprep.mubr.f32.mxu0 0.0
        %2314 = vmatmul.mubr.f32.gmra.mxu0 %v2221
        %v2315 = vpop.f32.mrf.mxu0
        %v2316 = vadd.f32 0.0, %v2315
        %v2317 = vpop.f32.mrf.mxu0
        %v2318 = vadd.f32 0.0, %v2317
        %2319 = vdwg.mxu0
        %2320 = vmatprep.subr.mxu0 0.0
        %2321 = vmatpush1.msra.mxu0 0.0
        %2322 = vmatprep.subr.mxu0 0.0
        %2323 = vmatpush1.msra.mxu0 0.0
        %2324 = vmatprep.subr.mxu0 0.0
        %2325 = vmatpush1.msra.mxu0 0.0
        %2326 = vmatprep.subr.mxu0 0.0
        %2327 = vmatpush1.msra.mxu0 0.0
        %2328 = vmatprep.subr.mxu0 0.0
        %2329 = vmatpush1.msra.mxu0 0.0
        %2330 = vmatprep.subr.mxu0 0.0
        %2331 = vmatpush1.msra.mxu0 0.0
        %2332 = vmatprep.subr.mxu0 0.0
        %2333 = vmatpush1.msra.mxu0 0.0
        %2334 = vmatprep.subr.mxu0 0.0
        %2335 = vmatpush1.msra.mxu0 0.0
        %2336 = vmatprep.subr.mxu0 0.0
        %2337 = vmatpush1.msra.mxu0 0.0
        %2338 = vmatprep.subr.mxu0 0.0
        %2339 = vmatpush1.msra.mxu0 0.0
        %2340 = vmatprep.subr.mxu0 0.0
        %2341 = vmatpush1.msra.mxu0 0.0
        %2342 = vmatprep.subr.mxu0 0.0
        %2343 = vmatpush1.msra.mxu0 0.0
        %2344 = vmatprep.subr.mxu0 0.0
        %2345 = vmatpush1.msra.mxu0 0.0
        %2346 = vmatprep.subr.mxu0 0.0
        %2347 = vmatpush1.msra.mxu0 0.0
        %2348 = vmatprep.subr.mxu0 0.0
        %2349 = vmatpush1.msra.mxu0 0.0
        %2350 = vmatprep.subr.mxu0 %v2229
        %2351 = vmatpush1.msra.mxu0 %v2227
        %2352 = vmatprep.subr.mxu0 0.0
        %2353 = vmatpush2.msra.mxu0 0.0
        %2354 = vmatprep.subr.mxu0 0.0
        %2355 = vmatpush2.msra.mxu0 0.0
        %2356 = vmatprep.subr.mxu0 0.0
        %2357 = vmatpush2.msra.mxu0 0.0
        %2358 = vmatprep.subr.mxu0 0.0
        %2359 = vmatpush2.msra.mxu0 0.0
        %2360 = vmatprep.subr.mxu0 0.0
        %2361 = vmatpush2.msra.mxu0 0.0
        %2362 = vmatprep.subr.mxu0 0.0
        %2363 = vmatpush2.msra.mxu0 0.0
        %2364 = vmatprep.subr.mxu0 0.0
        %2365 = vmatpush2.msra.mxu0 0.0
        %2366 = vmatprep.subr.mxu0 0.0
        %2367 = vmatpush2.msra.mxu0 0.0
        %2368 = vmatprep.subr.mxu0 0.0
        %2369 = vmatpush2.msra.mxu0 0.0
        %2370 = vmatprep.subr.mxu0 0.0
        %2371 = vmatpush2.msra.mxu0 0.0
        %2372 = vmatprep.subr.mxu0 0.0
        %2373 = vmatpush2.msra.mxu0 0.0
        %2374 = vmatprep.subr.mxu0 0.0
        %2375 = vmatpush2.msra.mxu0 0.0
        %2376 = vmatprep.subr.mxu0 0.0
        %2377 = vmatpush2.msra.mxu0 0.0
        %2378 = vmatprep.subr.mxu0 0.0
        %2379 = vmatpush2.msra.mxu0 0.0
        %2380 = vmatprep.subr.mxu0 0.0
        %2381 = vmatpush2.msra.mxu0 0.0
        %2382 = vmatprep.subr.mxu0 0.0
        %2383 = vmatpush2.msra.mxu0 0.0
        %2384 = vmatprep.mubr.f32.mxu0 0.0
        %2385 = vmatmul.mubr.f32.gmra.mxu0 %v2212
        %v2386 = vpop.f32.mrf.mxu0
        %v2387 = vadd.f32 0.0, %v2386
        %v2388 = vpop.f32.mrf.mxu0
        %v2389 = vadd.f32 0.0, %v2388
        %2390 = vmatprep.mubr.f32.mxu0 0.0
        %2391 = vmatmul.mubr.f32.gmra.mxu0 %v2215
        %v2392 = vpop.f32.mrf.mxu0
        %v2393 = vadd.f32 0.0, %v2392
        %v2394 = vpop.f32.mrf.mxu0
        %v2395 = vadd.f32 0.0, %v2394
        %2396 = vmatprep.mubr.f32.mxu0 0.0
        %2397 = vmatmul.mubr.f32.gmra.mxu0 %v2218
        %v2398 = vpop.f32.mrf.mxu0
        %v2399 = vadd.f32 0.0, %v2398
        %v2400 = vpop.f32.mrf.mxu0
        %v2401 = vadd.f32 0.0, %v2400
        %2402 = vmatprep.mubr.f32.mxu0 0.0
        %2403 = vmatmul.mubr.f32.gmra.mxu0 %v2221
        %v2404 = vpop.f32.mrf.mxu0
        %v2405 = vadd.f32 0.0, %v2404
        %v2406 = vpop.f32.mrf.mxu0
        %v2407 = vadd.f32 0.0, %v2406
        %2408 = vdwg.mxu0
        %v2409 = vadd.f32 %v2176, %v2298
        %v2410 = vadd.f32 %v2177, %v2300
        %v2411 = vadd.f32 %v2178, %v2387
        %v2412 = vadd.f32 %v2179, %v2389
        %v2413 = vadd.f32 %v2180, %v2304
        %v2414 = vadd.f32 %v2181, %v2306
        %v2415 = vadd.f32 %v2182, %v2393
        %v2416 = vadd.f32 %v2183, %v2395
        %v2417 = vadd.f32 %v2184, %v2310
        %v2418 = vadd.f32 %v2185, %v2312
        %v2419 = vadd.f32 %v2186, %v2399
        %v2420 = vadd.f32 %v2187, %v2401
        %v2421 = vadd.f32 %v2188, %v2316
        %v2422 = vadd.f32 %v2189, %v2318
        %v2423 = vadd.f32 %v2190, %v2405
        %v2424 = vadd.f32 %v2191, %v2407
        %s2425 = scalar_lea.vmem %s4, 256
        %v2426 = vld [vmem:[%s2425] sm:$0xff]
        %v2427 = vld [vmem:[%s2425 + $0x8] sm:$0xff]
        %v2428 = vld [vmem:[%s2425 + $0x10] sm:$0xff]
        %v2429 = vld [vmem:[%s2425 + $0x18] sm:$0xff]
        %v2430 = vld [vmem:[%s2425 + $0x20] sm:$0xff]
        %v2431 = vld [vmem:[%s2425 + $0x28] sm:$0xff]
        %v2432 = vld [vmem:[%s2425 + $0x30] sm:$0xff]
        %v2433 = vld [vmem:[%s2425 + $0x38] sm:$0xff]
        %v2434 = vld [vmem:[%s2425 + $0x40] sm:$0xff]
        %v2435 = vld [vmem:[%s2425 + $0x48] sm:$0xff]
        %v2436 = vld [vmem:[%s2425 + $0x50] sm:$0xff]
        %v2437 = vld [vmem:[%s2425 + $0x58] sm:$0xff]
        %v2438 = vld [vmem:[%s2425 + $0x60] sm:$0xff]
        %v2439 = vld [vmem:[%s2425 + $0x68] sm:$0xff]
        %v2440 = vld [vmem:[%s2425 + $0x70] sm:$0xff]
        %v2441 = vld [vmem:[%s2425 + $0x78] sm:$0xff]
        %v2443 = vsel %vm1328, %v1228, 0
        %v2446 = vsel %vm1328, %v1233, 0
        %v2449 = vsel %vm1328, %v1303, 0
        %v2452 = vsel %vm1328, %v1308, 0
        %2454 = vmatprep.subr.mxu0 0.0
        %2455 = vmatpush1.msra.mxu0 0.0
        %2456 = vmatprep.subr.mxu0 0.0
        %2457 = vmatpush1.msra.mxu0 0.0
        %2458 = vmatprep.subr.mxu0 0.0
        %2459 = vmatpush1.msra.mxu0 0.0
        %2460 = vmatprep.subr.mxu0 0.0
        %2461 = vmatpush1.msra.mxu0 0.0
        %2462 = vmatprep.subr.mxu0 0.0
        %2463 = vmatpush1.msra.mxu0 0.0
        %2464 = vmatprep.subr.mxu0 0.0
        %2465 = vmatpush1.msra.mxu0 0.0
        %2466 = vmatprep.subr.mxu0 0.0
        %2467 = vmatpush1.msra.mxu0 0.0
        %2468 = vmatprep.subr.mxu0 0.0
        %2469 = vmatpush1.msra.mxu0 0.0
        %2470 = vmatprep.subr.mxu0 0.0
        %2471 = vmatpush1.msra.mxu0 0.0
        %2472 = vmatprep.subr.mxu0 0.0
        %2473 = vmatpush1.msra.mxu0 0.0
        %2474 = vmatprep.subr.mxu0 0.0
        %2475 = vmatpush1.msra.mxu0 0.0
        %2476 = vmatprep.subr.mxu0 0.0
        %2477 = vmatpush1.msra.mxu0 0.0
        %2478 = vmatprep.subr.mxu0 %v2439
        %2479 = vmatpush1.msra.mxu0 %v2438
        %2480 = vmatprep.subr.mxu0 %v2435
        %2481 = vmatpush1.msra.mxu0 %v2434
        %2482 = vmatprep.subr.mxu0 %v2431
        %2483 = vmatpush1.msra.mxu0 %v2430
        %2484 = vmatprep.subr.mxu0 %v2427
        %2485 = vmatpush1.msra.mxu0 %v2426
        %2486 = vmatprep.subr.mxu0 0.0
        %2487 = vmatpush2.msra.mxu0 0.0
        %2488 = vmatprep.subr.mxu0 0.0
        %2489 = vmatpush2.msra.mxu0 0.0
        %2490 = vmatprep.subr.mxu0 0.0
        %2491 = vmatpush2.msra.mxu0 0.0
        %2492 = vmatprep.subr.mxu0 0.0
        %2493 = vmatpush2.msra.mxu0 0.0
        %2494 = vmatprep.subr.mxu0 0.0
        %2495 = vmatpush2.msra.mxu0 0.0
        %2496 = vmatprep.subr.mxu0 0.0
        %2497 = vmatpush2.msra.mxu0 0.0
        %2498 = vmatprep.subr.mxu0 0.0
        %2499 = vmatpush2.msra.mxu0 0.0
        %2500 = vmatprep.subr.mxu0 0.0
        %2501 = vmatpush2.msra.mxu0 0.0
        %2502 = vmatprep.subr.mxu0 0.0
        %2503 = vmatpush2.msra.mxu0 0.0
        %2504 = vmatprep.subr.mxu0 0.0
        %2505 = vmatpush2.msra.mxu0 0.0
        %2506 = vmatprep.subr.mxu0 0.0
        %2507 = vmatpush2.msra.mxu0 0.0
        %2508 = vmatprep.subr.mxu0 0.0
        %2509 = vmatpush2.msra.mxu0 0.0
        %2510 = vmatprep.subr.mxu0 0.0
        %2511 = vmatpush2.msra.mxu0 0.0
        %2512 = vmatprep.subr.mxu0 0.0
        %2513 = vmatpush2.msra.mxu0 0.0
        %2514 = vmatprep.subr.mxu0 0.0
        %2515 = vmatpush2.msra.mxu0 0.0
        %2516 = vmatprep.subr.mxu0 0.0
        %2517 = vmatpush2.msra.mxu0 0.0
        %2518 = vmatprep.mubr.f32.mxu0 0.0
        %2519 = vmatmul.mubr.f32.gmra.mxu0 %v2443
        %v2520 = vpop.f32.mrf.mxu0
        %v2521 = vadd.f32 0.0, %v2520
        %v2522 = vpop.f32.mrf.mxu0
        %v2523 = vadd.f32 0.0, %v2522
        %2524 = vmatprep.mubr.f32.mxu0 0.0
        %2525 = vmatmul.mubr.f32.gmra.mxu0 %v2446
        %v2526 = vpop.f32.mrf.mxu0
        %v2527 = vadd.f32 0.0, %v2526
        %v2528 = vpop.f32.mrf.mxu0
        %v2529 = vadd.f32 0.0, %v2528
        %2530 = vmatprep.mubr.f32.mxu0 0.0
        %2531 = vmatmul.mubr.f32.gmra.mxu0 %v2449
        %v2532 = vpop.f32.mrf.mxu0
        %v2533 = vadd.f32 0.0, %v2532
        %v2534 = vpop.f32.mrf.mxu0
        %v2535 = vadd.f32 0.0, %v2534
        %2536 = vmatprep.mubr.f32.mxu0 0.0
        %2537 = vmatmul.mubr.f32.gmra.mxu0 %v2452
        %v2538 = vpop.f32.mrf.mxu0
        %v2539 = vadd.f32 0.0, %v2538
        %v2540 = vpop.f32.mrf.mxu0
        %v2541 = vadd.f32 0.0, %v2540
        %2542 = vdwg.mxu0
        %2543 = vmatprep.subr.mxu0 0.0
        %2544 = vmatpush1.msra.mxu0 0.0
        %2545 = vmatprep.subr.mxu0 0.0
        %2546 = vmatpush1.msra.mxu0 0.0
        %2547 = vmatprep.subr.mxu0 0.0
        %2548 = vmatpush1.msra.mxu0 0.0
        %2549 = vmatprep.subr.mxu0 0.0
        %2550 = vmatpush1.msra.mxu0 0.0
        %2551 = vmatprep.subr.mxu0 0.0
        %2552 = vmatpush1.msra.mxu0 0.0
        %2553 = vmatprep.subr.mxu0 0.0
        %2554 = vmatpush1.msra.mxu0 0.0
        %2555 = vmatprep.subr.mxu0 0.0
        %2556 = vmatpush1.msra.mxu0 0.0
        %2557 = vmatprep.subr.mxu0 0.0
        %2558 = vmatpush1.msra.mxu0 0.0
        %2559 = vmatprep.subr.mxu0 0.0
        %2560 = vmatpush1.msra.mxu0 0.0
        %2561 = vmatprep.subr.mxu0 0.0
        %2562 = vmatpush1.msra.mxu0 0.0
        %2563 = vmatprep.subr.mxu0 0.0
        %2564 = vmatpush1.msra.mxu0 0.0
        %2565 = vmatprep.subr.mxu0 0.0
        %2566 = vmatpush1.msra.mxu0 0.0
        %2567 = vmatprep.subr.mxu0 %v2441
        %2568 = vmatpush1.msra.mxu0 %v2440
        %2569 = vmatprep.subr.mxu0 %v2437
        %2570 = vmatpush1.msra.mxu0 %v2436
        %2571 = vmatprep.subr.mxu0 %v2433
        %2572 = vmatpush1.msra.mxu0 %v2432
        %2573 = vmatprep.subr.mxu0 %v2429
        %2574 = vmatpush1.msra.mxu0 %v2428
        %2575 = vmatprep.subr.mxu0 0.0
        %2576 = vmatpush2.msra.mxu0 0.0
        %2577 = vmatprep.subr.mxu0 0.0
        %2578 = vmatpush2.msra.mxu0 0.0
        %2579 = vmatprep.subr.mxu0 0.0
        %2580 = vmatpush2.msra.mxu0 0.0
        %2581 = vmatprep.subr.mxu0 0.0
        %2582 = vmatpush2.msra.mxu0 0.0
        %2583 = vmatprep.subr.mxu0 0.0
        %2584 = vmatpush2.msra.mxu0 0.0
        %2585 = vmatprep.subr.mxu0 0.0
        %2586 = vmatpush2.msra.mxu0 0.0
        %2587 = vmatprep.subr.mxu0 0.0
        %2588 = vmatpush2.msra.mxu0 0.0
        %2589 = vmatprep.subr.mxu0 0.0
        %2590 = vmatpush2.msra.mxu0 0.0
        %2591 = vmatprep.subr.mxu0 0.0
        %2592 = vmatpush2.msra.mxu0 0.0
        %2593 = vmatprep.subr.mxu0 0.0
        %2594 = vmatpush2.msra.mxu0 0.0
        %2595 = vmatprep.subr.mxu0 0.0
        %2596 = vmatpush2.msra.mxu0 0.0
        %2597 = vmatprep.subr.mxu0 0.0
        %2598 = vmatpush2.msra.mxu0 0.0
        %2599 = vmatprep.subr.mxu0 0.0
        %2600 = vmatpush2.msra.mxu0 0.0
        %2601 = vmatprep.subr.mxu0 0.0
        %2602 = vmatpush2.msra.mxu0 0.0
        %2603 = vmatprep.subr.mxu0 0.0
        %2604 = vmatpush2.msra.mxu0 0.0
        %2605 = vmatprep.subr.mxu0 0.0
        %2606 = vmatpush2.msra.mxu0 0.0
        %2607 = vmatprep.mubr.f32.mxu0 0.0
        %2608 = vmatmul.mubr.f32.gmra.mxu0 %v2443
        %v2609 = vpop.f32.mrf.mxu0
        %v2610 = vadd.f32 0.0, %v2609
        %v2611 = vpop.f32.mrf.mxu0
        %v2612 = vadd.f32 0.0, %v2611
        %2613 = vmatprep.mubr.f32.mxu0 0.0
        %2614 = vmatmul.mubr.f32.gmra.mxu0 %v2446
        %v2615 = vpop.f32.mrf.mxu0
        %v2616 = vadd.f32 0.0, %v2615
        %v2617 = vpop.f32.mrf.mxu0
        %v2618 = vadd.f32 0.0, %v2617
        %2619 = vmatprep.mubr.f32.mxu0 0.0
        %2620 = vmatmul.mubr.f32.gmra.mxu0 %v2449
        %v2621 = vpop.f32.mrf.mxu0
        %v2622 = vadd.f32 0.0, %v2621
        %v2623 = vpop.f32.mrf.mxu0
        %v2624 = vadd.f32 0.0, %v2623
        %2625 = vmatprep.mubr.f32.mxu0 0.0
        %2626 = vmatmul.mubr.f32.gmra.mxu0 %v2452
        %v2627 = vpop.f32.mrf.mxu0
        %v2628 = vadd.f32 0.0, %v2627
        %v2629 = vpop.f32.mrf.mxu0
        %v2630 = vadd.f32 0.0, %v2629
        %2631 = vdwg.mxu0
        %v2632 = vadd.f32 %v2409, %v2521
        %v2633 = vadd.f32 %v2410, %v2523
        %v2634 = vadd.f32 %v2411, %v2610
        %v2635 = vadd.f32 %v2412, %v2612
        %v2636 = vadd.f32 %v2413, %v2527
        %v2637 = vadd.f32 %v2414, %v2529
        %v2638 = vadd.f32 %v2415, %v2616
        %v2639 = vadd.f32 %v2416, %v2618
        %v2640 = vadd.f32 %v2417, %v2533
        %v2641 = vadd.f32 %v2418, %v2535
        %v2642 = vadd.f32 %v2419, %v2622
        %v2643 = vadd.f32 %v2420, %v2624
        %v2644 = vadd.f32 %v2421, %v2539
        %v2645 = vadd.f32 %v2422, %v2541
        %v2646 = vadd.f32 %v2423, %v2628
        %v2647 = vadd.f32 %v2424, %v2630
        %v2648 = vld [vmem:[%s5] sm:$0xff]
        %v2649 = vld [vmem:[%s5 + $0x8] sm:$0xff]
        %v2650 = vld [vmem:[%s5 + $0x10] sm:$0xff]
        %v2651 = vld [vmem:[%s5 + $0x18] sm:$0xff]
        %2653 = vset.pattern.permute.xlu0 0
        %2654 = vperm.xlu0 %2653, %v380
        %v2655 = vpop.permute.xlu0 %2654
        %2658 = vset.pattern.permute.xlu0 0
        %2659 = vperm.xlu0 %2658, %v381
        %v2660 = vpop.permute.xlu0 %2659
        %2663 = vset.pattern.permute.xlu0 0
        %2664 = vperm.xlu0 %2663, %v382
        %v2665 = vpop.permute.xlu0 %2664
        %2668 = vset.pattern.permute.xlu0 0
        %2669 = vperm.xlu0 %2668, %v383
        %v2670 = vpop.permute.xlu0 %2669
        %v2672 = vmul.f32 %v2632, %v2655
        %v2673 = vmul.f32 %v2636, %v2660
        %v2674 = vmul.f32 %v2640, %v2665
        %v2675 = vmul.f32 %v2644, %v2670
        %v2676 = vadd.f32 %v2648, %v2672
        %v2677 = vadd.f32 %v2649, %v2673
        %v2678 = vadd.f32 %v2650, %v2674
        %v2679 = vadd.f32 %v2651, %v2675
        %2680 = vset.pattern.permute.xlu0 1
        %2681 = vperm.xlu0 %2680, %v380
        %v2682 = vpop.permute.xlu0 %2681
        %2684 = vset.pattern.permute.xlu0 1
        %2685 = vperm.xlu0 %2684, %v381
        %v2686 = vpop.permute.xlu0 %2685
        %2688 = vset.pattern.permute.xlu0 1
        %2689 = vperm.xlu0 %2688, %v382
        %v2690 = vpop.permute.xlu0 %2689
        %2692 = vset.pattern.permute.xlu0 1
        %2693 = vperm.xlu0 %2692, %v383
        %v2694 = vpop.permute.xlu0 %2693
        %v2696 = vmul.f32 %v2632, %v2682
        %v2697 = vmul.f32 %v2636, %v2686
        %v2698 = vmul.f32 %v2640, %v2690
        %v2699 = vmul.f32 %v2644, %v2694
        %2704 = vrot.lane.b32.xlu0 %v2696, 64
        %v2705 = vpop.permute.xlu0 %2704
        %2706 = vrot.lane.b32.xlu0 %v2697, 64
        %v2707 = vpop.permute.xlu0 %2706
        %2708 = vrot.lane.b32.xlu0 %v2698, 64
        %v2709 = vpop.permute.xlu0 %2708
        %2710 = vrot.lane.b32.xlu0 %v2699, 64
        %v2711 = vpop.permute.xlu0 %2710
        %v2716 = vadd.f32 %v2676, %v2705
        %v2717 = vadd.f32 %v2677, %v2707
        %v2718 = vadd.f32 %v2678, %v2709
        %v2719 = vadd.f32 %v2679, %v2711
        %2720 = vset.pattern.permute.xlu0 2
        %2721 = vperm.xlu0 %2720, %v380
        %v2722 = vpop.permute.xlu0 %2721
        %2724 = vset.pattern.permute.xlu0 2
        %2725 = vperm.xlu0 %2724, %v381
        %v2726 = vpop.permute.xlu0 %2725
        %2728 = vset.pattern.permute.xlu0 2
        %2729 = vperm.xlu0 %2728, %v382
        %v2730 = vpop.permute.xlu0 %2729
        %2732 = vset.pattern.permute.xlu0 2
        %2733 = vperm.xlu0 %2732, %v383
        %v2734 = vpop.permute.xlu0 %2733
        %v2736 = vmul.f32 %v2633, %v2722
        %v2737 = vmul.f32 %v2637, %v2726
        %v2738 = vmul.f32 %v2641, %v2730
        %v2739 = vmul.f32 %v2645, %v2734
        %v2740 = vadd.f32 %v2716, %v2736
        %v2741 = vadd.f32 %v2717, %v2737
        %v2742 = vadd.f32 %v2718, %v2738
        %v2743 = vadd.f32 %v2719, %v2739
        %2744 = vset.pattern.permute.xlu0 3
        %2745 = vperm.xlu0 %2744, %v380
        %v2746 = vpop.permute.xlu0 %2745
        %2748 = vset.pattern.permute.xlu0 3
        %2749 = vperm.xlu0 %2748, %v381
        %v2750 = vpop.permute.xlu0 %2749
        %2752 = vset.pattern.permute.xlu0 3
        %2753 = vperm.xlu0 %2752, %v382
        %v2754 = vpop.permute.xlu0 %2753
        %2756 = vset.pattern.permute.xlu0 3
        %2757 = vperm.xlu0 %2756, %v383
        %v2758 = vpop.permute.xlu0 %2757
        %v2760 = vmul.f32 %v2633, %v2746
        %v2761 = vmul.f32 %v2637, %v2750
        %v2762 = vmul.f32 %v2641, %v2754
        %v2763 = vmul.f32 %v2645, %v2758
        %2768 = vrot.lane.b32.xlu0 %v2760, 64
        %v2769 = vpop.permute.xlu0 %2768
        %2770 = vrot.lane.b32.xlu0 %v2761, 64
        %v2771 = vpop.permute.xlu0 %2770
        %2772 = vrot.lane.b32.xlu0 %v2762, 64
        %v2773 = vpop.permute.xlu0 %2772
        %2774 = vrot.lane.b32.xlu0 %v2763, 64
        %v2775 = vpop.permute.xlu0 %2774
        %v2780 = vadd.f32 %v2740, %v2769
        %v2781 = vadd.f32 %v2741, %v2771
        %v2782 = vadd.f32 %v2742, %v2773
        %v2783 = vadd.f32 %v2743, %v2775
        %2784 = vset.pattern.permute.xlu0 4
        %2785 = vperm.xlu0 %2784, %v380
        %v2786 = vpop.permute.xlu0 %2785
        %2788 = vset.pattern.permute.xlu0 4
        %2789 = vperm.xlu0 %2788, %v381
        %v2790 = vpop.permute.xlu0 %2789
        %2792 = vset.pattern.permute.xlu0 4
        %2793 = vperm.xlu0 %2792, %v382
        %v2794 = vpop.permute.xlu0 %2793
        %2796 = vset.pattern.permute.xlu0 4
        %2797 = vperm.xlu0 %2796, %v383
        %v2798 = vpop.permute.xlu0 %2797
        %v2800 = vmul.f32 %v2634, %v2786
        %v2801 = vmul.f32 %v2638, %v2790
        %v2802 = vmul.f32 %v2642, %v2794
        %v2803 = vmul.f32 %v2646, %v2798
        %v2804 = vadd.f32 %v2780, %v2800
        %v2805 = vadd.f32 %v2781, %v2801
        %v2806 = vadd.f32 %v2782, %v2802
        %v2807 = vadd.f32 %v2783, %v2803
        %2808 = vset.pattern.permute.xlu0 5
        %2809 = vperm.xlu0 %2808, %v380
        %v2810 = vpop.permute.xlu0 %2809
        %2812 = vset.pattern.permute.xlu0 5
        %2813 = vperm.xlu0 %2812, %v381
        %v2814 = vpop.permute.xlu0 %2813
        %2816 = vset.pattern.permute.xlu0 5
        %2817 = vperm.xlu0 %2816, %v382
        %v2818 = vpop.permute.xlu0 %2817
        %2820 = vset.pattern.permute.xlu0 5
        %2821 = vperm.xlu0 %2820, %v383
        %v2822 = vpop.permute.xlu0 %2821
        %v2824 = vmul.f32 %v2634, %v2810
        %v2825 = vmul.f32 %v2638, %v2814
        %v2826 = vmul.f32 %v2642, %v2818
        %v2827 = vmul.f32 %v2646, %v2822
        %2832 = vrot.lane.b32.xlu0 %v2824, 64
        %v2833 = vpop.permute.xlu0 %2832
        %2834 = vrot.lane.b32.xlu0 %v2825, 64
        %v2835 = vpop.permute.xlu0 %2834
        %2836 = vrot.lane.b32.xlu0 %v2826, 64
        %v2837 = vpop.permute.xlu0 %2836
        %2838 = vrot.lane.b32.xlu0 %v2827, 64
        %v2839 = vpop.permute.xlu0 %2838
        %v2844 = vadd.f32 %v2804, %v2833
        %v2845 = vadd.f32 %v2805, %v2835
        %v2846 = vadd.f32 %v2806, %v2837
        %v2847 = vadd.f32 %v2807, %v2839
        %2848 = vset.pattern.permute.xlu0 6
        %2849 = vperm.xlu0 %2848, %v380
        %v2850 = vpop.permute.xlu0 %2849
        %2852 = vset.pattern.permute.xlu0 6
        %2853 = vperm.xlu0 %2852, %v381
        %v2854 = vpop.permute.xlu0 %2853
        %2856 = vset.pattern.permute.xlu0 6
        %2857 = vperm.xlu0 %2856, %v382
        %v2858 = vpop.permute.xlu0 %2857
        %2860 = vset.pattern.permute.xlu0 6
        %2861 = vperm.xlu0 %2860, %v383
        %v2862 = vpop.permute.xlu0 %2861
        %v2864 = vmul.f32 %v2635, %v2850
        %v2865 = vmul.f32 %v2639, %v2854
        %v2866 = vmul.f32 %v2643, %v2858
        %v2867 = vmul.f32 %v2647, %v2862
        %v2868 = vadd.f32 %v2844, %v2864
        %v2869 = vadd.f32 %v2845, %v2865
        %v2870 = vadd.f32 %v2846, %v2866
        %v2871 = vadd.f32 %v2847, %v2867
        %2872 = vset.pattern.permute.xlu0 7
        %2873 = vperm.xlu0 %2872, %v380
        %v2874 = vpop.permute.xlu0 %2873
        %2876 = vset.pattern.permute.xlu0 7
        %2877 = vperm.xlu0 %2876, %v381
        %v2878 = vpop.permute.xlu0 %2877
        %2880 = vset.pattern.permute.xlu0 7
        %2881 = vperm.xlu0 %2880, %v382
        %v2882 = vpop.permute.xlu0 %2881
        %2884 = vset.pattern.permute.xlu0 7
        %2885 = vperm.xlu0 %2884, %v383
        %v2886 = vpop.permute.xlu0 %2885
        %v2888 = vmul.f32 %v2635, %v2874
        %v2889 = vmul.f32 %v2639, %v2878
        %v2890 = vmul.f32 %v2643, %v2882
        %v2891 = vmul.f32 %v2647, %v2886
        %2896 = vrot.lane.b32.xlu0 %v2888, 64
        %v2897 = vpop.permute.xlu0 %2896
        %2898 = vrot.lane.b32.xlu0 %v2889, 64
        %v2899 = vpop.permute.xlu0 %2898
        %2900 = vrot.lane.b32.xlu0 %v2890, 64
        %v2901 = vpop.permute.xlu0 %2900
        %2902 = vrot.lane.b32.xlu0 %v2891, 64
        %v2903 = vpop.permute.xlu0 %2902
        %v2908 = vadd.f32 %v2868, %v2897
        %v2909 = vadd.f32 %v2869, %v2899
        %v2910 = vadd.f32 %v2870, %v2901
        %v2911 = vadd.f32 %v2871, %v2903
        %v2912 = vxor.u32 %v2908, 2147483648
        %v2913 = vxor.u32 %v2909, 2147483648
        %v2914 = vxor.u32 %v2910, 2147483648
        %v2915 = vxor.u32 %v2911, 2147483648
        %v2916 = vmul.f32 %v2912, 1.442695
        %v2917 = vpow.pop %v2916
        %v2918 = vmul.f32 %v2913, 1.442695
        %v2919 = vpow.pop %v2918
        %v2920 = vmul.f32 %v2914, 1.442695
        %v2921 = vpow.pop %v2920
        %v2922 = vmul.f32 %v2915, 1.442695
        %v2923 = vpow.pop %v2922
        %v2924 = vadd.f32 %v2917, 1.0
        %v2925 = vadd.f32 %v2919, 1.0
        %v2926 = vadd.f32 %v2921, 1.0
        %v2927 = vadd.f32 %v2923, 1.0
        %v2928 = vrcp.pop %v2924
        %v2929 = vmul.f32 1.0, %v2928
        %v2930 = vrcp.pop %v2925
        %v2931 = vmul.f32 1.0, %v2930
        %v2932 = vrcp.pop %v2926
        %v2933 = vmul.f32 1.0, %v2932
        %v2934 = vrcp.pop %v2927
        %v2935 = vmul.f32 1.0, %v2934
        %v2936 = vmul.f32 %v2929, %v376
        %v2937 = vmul.f32 %v2931, %v377
        %v2938 = vmul.f32 %v2933, %v378
        %v2939 = vmul.f32 %v2935, %v379
        %2940 = vmatprep.subr.mxu0 0.0
        %2941 = vmatpush1.msra.mxu0 0.0
        %2942 = vmatprep.subr.mxu0 0.0
        %2943 = vmatpush1.msra.mxu0 0.0
        %2944 = vmatprep.subr.mxu0 0.0
        %2945 = vmatpush1.msra.mxu0 0.0
        %2946 = vmatprep.subr.mxu0 0.0
        %2947 = vmatpush1.msra.mxu0 0.0
        %2948 = vmatprep.subr.mxu0 0.0
        %2949 = vmatpush1.msra.mxu0 0.0
        %2950 = vmatprep.subr.mxu0 0.0
        %2951 = vmatpush1.msra.mxu0 0.0
        %2952 = vmatprep.subr.mxu0 0.0
        %2953 = vmatpush1.msra.mxu0 0.0
        %2954 = vmatprep.subr.mxu0 0.0
        %2955 = vmatpush1.msra.mxu0 0.0
        %2956 = vmatprep.subr.mxu0 0.0
        %2957 = vmatpush1.msra.mxu0 0.0
        %2958 = vmatprep.subr.mxu0 0.0
        %2959 = vmatpush1.msra.mxu0 0.0
        %2960 = vmatprep.subr.mxu0 0.0
        %2961 = vmatpush1.msra.mxu0 0.0
        %2962 = vmatprep.subr.mxu0 0.0
        %2963 = vmatpush1.msra.mxu0 0.0
        %2964 = vmatprep.subr.mxu0 0.0
        %2965 = vmatpush1.msra.mxu0 0.0
        %2966 = vmatprep.subr.mxu0 0.0
        %2967 = vmatpush1.msra.mxu0 0.0
        %2968 = vmatprep.subr.mxu0 0.0
        %2969 = vmatpush1.msra.mxu0 %v2937
        %2970 = vmatprep.subr.mxu0 0.0
        %2971 = vmatpush1.msra.mxu0 %v2936
        %2972 = vmatprep.subr.mxu0 0.0
        %2973 = vmatpush2.msra.mxu0 0.0
        %2974 = vmatprep.subr.mxu0 0.0
        %2975 = vmatpush2.msra.mxu0 0.0
        %2976 = vmatprep.subr.mxu0 0.0
        %2977 = vmatpush2.msra.mxu0 0.0
        %2978 = vmatprep.subr.mxu0 0.0
        %2979 = vmatpush2.msra.mxu0 0.0
        %2980 = vmatprep.subr.mxu0 0.0
        %2981 = vmatpush2.msra.mxu0 0.0
        %2982 = vmatprep.subr.mxu0 0.0
        %2983 = vmatpush2.msra.mxu0 0.0
        %2984 = vmatprep.subr.mxu0 0.0
        %2985 = vmatpush2.msra.mxu0 0.0
        %2986 = vmatprep.subr.mxu0 0.0
        %2987 = vmatpush2.msra.mxu0 0.0
        %2988 = vmatprep.subr.mxu0 0.0
        %2989 = vmatpush2.msra.mxu0 0.0
        %2990 = vmatprep.subr.mxu0 0.0
        %2991 = vmatpush2.msra.mxu0 0.0
        %2992 = vmatprep.subr.mxu0 0.0
        %2993 = vmatpush2.msra.mxu0 0.0
        %2994 = vmatprep.subr.mxu0 0.0
        %2995 = vmatpush2.msra.mxu0 0.0
        %2996 = vmatprep.subr.mxu0 0.0
        %2997 = vmatpush2.msra.mxu0 0.0
        %2998 = vmatprep.subr.mxu0 0.0
        %2999 = vmatpush2.msra.mxu0 0.0
        %3000 = vmatprep.subr.mxu0 0.0
        %3001 = vmatpush2.msra.mxu0 0.0
        %3002 = vmatprep.subr.mxu0 0.0
        %3003 = vmatpush2.msra.mxu0 0.0
        %3004 = vmatprep.mubr.f32.mxu0 0.0
        %3005 = vmatmul.mubr.f32.gmra.mxu0 %v394
        %v3006 = vpop.f32.mrf.mxu0
        %v3007 = vadd.f32 0.0, %v3006
        %v3008 = vpop.f32.mrf.mxu0
        %3009 = vmatprep.mubr.f32.mxu0 0.0
        %3010 = vmatmul.mubr.f32.gmra.mxu0 %v397
        %v3011 = vpop.f32.mrf.mxu0
        %v3012 = vadd.f32 0.0, %v3011
        %v3013 = vpop.f32.mrf.mxu0
        %3014 = vdwg.mxu0
        %3015 = vmatprep.subr.mxu0 0.0
        %3016 = vmatpush1.msra.mxu0 0.0
        %3017 = vmatprep.subr.mxu0 0.0
        %3018 = vmatpush1.msra.mxu0 0.0
        %3019 = vmatprep.subr.mxu0 0.0
        %3020 = vmatpush1.msra.mxu0 0.0
        %3021 = vmatprep.subr.mxu0 0.0
        %3022 = vmatpush1.msra.mxu0 0.0
        %3023 = vmatprep.subr.mxu0 0.0
        %3024 = vmatpush1.msra.mxu0 0.0
        %3025 = vmatprep.subr.mxu0 0.0
        %3026 = vmatpush1.msra.mxu0 0.0
        %3027 = vmatprep.subr.mxu0 0.0
        %3028 = vmatpush1.msra.mxu0 0.0
        %3029 = vmatprep.subr.mxu0 0.0
        %3030 = vmatpush1.msra.mxu0 0.0
        %3031 = vmatprep.subr.mxu0 0.0
        %3032 = vmatpush1.msra.mxu0 0.0
        %3033 = vmatprep.subr.mxu0 0.0
        %3034 = vmatpush1.msra.mxu0 0.0
        %3035 = vmatprep.subr.mxu0 0.0
        %3036 = vmatpush1.msra.mxu0 0.0
        %3037 = vmatprep.subr.mxu0 0.0
        %3038 = vmatpush1.msra.mxu0 0.0
        %3039 = vmatprep.subr.mxu0 0.0
        %3040 = vmatpush1.msra.mxu0 0.0
        %3041 = vmatprep.subr.mxu0 0.0
        %3042 = vmatpush1.msra.mxu0 0.0
        %3043 = vmatprep.subr.mxu0 0.0
        %3044 = vmatpush1.msra.mxu0 %v2939
        %3045 = vmatprep.subr.mxu0 0.0
        %3046 = vmatpush1.msra.mxu0 %v2938
        %3047 = vmatprep.subr.mxu0 0.0
        %3048 = vmatpush2.msra.mxu0 0.0
        %3049 = vmatprep.subr.mxu0 0.0
        %3050 = vmatpush2.msra.mxu0 0.0
        %3051 = vmatprep.subr.mxu0 0.0
        %3052 = vmatpush2.msra.mxu0 0.0
        %3053 = vmatprep.subr.mxu0 0.0
        %3054 = vmatpush2.msra.mxu0 0.0
        %3055 = vmatprep.subr.mxu0 0.0
        %3056 = vmatpush2.msra.mxu0 0.0
        %3057 = vmatprep.subr.mxu0 0.0
        %3058 = vmatpush2.msra.mxu0 0.0
        %3059 = vmatprep.subr.mxu0 0.0
        %3060 = vmatpush2.msra.mxu0 0.0
        %3061 = vmatprep.subr.mxu0 0.0
        %3062 = vmatpush2.msra.mxu0 0.0
        %3063 = vmatprep.subr.mxu0 0.0
        %3064 = vmatpush2.msra.mxu0 0.0
        %3065 = vmatprep.subr.mxu0 0.0
        %3066 = vmatpush2.msra.mxu0 0.0
        %3067 = vmatprep.subr.mxu0 0.0
        %3068 = vmatpush2.msra.mxu0 0.0
        %3069 = vmatprep.subr.mxu0 0.0
        %3070 = vmatpush2.msra.mxu0 0.0
        %3071 = vmatprep.subr.mxu0 0.0
        %3072 = vmatpush2.msra.mxu0 0.0
        %3073 = vmatprep.subr.mxu0 0.0
        %3074 = vmatpush2.msra.mxu0 0.0
        %3075 = vmatprep.subr.mxu0 0.0
        %3076 = vmatpush2.msra.mxu0 0.0
        %3077 = vmatprep.subr.mxu0 0.0
        %3078 = vmatpush2.msra.mxu0 0.0
        %3079 = vmatprep.mubr.f32.mxu0 0.0
        %3080 = vmatmul.mubr.f32.gmra.mxu0 %v394
        %v3081 = vpop.f32.mrf.mxu0
        %v3082 = vadd.f32 0.0, %v3081
        %v3083 = vpop.f32.mrf.mxu0
        %3084 = vmatprep.mubr.f32.mxu0 0.0
        %3085 = vmatmul.mubr.f32.gmra.mxu0 %v397
        %v3086 = vpop.f32.mrf.mxu0
        %v3087 = vadd.f32 0.0, %v3086
        %v3088 = vpop.f32.mrf.mxu0
        %3089 = vdwg.mxu0
        %3090 = vmatprep.subr.mxu0 0.0
        %3091 = vmatpush1.msra.mxu0 0.0
        %3092 = vmatprep.subr.mxu0 0.0
        %3093 = vmatpush1.msra.mxu0 0.0
        %3094 = vmatprep.subr.mxu0 0.0
        %3095 = vmatpush1.msra.mxu0 0.0
        %3096 = vmatprep.subr.mxu0 0.0
        %3097 = vmatpush1.msra.mxu0 0.0
        %3098 = vmatprep.subr.mxu0 0.0
        %3099 = vmatpush1.msra.mxu0 0.0
        %3100 = vmatprep.subr.mxu0 0.0
        %3101 = vmatpush1.msra.mxu0 0.0
        %3102 = vmatprep.subr.mxu0 0.0
        %3103 = vmatpush1.msra.mxu0 0.0
        %3104 = vmatprep.subr.mxu0 0.0
        %3105 = vmatpush1.msra.mxu0 0.0
        %3106 = vmatprep.subr.mxu0 0.0
        %3107 = vmatpush1.msra.mxu0 0.0
        %3108 = vmatprep.subr.mxu0 0.0
        %3109 = vmatpush1.msra.mxu0 0.0
        %3110 = vmatprep.subr.mxu0 0.0
        %3111 = vmatpush1.msra.mxu0 0.0
        %3112 = vmatprep.subr.mxu0 0.0
        %3113 = vmatpush1.msra.mxu0 0.0
        %3114 = vmatprep.subr.mxu0 0.0
        %3115 = vmatpush1.msra.mxu0 0.0
        %3116 = vmatprep.subr.mxu0 0.0
        %3117 = vmatpush1.msra.mxu0 0.0
        %3118 = vmatprep.subr.mxu0 0.0
        %3119 = vmatpush1.msra.mxu0 %v2937
        %3120 = vmatprep.subr.mxu0 0.0
        %3121 = vmatpush1.msra.mxu0 %v2936
        %3122 = vmatprep.subr.mxu0 0.0
        %3123 = vmatpush2.msra.mxu0 0.0
        %3124 = vmatprep.subr.mxu0 0.0
        %3125 = vmatpush2.msra.mxu0 0.0
        %3126 = vmatprep.subr.mxu0 0.0
        %3127 = vmatpush2.msra.mxu0 0.0
        %3128 = vmatprep.subr.mxu0 0.0
        %3129 = vmatpush2.msra.mxu0 0.0
        %3130 = vmatprep.subr.mxu0 0.0
        %3131 = vmatpush2.msra.mxu0 0.0
        %3132 = vmatprep.subr.mxu0 0.0
        %3133 = vmatpush2.msra.mxu0 0.0
        %3134 = vmatprep.subr.mxu0 0.0
        %3135 = vmatpush2.msra.mxu0 0.0
        %3136 = vmatprep.subr.mxu0 0.0
        %3137 = vmatpush2.msra.mxu0 0.0
        %3138 = vmatprep.subr.mxu0 0.0
        %3139 = vmatpush2.msra.mxu0 0.0
        %3140 = vmatprep.subr.mxu0 0.0
        %3141 = vmatpush2.msra.mxu0 0.0
        %3142 = vmatprep.subr.mxu0 0.0
        %3143 = vmatpush2.msra.mxu0 0.0
        %3144 = vmatprep.subr.mxu0 0.0
        %3145 = vmatpush2.msra.mxu0 0.0
        %3146 = vmatprep.subr.mxu0 0.0
        %3147 = vmatpush2.msra.mxu0 0.0
        %3148 = vmatprep.subr.mxu0 0.0
        %3149 = vmatpush2.msra.mxu0 0.0
        %3150 = vmatprep.subr.mxu0 0.0
        %3151 = vmatpush2.msra.mxu0 0.0
        %3152 = vmatprep.subr.mxu0 0.0
        %3153 = vmatpush2.msra.mxu0 0.0
        %3154 = vmatprep.mubr.f32.mxu0 0.0
        %3155 = vmatmul.mubr.f32.gmra.mxu0 %v550
        %v3156 = vpop.f32.mrf.mxu0
        %v3157 = vadd.f32 0.0, %v3156
        %v3158 = vpop.f32.mrf.mxu0
        %3159 = vmatprep.mubr.f32.mxu0 0.0
        %3160 = vmatmul.mubr.f32.gmra.mxu0 %v553
        %v3161 = vpop.f32.mrf.mxu0
        %v3162 = vadd.f32 0.0, %v3161
        %v3163 = vpop.f32.mrf.mxu0
        %3164 = vdwg.mxu0
        %3165 = vmatprep.subr.mxu0 0.0
        %3166 = vmatpush1.msra.mxu0 0.0
        %3167 = vmatprep.subr.mxu0 0.0
        %3168 = vmatpush1.msra.mxu0 0.0
        %3169 = vmatprep.subr.mxu0 0.0
        %3170 = vmatpush1.msra.mxu0 0.0
        %3171 = vmatprep.subr.mxu0 0.0
        %3172 = vmatpush1.msra.mxu0 0.0
        %3173 = vmatprep.subr.mxu0 0.0
        %3174 = vmatpush1.msra.mxu0 0.0
        %3175 = vmatprep.subr.mxu0 0.0
        %3176 = vmatpush1.msra.mxu0 0.0
        %3177 = vmatprep.subr.mxu0 0.0
        %3178 = vmatpush1.msra.mxu0 0.0
        %3179 = vmatprep.subr.mxu0 0.0
        %3180 = vmatpush1.msra.mxu0 0.0
        %3181 = vmatprep.subr.mxu0 0.0
        %3182 = vmatpush1.msra.mxu0 0.0
        %3183 = vmatprep.subr.mxu0 0.0
        %3184 = vmatpush1.msra.mxu0 0.0
        %3185 = vmatprep.subr.mxu0 0.0
        %3186 = vmatpush1.msra.mxu0 0.0
        %3187 = vmatprep.subr.mxu0 0.0
        %3188 = vmatpush1.msra.mxu0 0.0
        %3189 = vmatprep.subr.mxu0 0.0
        %3190 = vmatpush1.msra.mxu0 0.0
        %3191 = vmatprep.subr.mxu0 0.0
        %3192 = vmatpush1.msra.mxu0 0.0
        %3193 = vmatprep.subr.mxu0 0.0
        %3194 = vmatpush1.msra.mxu0 %v2939
        %3195 = vmatprep.subr.mxu0 0.0
        %3196 = vmatpush1.msra.mxu0 %v2938
        %3197 = vmatprep.subr.mxu0 0.0
        %3198 = vmatpush2.msra.mxu0 0.0
        %3199 = vmatprep.subr.mxu0 0.0
        %3200 = vmatpush2.msra.mxu0 0.0
        %3201 = vmatprep.subr.mxu0 0.0
        %3202 = vmatpush2.msra.mxu0 0.0
        %3203 = vmatprep.subr.mxu0 0.0
        %3204 = vmatpush2.msra.mxu0 0.0
        %3205 = vmatprep.subr.mxu0 0.0
        %3206 = vmatpush2.msra.mxu0 0.0
        %3207 = vmatprep.subr.mxu0 0.0
        %3208 = vmatpush2.msra.mxu0 0.0
        %3209 = vmatprep.subr.mxu0 0.0
        %3210 = vmatpush2.msra.mxu0 0.0
        %3211 = vmatprep.subr.mxu0 0.0
        %3212 = vmatpush2.msra.mxu0 0.0
        %3213 = vmatprep.subr.mxu0 0.0
        %3214 = vmatpush2.msra.mxu0 0.0
        %3215 = vmatprep.subr.mxu0 0.0
        %3216 = vmatpush2.msra.mxu0 0.0
        %3217 = vmatprep.subr.mxu0 0.0
        %3218 = vmatpush2.msra.mxu0 0.0
        %3219 = vmatprep.subr.mxu0 0.0
        %3220 = vmatpush2.msra.mxu0 0.0
        %3221 = vmatprep.subr.mxu0 0.0
        %3222 = vmatpush2.msra.mxu0 0.0
        %3223 = vmatprep.subr.mxu0 0.0
        %3224 = vmatpush2.msra.mxu0 0.0
        %3225 = vmatprep.subr.mxu0 0.0
        %3226 = vmatpush2.msra.mxu0 0.0
        %3227 = vmatprep.subr.mxu0 0.0
        %3228 = vmatpush2.msra.mxu0 0.0
        %3229 = vmatprep.mubr.f32.mxu0 0.0
        %3230 = vmatmul.mubr.f32.gmra.mxu0 %v550
        %v3231 = vpop.f32.mrf.mxu0
        %v3232 = vadd.f32 0.0, %v3231
        %v3233 = vpop.f32.mrf.mxu0
        %3234 = vmatprep.mubr.f32.mxu0 0.0
        %3235 = vmatmul.mubr.f32.gmra.mxu0 %v553
        %v3236 = vpop.f32.mrf.mxu0
        %v3237 = vadd.f32 0.0, %v3236
        %v3238 = vpop.f32.mrf.mxu0
        %3239 = vdwg.mxu0
        %3240 = vmatprep.subr.mxu0 0.0
        %3241 = vmatpush1.msra.mxu0 0.0
        %3242 = vmatprep.subr.mxu0 0.0
        %3243 = vmatpush1.msra.mxu0 0.0
        %3244 = vmatprep.subr.mxu0 0.0
        %3245 = vmatpush1.msra.mxu0 0.0
        %3246 = vmatprep.subr.mxu0 0.0
        %3247 = vmatpush1.msra.mxu0 0.0
        %3248 = vmatprep.subr.mxu0 0.0
        %3249 = vmatpush1.msra.mxu0 0.0
        %3250 = vmatprep.subr.mxu0 0.0
        %3251 = vmatpush1.msra.mxu0 0.0
        %3252 = vmatprep.subr.mxu0 0.0
        %3253 = vmatpush1.msra.mxu0 0.0
        %3254 = vmatprep.subr.mxu0 0.0
        %3255 = vmatpush1.msra.mxu0 0.0
        %3256 = vmatprep.subr.mxu0 0.0
        %3257 = vmatpush1.msra.mxu0 0.0
        %3258 = vmatprep.subr.mxu0 0.0
        %3259 = vmatpush1.msra.mxu0 0.0
        %3260 = vmatprep.subr.mxu0 0.0
        %3261 = vmatpush1.msra.mxu0 0.0
        %3262 = vmatprep.subr.mxu0 0.0
        %3263 = vmatpush1.msra.mxu0 0.0
        %3264 = vmatprep.subr.mxu0 0.0
        %3265 = vmatpush1.msra.mxu0 0.0
        %3266 = vmatprep.subr.mxu0 0.0
        %3267 = vmatpush1.msra.mxu0 0.0
        %3268 = vmatprep.subr.mxu0 0.0
        %3269 = vmatpush1.msra.mxu0 %v2937
        %3270 = vmatprep.subr.mxu0 0.0
        %3271 = vmatpush1.msra.mxu0 %v2936
        %3272 = vmatprep.subr.mxu0 0.0
        %3273 = vmatpush2.msra.mxu0 0.0
        %3274 = vmatprep.subr.mxu0 0.0
        %3275 = vmatpush2.msra.mxu0 0.0
        %3276 = vmatprep.subr.mxu0 0.0
        %3277 = vmatpush2.msra.mxu0 0.0
        %3278 = vmatprep.subr.mxu0 0.0
        %3279 = vmatpush2.msra.mxu0 0.0
        %3280 = vmatprep.subr.mxu0 0.0
        %3281 = vmatpush2.msra.mxu0 0.0
        %3282 = vmatprep.subr.mxu0 0.0
        %3283 = vmatpush2.msra.mxu0 0.0
        %3284 = vmatprep.subr.mxu0 0.0
        %3285 = vmatpush2.msra.mxu0 0.0
        %3286 = vmatprep.subr.mxu0 0.0
        %3287 = vmatpush2.msra.mxu0 0.0
        %3288 = vmatprep.subr.mxu0 0.0
        %3289 = vmatpush2.msra.mxu0 0.0
        %3290 = vmatprep.subr.mxu0 0.0
        %3291 = vmatpush2.msra.mxu0 0.0
        %3292 = vmatprep.subr.mxu0 0.0
        %3293 = vmatpush2.msra.mxu0 0.0
        %3294 = vmatprep.subr.mxu0 0.0
        %3295 = vmatpush2.msra.mxu0 0.0
        %3296 = vmatprep.subr.mxu0 0.0
        %3297 = vmatpush2.msra.mxu0 0.0
        %3298 = vmatprep.subr.mxu0 0.0
        %3299 = vmatpush2.msra.mxu0 0.0
        %3300 = vmatprep.subr.mxu0 0.0
        %3301 = vmatpush2.msra.mxu0 0.0
        %3302 = vmatprep.subr.mxu0 0.0
        %3303 = vmatpush2.msra.mxu0 0.0
        %3304 = vmatprep.mubr.f32.mxu0 0.0
        %3305 = vmatmul.mubr.f32.gmra.mxu0 %v706
        %v3306 = vpop.f32.mrf.mxu0
        %v3307 = vadd.f32 0.0, %v3306
        %v3308 = vpop.f32.mrf.mxu0
        %3309 = vmatprep.mubr.f32.mxu0 0.0
        %3310 = vmatmul.mubr.f32.gmra.mxu0 %v709
        %v3311 = vpop.f32.mrf.mxu0
        %v3312 = vadd.f32 0.0, %v3311
        %v3313 = vpop.f32.mrf.mxu0
        %3314 = vdwg.mxu0
        %3315 = vmatprep.subr.mxu0 0.0
        %3316 = vmatpush1.msra.mxu0 0.0
        %3317 = vmatprep.subr.mxu0 0.0
        %3318 = vmatpush1.msra.mxu0 0.0
        %3319 = vmatprep.subr.mxu0 0.0
        %3320 = vmatpush1.msra.mxu0 0.0
        %3321 = vmatprep.subr.mxu0 0.0
        %3322 = vmatpush1.msra.mxu0 0.0
        %3323 = vmatprep.subr.mxu0 0.0
        %3324 = vmatpush1.msra.mxu0 0.0
        %3325 = vmatprep.subr.mxu0 0.0
        %3326 = vmatpush1.msra.mxu0 0.0
        %3327 = vmatprep.subr.mxu0 0.0
        %3328 = vmatpush1.msra.mxu0 0.0
        %3329 = vmatprep.subr.mxu0 0.0
        %3330 = vmatpush1.msra.mxu0 0.0
        %3331 = vmatprep.subr.mxu0 0.0
        %3332 = vmatpush1.msra.mxu0 0.0
        %3333 = vmatprep.subr.mxu0 0.0
        %3334 = vmatpush1.msra.mxu0 0.0
        %3335 = vmatprep.subr.mxu0 0.0
        %3336 = vmatpush1.msra.mxu0 0.0
        %3337 = vmatprep.subr.mxu0 0.0
        %3338 = vmatpush1.msra.mxu0 0.0
        %3339 = vmatprep.subr.mxu0 0.0
        %3340 = vmatpush1.msra.mxu0 0.0
        %3341 = vmatprep.subr.mxu0 0.0
        %3342 = vmatpush1.msra.mxu0 0.0
        %3343 = vmatprep.subr.mxu0 0.0
        %3344 = vmatpush1.msra.mxu0 %v2939
        %3345 = vmatprep.subr.mxu0 0.0
        %3346 = vmatpush1.msra.mxu0 %v2938
        %3347 = vmatprep.subr.mxu0 0.0
        %3348 = vmatpush2.msra.mxu0 0.0
        %3349 = vmatprep.subr.mxu0 0.0
        %3350 = vmatpush2.msra.mxu0 0.0
        %3351 = vmatprep.subr.mxu0 0.0
        %3352 = vmatpush2.msra.mxu0 0.0
        %3353 = vmatprep.subr.mxu0 0.0
        %3354 = vmatpush2.msra.mxu0 0.0
        %3355 = vmatprep.subr.mxu0 0.0
        %3356 = vmatpush2.msra.mxu0 0.0
        %3357 = vmatprep.subr.mxu0 0.0
        %3358 = vmatpush2.msra.mxu0 0.0
        %3359 = vmatprep.subr.mxu0 0.0
        %3360 = vmatpush2.msra.mxu0 0.0
        %3361 = vmatprep.subr.mxu0 0.0
        %3362 = vmatpush2.msra.mxu0 0.0
        %3363 = vmatprep.subr.mxu0 0.0
        %3364 = vmatpush2.msra.mxu0 0.0
        %3365 = vmatprep.subr.mxu0 0.0
        %3366 = vmatpush2.msra.mxu0 0.0
        %3367 = vmatprep.subr.mxu0 0.0
        %3368 = vmatpush2.msra.mxu0 0.0
        %3369 = vmatprep.subr.mxu0 0.0
        %3370 = vmatpush2.msra.mxu0 0.0
        %3371 = vmatprep.subr.mxu0 0.0
        %3372 = vmatpush2.msra.mxu0 0.0
        %3373 = vmatprep.subr.mxu0 0.0
        %3374 = vmatpush2.msra.mxu0 0.0
        %3375 = vmatprep.subr.mxu0 0.0
        %3376 = vmatpush2.msra.mxu0 0.0
        %3377 = vmatprep.subr.mxu0 0.0
        %3378 = vmatpush2.msra.mxu0 0.0
        %3379 = vmatprep.mubr.f32.mxu0 0.0
        %3380 = vmatmul.mubr.f32.gmra.mxu0 %v706
        %v3381 = vpop.f32.mrf.mxu0
        %v3382 = vadd.f32 0.0, %v3381
        %v3383 = vpop.f32.mrf.mxu0
        %3384 = vmatprep.mubr.f32.mxu0 0.0
        %3385 = vmatmul.mubr.f32.gmra.mxu0 %v709
        %v3386 = vpop.f32.mrf.mxu0
        %v3387 = vadd.f32 0.0, %v3386
        %v3388 = vpop.f32.mrf.mxu0
        %3389 = vdwg.mxu0
        %v3390 = vld [vmem:[#allocation5] sm:$0x3]
        %v3391 = vld [vmem:[%s7] sm:$0xff]
        %v3392 = vld [vmem:[%s7 + $0x8] sm:$0xff]
        %v3393 = vld [vmem:[%s7 + $0x10] sm:$0xff]
        %v3394 = vld [vmem:[%s7 + $0x18] sm:$0xff]
        %v3395 = vld [vmem:[%s7 + $0x20] sm:$0xff]
        %v3396 = vld [vmem:[%s7 + $0x28] sm:$0xff]
        %v3397 = vld [vmem:[%s7 + $0x30] sm:$0xff]
        %v3398 = vld [vmem:[%s7 + $0x38] sm:$0xff]
        %v3400 = vsel %vm1328, %v3007, 0
        %v3403 = vsel %vm1328, %v3012, 0
        %v3406 = vsel %vm1328, %v3082, 0
        %v3409 = vsel %vm1328, %v3087, 0
        %3411 = vmatprep.subr.mxu0 0.0
        %3412 = vmatpush1.msra.mxu0 0.0
        %3413 = vmatprep.subr.mxu0 0.0
        %3414 = vmatpush1.msra.mxu0 0.0
        %3415 = vmatprep.subr.mxu0 0.0
        %3416 = vmatpush1.msra.mxu0 0.0
        %3417 = vmatprep.subr.mxu0 0.0
        %3418 = vmatpush1.msra.mxu0 0.0
        %3419 = vmatprep.subr.mxu0 0.0
        %3420 = vmatpush1.msra.mxu0 0.0
        %3421 = vmatprep.subr.mxu0 0.0
        %3422 = vmatpush1.msra.mxu0 0.0
        %3423 = vmatprep.subr.mxu0 0.0
        %3424 = vmatpush1.msra.mxu0 0.0
        %3425 = vmatprep.subr.mxu0 0.0
        %3426 = vmatpush1.msra.mxu0 0.0
        %3427 = vmatprep.subr.mxu0 0.0
        %3428 = vmatpush1.msra.mxu0 0.0
        %3429 = vmatprep.subr.mxu0 0.0
        %3430 = vmatpush1.msra.mxu0 0.0
        %3431 = vmatprep.subr.mxu0 0.0
        %3432 = vmatpush1.msra.mxu0 0.0
        %3433 = vmatprep.subr.mxu0 0.0
        %3434 = vmatpush1.msra.mxu0 0.0
        %3435 = vmatprep.subr.mxu0 %v3398
        %3436 = vmatpush1.msra.mxu0 %v3397
        %3437 = vmatprep.subr.mxu0 %v3396
        %3438 = vmatpush1.msra.mxu0 %v3395
        %3439 = vmatprep.subr.mxu0 %v3394
        %3440 = vmatpush1.msra.mxu0 %v3393
        %3441 = vmatprep.subr.mxu0 %v3392
        %3442 = vmatpush1.msra.mxu0 %v3391
        %3443 = vmatprep.subr.mxu0 0.0
        %3444 = vmatpush2.msra.mxu0 0.0
        %3445 = vmatprep.subr.mxu0 0.0
        %3446 = vmatpush2.msra.mxu0 0.0
        %3447 = vmatprep.subr.mxu0 0.0
        %3448 = vmatpush2.msra.mxu0 0.0
        %3449 = vmatprep.subr.mxu0 0.0
        %3450 = vmatpush2.msra.mxu0 0.0
        %3451 = vmatprep.subr.mxu0 0.0
        %3452 = vmatpush2.msra.mxu0 0.0
        %3453 = vmatprep.subr.mxu0 0.0
        %3454 = vmatpush2.msra.mxu0 0.0
        %3455 = vmatprep.subr.mxu0 0.0
        %3456 = vmatpush2.msra.mxu0 0.0
        %3457 = vmatprep.subr.mxu0 0.0
        %3458 = vmatpush2.msra.mxu0 0.0
        %3459 = vmatprep.subr.mxu0 0.0
        %3460 = vmatpush2.msra.mxu0 0.0
        %3461 = vmatprep.subr.mxu0 0.0
        %3462 = vmatpush2.msra.mxu0 0.0
        %3463 = vmatprep.subr.mxu0 0.0
        %3464 = vmatpush2.msra.mxu0 0.0
        %3465 = vmatprep.subr.mxu0 0.0
        %3466 = vmatpush2.msra.mxu0 0.0
        %3467 = vmatprep.subr.mxu0 0.0
        %3468 = vmatpush2.msra.mxu0 0.0
        %3469 = vmatprep.subr.mxu0 0.0
        %3470 = vmatpush2.msra.mxu0 0.0
        %3471 = vmatprep.subr.mxu0 0.0
        %3472 = vmatpush2.msra.mxu0 0.0
        %3473 = vmatprep.subr.mxu0 0.0
        %3474 = vmatpush2.msra.mxu0 0.0
        %3475 = vmatprep.mubr.f32.mxu0 0.0
        %3476 = vmatmul.mubr.f32.gmra.mxu0 %v3400
        %v3477 = vpop.f32.mrf.mxu0
        %v3478 = vadd.f32 0.0, %v3477
        %v3479 = vpop.f32.mrf.mxu0
        %v3480 = vadd.f32 0.0, %v3479
        %3481 = vmatprep.mubr.f32.mxu0 0.0
        %3482 = vmatmul.mubr.f32.gmra.mxu0 %v3403
        %v3483 = vpop.f32.mrf.mxu0
        %v3484 = vadd.f32 0.0, %v3483
        %v3485 = vpop.f32.mrf.mxu0
        %v3486 = vadd.f32 0.0, %v3485
        %3487 = vmatprep.mubr.f32.mxu0 0.0
        %3488 = vmatmul.mubr.f32.gmra.mxu0 %v3406
        %v3489 = vpop.f32.mrf.mxu0
        %v3490 = vadd.f32 0.0, %v3489
        %v3491 = vpop.f32.mrf.mxu0
        %v3492 = vadd.f32 0.0, %v3491
        %3493 = vmatprep.mubr.f32.mxu0 0.0
        %3494 = vmatmul.mubr.f32.gmra.mxu0 %v3409
        %v3495 = vpop.f32.mrf.mxu0
        %v3496 = vadd.f32 0.0, %v3495
        %v3497 = vpop.f32.mrf.mxu0
        %v3498 = vadd.f32 0.0, %v3497
        %3499 = vdwg.mxu0
        %v3501 = vlaneseq
        %v3502 = vshrl.u32 %v3501, 7
        %v3503 = vsub.s32 0, %v3502
        %v3504 = vrot.slane %v3390, %v3503
        %v3505 = vlaneseq
        %v3506 = vshrl.u32 %v3505, 7
        %v3507 = vsub.s32 1, %v3506
        %v3508 = vrot.slane %v3390, %v3507
        %v3509 = vsel %vm1549, %v3504, 0
        %v3511 = vsel %vm1549, %v3508, 0
        %3513 = vmatprep.subr.mxu0 0.0
        %3514 = vmatpush1.msra.mxu0 0.0
        %3515 = vmatprep.subr.mxu0 0.0
        %3516 = vmatpush1.msra.mxu0 0.0
        %3517 = vmatprep.subr.mxu0 0.0
        %3518 = vmatpush1.msra.mxu0 0.0
        %3519 = vmatprep.subr.mxu0 0.0
        %3520 = vmatpush1.msra.mxu0 0.0
        %3521 = vmatprep.subr.mxu0 0.0
        %3522 = vmatpush1.msra.mxu0 0.0
        %3523 = vmatprep.subr.mxu0 0.0
        %3524 = vmatpush1.msra.mxu0 0.0
        %3525 = vmatprep.subr.mxu0 0.0
        %3526 = vmatpush1.msra.mxu0 0.0
        %3527 = vmatprep.subr.mxu0 0.0
        %3528 = vmatpush1.msra.mxu0 0.0
        %3529 = vmatprep.subr.mxu0 0.0
        %3530 = vmatpush1.msra.mxu0 0.0
        %3531 = vmatprep.subr.mxu0 0.0
        %3532 = vmatpush1.msra.mxu0 0.0
        %3533 = vmatprep.subr.mxu0 0.0
        %3534 = vmatpush1.msra.mxu0 0.0
        %3535 = vmatprep.subr.mxu0 0.0
        %3536 = vmatpush1.msra.mxu0 0.0
        %3537 = vmatprep.subr.mxu0 0.0
        %3538 = vmatpush1.msra.mxu0 0.0
        %3539 = vmatprep.subr.mxu0 0.0
        %3540 = vmatpush1.msra.mxu0 0.0
        %3541 = vmatprep.subr.mxu0 0.0
        %3542 = vmatpush1.msra.mxu0 0.0
        %3543 = vmatprep.subr.mxu0 %v3511
        %3544 = vmatpush1.msra.mxu0 %v3509
        %3545 = vmatprep.subr.mxu0 0.0
        %3546 = vmatpush2.msra.mxu0 0.0
        %3547 = vmatprep.subr.mxu0 0.0
        %3548 = vmatpush2.msra.mxu0 0.0
        %3549 = vmatprep.subr.mxu0 0.0
        %3550 = vmatpush2.msra.mxu0 0.0
        %3551 = vmatprep.subr.mxu0 0.0
        %3552 = vmatpush2.msra.mxu0 0.0
        %3553 = vmatprep.subr.mxu0 0.0
        %3554 = vmatpush2.msra.mxu0 0.0
        %3555 = vmatprep.subr.mxu0 0.0
        %3556 = vmatpush2.msra.mxu0 0.0
        %3557 = vmatprep.subr.mxu0 0.0
        %3558 = vmatpush2.msra.mxu0 0.0
        %3559 = vmatprep.subr.mxu0 0.0
        %3560 = vmatpush2.msra.mxu0 0.0
        %3561 = vmatprep.subr.mxu0 0.0
        %3562 = vmatpush2.msra.mxu0 0.0
        %3563 = vmatprep.subr.mxu0 0.0
        %3564 = vmatpush2.msra.mxu0 0.0
        %3565 = vmatprep.subr.mxu0 0.0
        %3566 = vmatpush2.msra.mxu0 0.0
        %3567 = vmatprep.subr.mxu0 0.0
        %3568 = vmatpush2.msra.mxu0 0.0
        %3569 = vmatprep.subr.mxu0 0.0
        %3570 = vmatpush2.msra.mxu0 0.0
        %3571 = vmatprep.subr.mxu0 0.0
        %3572 = vmatpush2.msra.mxu0 0.0
        %3573 = vmatprep.subr.mxu0 0.0
        %3574 = vmatpush2.msra.mxu0 0.0
        %3575 = vmatprep.subr.mxu0 0.0
        %3576 = vmatpush2.msra.mxu0 0.0
        %3577 = vmatprep.mubr.f32.mxu0 0.0
        %3578 = vmatmul.mubr.f32.gmra.mxu0 %v1538
        %v3579 = vpop.f32.mrf.mxu0
        %v3580 = vadd.f32 %v3478, %v3579
        %v3581 = vpop.f32.mrf.mxu0
        %v3582 = vadd.f32 %v3480, %v3581
        %3583 = vmatprep.mubr.f32.mxu0 0.0
        %3584 = vmatmul.mubr.f32.gmra.mxu0 %v1541
        %v3585 = vpop.f32.mrf.mxu0
        %v3586 = vadd.f32 %v3484, %v3585
        %v3587 = vpop.f32.mrf.mxu0
        %v3588 = vadd.f32 %v3486, %v3587
        %3589 = vmatprep.mubr.f32.mxu0 0.0
        %3590 = vmatmul.mubr.f32.gmra.mxu0 %v1544
        %v3591 = vpop.f32.mrf.mxu0
        %v3592 = vadd.f32 %v3490, %v3591
        %v3593 = vpop.f32.mrf.mxu0
        %v3594 = vadd.f32 %v3492, %v3593
        %3595 = vmatprep.mubr.f32.mxu0 0.0
        %3596 = vmatmul.mubr.f32.gmra.mxu0 %v1547
        %v3597 = vpop.f32.mrf.mxu0
        %v3598 = vadd.f32 %v3496, %v3597
        %v3599 = vpop.f32.mrf.mxu0
        %v3600 = vadd.f32 %v3498, %v3599
        %3601 = vdwg.mxu0
        %s3602 = scalar_lea.vmem [#allocation5], 2
        %v3603 = vld [vmem:[%s3602] sm:$0x3]
        %v3605 = vlaneseq
        %v3606 = vshrl.u32 %v3605, 7
        %v3607 = vsub.s32 0, %v3606
        %v3608 = vrot.slane %v3603, %v3607
        %v3609 = vlaneseq
        %v3610 = vshrl.u32 %v3609, 7
        %v3611 = vsub.s32 1, %v3610
        %v3612 = vrot.slane %v3603, %v3611
        %v3613 = vsel %vm1549, %v3608, 0
        %v3615 = vsel %vm1549, %v3612, 0
        %3617 = vmatprep.subr.mxu0 0.0
        %3618 = vmatpush1.msra.mxu0 0.0
        %3619 = vmatprep.subr.mxu0 0.0
        %3620 = vmatpush1.msra.mxu0 0.0
        %3621 = vmatprep.subr.mxu0 0.0
        %3622 = vmatpush1.msra.mxu0 0.0
        %3623 = vmatprep.subr.mxu0 0.0
        %3624 = vmatpush1.msra.mxu0 0.0
        %3625 = vmatprep.subr.mxu0 0.0
        %3626 = vmatpush1.msra.mxu0 0.0
        %3627 = vmatprep.subr.mxu0 0.0
        %3628 = vmatpush1.msra.mxu0 0.0
        %3629 = vmatprep.subr.mxu0 0.0
        %3630 = vmatpush1.msra.mxu0 0.0
        %3631 = vmatprep.subr.mxu0 0.0
        %3632 = vmatpush1.msra.mxu0 0.0
        %3633 = vmatprep.subr.mxu0 0.0
        %3634 = vmatpush1.msra.mxu0 0.0
        %3635 = vmatprep.subr.mxu0 0.0
        %3636 = vmatpush1.msra.mxu0 0.0
        %3637 = vmatprep.subr.mxu0 0.0
        %3638 = vmatpush1.msra.mxu0 0.0
        %3639 = vmatprep.subr.mxu0 0.0
        %3640 = vmatpush1.msra.mxu0 0.0
        %3641 = vmatprep.subr.mxu0 0.0
        %3642 = vmatpush1.msra.mxu0 0.0
        %3643 = vmatprep.subr.mxu0 0.0
        %3644 = vmatpush1.msra.mxu0 0.0
        %3645 = vmatprep.subr.mxu0 0.0
        %3646 = vmatpush1.msra.mxu0 0.0
        %3647 = vmatprep.subr.mxu0 %v3615
        %3648 = vmatpush1.msra.mxu0 %v3613
        %3649 = vmatprep.subr.mxu0 0.0
        %3650 = vmatpush2.msra.mxu0 0.0
        %3651 = vmatprep.subr.mxu0 0.0
        %3652 = vmatpush2.msra.mxu0 0.0
        %3653 = vmatprep.subr.mxu0 0.0
        %3654 = vmatpush2.msra.mxu0 0.0
        %3655 = vmatprep.subr.mxu0 0.0
        %3656 = vmatpush2.msra.mxu0 0.0
        %3657 = vmatprep.subr.mxu0 0.0
        %3658 = vmatpush2.msra.mxu0 0.0
        %3659 = vmatprep.subr.mxu0 0.0
        %3660 = vmatpush2.msra.mxu0 0.0
        %3661 = vmatprep.subr.mxu0 0.0
        %3662 = vmatpush2.msra.mxu0 0.0
        %3663 = vmatprep.subr.mxu0 0.0
        %3664 = vmatpush2.msra.mxu0 0.0
        %3665 = vmatprep.subr.mxu0 0.0
        %3666 = vmatpush2.msra.mxu0 0.0
        %3667 = vmatprep.subr.mxu0 0.0
        %3668 = vmatpush2.msra.mxu0 0.0
        %3669 = vmatprep.subr.mxu0 0.0
        %3670 = vmatpush2.msra.mxu0 0.0
        %3671 = vmatprep.subr.mxu0 0.0
        %3672 = vmatpush2.msra.mxu0 0.0
        %3673 = vmatprep.subr.mxu0 0.0
        %3674 = vmatpush2.msra.mxu0 0.0
        %3675 = vmatprep.subr.mxu0 0.0
        %3676 = vmatpush2.msra.mxu0 0.0
        %3677 = vmatprep.subr.mxu0 0.0
        %3678 = vmatpush2.msra.mxu0 0.0
        %3679 = vmatprep.subr.mxu0 0.0
        %3680 = vmatpush2.msra.mxu0 0.0
        %3681 = vmatprep.mubr.f32.mxu0 0.0
        %3682 = vmatmul.mubr.f32.gmra.mxu0 %v1756
        %v3683 = vpop.f32.mrf.mxu0
        %v3684 = vadd.f32 0.0, %v3683
        %v3685 = vpop.f32.mrf.mxu0
        %v3686 = vadd.f32 0.0, %v3685
        %3687 = vmatprep.mubr.f32.mxu0 0.0
        %3688 = vmatmul.mubr.f32.gmra.mxu0 %v1759
        %v3689 = vpop.f32.mrf.mxu0
        %v3690 = vadd.f32 0.0, %v3689
        %v3691 = vpop.f32.mrf.mxu0
        %v3692 = vadd.f32 0.0, %v3691
        %3693 = vmatprep.mubr.f32.mxu0 0.0
        %3694 = vmatmul.mubr.f32.gmra.mxu0 %v1762
        %v3695 = vpop.f32.mrf.mxu0
        %v3696 = vadd.f32 0.0, %v3695
        %v3697 = vpop.f32.mrf.mxu0
        %v3698 = vadd.f32 0.0, %v3697
        %3699 = vmatprep.mubr.f32.mxu0 0.0
        %3700 = vmatmul.mubr.f32.gmra.mxu0 %v1765
        %v3701 = vpop.f32.mrf.mxu0
        %v3702 = vadd.f32 0.0, %v3701
        %v3703 = vpop.f32.mrf.mxu0
        %v3704 = vadd.f32 0.0, %v3703
        %3705 = vdwg.mxu0
        %v3706 = vadd.f32 %v3580, %v3684
        %v3707 = vadd.f32 %v3582, %v3686
        %v3708 = vadd.f32 %v3586, %v3690
        %v3709 = vadd.f32 %v3588, %v3692
        %v3710 = vadd.f32 %v3592, %v3696
        %v3711 = vadd.f32 %v3594, %v3698
        %v3712 = vadd.f32 %v3598, %v3702
        %v3713 = vadd.f32 %v3600, %v3704
        %s3714 = scalar_lea.vmem %s7, 64
        %v3715 = vld [vmem:[%s3714] sm:$0xff]
        %v3716 = vld [vmem:[%s3714 + $0x8] sm:$0xff]
        %v3717 = vld [vmem:[%s3714 + $0x10] sm:$0xff]
        %v3718 = vld [vmem:[%s3714 + $0x18] sm:$0xff]
        %v3719 = vld [vmem:[%s3714 + $0x20] sm:$0xff]
        %v3720 = vld [vmem:[%s3714 + $0x28] sm:$0xff]
        %v3721 = vld [vmem:[%s3714 + $0x30] sm:$0xff]
        %v3722 = vld [vmem:[%s3714 + $0x38] sm:$0xff]
        %v3724 = vsel %vm1328, %v3157, 0
        %v3727 = vsel %vm1328, %v3162, 0
        %v3730 = vsel %vm1328, %v3232, 0
        %v3733 = vsel %vm1328, %v3237, 0
        %3735 = vmatprep.subr.mxu0 0.0
        %3736 = vmatpush1.msra.mxu0 0.0
        %3737 = vmatprep.subr.mxu0 0.0
        %3738 = vmatpush1.msra.mxu0 0.0
        %3739 = vmatprep.subr.mxu0 0.0
        %3740 = vmatpush1.msra.mxu0 0.0
        %3741 = vmatprep.subr.mxu0 0.0
        %3742 = vmatpush1.msra.mxu0 0.0
        %3743 = vmatprep.subr.mxu0 0.0
        %3744 = vmatpush1.msra.mxu0 0.0
        %3745 = vmatprep.subr.mxu0 0.0
        %3746 = vmatpush1.msra.mxu0 0.0
        %3747 = vmatprep.subr.mxu0 0.0
        %3748 = vmatpush1.msra.mxu0 0.0
        %3749 = vmatprep.subr.mxu0 0.0
        %3750 = vmatpush1.msra.mxu0 0.0
        %3751 = vmatprep.subr.mxu0 0.0
        %3752 = vmatpush1.msra.mxu0 0.0
        %3753 = vmatprep.subr.mxu0 0.0
        %3754 = vmatpush1.msra.mxu0 0.0
        %3755 = vmatprep.subr.mxu0 0.0
        %3756 = vmatpush1.msra.mxu0 0.0
        %3757 = vmatprep.subr.mxu0 0.0
        %3758 = vmatpush1.msra.mxu0 0.0
        %3759 = vmatprep.subr.mxu0 %v3722
        %3760 = vmatpush1.msra.mxu0 %v3721
        %3761 = vmatprep.subr.mxu0 %v3720
        %3762 = vmatpush1.msra.mxu0 %v3719
        %3763 = vmatprep.subr.mxu0 %v3718
        %3764 = vmatpush1.msra.mxu0 %v3717
        %3765 = vmatprep.subr.mxu0 %v3716
        %3766 = vmatpush1.msra.mxu0 %v3715
        %3767 = vmatprep.subr.mxu0 0.0
        %3768 = vmatpush2.msra.mxu0 0.0
        %3769 = vmatprep.subr.mxu0 0.0
        %3770 = vmatpush2.msra.mxu0 0.0
        %3771 = vmatprep.subr.mxu0 0.0
        %3772 = vmatpush2.msra.mxu0 0.0
        %3773 = vmatprep.subr.mxu0 0.0
        %3774 = vmatpush2.msra.mxu0 0.0
        %3775 = vmatprep.subr.mxu0 0.0
        %3776 = vmatpush2.msra.mxu0 0.0
        %3777 = vmatprep.subr.mxu0 0.0
        %3778 = vmatpush2.msra.mxu0 0.0
        %3779 = vmatprep.subr.mxu0 0.0
        %3780 = vmatpush2.msra.mxu0 0.0
        %3781 = vmatprep.subr.mxu0 0.0
        %3782 = vmatpush2.msra.mxu0 0.0
        %3783 = vmatprep.subr.mxu0 0.0
        %3784 = vmatpush2.msra.mxu0 0.0
        %3785 = vmatprep.subr.mxu0 0.0
        %3786 = vmatpush2.msra.mxu0 0.0
        %3787 = vmatprep.subr.mxu0 0.0
        %3788 = vmatpush2.msra.mxu0 0.0
        %3789 = vmatprep.subr.mxu0 0.0
        %3790 = vmatpush2.msra.mxu0 0.0
        %3791 = vmatprep.subr.mxu0 0.0
        %3792 = vmatpush2.msra.mxu0 0.0
        %3793 = vmatprep.subr.mxu0 0.0
        %3794 = vmatpush2.msra.mxu0 0.0
        %3795 = vmatprep.subr.mxu0 0.0
        %3796 = vmatpush2.msra.mxu0 0.0
        %3797 = vmatprep.subr.mxu0 0.0
        %3798 = vmatpush2.msra.mxu0 0.0
        %3799 = vmatprep.mubr.f32.mxu0 0.0
        %3800 = vmatmul.mubr.f32.gmra.mxu0 %v3724
        %v3801 = vpop.f32.mrf.mxu0
        %v3802 = vadd.f32 0.0, %v3801
        %v3803 = vpop.f32.mrf.mxu0
        %v3804 = vadd.f32 0.0, %v3803
        %3805 = vmatprep.mubr.f32.mxu0 0.0
        %3806 = vmatmul.mubr.f32.gmra.mxu0 %v3727
        %v3807 = vpop.f32.mrf.mxu0
        %v3808 = vadd.f32 0.0, %v3807
        %v3809 = vpop.f32.mrf.mxu0
        %v3810 = vadd.f32 0.0, %v3809
        %3811 = vmatprep.mubr.f32.mxu0 0.0
        %3812 = vmatmul.mubr.f32.gmra.mxu0 %v3730
        %v3813 = vpop.f32.mrf.mxu0
        %v3814 = vadd.f32 0.0, %v3813
        %v3815 = vpop.f32.mrf.mxu0
        %v3816 = vadd.f32 0.0, %v3815
        %3817 = vmatprep.mubr.f32.mxu0 0.0
        %3818 = vmatmul.mubr.f32.gmra.mxu0 %v3733
        %v3819 = vpop.f32.mrf.mxu0
        %v3820 = vadd.f32 0.0, %v3819
        %v3821 = vpop.f32.mrf.mxu0
        %v3822 = vadd.f32 0.0, %v3821
        %3823 = vdwg.mxu0
        %v3824 = vadd.f32 %v3706, %v3802
        %v3825 = vadd.f32 %v3707, %v3804
        %v3826 = vadd.f32 %v3708, %v3808
        %v3827 = vadd.f32 %v3709, %v3810
        %v3828 = vadd.f32 %v3710, %v3814
        %v3829 = vadd.f32 %v3711, %v3816
        %v3830 = vadd.f32 %v3712, %v3820
        %v3831 = vadd.f32 %v3713, %v3822
        %s3832 = scalar_lea.vmem [#allocation5], 4
        %v3833 = vld [vmem:[%s3832] sm:$0x3]
        %v3835 = vlaneseq
        %v3836 = vshrl.u32 %v3835, 7
        %v3837 = vsub.s32 0, %v3836
        %v3838 = vrot.slane %v3833, %v3837
        %v3839 = vlaneseq
        %v3840 = vshrl.u32 %v3839, 7
        %v3841 = vsub.s32 1, %v3840
        %v3842 = vrot.slane %v3833, %v3841
        %v3843 = vsel %vm1549, %v3838, 0
        %v3845 = vsel %vm1549, %v3842, 0
        %3847 = vmatprep.subr.mxu0 0.0
        %3848 = vmatpush1.msra.mxu0 0.0
        %3849 = vmatprep.subr.mxu0 0.0
        %3850 = vmatpush1.msra.mxu0 0.0
        %3851 = vmatprep.subr.mxu0 0.0
        %3852 = vmatpush1.msra.mxu0 0.0
        %3853 = vmatprep.subr.mxu0 0.0
        %3854 = vmatpush1.msra.mxu0 0.0
        %3855 = vmatprep.subr.mxu0 0.0
        %3856 = vmatpush1.msra.mxu0 0.0
        %3857 = vmatprep.subr.mxu0 0.0
        %3858 = vmatpush1.msra.mxu0 0.0
        %3859 = vmatprep.subr.mxu0 0.0
        %3860 = vmatpush1.msra.mxu0 0.0
        %3861 = vmatprep.subr.mxu0 0.0
        %3862 = vmatpush1.msra.mxu0 0.0
        %3863 = vmatprep.subr.mxu0 0.0
        %3864 = vmatpush1.msra.mxu0 0.0
        %3865 = vmatprep.subr.mxu0 0.0
        %3866 = vmatpush1.msra.mxu0 0.0
        %3867 = vmatprep.subr.mxu0 0.0
        %3868 = vmatpush1.msra.mxu0 0.0
        %3869 = vmatprep.subr.mxu0 0.0
        %3870 = vmatpush1.msra.mxu0 0.0
        %3871 = vmatprep.subr.mxu0 0.0
        %3872 = vmatpush1.msra.mxu0 0.0
        %3873 = vmatprep.subr.mxu0 0.0
        %3874 = vmatpush1.msra.mxu0 0.0
        %3875 = vmatprep.subr.mxu0 0.0
        %3876 = vmatpush1.msra.mxu0 0.0
        %3877 = vmatprep.subr.mxu0 %v3845
        %3878 = vmatpush1.msra.mxu0 %v3843
        %3879 = vmatprep.subr.mxu0 0.0
        %3880 = vmatpush2.msra.mxu0 0.0
        %3881 = vmatprep.subr.mxu0 0.0
        %3882 = vmatpush2.msra.mxu0 0.0
        %3883 = vmatprep.subr.mxu0 0.0
        %3884 = vmatpush2.msra.mxu0 0.0
        %3885 = vmatprep.subr.mxu0 0.0
        %3886 = vmatpush2.msra.mxu0 0.0
        %3887 = vmatprep.subr.mxu0 0.0
        %3888 = vmatpush2.msra.mxu0 0.0
        %3889 = vmatprep.subr.mxu0 0.0
        %3890 = vmatpush2.msra.mxu0 0.0
        %3891 = vmatprep.subr.mxu0 0.0
        %3892 = vmatpush2.msra.mxu0 0.0
        %3893 = vmatprep.subr.mxu0 0.0
        %3894 = vmatpush2.msra.mxu0 0.0
        %3895 = vmatprep.subr.mxu0 0.0
        %3896 = vmatpush2.msra.mxu0 0.0
        %3897 = vmatprep.subr.mxu0 0.0
        %3898 = vmatpush2.msra.mxu0 0.0
        %3899 = vmatprep.subr.mxu0 0.0
        %3900 = vmatpush2.msra.mxu0 0.0
        %3901 = vmatprep.subr.mxu0 0.0
        %3902 = vmatpush2.msra.mxu0 0.0
        %3903 = vmatprep.subr.mxu0 0.0
        %3904 = vmatpush2.msra.mxu0 0.0
        %3905 = vmatprep.subr.mxu0 0.0
        %3906 = vmatpush2.msra.mxu0 0.0
        %3907 = vmatprep.subr.mxu0 0.0
        %3908 = vmatpush2.msra.mxu0 0.0
        %3909 = vmatprep.subr.mxu0 0.0
        %3910 = vmatpush2.msra.mxu0 0.0
        %3911 = vmatprep.mubr.f32.mxu0 0.0
        %3912 = vmatmul.mubr.f32.gmra.mxu0 %v2212
        %v3913 = vpop.f32.mrf.mxu0
        %v3914 = vadd.f32 0.0, %v3913
        %v3915 = vpop.f32.mrf.mxu0
        %v3916 = vadd.f32 0.0, %v3915
        %3917 = vmatprep.mubr.f32.mxu0 0.0
        %3918 = vmatmul.mubr.f32.gmra.mxu0 %v2215
        %v3919 = vpop.f32.mrf.mxu0
        %v3920 = vadd.f32 0.0, %v3919
        %v3921 = vpop.f32.mrf.mxu0
        %v3922 = vadd.f32 0.0, %v3921
        %3923 = vmatprep.mubr.f32.mxu0 0.0
        %3924 = vmatmul.mubr.f32.gmra.mxu0 %v2218
        %v3925 = vpop.f32.mrf.mxu0
        %v3926 = vadd.f32 0.0, %v3925
        %v3927 = vpop.f32.mrf.mxu0
        %v3928 = vadd.f32 0.0, %v3927
        %3929 = vmatprep.mubr.f32.mxu0 0.0
        %3930 = vmatmul.mubr.f32.gmra.mxu0 %v2221
        %v3931 = vpop.f32.mrf.mxu0
        %v3932 = vadd.f32 0.0, %v3931
        %v3933 = vpop.f32.mrf.mxu0
        %v3934 = vadd.f32 0.0, %v3933
        %3935 = vdwg.mxu0
        %v3936 = vadd.f32 %v3824, %v3914
        %v3937 = vadd.f32 %v3825, %v3916
        %v3938 = vadd.f32 %v3826, %v3920
        %v3939 = vadd.f32 %v3827, %v3922
        %v3940 = vadd.f32 %v3828, %v3926
        %v3941 = vadd.f32 %v3829, %v3928
        %v3942 = vadd.f32 %v3830, %v3932
        %v3943 = vadd.f32 %v3831, %v3934
        %s3944 = scalar_lea.vmem %s7, 128
        %v3945 = vld [vmem:[%s3944] sm:$0xff]
        %v3946 = vld [vmem:[%s3944 + $0x8] sm:$0xff]
        %v3947 = vld [vmem:[%s3944 + $0x10] sm:$0xff]
        %v3948 = vld [vmem:[%s3944 + $0x18] sm:$0xff]
        %v3949 = vld [vmem:[%s3944 + $0x20] sm:$0xff]
        %v3950 = vld [vmem:[%s3944 + $0x28] sm:$0xff]
        %v3951 = vld [vmem:[%s3944 + $0x30] sm:$0xff]
        %v3952 = vld [vmem:[%s3944 + $0x38] sm:$0xff]
        %v3954 = vsel %vm1328, %v3307, 0
        %v3957 = vsel %vm1328, %v3312, 0
        %v3960 = vsel %vm1328, %v3382, 0
        %v3963 = vsel %vm1328, %v3387, 0
        %3965 = vmatprep.subr.mxu0 0.0
        %3966 = vmatpush1.msra.mxu0 0.0
        %3967 = vmatprep.subr.mxu0 0.0
        %3968 = vmatpush1.msra.mxu0 0.0
        %3969 = vmatprep.subr.mxu0 0.0
        %3970 = vmatpush1.msra.mxu0 0.0
        %3971 = vmatprep.subr.mxu0 0.0
        %3972 = vmatpush1.msra.mxu0 0.0
        %3973 = vmatprep.subr.mxu0 0.0
        %3974 = vmatpush1.msra.mxu0 0.0
        %3975 = vmatprep.subr.mxu0 0.0
        %3976 = vmatpush1.msra.mxu0 0.0
        %3977 = vmatprep.subr.mxu0 0.0
        %3978 = vmatpush1.msra.mxu0 0.0
        %3979 = vmatprep.subr.mxu0 0.0
        %3980 = vmatpush1.msra.mxu0 0.0
        %3981 = vmatprep.subr.mxu0 0.0
        %3982 = vmatpush1.msra.mxu0 0.0
        %3983 = vmatprep.subr.mxu0 0.0
        %3984 = vmatpush1.msra.mxu0 0.0
        %3985 = vmatprep.subr.mxu0 0.0
        %3986 = vmatpush1.msra.mxu0 0.0
        %3987 = vmatprep.subr.mxu0 0.0
        %3988 = vmatpush1.msra.mxu0 0.0
        %3989 = vmatprep.subr.mxu0 %v3952
        %3990 = vmatpush1.msra.mxu0 %v3951
        %3991 = vmatprep.subr.mxu0 %v3950
        %3992 = vmatpush1.msra.mxu0 %v3949
        %3993 = vmatprep.subr.mxu0 %v3948
        %3994 = vmatpush1.msra.mxu0 %v3947
        %3995 = vmatprep.subr.mxu0 %v3946
        %3996 = vmatpush1.msra.mxu0 %v3945
        %3997 = vmatprep.subr.mxu0 0.0
        %3998 = vmatpush2.msra.mxu0 0.0
        %3999 = vmatprep.subr.mxu0 0.0
        %4000 = vmatpush2.msra.mxu0 0.0
        %4001 = vmatprep.subr.mxu0 0.0
        %4002 = vmatpush2.msra.mxu0 0.0
        %4003 = vmatprep.subr.mxu0 0.0
        %4004 = vmatpush2.msra.mxu0 0.0
        %4005 = vmatprep.subr.mxu0 0.0
        %4006 = vmatpush2.msra.mxu0 0.0
        %4007 = vmatprep.subr.mxu0 0.0
        %4008 = vmatpush2.msra.mxu0 0.0
        %4009 = vmatprep.subr.mxu0 0.0
        %4010 = vmatpush2.msra.mxu0 0.0
        %4011 = vmatprep.subr.mxu0 0.0
        %4012 = vmatpush2.msra.mxu0 0.0
        %4013 = vmatprep.subr.mxu0 0.0
        %4014 = vmatpush2.msra.mxu0 0.0
        %4015 = vmatprep.subr.mxu0 0.0
        %4016 = vmatpush2.msra.mxu0 0.0
        %4017 = vmatprep.subr.mxu0 0.0
        %4018 = vmatpush2.msra.mxu0 0.0
        %4019 = vmatprep.subr.mxu0 0.0
        %4020 = vmatpush2.msra.mxu0 0.0
        %4021 = vmatprep.subr.mxu0 0.0
        %4022 = vmatpush2.msra.mxu0 0.0
        %4023 = vmatprep.subr.mxu0 0.0
        %4024 = vmatpush2.msra.mxu0 0.0
        %4025 = vmatprep.subr.mxu0 0.0
        %4026 = vmatpush2.msra.mxu0 0.0
        %4027 = vmatprep.subr.mxu0 0.0
        %4028 = vmatpush2.msra.mxu0 0.0
        %4029 = vmatprep.mubr.f32.mxu0 0.0
        %4030 = vmatmul.mubr.f32.gmra.mxu0 %v3954
        %v4031 = vpop.f32.mrf.mxu0
        %v4032 = vadd.f32 0.0, %v4031
        %v4033 = vpop.f32.mrf.mxu0
        %v4034 = vadd.f32 0.0, %v4033
        %4035 = vmatprep.mubr.f32.mxu0 0.0
        %4036 = vmatmul.mubr.f32.gmra.mxu0 %v3957
        %v4037 = vpop.f32.mrf.mxu0
        %v4038 = vadd.f32 0.0, %v4037
        %v4039 = vpop.f32.mrf.mxu0
        %v4040 = vadd.f32 0.0, %v4039
        %4041 = vmatprep.mubr.f32.mxu0 0.0
        %4042 = vmatmul.mubr.f32.gmra.mxu0 %v3960
        %v4043 = vpop.f32.mrf.mxu0
        %v4044 = vadd.f32 0.0, %v4043
        %v4045 = vpop.f32.mrf.mxu0
        %v4046 = vadd.f32 0.0, %v4045
        %4047 = vmatprep.mubr.f32.mxu0 0.0
        %4048 = vmatmul.mubr.f32.gmra.mxu0 %v3963
        %v4049 = vpop.f32.mrf.mxu0
        %v4050 = vadd.f32 0.0, %v4049
        %v4051 = vpop.f32.mrf.mxu0
        %v4052 = vadd.f32 0.0, %v4051
        %4053 = vdwg.mxu0
        %v4054 = vadd.f32 %v3936, %v4032
        %v4055 = vadd.f32 %v3937, %v4034
        %v4056 = vadd.f32 %v3938, %v4038
        %v4057 = vadd.f32 %v3939, %v4040
        %v4058 = vadd.f32 %v3940, %v4044
        %v4059 = vadd.f32 %v3941, %v4046
        %v4060 = vadd.f32 %v3942, %v4050
        %v4061 = vadd.f32 %v3943, %v4052
        %v4062 = vld [vmem:[%s8] sm:$0xff]
        %v4063 = vld [vmem:[%s8 + $0x8] sm:$0xff]
        %v4064 = vld [vmem:[%s8 + $0x10] sm:$0xff]
        %v4065 = vld [vmem:[%s8 + $0x18] sm:$0xff]
        %v4066 = vmul.f32 %v4054, %v2655
        %v4067 = vmul.f32 %v4056, %v2660
        %v4068 = vmul.f32 %v4058, %v2665
        %v4069 = vmul.f32 %v4060, %v2670
        %v4070 = vadd.f32 %v4062, %v4066
        %v4071 = vadd.f32 %v4063, %v4067
        %v4072 = vadd.f32 %v4064, %v4068
        %v4073 = vadd.f32 %v4065, %v4069
        %v4074 = vmul.f32 %v4054, %v2682
        %v4075 = vmul.f32 %v4056, %v2686
        %v4076 = vmul.f32 %v4058, %v2690
        %v4077 = vmul.f32 %v4060, %v2694
        %4082 = vrot.lane.b32.xlu0 %v4074, 96
        %v4083 = vpop.permute.xlu0 %4082
        %4084 = vrot.lane.b32.xlu0 %v4075, 96
        %v4085 = vpop.permute.xlu0 %4084
        %4086 = vrot.lane.b32.xlu0 %v4076, 96
        %v4087 = vpop.permute.xlu0 %4086
        %4088 = vrot.lane.b32.xlu0 %v4077, 96
        %v4089 = vpop.permute.xlu0 %4088
        %v4094 = vadd.f32 %v4070, %v4083
        %v4095 = vadd.f32 %v4071, %v4085
        %v4096 = vadd.f32 %v4072, %v4087
        %v4097 = vadd.f32 %v4073, %v4089
        %v4098 = vmul.f32 %v4054, %v2722
        %v4099 = vmul.f32 %v4056, %v2726
        %v4100 = vmul.f32 %v4058, %v2730
        %v4101 = vmul.f32 %v4060, %v2734
        %4106 = vrot.lane.b32.xlu0 %v4098, 64
        %v4107 = vpop.permute.xlu0 %4106
        %4108 = vrot.lane.b32.xlu0 %v4099, 64
        %v4109 = vpop.permute.xlu0 %4108
        %4110 = vrot.lane.b32.xlu0 %v4100, 64
        %v4111 = vpop.permute.xlu0 %4110
        %4112 = vrot.lane.b32.xlu0 %v4101, 64
        %v4113 = vpop.permute.xlu0 %4112
        %v4118 = vadd.f32 %v4094, %v4107
        %v4119 = vadd.f32 %v4095, %v4109
        %v4120 = vadd.f32 %v4096, %v4111
        %v4121 = vadd.f32 %v4097, %v4113
        %v4122 = vmul.f32 %v4054, %v2746
        %v4123 = vmul.f32 %v4056, %v2750
        %v4124 = vmul.f32 %v4058, %v2754
        %v4125 = vmul.f32 %v4060, %v2758
        %4130 = vrot.lane.b32.xlu0 %v4122, 32
        %v4131 = vpop.permute.xlu0 %4130
        %4132 = vrot.lane.b32.xlu0 %v4123, 32
        %v4133 = vpop.permute.xlu0 %4132
        %4134 = vrot.lane.b32.xlu0 %v4124, 32
        %v4135 = vpop.permute.xlu0 %4134
        %4136 = vrot.lane.b32.xlu0 %v4125, 32
        %v4137 = vpop.permute.xlu0 %4136
        %v4142 = vadd.f32 %v4118, %v4131
        %v4143 = vadd.f32 %v4119, %v4133
        %v4144 = vadd.f32 %v4120, %v4135
        %v4145 = vadd.f32 %v4121, %v4137
        %v4146 = vmul.f32 %v4055, %v2786
        %v4147 = vmul.f32 %v4057, %v2790
        %v4148 = vmul.f32 %v4059, %v2794
        %v4149 = vmul.f32 %v4061, %v2798
        %v4150 = vadd.f32 %v4142, %v4146
        %v4151 = vadd.f32 %v4143, %v4147
        %v4152 = vadd.f32 %v4144, %v4148
        %v4153 = vadd.f32 %v4145, %v4149
        %v4154 = vmul.f32 %v4055, %v2810
        %v4155 = vmul.f32 %v4057, %v2814
        %v4156 = vmul.f32 %v4059, %v2818
        %v4157 = vmul.f32 %v4061, %v2822
        %4162 = vrot.lane.b32.xlu0 %v4154, 96
        %v4163 = vpop.permute.xlu0 %4162
        %4164 = vrot.lane.b32.xlu0 %v4155, 96
        %v4165 = vpop.permute.xlu0 %4164
        %4166 = vrot.lane.b32.xlu0 %v4156, 96
        %v4167 = vpop.permute.xlu0 %4166
        %4168 = vrot.lane.b32.xlu0 %v4157, 96
        %v4169 = vpop.permute.xlu0 %4168
        %v4174 = vadd.f32 %v4150, %v4163
        %v4175 = vadd.f32 %v4151, %v4165
        %v4176 = vadd.f32 %v4152, %v4167
        %v4177 = vadd.f32 %v4153, %v4169
        %v4178 = vmul.f32 %v4055, %v2850
        %v4179 = vmul.f32 %v4057, %v2854
        %v4180 = vmul.f32 %v4059, %v2858
        %v4181 = vmul.f32 %v4061, %v2862
        %4186 = vrot.lane.b32.xlu0 %v4178, 64
        %v4187 = vpop.permute.xlu0 %4186
        %4188 = vrot.lane.b32.xlu0 %v4179, 64
        %v4189 = vpop.permute.xlu0 %4188
        %4190 = vrot.lane.b32.xlu0 %v4180, 64
        %v4191 = vpop.permute.xlu0 %4190
        %4192 = vrot.lane.b32.xlu0 %v4181, 64
        %v4193 = vpop.permute.xlu0 %4192
        %v4198 = vadd.f32 %v4174, %v4187
        %v4199 = vadd.f32 %v4175, %v4189
        %v4200 = vadd.f32 %v4176, %v4191
        %v4201 = vadd.f32 %v4177, %v4193
        %v4202 = vmul.f32 %v4055, %v2874
        %v4203 = vmul.f32 %v4057, %v2878
        %v4204 = vmul.f32 %v4059, %v2882
        %v4205 = vmul.f32 %v4061, %v2886
        %4210 = vrot.lane.b32.xlu0 %v4202, 32
        %v4211 = vpop.permute.xlu0 %4210
        %4212 = vrot.lane.b32.xlu0 %v4203, 32
        %v4213 = vpop.permute.xlu0 %4212
        %4214 = vrot.lane.b32.xlu0 %v4204, 32
        %v4215 = vpop.permute.xlu0 %4214
        %4216 = vrot.lane.b32.xlu0 %v4205, 32
        %v4217 = vpop.permute.xlu0 %4216
        %v4222 = vadd.f32 %v4198, %v4211
        %v4223 = vadd.f32 %v4199, %v4213
        %v4224 = vadd.f32 %v4200, %v4215
        %v4225 = vadd.f32 %v4201, %v4217
        %v4226 = vtanh.pop %v4222
        %v4227 = vtanh.pop %v4223
        %v4228 = vtanh.pop %v4224
        %v4229 = vtanh.pop %v4225
        %4234 = vrot.lane.b32.xlu0 %v376, 32
        %v4235 = vpop.permute.xlu0 %4234
        %4236 = vrot.lane.b32.xlu0 %v377, 32
        %v4237 = vpop.permute.xlu0 %4236
        %4238 = vrot.lane.b32.xlu0 %v378, 32
        %v4239 = vpop.permute.xlu0 %4238
        %4240 = vrot.lane.b32.xlu0 %v379, 32
        %v4241 = vpop.permute.xlu0 %4240
        %v4246 = vmul.f32 %v2929, %v4235
        %v4247 = vmul.f32 %v2931, %v4237
        %v4248 = vmul.f32 %v2933, %v4239
        %v4249 = vmul.f32 %v2935, %v4241
        %v4250 = vsub.f32 1.0, %v2929
        %v4251 = vsub.f32 1.0, %v2931
        %v4252 = vsub.f32 1.0, %v2933
        %v4253 = vsub.f32 1.0, %v2935
        %4258 = vrot.lane.b32.xlu0 %v4226, 32
        %v4259 = vpop.permute.xlu0 %4258
        %4260 = vrot.lane.b32.xlu0 %v4227, 32
        %v4261 = vpop.permute.xlu0 %4260
        %4262 = vrot.lane.b32.xlu0 %v4228, 32
        %v4263 = vpop.permute.xlu0 %4262
        %4264 = vrot.lane.b32.xlu0 %v4229, 32
        %v4265 = vpop.permute.xlu0 %4264
        %v4270 = vmul.f32 %v4250, %v4259
        %v4271 = vmul.f32 %v4251, %v4261
        %v4272 = vmul.f32 %v4252, %v4263
        %v4273 = vmul.f32 %v4253, %v4265
        %v4274 = vadd.f32 %v4246, %v4270
        %v4275 = vadd.f32 %v4247, %v4271
        %v4276 = vadd.f32 %v4248, %v4272
        %v4277 = vadd.f32 %v4249, %v4273
        %4282 = vrot.lane.b32.xlu0 %v4274, 96
        %v4283 = vpop.permute.xlu0 %4282
        %4284 = vrot.lane.b32.xlu0 %v4275, 96
        %v4285 = vpop.permute.xlu0 %4284
        %4286 = vrot.lane.b32.xlu0 %v4276, 96
        %v4287 = vpop.permute.xlu0 %4286
        %4288 = vrot.lane.b32.xlu0 %v4277, 96
        %v4289 = vpop.permute.xlu0 %4288
        %4294 = vst.msk [vmem:[#allocation2] sm:$0xff] %vm1328, %v4283
        %4295 = vst.msk [vmem:[#allocation2 + $0x8] sm:$0xff] %vm1328, %v4285
        %4296 = vst.msk [vmem:[#allocation2 + $0x10] sm:$0xff] %vm1328, %v4287
        %4297 = vst.msk [vmem:[#allocation2 + $0x18] sm:$0xff] %vm1328, %v4289
        %4298 = vst.msk [vmem:[%s362] sm:$0xff] %vm1328, %v4283
        %4299 = vst.msk [vmem:[%s362 + $0x8] sm:$0xff] %vm1328, %v4285
        %4300 = vst.msk [vmem:[%s362 + $0x10] sm:$0xff] %vm1328, %v4287
        %4301 = vst.msk [vmem:[%s362 + $0x18] sm:$0xff] %vm1328, %v4289
        %p4302 = scmp.lt.s32.totalorder %s22, 7
        %s4303 = scalar_select %p4302, %s22, 7
        %s4304 = smul.addr %s4303, 4
        %s4305 = smul.addr %s4304, 8
        %s4306 = scalar_lea.vmem %s9, %s4305
        // Predicated region
        $region69: #{_lambda_.3} parent=55 // pred_check
          %p4307 = pneg %p234
        $region70: #{_lambda_.3} parent=55 // pred_check_branch
          %4309 = sbr.rel (%p4307) target = $region72
        $region71: #{_lambda_.3} parent=55 // pred_region
          _
        $region72: #{_lambda_.3} parent=55 // pred_fallthru
          _
      $region56: #{_lambda_.3} parent=5 // pred_fallthru
        _
      %p4310 = scmp.le.s32.totalorder 2, %s17
      // Predicated region
      $region73: #{_lambda_.3} parent=5 // pred_check
        %p4311 = pneg %p4310
      $region74: #{_lambda_.3} parent=5 // pred_check_branch
        %4313 = sbr.rel (%p4311) target = $region76
      $region75: #{_lambda_.3} parent=5 // pred_region
        %s4314 = ssub.s32 %s17, 2
        // Predicated region
        $region77: #{_lambda_.3} parent=75 // pred_check
          %p4315 = pneg %p240
        $region78: #{_lambda_.3} parent=75 // pred_check_branch
          %4317 = sbr.rel (%p4315) target = $region80
        $region79: #{_lambda_.3} parent=75 // pred_region
          %p4318 = scmp.lt.s32.totalorder %s23, 7
          %s4319 = scalar_select %p4318, %s23, 7
          %s4320 = smul.addr %s4319, 4
          %s4321 = smul.addr %s4320, 8
          %s4322 = scalar_lea.vmem %s9, %s4321
        $region80: #{_lambda_.3} parent=75 // pred_fallthru
          _
      $region76: #{_lambda_.3} parent=5 // pred_fallthru
        _
    $region6: #{_lambda_.3} parent=1 // loop_footer
      %s21 = sadd.s32 1, %s17
    $region7: #{_lambda_.3} parent=1 // loop_footer_branch
      %16 = sbr.rel target = $region3
    $region8: #{_lambda_.3} parent=1 // loop_exit
      _
    %4323 = vsyncpa [#allocation4], 1
    %s4324 = scalar_lea.sflag [#allocation4], 1
    %4325 = vsyncpa %s4324, 1
    %4326 = vsyncpa [#allocation6], 1

// kernel: _lambda_.4
$region0: #{_lambda_.4}
  #allocation0 [shape = 'u32[]', space=smem, size = 0x4, offset = 0x4, fixed_abs, tag = 'smem constant byte address 0x4 - core index']
  #allocation1 [shape = 'u32[144,128]{1,0:T(1,128)}', space=vmem, size = 0x12000, scoped, tag = 'internal scratch']
  #allocation2 [shape = 'f32[32,32]{1,0:T(8,128)}', space=vmem, size = 0x4000, scoped, tag = 'scratch operand']
  %s0 = inlined_call_operand.vmem [shape: f32[8,32,32], index: 0, kind: input, shape index: {}]
  %s1 = inlined_call_operand.vmem [shape: f32[3,16,16], index: 1, kind: input, shape index: {}]
  %s2 = inlined_call_operand.vmem [shape: f32[32,8], index: 2, kind: input, shape index: {}]
  %s3 = inlined_call_operand.vmem [shape: f32[3,32,512], index: 3, kind: input, shape index: {}]
  %s4 = inlined_call_operand.vmem [shape: f32[3,32,512], index: 4, kind: input, shape index: {}]
  %s5 = inlined_call_operand.vmem [shape: f32[32,64], index: 5, kind: input, shape index: {}]
  %s6 = inlined_call_operand.vmem [shape: f32[3,32,256], index: 6, kind: input, shape index: {}]
  %s7 = inlined_call_operand.vmem [shape: f32[3,32,256], index: 7, kind: input, shape index: {}]
  %s8 = inlined_call_operand.vmem [shape: f32[32,32], index: 8, kind: input, shape index: {}]
  %s9 = inlined_call_operand.vmem [shape: f32[32,32], index: 9, kind: output, shape index: {}]
  %s10 = sld [smem:[#allocation0]]
  $region73: #{_lambda_.4} parent=0
    _
  %s12 = ssub.s32 1, %s10
  %s13 = scalar_select 0, %s12, %s10
  loop: start=0, step=1, limit=10
  $region2: #{_lambda_.4} parent=0 // loop_pre_header
    _
  $region3: #{_lambda_.4} parent=0 // loop_header
    %s15 = sphi 0, %s19
    %p16 = scmp.ge.s32.totalorder %s15, 10
    %s25 = sphi 0, %s27
    %s28 = sphi 0, %s25
    %s29 = sphi 0, %s28
    %s45 = sphi 0, %s29
    %s49 = sphi 0, %s49
    %s51 = sphi 0, %s49
    %s52 = sphi 0, %s51
    %s66 = sphi 0, %s52
    %s70 = sphi 0, %s70
    %s72 = sphi 0, %s70
    %s73 = sphi 0, %s72
    %s87 = sphi 0, %s73
    %s91 = sphi 0, %s91
    %s93 = sphi 0, %s91
    %s94 = sphi 0, %s93
    %s108 = sphi 0, %s94
    %s112 = sphi 0, %s112
    %s114 = sphi 0, %s112
    %s115 = sphi 0, %s114
    %s129 = sphi 0, %s115
    %s133 = sphi 0, %s133
    %s135 = sphi 0, %s133
    %s136 = sphi 0, %s135
    %s150 = sphi 0, %s136
    %s154 = sphi 0, %s154
    %s156 = sphi 0, %s154
    %s157 = sphi 0, %s156
    %s171 = sphi 0, %s157
    %s175 = sphi 0, %s175
    %s177 = sphi 0, %s175
    %s178 = sphi 0, %s177
    %s192 = sphi 0, %s178
    %s196 = sphi 0, %s196
    %s198 = sphi 0, %s196
    %s199 = sphi 0, %s198
    %s213 = sphi 0, %s199
    %s217 = sphi 0, %s217
    %s219 = sphi 0, %s217
    %s220 = sphi 0, %s219
    %s234 = sphi 0, %s220
  $region4: #{_lambda_.4} parent=0 // loop_header_branch
    %18 = sbr.rel (%p16) target = $region8
  $region5: #{_lambda_.4} parent=0 // loop_body
    %s20 = ssub.s32 %s15, 1
    %s21 = ssub.s32 %s15, 2
    %s22 = sadd.s32 %s15, 1
    %s23 = ssub.s32 %s15, %s22
    %p24 = scmp.eq.s32.totalorder %s23, 0
    %s26 = sadd.s32 %s25, 1
    %s27 = scalar_select %p24, %s25, %s26
    %p30 = pneg %p24
    %p31 = scmp.eq.s32.totalorder %s15, 7
    %p32 = por %p30, %p31
    %p33 = scmp.ne.s32.totalorder %s25, %s28
    %p34 = scmp.eq.s32.totalorder %s15, 0
    %p35 = por %p33, %p34
    %p36 = scmp.ne.s32.totalorder %s25, %s28
    %p37 = scmp.eq.s32.totalorder %s20, 7
    %p38 = por %p36, %p37
    %p39 = scmp.ne.s32.totalorder %s28, %s29
    %p40 = scmp.eq.s32.totalorder %s20, 0
    %p41 = por %p39, %p40
    %p42 = scmp.ne.s32.totalorder %s28, %s29
    %p43 = scmp.eq.s32.totalorder %s21, 7
    %p44 = por %p42, %p43
    %p46 = scmp.ne.s32.totalorder %s29, %s45
    %p47 = scmp.eq.s32.totalorder %s21, 0
    %p48 = por %p46, %p47
    %s50 = sadd.s32 %s49, 1
    %p53 = scmp.eq.s32.totalorder %s15, 7
    %p54 = scmp.ne.s32.totalorder %s49, %s51
    %p55 = scmp.eq.s32.totalorder %s15, 0
    %p56 = por %p54, %p55
    %p57 = scmp.ne.s32.totalorder %s49, %s51
    %p58 = scmp.eq.s32.totalorder %s20, 7
    %p59 = por %p57, %p58
    %p60 = scmp.ne.s32.totalorder %s51, %s52
    %p61 = scmp.eq.s32.totalorder %s20, 0
    %p62 = por %p60, %p61
    %p63 = scmp.ne.s32.totalorder %s51, %s52
    %p64 = scmp.eq.s32.totalorder %s21, 7
    %p65 = por %p63, %p64
    %p67 = scmp.ne.s32.totalorder %s52, %s66
    %p68 = scmp.eq.s32.totalorder %s21, 0
    %p69 = por %p67, %p68
    %s71 = sadd.s32 %s70, 1
    %p74 = scmp.eq.s32.totalorder %s15, 7
    %p75 = scmp.ne.s32.totalorder %s70, %s72
    %p76 = scmp.eq.s32.totalorder %s15, 0
    %p77 = por %p75, %p76
    %p78 = scmp.ne.s32.totalorder %s70, %s72
    %p79 = scmp.eq.s32.totalorder %s20, 7
    %p80 = por %p78, %p79
    %p81 = scmp.ne.s32.totalorder %s72, %s73
    %p82 = scmp.eq.s32.totalorder %s20, 0
    %p83 = por %p81, %p82
    %p84 = scmp.ne.s32.totalorder %s72, %s73
    %p85 = scmp.eq.s32.totalorder %s21, 7
    %p86 = por %p84, %p85
    %p88 = scmp.ne.s32.totalorder %s73, %s87
    %p89 = scmp.eq.s32.totalorder %s21, 0
    %p90 = por %p88, %p89
    %s92 = sadd.s32 %s91, 1
    %p95 = scmp.eq.s32.totalorder %s15, 7
    %p96 = scmp.ne.s32.totalorder %s91, %s93
    %p97 = scmp.eq.s32.totalorder %s15, 0
    %p98 = por %p96, %p97
    %p99 = scmp.ne.s32.totalorder %s91, %s93
    %p100 = scmp.eq.s32.totalorder %s20, 7
    %p101 = por %p99, %p100
    %p102 = scmp.ne.s32.totalorder %s93, %s94
    %p103 = scmp.eq.s32.totalorder %s20, 0
    %p104 = por %p102, %p103
    %p105 = scmp.ne.s32.totalorder %s93, %s94
    %p106 = scmp.eq.s32.totalorder %s21, 7
    %p107 = por %p105, %p106
    %p109 = scmp.ne.s32.totalorder %s94, %s108
    %p110 = scmp.eq.s32.totalorder %s21, 0
    %p111 = por %p109, %p110
    %s113 = sadd.s32 %s112, 1
    %p116 = scmp.eq.s32.totalorder %s15, 7
    %p117 = scmp.ne.s32.totalorder %s112, %s114
    %p118 = scmp.eq.s32.totalorder %s15, 0
    %p119 = por %p117, %p118
    %p120 = scmp.ne.s32.totalorder %s112, %s114
    %p121 = scmp.eq.s32.totalorder %s20, 7
    %p122 = por %p120, %p121
    %p123 = scmp.ne.s32.totalorder %s114, %s115
    %p124 = scmp.eq.s32.totalorder %s20, 0
    %p125 = por %p123, %p124
    %p126 = scmp.ne.s32.totalorder %s114, %s115
    %p127 = scmp.eq.s32.totalorder %s21, 7
    %p128 = por %p126, %p127
    %p130 = scmp.ne.s32.totalorder %s115, %s129
    %p131 = scmp.eq.s32.totalorder %s21, 0
    %p132 = por %p130, %p131
    %s134 = sadd.s32 %s133, 1
    %p137 = scmp.eq.s32.totalorder %s15, 7
    %p138 = scmp.ne.s32.totalorder %s133, %s135
    %p139 = scmp.eq.s32.totalorder %s15, 0
    %p140 = por %p138, %p139
    %p141 = scmp.ne.s32.totalorder %s133, %s135
    %p142 = scmp.eq.s32.totalorder %s20, 7
    %p143 = por %p141, %p142
    %p144 = scmp.ne.s32.totalorder %s135, %s136
    %p145 = scmp.eq.s32.totalorder %s20, 0
    %p146 = por %p144, %p145
    %p147 = scmp.ne.s32.totalorder %s135, %s136
    %p148 = scmp.eq.s32.totalorder %s21, 7
    %p149 = por %p147, %p148
    %p151 = scmp.ne.s32.totalorder %s136, %s150
    %p152 = scmp.eq.s32.totalorder %s21, 0
    %p153 = por %p151, %p152
    %s155 = sadd.s32 %s154, 1
    %p158 = scmp.eq.s32.totalorder %s15, 7
    %p159 = scmp.ne.s32.totalorder %s154, %s156
    %p160 = scmp.eq.s32.totalorder %s15, 0
    %p161 = por %p159, %p160
    %p162 = scmp.ne.s32.totalorder %s154, %s156
    %p163 = scmp.eq.s32.totalorder %s20, 7
    %p164 = por %p162, %p163
    %p165 = scmp.ne.s32.totalorder %s156, %s157
    %p166 = scmp.eq.s32.totalorder %s20, 0
    %p167 = por %p165, %p166
    %p168 = scmp.ne.s32.totalorder %s156, %s157
    %p169 = scmp.eq.s32.totalorder %s21, 7
    %p170 = por %p168, %p169
    %p172 = scmp.ne.s32.totalorder %s157, %s171
    %p173 = scmp.eq.s32.totalorder %s21, 0
    %p174 = por %p172, %p173
    %s176 = sadd.s32 %s175, 1
    %p179 = scmp.eq.s32.totalorder %s15, 7
    %p180 = scmp.ne.s32.totalorder %s175, %s177
    %p181 = scmp.eq.s32.totalorder %s15, 0
    %p182 = por %p180, %p181
    %p183 = scmp.ne.s32.totalorder %s175, %s177
    %p184 = scmp.eq.s32.totalorder %s20, 7
    %p185 = por %p183, %p184
    %p186 = scmp.ne.s32.totalorder %s177, %s178
    %p187 = scmp.eq.s32.totalorder %s20, 0
    %p188 = por %p186, %p187
    %p189 = scmp.ne.s32.totalorder %s177, %s178
    %p190 = scmp.eq.s32.totalorder %s21, 7
    %p191 = por %p189, %p190
    %p193 = scmp.ne.s32.totalorder %s178, %s192
    %p194 = scmp.eq.s32.totalorder %s21, 0
    %p195 = por %p193, %p194
    %s197 = sadd.s32 %s196, 1
    %p200 = scmp.eq.s32.totalorder %s15, 7
    %p201 = scmp.ne.s32.totalorder %s196, %s198
    %p202 = scmp.eq.s32.totalorder %s15, 0
    %p203 = por %p201, %p202
    %p204 = scmp.ne.s32.totalorder %s196, %s198
    %p205 = scmp.eq.s32.totalorder %s20, 7
    %p206 = por %p204, %p205
    %p207 = scmp.ne.s32.totalorder %s198, %s199
    %p208 = scmp.eq.s32.totalorder %s20, 0
    %p209 = por %p207, %p208
    %p210 = scmp.ne.s32.totalorder %s198, %s199
    %p211 = scmp.eq.s32.totalorder %s21, 7
    %p212 = por %p210, %p211
    %p214 = scmp.ne.s32.totalorder %s199, %s213
    %p215 = scmp.eq.s32.totalorder %s21, 0
    %p216 = por %p214, %p215
    %s218 = sadd.s32 %s217, 1
    %p221 = scmp.eq.s32.totalorder %s15, 7
    %p222 = scmp.ne.s32.totalorder %s217, %s219
    %p223 = scmp.eq.s32.totalorder %s15, 0
    %p224 = por %p222, %p223
    %p225 = scmp.ne.s32.totalorder %s217, %s219
    %p226 = scmp.eq.s32.totalorder %s20, 7
    %p227 = por %p225, %p226
    %p228 = scmp.ne.s32.totalorder %s219, %s220
    %p229 = scmp.eq.s32.totalorder %s20, 0
    %p230 = por %p228, %p229
    %p231 = scmp.ne.s32.totalorder %s219, %s220
    %p232 = scmp.eq.s32.totalorder %s21, 7
    %p233 = por %p231, %p232
    %p235 = scmp.ne.s32.totalorder %s220, %s234
    %p236 = scmp.eq.s32.totalorder %s21, 0
    %p237 = por %p235, %p236
    %p238 = scmp.le.s32.totalorder 1, %s15
    %p239 = scmp.lt.s32.totalorder %s15, 9
    %p240 = pnand %p238, %p239
    %p241 = pneg %p240
    // Predicated region
    $region9: #{_lambda_.4} parent=5 // pred_check
      _
    $region10: #{_lambda_.4} parent=5 // pred_check_branch
      %243 = sbr.rel (%p240) target = $region12
    $region11: #{_lambda_.4} parent=5 // pred_region
      %s244 = ssub.s32 %s15, 1
      // Predicated region
      $region13: #{_lambda_.4} parent=11 // pred_check
        %p245 = pneg %p62
      $region14: #{_lambda_.4} parent=11 // pred_check_branch
        %247 = sbr.rel (%p245) target = $region16
      $region15: #{_lambda_.4} parent=11 // pred_region
        _
      $region16: #{_lambda_.4} parent=11 // pred_fallthru
        _
      // Predicated region
      $region17: #{_lambda_.4} parent=11 // pred_check
        %p248 = pneg %p83
      $region18: #{_lambda_.4} parent=11 // pred_check_branch
        %250 = sbr.rel (%p248) target = $region20
      $region19: #{_lambda_.4} parent=11 // pred_region
        _
      $region20: #{_lambda_.4} parent=11 // pred_fallthru
        _
      // Predicated region
      $region21: #{_lambda_.4} parent=11 // pred_check
        %p251 = pneg %p104
      $region22: #{_lambda_.4} parent=11 // pred_check_branch
        %253 = sbr.rel (%p251) target = $region24
      $region23: #{_lambda_.4} parent=11 // pred_region
        _
      $region24: #{_lambda_.4} parent=11 // pred_fallthru
        _
      // Predicated region
      $region25: #{_lambda_.4} parent=11 // pred_check
        %p254 = pneg %p125
      $region26: #{_lambda_.4} parent=11 // pred_check_branch
        %256 = sbr.rel (%p254) target = $region28
      $region27: #{_lambda_.4} parent=11 // pred_region
        _
      $region28: #{_lambda_.4} parent=11 // pred_fallthru
        _
      // Predicated region
      $region29: #{_lambda_.4} parent=11 // pred_check
        %p257 = pneg %p146
      $region30: #{_lambda_.4} parent=11 // pred_check_branch
        %259 = sbr.rel (%p257) target = $region32
      $region31: #{_lambda_.4} parent=11 // pred_region
        _
      $region32: #{_lambda_.4} parent=11 // pred_fallthru
        _
      // Predicated region
      $region33: #{_lambda_.4} parent=11 // pred_check
        %p260 = pneg %p167
      $region34: #{_lambda_.4} parent=11 // pred_check_branch
        %262 = sbr.rel (%p260) target = $region36
      $region35: #{_lambda_.4} parent=11 // pred_region
        _
      $region36: #{_lambda_.4} parent=11 // pred_fallthru
        _
      // Predicated region
      $region37: #{_lambda_.4} parent=11 // pred_check
        %p263 = pneg %p188
      $region38: #{_lambda_.4} parent=11 // pred_check_branch
        %265 = sbr.rel (%p263) target = $region40
      $region39: #{_lambda_.4} parent=11 // pred_region
        _
      $region40: #{_lambda_.4} parent=11 // pred_fallthru
        _
      // Predicated region
      $region41: #{_lambda_.4} parent=11 // pred_check
        %p266 = pneg %p209
      $region42: #{_lambda_.4} parent=11 // pred_check_branch
        %268 = sbr.rel (%p266) target = $region44
      $region43: #{_lambda_.4} parent=11 // pred_region
        _
      $region44: #{_lambda_.4} parent=11 // pred_fallthru
        _
    $region12: #{_lambda_.4} parent=5 // pred_fallthru
      _
    %p269 = scmp.lt.s32.totalorder %s15, 8
    // Predicated region
    $region45: #{_lambda_.4} parent=5 // pred_check
      %p270 = pneg %p269
    $region46: #{_lambda_.4} parent=5 // pred_check_branch
      %272 = sbr.rel (%p270) target = $region48
    $region47: #{_lambda_.4} parent=5 // pred_region
      // Predicated region
      $region49: #{_lambda_.4} parent=47 // pred_check
        %p273 = pneg %p35
      $region50: #{_lambda_.4} parent=47 // pred_check_branch
        %275 = sbr.rel (%p273) target = $region52
      $region51: #{_lambda_.4} parent=47 // pred_region
        %p276 = scmp.lt.s32.totalorder %s15, 7
        %s277 = scalar_select %p276, %s15, 7
        %s278 = smul.addr %s277, 4
        %s279 = smul.addr %s278, 8
        %s280 = scalar_lea.vmem %s0, %s279
      $region52: #{_lambda_.4} parent=47 // pred_fallthru
        _
    $region48: #{_lambda_.4} parent=5 // pred_fallthru
      _
    %p281 = scmp.le.s32.totalorder 1, %s15
    %p282 = scmp.lt.s32.totalorder %s15, 9
    %p283 = pnand %p281, %p282
    %p284 = pneg %p283
    // Predicated region
    $region53: #{_lambda_.4} parent=5 // pred_check
      _
    $region54: #{_lambda_.4} parent=5 // pred_check_branch
      %286 = sbr.rel (%p283) target = $region56
    $region55: #{_lambda_.4} parent=5 // pred_region
      %s287 = ssub.s32 %s15, 1
      %p288 = scmp.lt.s32.totalorder %s20, 7
      %s289 = scalar_select %p288, %s20, 7
      %s290 = smul.addr %s289, 4
      %s291 = smul.addr %s290, 8
      %s292 = scalar_lea.vmem %s0, %s291
      %p293 = pneg %p41
      %p294 = pneg %p38
      %p295 = pneg %p62
      %p296 = pneg %p59
      %p297 = pneg %p83
      %p298 = pneg %p80
      %p299 = pneg %p104
      %p300 = pneg %p101
      %p301 = pneg %p125
      %p302 = pneg %p122
      %p303 = pneg %p146
      %p304 = pneg %p143
      %p305 = pneg %p167
      %p306 = pneg %p164
      %p307 = pneg %p188
      %p308 = pneg %p185
      %p309 = pneg %p209
      %p310 = pneg %p206
      %p311 = pneg %p230
      %p312 = pneg %p227
      %p313 = scmp.lt.s32.totalorder %s20, 7
      %s314 = scalar_select %p313, %s20, 7
      %s315 = smul.addr %s314, 4
      %s316 = smul.addr %s315, 8
      %s317 = scalar_lea.vmem %s0, %s316
      %p318 = scmp.eq.s32.totalorder %s20, 0
      // Predicated region
      $region57: #{_lambda_.4} parent=55 // pred_check
        %p319 = pneg %p318
      $region58: #{_lambda_.4} parent=55 // pred_check_branch
        %321 = sbr.rel (%p319) target = $region60
      $region59: #{_lambda_.4} parent=55 // pred_region
        %vm322 = vcmask 261120
        %323 = vst.msk [vmem:[#allocation2] sm:$0xff] %vm322, 0.0
        %324 = vst.msk [vmem:[#allocation2 + $0x8] sm:$0xff] %vm322, 0.0
        %325 = vst.msk [vmem:[#allocation2 + $0x10] sm:$0xff] %vm322, 0.0
        %326 = vst.msk [vmem:[#allocation2 + $0x18] sm:$0xff] %vm322, 0.0
      $region60: #{_lambda_.4} parent=55 // pred_fallthru
        _
      %v327 = vld [vmem:[%s317] sm:$0xff]
      %v328 = vld [vmem:[%s317 + $0x8] sm:$0xff]
      %v329 = vld [vmem:[%s317 + $0x10] sm:$0xff]
      %v330 = vld [vmem:[%s317 + $0x18] sm:$0xff]
      %v331 = vld [vmem:[#allocation2] sm:$0xff]
      %v332 = vld [vmem:[#allocation2 + $0x8] sm:$0xff]
      %v333 = vld [vmem:[#allocation2 + $0x10] sm:$0xff]
      %v334 = vld [vmem:[#allocation2 + $0x18] sm:$0xff]
      %v335 = vld [vmem:[%s2] sm:$0xff]
      %v336 = vld [vmem:[%s2 + $0x8] sm:$0xff]
      %v337 = vld [vmem:[%s2 + $0x10] sm:$0xff]
      %v338 = vld [vmem:[%s2 + $0x18] sm:$0xff]
      %v339 = vld [vmem:[%s1] sm:$0xff]
      %v340 = vld [vmem:[%s1 + $0x8] sm:$0xff]
      %s341 = scalar_lea.vmem %s1, 16
      %v342 = vld [vmem:[%s341] sm:$0xff]
      %v343 = vld [vmem:[%s341 + $0x8] sm:$0xff]
      %s344 = scalar_lea.vmem %s1, 32
      %v345 = vld [vmem:[%s344] sm:$0xff]
      %v346 = vld [vmem:[%s344 + $0x8] sm:$0xff]
      %vm347 = vcmask 130048
      %v349 = vsel %vm347, %v339, 0
      %v352 = vsel %vm347, %v340, 0
      %354 = vmatprep.subr.mxu0 0.0
      %355 = vmatpush1.msra.mxu0 0.0
      %356 = vmatprep.subr.mxu0 0.0
      %357 = vmatpush1.msra.mxu0 0.0
      %358 = vmatprep.subr.mxu0 0.0
      %359 = vmatpush1.msra.mxu0 0.0
      %360 = vmatprep.subr.mxu0 0.0
      %361 = vmatpush1.msra.mxu0 0.0
      %362 = vmatprep.subr.mxu0 0.0
      %363 = vmatpush1.msra.mxu0 0.0
      %364 = vmatprep.subr.mxu0 0.0
      %365 = vmatpush1.msra.mxu0 0.0
      %366 = vmatprep.subr.mxu0 0.0
      %367 = vmatpush1.msra.mxu0 0.0
      %368 = vmatprep.subr.mxu0 0.0
      %369 = vmatpush1.msra.mxu0 0.0
      %370 = vmatprep.subr.mxu0 0.0
      %371 = vmatpush1.msra.mxu0 0.0
      %372 = vmatprep.subr.mxu0 0.0
      %373 = vmatpush1.msra.mxu0 0.0
      %374 = vmatprep.subr.mxu0 0.0
      %375 = vmatpush1.msra.mxu0 0.0
      %376 = vmatprep.subr.mxu0 0.0
      %377 = vmatpush1.msra.mxu0 0.0
      %378 = vmatprep.subr.mxu0 0.0
      %379 = vmatpush1.msra.mxu0 0.0
      %380 = vmatprep.subr.mxu0 0.0
      %381 = vmatpush1.msra.mxu0 0.0
      %382 = vmatprep.subr.mxu0 0.0
      %383 = vmatpush1.msra.mxu0 %v328
      %384 = vmatprep.subr.mxu0 0.0
      %385 = vmatpush1.msra.mxu0 %v327
      %386 = vmatprep.subr.mxu0 0.0
      %387 = vmatpush2.msra.mxu0 0.0
      %388 = vmatprep.subr.mxu0 0.0
      %389 = vmatpush2.msra.mxu0 0.0
      %390 = vmatprep.subr.mxu0 0.0
      %391 = vmatpush2.msra.mxu0 0.0
      %392 = vmatprep.subr.mxu0 0.0
      %393 = vmatpush2.msra.mxu0 0.0
      %394 = vmatprep.subr.mxu0 0.0
      %395 = vmatpush2.msra.mxu0 0.0
      %396 = vmatprep.subr.mxu0 0.0
      %397 = vmatpush2.msra.mxu0 0.0
      %398 = vmatprep.subr.mxu0 0.0
      %399 = vmatpush2.msra.mxu0 0.0
      %400 = vmatprep.subr.mxu0 0.0
      %401 = vmatpush2.msra.mxu0 0.0
      %402 = vmatprep.subr.mxu0 0.0
      %403 = vmatpush2.msra.mxu0 0.0
      %404 = vmatprep.subr.mxu0 0.0
      %405 = vmatpush2.msra.mxu0 0.0
      %406 = vmatprep.subr.mxu0 0.0
      %407 = vmatpush2.msra.mxu0 0.0
      %408 = vmatprep.subr.mxu0 0.0
      %409 = vmatpush2.msra.mxu0 0.0
      %410 = vmatprep.subr.mxu0 0.0
      %411 = vmatpush2.msra.mxu0 0.0
      %412 = vmatprep.subr.mxu0 0.0
      %413 = vmatpush2.msra.mxu0 0.0
      %414 = vmatprep.subr.mxu0 0.0
      %415 = vmatpush2.msra.mxu0 0.0
      %416 = vmatprep.subr.mxu0 0.0
      %417 = vmatpush2.msra.mxu0 0.0
      %418 = vmatprep.mubr.f32.mxu0 0.0
      %419 = vmatmul.mubr.f32.gmra.mxu0 %v349
      %v420 = vpop.f32.mrf.mxu0
      %v421 = vadd.f32 0.0, %v420
      %v422 = vpop.f32.mrf.mxu0
      %423 = vmatprep.mubr.f32.mxu0 0.0
      %424 = vmatmul.mubr.f32.gmra.mxu0 %v352
      %v425 = vpop.f32.mrf.mxu0
      %v426 = vadd.f32 0.0, %v425
      %v427 = vpop.f32.mrf.mxu0
      %428 = vdwg.mxu0
      %429 = vmatprep.subr.mxu0 0.0
      %430 = vmatpush1.msra.mxu0 0.0
      %431 = vmatprep.subr.mxu0 0.0
      %432 = vmatpush1.msra.mxu0 0.0
      %433 = vmatprep.subr.mxu0 0.0
      %434 = vmatpush1.msra.mxu0 0.0
      %435 = vmatprep.subr.mxu0 0.0
      %436 = vmatpush1.msra.mxu0 0.0
      %437 = vmatprep.subr.mxu0 0.0
      %438 = vmatpush1.msra.mxu0 0.0
      %439 = vmatprep.subr.mxu0 0.0
      %440 = vmatpush1.msra.mxu0 0.0
      %441 = vmatprep.subr.mxu0 0.0
      %442 = vmatpush1.msra.mxu0 0.0
      %443 = vmatprep.subr.mxu0 0.0
      %444 = vmatpush1.msra.mxu0 0.0
      %445 = vmatprep.subr.mxu0 0.0
      %446 = vmatpush1.msra.mxu0 0.0
      %447 = vmatprep.subr.mxu0 0.0
      %448 = vmatpush1.msra.mxu0 0.0
      %449 = vmatprep.subr.mxu0 0.0
      %450 = vmatpush1.msra.mxu0 0.0
      %451 = vmatprep.subr.mxu0 0.0
      %452 = vmatpush1.msra.mxu0 0.0
      %453 = vmatprep.subr.mxu0 0.0
      %454 = vmatpush1.msra.mxu0 0.0
      %455 = vmatprep.subr.mxu0 0.0
      %456 = vmatpush1.msra.mxu0 0.0
      %457 = vmatprep.subr.mxu0 0.0
      %458 = vmatpush1.msra.mxu0 %v330
      %459 = vmatprep.subr.mxu0 0.0
      %460 = vmatpush1.msra.mxu0 %v329
      %461 = vmatprep.subr.mxu0 0.0
      %462 = vmatpush2.msra.mxu0 0.0
      %463 = vmatprep.subr.mxu0 0.0
      %464 = vmatpush2.msra.mxu0 0.0
      %465 = vmatprep.subr.mxu0 0.0
      %466 = vmatpush2.msra.mxu0 0.0
      %467 = vmatprep.subr.mxu0 0.0
      %468 = vmatpush2.msra.mxu0 0.0
      %469 = vmatprep.subr.mxu0 0.0
      %470 = vmatpush2.msra.mxu0 0.0
      %471 = vmatprep.subr.mxu0 0.0
      %472 = vmatpush2.msra.mxu0 0.0
      %473 = vmatprep.subr.mxu0 0.0
      %474 = vmatpush2.msra.mxu0 0.0
      %475 = vmatprep.subr.mxu0 0.0
      %476 = vmatpush2.msra.mxu0 0.0
      %477 = vmatprep.subr.mxu0 0.0
      %478 = vmatpush2.msra.mxu0 0.0
      %479 = vmatprep.subr.mxu0 0.0
      %480 = vmatpush2.msra.mxu0 0.0
      %481 = vmatprep.subr.mxu0 0.0
      %482 = vmatpush2.msra.mxu0 0.0
      %483 = vmatprep.subr.mxu0 0.0
      %484 = vmatpush2.msra.mxu0 0.0
      %485 = vmatprep.subr.mxu0 0.0
      %486 = vmatpush2.msra.mxu0 0.0
      %487 = vmatprep.subr.mxu0 0.0
      %488 = vmatpush2.msra.mxu0 0.0
      %489 = vmatprep.subr.mxu0 0.0
      %490 = vmatpush2.msra.mxu0 0.0
      %491 = vmatprep.subr.mxu0 0.0
      %492 = vmatpush2.msra.mxu0 0.0
      %493 = vmatprep.mubr.f32.mxu0 0.0
      %494 = vmatmul.mubr.f32.gmra.mxu0 %v349
      %v495 = vpop.f32.mrf.mxu0
      %v496 = vadd.f32 0.0, %v495
      %v497 = vpop.f32.mrf.mxu0
      %498 = vmatprep.mubr.f32.mxu0 0.0
      %499 = vmatmul.mubr.f32.gmra.mxu0 %v352
      %v500 = vpop.f32.mrf.mxu0
      %v501 = vadd.f32 0.0, %v500
      %v502 = vpop.f32.mrf.mxu0
      %503 = vdwg.mxu0
      %v505 = vsel %vm347, %v342, 0
      %v508 = vsel %vm347, %v343, 0
      %510 = vmatprep.subr.mxu0 0.0
      %511 = vmatpush1.msra.mxu0 0.0
      %512 = vmatprep.subr.mxu0 0.0
      %513 = vmatpush1.msra.mxu0 0.0
      %514 = vmatprep.subr.mxu0 0.0
      %515 = vmatpush1.msra.mxu0 0.0
      %516 = vmatprep.subr.mxu0 0.0
      %517 = vmatpush1.msra.mxu0 0.0
      %518 = vmatprep.subr.mxu0 0.0
      %519 = vmatpush1.msra.mxu0 0.0
      %520 = vmatprep.subr.mxu0 0.0
      %521 = vmatpush1.msra.mxu0 0.0
      %522 = vmatprep.subr.mxu0 0.0
      %523 = vmatpush1.msra.mxu0 0.0
      %524 = vmatprep.subr.mxu0 0.0
      %525 = vmatpush1.msra.mxu0 0.0
      %526 = vmatprep.subr.mxu0 0.0
      %527 = vmatpush1.msra.mxu0 0.0
      %528 = vmatprep.subr.mxu0 0.0
      %529 = vmatpush1.msra.mxu0 0.0
      %530 = vmatprep.subr.mxu0 0.0
      %531 = vmatpush1.msra.mxu0 0.0
      %532 = vmatprep.subr.mxu0 0.0
      %533 = vmatpush1.msra.mxu0 0.0
      %534 = vmatprep.subr.mxu0 0.0
      %535 = vmatpush1.msra.mxu0 0.0
      %536 = vmatprep.subr.mxu0 0.0
      %537 = vmatpush1.msra.mxu0 0.0
      %538 = vmatprep.subr.mxu0 0.0
      %539 = vmatpush1.msra.mxu0 %v328
      %540 = vmatprep.subr.mxu0 0.0
      %541 = vmatpush1.msra.mxu0 %v327
      %542 = vmatprep.subr.mxu0 0.0
      %543 = vmatpush2.msra.mxu0 0.0
      %544 = vmatprep.subr.mxu0 0.0
      %545 = vmatpush2.msra.mxu0 0.0
      %546 = vmatprep.subr.mxu0 0.0
      %547 = vmatpush2.msra.mxu0 0.0
      %548 = vmatprep.subr.mxu0 0.0
      %549 = vmatpush2.msra.mxu0 0.0
      %550 = vmatprep.subr.mxu0 0.0
      %551 = vmatpush2.msra.mxu0 0.0
      %552 = vmatprep.subr.mxu0 0.0
      %553 = vmatpush2.msra.mxu0 0.0
      %554 = vmatprep.subr.mxu0 0.0
      %555 = vmatpush2.msra.mxu0 0.0
      %556 = vmatprep.subr.mxu0 0.0
      %557 = vmatpush2.msra.mxu0 0.0
      %558 = vmatprep.subr.mxu0 0.0
      %559 = vmatpush2.msra.mxu0 0.0
      %560 = vmatprep.subr.mxu0 0.0
      %561 = vmatpush2.msra.mxu0 0.0
      %562 = vmatprep.subr.mxu0 0.0
      %563 = vmatpush2.msra.mxu0 0.0
      %564 = vmatprep.subr.mxu0 0.0
      %565 = vmatpush2.msra.mxu0 0.0
      %566 = vmatprep.subr.mxu0 0.0
      %567 = vmatpush2.msra.mxu0 0.0
      %568 = vmatprep.subr.mxu0 0.0
      %569 = vmatpush2.msra.mxu0 0.0
      %570 = vmatprep.subr.mxu0 0.0
      %571 = vmatpush2.msra.mxu0 0.0
      %572 = vmatprep.subr.mxu0 0.0
      %573 = vmatpush2.msra.mxu0 0.0
      %574 = vmatprep.mubr.f32.mxu0 0.0
      %575 = vmatmul.mubr.f32.gmra.mxu0 %v505
      %v576 = vpop.f32.mrf.mxu0
      %v577 = vadd.f32 0.0, %v576
      %v578 = vpop.f32.mrf.mxu0
      %579 = vmatprep.mubr.f32.mxu0 0.0
      %580 = vmatmul.mubr.f32.gmra.mxu0 %v508
      %v581 = vpop.f32.mrf.mxu0
      %v582 = vadd.f32 0.0, %v581
      %v583 = vpop.f32.mrf.mxu0
      %584 = vdwg.mxu0
      %585 = vmatprep.subr.mxu0 0.0
      %586 = vmatpush1.msra.mxu0 0.0
      %587 = vmatprep.subr.mxu0 0.0
      %588 = vmatpush1.msra.mxu0 0.0
      %589 = vmatprep.subr.mxu0 0.0
      %590 = vmatpush1.msra.mxu0 0.0
      %591 = vmatprep.subr.mxu0 0.0
      %592 = vmatpush1.msra.mxu0 0.0
      %593 = vmatprep.subr.mxu0 0.0
      %594 = vmatpush1.msra.mxu0 0.0
      %595 = vmatprep.subr.mxu0 0.0
      %596 = vmatpush1.msra.mxu0 0.0
      %597 = vmatprep.subr.mxu0 0.0
      %598 = vmatpush1.msra.mxu0 0.0
      %599 = vmatprep.subr.mxu0 0.0
      %600 = vmatpush1.msra.mxu0 0.0
      %601 = vmatprep.subr.mxu0 0.0
      %602 = vmatpush1.msra.mxu0 0.0
      %603 = vmatprep.subr.mxu0 0.0
      %604 = vmatpush1.msra.mxu0 0.0
      %605 = vmatprep.subr.mxu0 0.0
      %606 = vmatpush1.msra.mxu0 0.0
      %607 = vmatprep.subr.mxu0 0.0
      %608 = vmatpush1.msra.mxu0 0.0
      %609 = vmatprep.subr.mxu0 0.0
      %610 = vmatpush1.msra.mxu0 0.0
      %611 = vmatprep.subr.mxu0 0.0
      %612 = vmatpush1.msra.mxu0 0.0
      %613 = vmatprep.subr.mxu0 0.0
      %614 = vmatpush1.msra.mxu0 %v330
      %615 = vmatprep.subr.mxu0 0.0
      %616 = vmatpush1.msra.mxu0 %v329
      %617 = vmatprep.subr.mxu0 0.0
      %618 = vmatpush2.msra.mxu0 0.0
      %619 = vmatprep.subr.mxu0 0.0
      %620 = vmatpush2.msra.mxu0 0.0
      %621 = vmatprep.subr.mxu0 0.0
      %622 = vmatpush2.msra.mxu0 0.0
      %623 = vmatprep.subr.mxu0 0.0
      %624 = vmatpush2.msra.mxu0 0.0
      %625 = vmatprep.subr.mxu0 0.0
      %626 = vmatpush2.msra.mxu0 0.0
      %627 = vmatprep.subr.mxu0 0.0
      %628 = vmatpush2.msra.mxu0 0.0
      %629 = vmatprep.subr.mxu0 0.0
      %630 = vmatpush2.msra.mxu0 0.0
      %631 = vmatprep.subr.mxu0 0.0
      %632 = vmatpush2.msra.mxu0 0.0
      %633 = vmatprep.subr.mxu0 0.0
      %634 = vmatpush2.msra.mxu0 0.0
      %635 = vmatprep.subr.mxu0 0.0
      %636 = vmatpush2.msra.mxu0 0.0
      %637 = vmatprep.subr.mxu0 0.0
      %638 = vmatpush2.msra.mxu0 0.0
      %639 = vmatprep.subr.mxu0 0.0
      %640 = vmatpush2.msra.mxu0 0.0
      %641 = vmatprep.subr.mxu0 0.0
      %642 = vmatpush2.msra.mxu0 0.0
      %643 = vmatprep.subr.mxu0 0.0
      %644 = vmatpush2.msra.mxu0 0.0
      %645 = vmatprep.subr.mxu0 0.0
      %646 = vmatpush2.msra.mxu0 0.0
      %647 = vmatprep.subr.mxu0 0.0
      %648 = vmatpush2.msra.mxu0 0.0
      %649 = vmatprep.mubr.f32.mxu0 0.0
      %650 = vmatmul.mubr.f32.gmra.mxu0 %v505
      %v651 = vpop.f32.mrf.mxu0
      %v652 = vadd.f32 0.0, %v651
      %v653 = vpop.f32.mrf.mxu0
      %654 = vmatprep.mubr.f32.mxu0 0.0
      %655 = vmatmul.mubr.f32.gmra.mxu0 %v508
      %v656 = vpop.f32.mrf.mxu0
      %v657 = vadd.f32 0.0, %v656
      %v658 = vpop.f32.mrf.mxu0
      %659 = vdwg.mxu0
      %v661 = vsel %vm347, %v345, 0
      %v664 = vsel %vm347, %v346, 0
      %666 = vmatprep.subr.mxu0 0.0
      %667 = vmatpush1.msra.mxu0 0.0
      %668 = vmatprep.subr.mxu0 0.0
      %669 = vmatpush1.msra.mxu0 0.0
      %670 = vmatprep.subr.mxu0 0.0
      %671 = vmatpush1.msra.mxu0 0.0
      %672 = vmatprep.subr.mxu0 0.0
      %673 = vmatpush1.msra.mxu0 0.0
      %674 = vmatprep.subr.mxu0 0.0
      %675 = vmatpush1.msra.mxu0 0.0
      %676 = vmatprep.subr.mxu0 0.0
      %677 = vmatpush1.msra.mxu0 0.0
      %678 = vmatprep.subr.mxu0 0.0
      %679 = vmatpush1.msra.mxu0 0.0
      %680 = vmatprep.subr.mxu0 0.0
      %681 = vmatpush1.msra.mxu0 0.0
      %682 = vmatprep.subr.mxu0 0.0
      %683 = vmatpush1.msra.mxu0 0.0
      %684 = vmatprep.subr.mxu0 0.0
      %685 = vmatpush1.msra.mxu0 0.0
      %686 = vmatprep.subr.mxu0 0.0
      %687 = vmatpush1.msra.mxu0 0.0
      %688 = vmatprep.subr.mxu0 0.0
      %689 = vmatpush1.msra.mxu0 0.0
      %690 = vmatprep.subr.mxu0 0.0
      %691 = vmatpush1.msra.mxu0 0.0
      %692 = vmatprep.subr.mxu0 0.0
      %693 = vmatpush1.msra.mxu0 0.0
      %694 = vmatprep.subr.mxu0 0.0
      %695 = vmatpush1.msra.mxu0 %v328
      %696 = vmatprep.subr.mxu0 0.0
      %697 = vmatpush1.msra.mxu0 %v327
      %698 = vmatprep.subr.mxu0 0.0
      %699 = vmatpush2.msra.mxu0 0.0
      %700 = vmatprep.subr.mxu0 0.0
      %701 = vmatpush2.msra.mxu0 0.0
      %702 = vmatprep.subr.mxu0 0.0
      %703 = vmatpush2.msra.mxu0 0.0
      %704 = vmatprep.subr.mxu0 0.0
      %705 = vmatpush2.msra.mxu0 0.0
      %706 = vmatprep.subr.mxu0 0.0
      %707 = vmatpush2.msra.mxu0 0.0
      %708 = vmatprep.subr.mxu0 0.0
      %709 = vmatpush2.msra.mxu0 0.0
      %710 = vmatprep.subr.mxu0 0.0
      %711 = vmatpush2.msra.mxu0 0.0
      %712 = vmatprep.subr.mxu0 0.0
      %713 = vmatpush2.msra.mxu0 0.0
      %714 = vmatprep.subr.mxu0 0.0
      %715 = vmatpush2.msra.mxu0 0.0
      %716 = vmatprep.subr.mxu0 0.0
      %717 = vmatpush2.msra.mxu0 0.0
      %718 = vmatprep.subr.mxu0 0.0
      %719 = vmatpush2.msra.mxu0 0.0
      %720 = vmatprep.subr.mxu0 0.0
      %721 = vmatpush2.msra.mxu0 0.0
      %722 = vmatprep.subr.mxu0 0.0
      %723 = vmatpush2.msra.mxu0 0.0
      %724 = vmatprep.subr.mxu0 0.0
      %725 = vmatpush2.msra.mxu0 0.0
      %726 = vmatprep.subr.mxu0 0.0
      %727 = vmatpush2.msra.mxu0 0.0
      %728 = vmatprep.subr.mxu0 0.0
      %729 = vmatpush2.msra.mxu0 0.0
      %730 = vmatprep.mubr.f32.mxu0 0.0
      %731 = vmatmul.mubr.f32.gmra.mxu0 %v661
      %v732 = vpop.f32.mrf.mxu0
      %v733 = vadd.f32 0.0, %v732
      %v734 = vpop.f32.mrf.mxu0
      %735 = vmatprep.mubr.f32.mxu0 0.0
      %736 = vmatmul.mubr.f32.gmra.mxu0 %v664
      %v737 = vpop.f32.mrf.mxu0
      %v738 = vadd.f32 0.0, %v737
      %v739 = vpop.f32.mrf.mxu0
      %740 = vdwg.mxu0
      %741 = vmatprep.subr.mxu0 0.0
      %742 = vmatpush1.msra.mxu0 0.0
      %743 = vmatprep.subr.mxu0 0.0
      %744 = vmatpush1.msra.mxu0 0.0
      %745 = vmatprep.subr.mxu0 0.0
      %746 = vmatpush1.msra.mxu0 0.0
      %747 = vmatprep.subr.mxu0 0.0
      %748 = vmatpush1.msra.mxu0 0.0
      %749 = vmatprep.subr.mxu0 0.0
      %750 = vmatpush1.msra.mxu0 0.0
      %751 = vmatprep.subr.mxu0 0.0
      %752 = vmatpush1.msra.mxu0 0.0
      %753 = vmatprep.subr.mxu0 0.0
      %754 = vmatpush1.msra.mxu0 0.0
      %755 = vmatprep.subr.mxu0 0.0
      %756 = vmatpush1.msra.mxu0 0.0
      %757 = vmatprep.subr.mxu0 0.0
      %758 = vmatpush1.msra.mxu0 0.0
      %759 = vmatprep.subr.mxu0 0.0
      %760 = vmatpush1.msra.mxu0 0.0
      %761 = vmatprep.subr.mxu0 0.0
      %762 = vmatpush1.msra.mxu0 0.0
      %763 = vmatprep.subr.mxu0 0.0
      %764 = vmatpush1.msra.mxu0 0.0
      %765 = vmatprep.subr.mxu0 0.0
      %766 = vmatpush1.msra.mxu0 0.0
      %767 = vmatprep.subr.mxu0 0.0
      %768 = vmatpush1.msra.mxu0 0.0
      %769 = vmatprep.subr.mxu0 0.0
      %770 = vmatpush1.msra.mxu0 %v330
      %771 = vmatprep.subr.mxu0 0.0
      %772 = vmatpush1.msra.mxu0 %v329
      %773 = vmatprep.subr.mxu0 0.0
      %774 = vmatpush2.msra.mxu0 0.0
      %775 = vmatprep.subr.mxu0 0.0
      %776 = vmatpush2.msra.mxu0 0.0
      %777 = vmatprep.subr.mxu0 0.0
      %778 = vmatpush2.msra.mxu0 0.0
      %779 = vmatprep.subr.mxu0 0.0
      %780 = vmatpush2.msra.mxu0 0.0
      %781 = vmatprep.subr.mxu0 0.0
      %782 = vmatpush2.msra.mxu0 0.0
      %783 = vmatprep.subr.mxu0 0.0
      %784 = vmatpush2.msra.mxu0 0.0
      %785 = vmatprep.subr.mxu0 0.0
      %786 = vmatpush2.msra.mxu0 0.0
      %787 = vmatprep.subr.mxu0 0.0
      %788 = vmatpush2.msra.mxu0 0.0
      %789 = vmatprep.subr.mxu0 0.0
      %790 = vmatpush2.msra.mxu0 0.0
      %791 = vmatprep.subr.mxu0 0.0
      %792 = vmatpush2.msra.mxu0 0.0
      %793 = vmatprep.subr.mxu0 0.0
      %794 = vmatpush2.msra.mxu0 0.0
      %795 = vmatprep.subr.mxu0 0.0
      %796 = vmatpush2.msra.mxu0 0.0
      %797 = vmatprep.subr.mxu0 0.0
      %798 = vmatpush2.msra.mxu0 0.0
      %799 = vmatprep.subr.mxu0 0.0
      %800 = vmatpush2.msra.mxu0 0.0
      %801 = vmatprep.subr.mxu0 0.0
      %802 = vmatpush2.msra.mxu0 0.0
      %803 = vmatprep.subr.mxu0 0.0
      %804 = vmatpush2.msra.mxu0 0.0
      %805 = vmatprep.mubr.f32.mxu0 0.0
      %806 = vmatmul.mubr.f32.gmra.mxu0 %v661
      %v807 = vpop.f32.mrf.mxu0
      %v808 = vadd.f32 0.0, %v807
      %v809 = vpop.f32.mrf.mxu0
      %810 = vmatprep.mubr.f32.mxu0 0.0
      %811 = vmatmul.mubr.f32.gmra.mxu0 %v664
      %v812 = vpop.f32.mrf.mxu0
      %v813 = vadd.f32 0.0, %v812
      %v814 = vpop.f32.mrf.mxu0
      %815 = vdwg.mxu0
      %816 = vmatprep.subr.mxu0 0.0
      %817 = vmatpush1.msra.mxu0 0.0
      %818 = vmatprep.subr.mxu0 0.0
      %819 = vmatpush1.msra.mxu0 0.0
      %820 = vmatprep.subr.mxu0 0.0
      %821 = vmatpush1.msra.mxu0 0.0
      %822 = vmatprep.subr.mxu0 0.0
      %823 = vmatpush1.msra.mxu0 0.0
      %824 = vmatprep.subr.mxu0 0.0
      %825 = vmatpush1.msra.mxu0 0.0
      %826 = vmatprep.subr.mxu0 0.0
      %827 = vmatpush1.msra.mxu0 0.0
      %828 = vmatprep.subr.mxu0 0.0
      %829 = vmatpush1.msra.mxu0 0.0
      %830 = vmatprep.subr.mxu0 0.0
      %831 = vmatpush1.msra.mxu0 0.0
      %832 = vmatprep.subr.mxu0 0.0
      %833 = vmatpush1.msra.mxu0 0.0
      %834 = vmatprep.subr.mxu0 0.0
      %835 = vmatpush1.msra.mxu0 0.0
      %836 = vmatprep.subr.mxu0 0.0
      %837 = vmatpush1.msra.mxu0 0.0
      %838 = vmatprep.subr.mxu0 0.0
      %839 = vmatpush1.msra.mxu0 0.0
      %840 = vmatprep.subr.mxu0 0.0
      %841 = vmatpush1.msra.mxu0 0.0
      %842 = vmatprep.subr.mxu0 0.0
      %843 = vmatpush1.msra.mxu0 0.0
      %844 = vmatprep.subr.mxu0 0.0
      %845 = vmatpush1.msra.mxu0 %v332
      %846 = vmatprep.subr.mxu0 0.0
      %847 = vmatpush1.msra.mxu0 %v331
      %848 = vmatprep.subr.mxu0 0.0
      %849 = vmatpush2.msra.mxu0 0.0
      %850 = vmatprep.subr.mxu0 0.0
      %851 = vmatpush2.msra.mxu0 0.0
      %852 = vmatprep.subr.mxu0 0.0
      %853 = vmatpush2.msra.mxu0 0.0
      %854 = vmatprep.subr.mxu0 0.0
      %855 = vmatpush2.msra.mxu0 0.0
      %856 = vmatprep.subr.mxu0 0.0
      %857 = vmatpush2.msra.mxu0 0.0
      %858 = vmatprep.subr.mxu0 0.0
      %859 = vmatpush2.msra.mxu0 0.0
      %860 = vmatprep.subr.mxu0 0.0
      %861 = vmatpush2.msra.mxu0 0.0
      %862 = vmatprep.subr.mxu0 0.0
      %863 = vmatpush2.msra.mxu0 0.0
      %864 = vmatprep.subr.mxu0 0.0
      %865 = vmatpush2.msra.mxu0 0.0
      %866 = vmatprep.subr.mxu0 0.0
      %867 = vmatpush2.msra.mxu0 0.0
      %868 = vmatprep.subr.mxu0 0.0
      %869 = vmatpush2.msra.mxu0 0.0
      %870 = vmatprep.subr.mxu0 0.0
      %871 = vmatpush2.msra.mxu0 0.0
      %872 = vmatprep.subr.mxu0 0.0
      %873 = vmatpush2.msra.mxu0 0.0
      %874 = vmatprep.subr.mxu0 0.0
      %875 = vmatpush2.msra.mxu0 0.0
      %876 = vmatprep.subr.mxu0 0.0
      %877 = vmatpush2.msra.mxu0 0.0
      %878 = vmatprep.subr.mxu0 0.0
      %879 = vmatpush2.msra.mxu0 0.0
      %880 = vmatprep.mubr.f32.mxu0 0.0
      %881 = vmatmul.mubr.f32.gmra.mxu0 %v349
      %v882 = vpop.f32.mrf.mxu0
      %v883 = vadd.f32 0.0, %v882
      %v884 = vpop.f32.mrf.mxu0
      %885 = vmatprep.mubr.f32.mxu0 0.0
      %886 = vmatmul.mubr.f32.gmra.mxu0 %v352
      %v887 = vpop.f32.mrf.mxu0
      %v888 = vadd.f32 0.0, %v887
      %v889 = vpop.f32.mrf.mxu0
      %890 = vdwg.mxu0
      %891 = vmatprep.subr.mxu0 0.0
      %892 = vmatpush1.msra.mxu0 0.0
      %893 = vmatprep.subr.mxu0 0.0
      %894 = vmatpush1.msra.mxu0 0.0
      %895 = vmatprep.subr.mxu0 0.0
      %896 = vmatpush1.msra.mxu0 0.0
      %897 = vmatprep.subr.mxu0 0.0
      %898 = vmatpush1.msra.mxu0 0.0
      %899 = vmatprep.subr.mxu0 0.0
      %900 = vmatpush1.msra.mxu0 0.0
      %901 = vmatprep.subr.mxu0 0.0
      %902 = vmatpush1.msra.mxu0 0.0
      %903 = vmatprep.subr.mxu0 0.0
      %904 = vmatpush1.msra.mxu0 0.0
      %905 = vmatprep.subr.mxu0 0.0
      %906 = vmatpush1.msra.mxu0 0.0
      %907 = vmatprep.subr.mxu0 0.0
      %908 = vmatpush1.msra.mxu0 0.0
      %909 = vmatprep.subr.mxu0 0.0
      %910 = vmatpush1.msra.mxu0 0.0
      %911 = vmatprep.subr.mxu0 0.0
      %912 = vmatpush1.msra.mxu0 0.0
      %913 = vmatprep.subr.mxu0 0.0
      %914 = vmatpush1.msra.mxu0 0.0
      %915 = vmatprep.subr.mxu0 0.0
      %916 = vmatpush1.msra.mxu0 0.0
      %917 = vmatprep.subr.mxu0 0.0
      %918 = vmatpush1.msra.mxu0 0.0
      %919 = vmatprep.subr.mxu0 0.0
      %920 = vmatpush1.msra.mxu0 %v334
      %921 = vmatprep.subr.mxu0 0.0
      %922 = vmatpush1.msra.mxu0 %v333
      %923 = vmatprep.subr.mxu0 0.0
      %924 = vmatpush2.msra.mxu0 0.0
      %925 = vmatprep.subr.mxu0 0.0
      %926 = vmatpush2.msra.mxu0 0.0
      %927 = vmatprep.subr.mxu0 0.0
      %928 = vmatpush2.msra.mxu0 0.0
      %929 = vmatprep.subr.mxu0 0.0
      %930 = vmatpush2.msra.mxu0 0.0
      %931 = vmatprep.subr.mxu0 0.0
      %932 = vmatpush2.msra.mxu0 0.0
      %933 = vmatprep.subr.mxu0 0.0
      %934 = vmatpush2.msra.mxu0 0.0
      %935 = vmatprep.subr.mxu0 0.0
      %936 = vmatpush2.msra.mxu0 0.0
      %937 = vmatprep.subr.mxu0 0.0
      %938 = vmatpush2.msra.mxu0 0.0
      %939 = vmatprep.subr.mxu0 0.0
      %940 = vmatpush2.msra.mxu0 0.0
      %941 = vmatprep.subr.mxu0 0.0
      %942 = vmatpush2.msra.mxu0 0.0
      %943 = vmatprep.subr.mxu0 0.0
      %944 = vmatpush2.msra.mxu0 0.0
      %945 = vmatprep.subr.mxu0 0.0
      %946 = vmatpush2.msra.mxu0 0.0
      %947 = vmatprep.subr.mxu0 0.0
      %948 = vmatpush2.msra.mxu0 0.0
      %949 = vmatprep.subr.mxu0 0.0
      %950 = vmatpush2.msra.mxu0 0.0
      %951 = vmatprep.subr.mxu0 0.0
      %952 = vmatpush2.msra.mxu0 0.0
      %953 = vmatprep.subr.mxu0 0.0
      %954 = vmatpush2.msra.mxu0 0.0
      %955 = vmatprep.mubr.f32.mxu0 0.0
      %956 = vmatmul.mubr.f32.gmra.mxu0 %v349
      %v957 = vpop.f32.mrf.mxu0
      %v958 = vadd.f32 0.0, %v957
      %v959 = vpop.f32.mrf.mxu0
      %960 = vmatprep.mubr.f32.mxu0 0.0
      %961 = vmatmul.mubr.f32.gmra.mxu0 %v352
      %v962 = vpop.f32.mrf.mxu0
      %v963 = vadd.f32 0.0, %v962
      %v964 = vpop.f32.mrf.mxu0
      %965 = vdwg.mxu0
      %966 = vmatprep.subr.mxu0 0.0
      %967 = vmatpush1.msra.mxu0 0.0
      %968 = vmatprep.subr.mxu0 0.0
      %969 = vmatpush1.msra.mxu0 0.0
      %970 = vmatprep.subr.mxu0 0.0
      %971 = vmatpush1.msra.mxu0 0.0
      %972 = vmatprep.subr.mxu0 0.0
      %973 = vmatpush1.msra.mxu0 0.0
      %974 = vmatprep.subr.mxu0 0.0
      %975 = vmatpush1.msra.mxu0 0.0
      %976 = vmatprep.subr.mxu0 0.0
      %977 = vmatpush1.msra.mxu0 0.0
      %978 = vmatprep.subr.mxu0 0.0
      %979 = vmatpush1.msra.mxu0 0.0
      %980 = vmatprep.subr.mxu0 0.0
      %981 = vmatpush1.msra.mxu0 0.0
      %982 = vmatprep.subr.mxu0 0.0
      %983 = vmatpush1.msra.mxu0 0.0
      %984 = vmatprep.subr.mxu0 0.0
      %985 = vmatpush1.msra.mxu0 0.0
      %986 = vmatprep.subr.mxu0 0.0
      %987 = vmatpush1.msra.mxu0 0.0
      %988 = vmatprep.subr.mxu0 0.0
      %989 = vmatpush1.msra.mxu0 0.0
      %990 = vmatprep.subr.mxu0 0.0
      %991 = vmatpush1.msra.mxu0 0.0
      %992 = vmatprep.subr.mxu0 0.0
      %993 = vmatpush1.msra.mxu0 0.0
      %994 = vmatprep.subr.mxu0 0.0
      %995 = vmatpush1.msra.mxu0 %v332
      %996 = vmatprep.subr.mxu0 0.0
      %997 = vmatpush1.msra.mxu0 %v331
      %998 = vmatprep.subr.mxu0 0.0
      %999 = vmatpush2.msra.mxu0 0.0
      %1000 = vmatprep.subr.mxu0 0.0
      %1001 = vmatpush2.msra.mxu0 0.0
      %1002 = vmatprep.subr.mxu0 0.0
      %1003 = vmatpush2.msra.mxu0 0.0
      %1004 = vmatprep.subr.mxu0 0.0
      %1005 = vmatpush2.msra.mxu0 0.0
      %1006 = vmatprep.subr.mxu0 0.0
      %1007 = vmatpush2.msra.mxu0 0.0
      %1008 = vmatprep.subr.mxu0 0.0
      %1009 = vmatpush2.msra.mxu0 0.0
      %1010 = vmatprep.subr.mxu0 0.0
      %1011 = vmatpush2.msra.mxu0 0.0
      %1012 = vmatprep.subr.mxu0 0.0
      %1013 = vmatpush2.msra.mxu0 0.0
      %1014 = vmatprep.subr.mxu0 0.0
      %1015 = vmatpush2.msra.mxu0 0.0
      %1016 = vmatprep.subr.mxu0 0.0
      %1017 = vmatpush2.msra.mxu0 0.0
      %1018 = vmatprep.subr.mxu0 0.0
      %1019 = vmatpush2.msra.mxu0 0.0
      %1020 = vmatprep.subr.mxu0 0.0
      %1021 = vmatpush2.msra.mxu0 0.0
      %1022 = vmatprep.subr.mxu0 0.0
      %1023 = vmatpush2.msra.mxu0 0.0
      %1024 = vmatprep.subr.mxu0 0.0
      %1025 = vmatpush2.msra.mxu0 0.0
      %1026 = vmatprep.subr.mxu0 0.0
      %1027 = vmatpush2.msra.mxu0 0.0
      %1028 = vmatprep.subr.mxu0 0.0
      %1029 = vmatpush2.msra.mxu0 0.0
      %1030 = vmatprep.mubr.f32.mxu0 0.0
      %1031 = vmatmul.mubr.f32.gmra.mxu0 %v505
      %v1032 = vpop.f32.mrf.mxu0
      %v1033 = vadd.f32 0.0, %v1032
      %v1034 = vpop.f32.mrf.mxu0
      %1035 = vmatprep.mubr.f32.mxu0 0.0
      %1036 = vmatmul.mubr.f32.gmra.mxu0 %v508
      %v1037 = vpop.f32.mrf.mxu0
      %v1038 = vadd.f32 0.0, %v1037
      %v1039 = vpop.f32.mrf.mxu0
      %1040 = vdwg.mxu0
      %1041 = vmatprep.subr.mxu0 0.0
      %1042 = vmatpush1.msra.mxu0 0.0
      %1043 = vmatprep.subr.mxu0 0.0
      %1044 = vmatpush1.msra.mxu0 0.0
      %1045 = vmatprep.subr.mxu0 0.0
      %1046 = vmatpush1.msra.mxu0 0.0
      %1047 = vmatprep.subr.mxu0 0.0
      %1048 = vmatpush1.msra.mxu0 0.0
      %1049 = vmatprep.subr.mxu0 0.0
      %1050 = vmatpush1.msra.mxu0 0.0
      %1051 = vmatprep.subr.mxu0 0.0
      %1052 = vmatpush1.msra.mxu0 0.0
      %1053 = vmatprep.subr.mxu0 0.0
      %1054 = vmatpush1.msra.mxu0 0.0
      %1055 = vmatprep.subr.mxu0 0.0
      %1056 = vmatpush1.msra.mxu0 0.0
      %1057 = vmatprep.subr.mxu0 0.0
      %1058 = vmatpush1.msra.mxu0 0.0
      %1059 = vmatprep.subr.mxu0 0.0
      %1060 = vmatpush1.msra.mxu0 0.0
      %1061 = vmatprep.subr.mxu0 0.0
      %1062 = vmatpush1.msra.mxu0 0.0
      %1063 = vmatprep.subr.mxu0 0.0
      %1064 = vmatpush1.msra.mxu0 0.0
      %1065 = vmatprep.subr.mxu0 0.0
      %1066 = vmatpush1.msra.mxu0 0.0
      %1067 = vmatprep.subr.mxu0 0.0
      %1068 = vmatpush1.msra.mxu0 0.0
      %1069 = vmatprep.subr.mxu0 0.0
      %1070 = vmatpush1.msra.mxu0 %v334
      %1071 = vmatprep.subr.mxu0 0.0
      %1072 = vmatpush1.msra.mxu0 %v333
      %1073 = vmatprep.subr.mxu0 0.0
      %1074 = vmatpush2.msra.mxu0 0.0
      %1075 = vmatprep.subr.mxu0 0.0
      %1076 = vmatpush2.msra.mxu0 0.0
      %1077 = vmatprep.subr.mxu0 0.0
      %1078 = vmatpush2.msra.mxu0 0.0
      %1079 = vmatprep.subr.mxu0 0.0
      %1080 = vmatpush2.msra.mxu0 0.0
      %1081 = vmatprep.subr.mxu0 0.0
      %1082 = vmatpush2.msra.mxu0 0.0
      %1083 = vmatprep.subr.mxu0 0.0
      %1084 = vmatpush2.msra.mxu0 0.0
      %1085 = vmatprep.subr.mxu0 0.0
      %1086 = vmatpush2.msra.mxu0 0.0
      %1087 = vmatprep.subr.mxu0 0.0
      %1088 = vmatpush2.msra.mxu0 0.0
      %1089 = vmatprep.subr.mxu0 0.0
      %1090 = vmatpush2.msra.mxu0 0.0
      %1091 = vmatprep.subr.mxu0 0.0
      %1092 = vmatpush2.msra.mxu0 0.0
      %1093 = vmatprep.subr.mxu0 0.0
      %1094 = vmatpush2.msra.mxu0 0.0
      %1095 = vmatprep.subr.mxu0 0.0
      %1096 = vmatpush2.msra.mxu0 0.0
      %1097 = vmatprep.subr.mxu0 0.0
      %1098 = vmatpush2.msra.mxu0 0.0
      %1099 = vmatprep.subr.mxu0 0.0
      %1100 = vmatpush2.msra.mxu0 0.0
      %1101 = vmatprep.subr.mxu0 0.0
      %1102 = vmatpush2.msra.mxu0 0.0
      %1103 = vmatprep.subr.mxu0 0.0
      %1104 = vmatpush2.msra.mxu0 0.0
      %1105 = vmatprep.mubr.f32.mxu0 0.0
      %1106 = vmatmul.mubr.f32.gmra.mxu0 %v505
      %v1107 = vpop.f32.mrf.mxu0
      %v1108 = vadd.f32 0.0, %v1107
      %v1109 = vpop.f32.mrf.mxu0
      %1110 = vmatprep.mubr.f32.mxu0 0.0
      %1111 = vmatmul.mubr.f32.gmra.mxu0 %v508
      %v1112 = vpop.f32.mrf.mxu0
      %v1113 = vadd.f32 0.0, %v1112
      %v1114 = vpop.f32.mrf.mxu0
      %1115 = vdwg.mxu0
      %1116 = vmatprep.subr.mxu0 0.0
      %1117 = vmatpush1.msra.mxu0 0.0
      %1118 = vmatprep.subr.mxu0 0.0
      %1119 = vmatpush1.msra.mxu0 0.0
      %1120 = vmatprep.subr.mxu0 0.0
      %1121 = vmatpush1.msra.mxu0 0.0
      %1122 = vmatprep.subr.mxu0 0.0
      %1123 = vmatpush1.msra.mxu0 0.0
      %1124 = vmatprep.subr.mxu0 0.0
      %1125 = vmatpush1.msra.mxu0 0.0
      %1126 = vmatprep.subr.mxu0 0.0
      %1127 = vmatpush1.msra.mxu0 0.0
      %1128 = vmatprep.subr.mxu0 0.0
      %1129 = vmatpush1.msra.mxu0 0.0
      %1130 = vmatprep.subr.mxu0 0.0
      %1131 = vmatpush1.msra.mxu0 0.0
      %1132 = vmatprep.subr.mxu0 0.0
      %1133 = vmatpush1.msra.mxu0 0.0
      %1134 = vmatprep.subr.mxu0 0.0
      %1135 = vmatpush1.msra.mxu0 0.0
      %1136 = vmatprep.subr.mxu0 0.0
      %1137 = vmatpush1.msra.mxu0 0.0
      %1138 = vmatprep.subr.mxu0 0.0
      %1139 = vmatpush1.msra.mxu0 0.0
      %1140 = vmatprep.subr.mxu0 0.0
      %1141 = vmatpush1.msra.mxu0 0.0
      %1142 = vmatprep.subr.mxu0 0.0
      %1143 = vmatpush1.msra.mxu0 0.0
      %1144 = vmatprep.subr.mxu0 0.0
      %1145 = vmatpush1.msra.mxu0 %v332
      %1146 = vmatprep.subr.mxu0 0.0
      %1147 = vmatpush1.msra.mxu0 %v331
      %1148 = vmatprep.subr.mxu0 0.0
      %1149 = vmatpush2.msra.mxu0 0.0
      %1150 = vmatprep.subr.mxu0 0.0
      %1151 = vmatpush2.msra.mxu0 0.0
      %1152 = vmatprep.subr.mxu0 0.0
      %1153 = vmatpush2.msra.mxu0 0.0
      %1154 = vmatprep.subr.mxu0 0.0
      %1155 = vmatpush2.msra.mxu0 0.0
      %1156 = vmatprep.subr.mxu0 0.0
      %1157 = vmatpush2.msra.mxu0 0.0
      %1158 = vmatprep.subr.mxu0 0.0
      %1159 = vmatpush2.msra.mxu0 0.0
      %1160 = vmatprep.subr.mxu0 0.0
      %1161 = vmatpush2.msra.mxu0 0.0
      %1162 = vmatprep.subr.mxu0 0.0
      %1163 = vmatpush2.msra.mxu0 0.0
      %1164 = vmatprep.subr.mxu0 0.0
      %1165 = vmatpush2.msra.mxu0 0.0
      %1166 = vmatprep.subr.mxu0 0.0
      %1167 = vmatpush2.msra.mxu0 0.0
      %1168 = vmatprep.subr.mxu0 0.0
      %1169 = vmatpush2.msra.mxu0 0.0
      %1170 = vmatprep.subr.mxu0 0.0
      %1171 = vmatpush2.msra.mxu0 0.0
      %1172 = vmatprep.subr.mxu0 0.0
      %1173 = vmatpush2.msra.mxu0 0.0
      %1174 = vmatprep.subr.mxu0 0.0
      %1175 = vmatpush2.msra.mxu0 0.0
      %1176 = vmatprep.subr.mxu0 0.0
      %1177 = vmatpush2.msra.mxu0 0.0
      %1178 = vmatprep.subr.mxu0 0.0
      %1179 = vmatpush2.msra.mxu0 0.0
      %1180 = vmatprep.mubr.f32.mxu0 0.0
      %1181 = vmatmul.mubr.f32.gmra.mxu0 %v661
      %v1182 = vpop.f32.mrf.mxu0
      %v1183 = vadd.f32 0.0, %v1182
      %v1184 = vpop.f32.mrf.mxu0
      %1185 = vmatprep.mubr.f32.mxu0 0.0
      %1186 = vmatmul.mubr.f32.gmra.mxu0 %v664
      %v1187 = vpop.f32.mrf.mxu0
      %v1188 = vadd.f32 0.0, %v1187
      %v1189 = vpop.f32.mrf.mxu0
      %1190 = vdwg.mxu0
      %1191 = vmatprep.subr.mxu0 0.0
      %1192 = vmatpush1.msra.mxu0 0.0
      %1193 = vmatprep.subr.mxu0 0.0
      %1194 = vmatpush1.msra.mxu0 0.0
      %1195 = vmatprep.subr.mxu0 0.0
      %1196 = vmatpush1.msra.mxu0 0.0
      %1197 = vmatprep.subr.mxu0 0.0
      %1198 = vmatpush1.msra.mxu0 0.0
      %1199 = vmatprep.subr.mxu0 0.0
      %1200 = vmatpush1.msra.mxu0 0.0
      %1201 = vmatprep.subr.mxu0 0.0
      %1202 = vmatpush1.msra.mxu0 0.0
      %1203 = vmatprep.subr.mxu0 0.0
      %1204 = vmatpush1.msra.mxu0 0.0
      %1205 = vmatprep.subr.mxu0 0.0
      %1206 = vmatpush1.msra.mxu0 0.0
      %1207 = vmatprep.subr.mxu0 0.0
      %1208 = vmatpush1.msra.mxu0 0.0
      %1209 = vmatprep.subr.mxu0 0.0
      %1210 = vmatpush1.msra.mxu0 0.0
      %1211 = vmatprep.subr.mxu0 0.0
      %1212 = vmatpush1.msra.mxu0 0.0
      %1213 = vmatprep.subr.mxu0 0.0
      %1214 = vmatpush1.msra.mxu0 0.0
      %1215 = vmatprep.subr.mxu0 0.0
      %1216 = vmatpush1.msra.mxu0 0.0
      %1217 = vmatprep.subr.mxu0 0.0
      %1218 = vmatpush1.msra.mxu0 0.0
      %1219 = vmatprep.subr.mxu0 0.0
      %1220 = vmatpush1.msra.mxu0 %v334
      %1221 = vmatprep.subr.mxu0 0.0
      %1222 = vmatpush1.msra.mxu0 %v333
      %1223 = vmatprep.subr.mxu0 0.0
      %1224 = vmatpush2.msra.mxu0 0.0
      %1225 = vmatprep.subr.mxu0 0.0
      %1226 = vmatpush2.msra.mxu0 0.0
      %1227 = vmatprep.subr.mxu0 0.0
      %1228 = vmatpush2.msra.mxu0 0.0
      %1229 = vmatprep.subr.mxu0 0.0
      %1230 = vmatpush2.msra.mxu0 0.0
      %1231 = vmatprep.subr.mxu0 0.0
      %1232 = vmatpush2.msra.mxu0 0.0
      %1233 = vmatprep.subr.mxu0 0.0
      %1234 = vmatpush2.msra.mxu0 0.0
      %1235 = vmatprep.subr.mxu0 0.0
      %1236 = vmatpush2.msra.mxu0 0.0
      %1237 = vmatprep.subr.mxu0 0.0
      %1238 = vmatpush2.msra.mxu0 0.0
      %1239 = vmatprep.subr.mxu0 0.0
      %1240 = vmatpush2.msra.mxu0 0.0
      %1241 = vmatprep.subr.mxu0 0.0
      %1242 = vmatpush2.msra.mxu0 0.0
      %1243 = vmatprep.subr.mxu0 0.0
      %1244 = vmatpush2.msra.mxu0 0.0
      %1245 = vmatprep.subr.mxu0 0.0
      %1246 = vmatpush2.msra.mxu0 0.0
      %1247 = vmatprep.subr.mxu0 0.0
      %1248 = vmatpush2.msra.mxu0 0.0
      %1249 = vmatprep.subr.mxu0 0.0
      %1250 = vmatpush2.msra.mxu0 0.0
      %1251 = vmatprep.subr.mxu0 0.0
      %1252 = vmatpush2.msra.mxu0 0.0
      %1253 = vmatprep.subr.mxu0 0.0
      %1254 = vmatpush2.msra.mxu0 0.0
      %1255 = vmatprep.mubr.f32.mxu0 0.0
      %1256 = vmatmul.mubr.f32.gmra.mxu0 %v661
      %v1257 = vpop.f32.mrf.mxu0
      %v1258 = vadd.f32 0.0, %v1257
      %v1259 = vpop.f32.mrf.mxu0
      %1260 = vmatprep.mubr.f32.mxu0 0.0
      %1261 = vmatmul.mubr.f32.gmra.mxu0 %v664
      %v1262 = vpop.f32.mrf.mxu0
      %v1263 = vadd.f32 0.0, %v1262
      %v1264 = vpop.f32.mrf.mxu0
      %1265 = vdwg.mxu0
      %v1266 = vld [vmem:[%s3] sm:$0xff]
      %v1267 = vld [vmem:[%s3 + $0x8] sm:$0xff]
      %v1268 = vld [vmem:[%s3 + $0x10] sm:$0xff]
      %v1269 = vld [vmem:[%s3 + $0x18] sm:$0xff]
      %v1270 = vld [vmem:[%s3 + $0x20] sm:$0xff]
      %v1271 = vld [vmem:[%s3 + $0x28] sm:$0xff]
      %v1272 = vld [vmem:[%s3 + $0x30] sm:$0xff]
      %v1273 = vld [vmem:[%s3 + $0x38] sm:$0xff]
      %v1274 = vld [vmem:[%s3 + $0x40] sm:$0xff]
      %v1275 = vld [vmem:[%s3 + $0x48] sm:$0xff]
      %v1276 = vld [vmem:[%s3 + $0x50] sm:$0xff]
      %v1277 = vld [vmem:[%s3 + $0x58] sm:$0xff]
      %v1278 = vld [vmem:[%s3 + $0x60] sm:$0xff]
      %v1279 = vld [vmem:[%s3 + $0x68] sm:$0xff]
      %v1280 = vld [vmem:[%s3 + $0x70] sm:$0xff]
      %v1281 = vld [vmem:[%s3 + $0x78] sm:$0xff]
      %v1282 = vld [vmem:[%s4] sm:$0xff]
      %v1283 = vld [vmem:[%s4 + $0x8] sm:$0xff]
      %v1284 = vld [vmem:[%s4 + $0x10] sm:$0xff]
      %v1285 = vld [vmem:[%s4 + $0x18] sm:$0xff]
      %v1286 = vld [vmem:[%s4 + $0x20] sm:$0xff]
      %v1287 = vld [vmem:[%s4 + $0x28] sm:$0xff]
      %v1288 = vld [vmem:[%s4 + $0x30] sm:$0xff]
      %v1289 = vld [vmem:[%s4 + $0x38] sm:$0xff]
      %v1290 = vld [vmem:[%s4 + $0x40] sm:$0xff]
      %v1291 = vld [vmem:[%s4 + $0x48] sm:$0xff]
      %v1292 = vld [vmem:[%s4 + $0x50] sm:$0xff]
      %v1293 = vld [vmem:[%s4 + $0x58] sm:$0xff]
      %v1294 = vld [vmem:[%s4 + $0x60] sm:$0xff]
      %v1295 = vld [vmem:[%s4 + $0x68] sm:$0xff]
      %v1296 = vld [vmem:[%s4 + $0x70] sm:$0xff]
      %v1297 = vld [vmem:[%s4 + $0x78] sm:$0xff]
      %vm1298 = vcmask 261120
      %v1300 = vsel %vm1298, %v883, 0
      %v1303 = vsel %vm1298, %v888, 0
      %v1306 = vsel %vm1298, %v958, 0
      %v1309 = vsel %vm1298, %v963, 0
      %1311 = vmatprep.subr.mxu0 0.0
      %1312 = vmatpush1.msra.mxu0 0.0
      %1313 = vmatprep.subr.mxu0 0.0
      %1314 = vmatpush1.msra.mxu0 0.0
      %1315 = vmatprep.subr.mxu0 0.0
      %1316 = vmatpush1.msra.mxu0 0.0
      %1317 = vmatprep.subr.mxu0 0.0
      %1318 = vmatpush1.msra.mxu0 0.0
      %1319 = vmatprep.subr.mxu0 0.0
      %1320 = vmatpush1.msra.mxu0 0.0
      %1321 = vmatprep.subr.mxu0 0.0
      %1322 = vmatpush1.msra.mxu0 0.0
      %1323 = vmatprep.subr.mxu0 0.0
      %1324 = vmatpush1.msra.mxu0 0.0
      %1325 = vmatprep.subr.mxu0 0.0
      %1326 = vmatpush1.msra.mxu0 0.0
      %1327 = vmatprep.subr.mxu0 0.0
      %1328 = vmatpush1.msra.mxu0 0.0
      %1329 = vmatprep.subr.mxu0 0.0
      %1330 = vmatpush1.msra.mxu0 0.0
      %1331 = vmatprep.subr.mxu0 0.0
      %1332 = vmatpush1.msra.mxu0 0.0
      %1333 = vmatprep.subr.mxu0 0.0
      %1334 = vmatpush1.msra.mxu0 0.0
      %1335 = vmatprep.subr.mxu0 %v1295
      %1336 = vmatpush1.msra.mxu0 %v1294
      %1337 = vmatprep.subr.mxu0 %v1291
      %1338 = vmatpush1.msra.mxu0 %v1290
      %1339 = vmatprep.subr.mxu0 %v1287
      %1340 = vmatpush1.msra.mxu0 %v1286
      %1341 = vmatprep.subr.mxu0 %v1283
      %1342 = vmatpush1.msra.mxu0 %v1282
      %1343 = vmatprep.subr.mxu0 0.0
      %1344 = vmatpush2.msra.mxu0 0.0
      %1345 = vmatprep.subr.mxu0 0.0
      %1346 = vmatpush2.msra.mxu0 0.0
      %1347 = vmatprep.subr.mxu0 0.0
      %1348 = vmatpush2.msra.mxu0 0.0
      %1349 = vmatprep.subr.mxu0 0.0
      %1350 = vmatpush2.msra.mxu0 0.0
      %1351 = vmatprep.subr.mxu0 0.0
      %1352 = vmatpush2.msra.mxu0 0.0
      %1353 = vmatprep.subr.mxu0 0.0
      %1354 = vmatpush2.msra.mxu0 0.0
      %1355 = vmatprep.subr.mxu0 0.0
      %1356 = vmatpush2.msra.mxu0 0.0
      %1357 = vmatprep.subr.mxu0 0.0
      %1358 = vmatpush2.msra.mxu0 0.0
      %1359 = vmatprep.subr.mxu0 0.0
      %1360 = vmatpush2.msra.mxu0 0.0
      %1361 = vmatprep.subr.mxu0 0.0
      %1362 = vmatpush2.msra.mxu0 0.0
      %1363 = vmatprep.subr.mxu0 0.0
      %1364 = vmatpush2.msra.mxu0 0.0
      %1365 = vmatprep.subr.mxu0 0.0
      %1366 = vmatpush2.msra.mxu0 0.0
      %1367 = vmatprep.subr.mxu0 0.0
      %1368 = vmatpush2.msra.mxu0 0.0
      %1369 = vmatprep.subr.mxu0 0.0
      %1370 = vmatpush2.msra.mxu0 0.0
      %1371 = vmatprep.subr.mxu0 0.0
      %1372 = vmatpush2.msra.mxu0 0.0
      %1373 = vmatprep.subr.mxu0 0.0
      %1374 = vmatpush2.msra.mxu0 0.0
      %1375 = vmatprep.mubr.f32.mxu0 0.0
      %1376 = vmatmul.mubr.f32.gmra.mxu0 %v1300
      %v1377 = vpop.f32.mrf.mxu0
      %v1378 = vadd.f32 0.0, %v1377
      %v1379 = vpop.f32.mrf.mxu0
      %v1380 = vadd.f32 0.0, %v1379
      %1381 = vmatprep.mubr.f32.mxu0 0.0
      %1382 = vmatmul.mubr.f32.gmra.mxu0 %v1303
      %v1383 = vpop.f32.mrf.mxu0
      %v1384 = vadd.f32 0.0, %v1383
      %v1385 = vpop.f32.mrf.mxu0
      %v1386 = vadd.f32 0.0, %v1385
      %1387 = vmatprep.mubr.f32.mxu0 0.0
      %1388 = vmatmul.mubr.f32.gmra.mxu0 %v1306
      %v1389 = vpop.f32.mrf.mxu0
      %v1390 = vadd.f32 0.0, %v1389
      %v1391 = vpop.f32.mrf.mxu0
      %v1392 = vadd.f32 0.0, %v1391
      %1393 = vmatprep.mubr.f32.mxu0 0.0
      %1394 = vmatmul.mubr.f32.gmra.mxu0 %v1309
      %v1395 = vpop.f32.mrf.mxu0
      %v1396 = vadd.f32 0.0, %v1395
      %v1397 = vpop.f32.mrf.mxu0
      %v1398 = vadd.f32 0.0, %v1397
      %1399 = vdwg.mxu0
      %1400 = vmatprep.subr.mxu0 0.0
      %1401 = vmatpush1.msra.mxu0 0.0
      %1402 = vmatprep.subr.mxu0 0.0
      %1403 = vmatpush1.msra.mxu0 0.0
      %1404 = vmatprep.subr.mxu0 0.0
      %1405 = vmatpush1.msra.mxu0 0.0
      %1406 = vmatprep.subr.mxu0 0.0
      %1407 = vmatpush1.msra.mxu0 0.0
      %1408 = vmatprep.subr.mxu0 0.0
      %1409 = vmatpush1.msra.mxu0 0.0
      %1410 = vmatprep.subr.mxu0 0.0
      %1411 = vmatpush1.msra.mxu0 0.0
      %1412 = vmatprep.subr.mxu0 0.0
      %1413 = vmatpush1.msra.mxu0 0.0
      %1414 = vmatprep.subr.mxu0 0.0
      %1415 = vmatpush1.msra.mxu0 0.0
      %1416 = vmatprep.subr.mxu0 0.0
      %1417 = vmatpush1.msra.mxu0 0.0
      %1418 = vmatprep.subr.mxu0 0.0
      %1419 = vmatpush1.msra.mxu0 0.0
      %1420 = vmatprep.subr.mxu0 0.0
      %1421 = vmatpush1.msra.mxu0 0.0
      %1422 = vmatprep.subr.mxu0 0.0
      %1423 = vmatpush1.msra.mxu0 0.0
      %1424 = vmatprep.subr.mxu0 %v1297
      %1425 = vmatpush1.msra.mxu0 %v1296
      %1426 = vmatprep.subr.mxu0 %v1293
      %1427 = vmatpush1.msra.mxu0 %v1292
      %1428 = vmatprep.subr.mxu0 %v1289
      %1429 = vmatpush1.msra.mxu0 %v1288
      %1430 = vmatprep.subr.mxu0 %v1285
      %1431 = vmatpush1.msra.mxu0 %v1284
      %1432 = vmatprep.subr.mxu0 0.0
      %1433 = vmatpush2.msra.mxu0 0.0
      %1434 = vmatprep.subr.mxu0 0.0
      %1435 = vmatpush2.msra.mxu0 0.0
      %1436 = vmatprep.subr.mxu0 0.0
      %1437 = vmatpush2.msra.mxu0 0.0
      %1438 = vmatprep.subr.mxu0 0.0
      %1439 = vmatpush2.msra.mxu0 0.0
      %1440 = vmatprep.subr.mxu0 0.0
      %1441 = vmatpush2.msra.mxu0 0.0
      %1442 = vmatprep.subr.mxu0 0.0
      %1443 = vmatpush2.msra.mxu0 0.0
      %1444 = vmatprep.subr.mxu0 0.0
      %1445 = vmatpush2.msra.mxu0 0.0
      %1446 = vmatprep.subr.mxu0 0.0
      %1447 = vmatpush2.msra.mxu0 0.0
      %1448 = vmatprep.subr.mxu0 0.0
      %1449 = vmatpush2.msra.mxu0 0.0
      %1450 = vmatprep.subr.mxu0 0.0
      %1451 = vmatpush2.msra.mxu0 0.0
      %1452 = vmatprep.subr.mxu0 0.0
      %1453 = vmatpush2.msra.mxu0 0.0
      %1454 = vmatprep.subr.mxu0 0.0
      %1455 = vmatpush2.msra.mxu0 0.0
      %1456 = vmatprep.subr.mxu0 0.0
      %1457 = vmatpush2.msra.mxu0 0.0
      %1458 = vmatprep.subr.mxu0 0.0
      %1459 = vmatpush2.msra.mxu0 0.0
      %1460 = vmatprep.subr.mxu0 0.0
      %1461 = vmatpush2.msra.mxu0 0.0
      %1462 = vmatprep.subr.mxu0 0.0
      %1463 = vmatpush2.msra.mxu0 0.0
      %1464 = vmatprep.mubr.f32.mxu0 0.0
      %1465 = vmatmul.mubr.f32.gmra.mxu0 %v1300
      %v1466 = vpop.f32.mrf.mxu0
      %v1467 = vadd.f32 0.0, %v1466
      %v1468 = vpop.f32.mrf.mxu0
      %v1469 = vadd.f32 0.0, %v1468
      %1470 = vmatprep.mubr.f32.mxu0 0.0
      %1471 = vmatmul.mubr.f32.gmra.mxu0 %v1303
      %v1472 = vpop.f32.mrf.mxu0
      %v1473 = vadd.f32 0.0, %v1472
      %v1474 = vpop.f32.mrf.mxu0
      %v1475 = vadd.f32 0.0, %v1474
      %1476 = vmatprep.mubr.f32.mxu0 0.0
      %1477 = vmatmul.mubr.f32.gmra.mxu0 %v1306
      %v1478 = vpop.f32.mrf.mxu0
      %v1479 = vadd.f32 0.0, %v1478
      %v1480 = vpop.f32.mrf.mxu0
      %v1481 = vadd.f32 0.0, %v1480
      %1482 = vmatprep.mubr.f32.mxu0 0.0
      %1483 = vmatmul.mubr.f32.gmra.mxu0 %v1309
      %v1484 = vpop.f32.mrf.mxu0
      %v1485 = vadd.f32 0.0, %v1484
      %v1486 = vpop.f32.mrf.mxu0
      %v1487 = vadd.f32 0.0, %v1486
      %1488 = vdwg.mxu0
      %v1490 = vsel %vm1298, %v421, 0
      %v1493 = vsel %vm1298, %v426, 0
      %v1496 = vsel %vm1298, %v496, 0
      %v1499 = vsel %vm1298, %v501, 0
      %1501 = vmatprep.subr.mxu0 0.0
      %1502 = vmatpush1.msra.mxu0 0.0
      %1503 = vmatprep.subr.mxu0 0.0
      %1504 = vmatpush1.msra.mxu0 0.0
      %1505 = vmatprep.subr.mxu0 0.0
      %1506 = vmatpush1.msra.mxu0 0.0
      %1507 = vmatprep.subr.mxu0 0.0
      %1508 = vmatpush1.msra.mxu0 0.0
      %1509 = vmatprep.subr.mxu0 0.0
      %1510 = vmatpush1.msra.mxu0 0.0
      %1511 = vmatprep.subr.mxu0 0.0
      %1512 = vmatpush1.msra.mxu0 0.0
      %1513 = vmatprep.subr.mxu0 0.0
      %1514 = vmatpush1.msra.mxu0 0.0
      %1515 = vmatprep.subr.mxu0 0.0
      %1516 = vmatpush1.msra.mxu0 0.0
      %1517 = vmatprep.subr.mxu0 0.0
      %1518 = vmatpush1.msra.mxu0 0.0
      %1519 = vmatprep.subr.mxu0 0.0
      %1520 = vmatpush1.msra.mxu0 0.0
      %1521 = vmatprep.subr.mxu0 0.0
      %1522 = vmatpush1.msra.mxu0 0.0
      %1523 = vmatprep.subr.mxu0 0.0
      %1524 = vmatpush1.msra.mxu0 0.0
      %1525 = vmatprep.subr.mxu0 %v1279
      %1526 = vmatpush1.msra.mxu0 %v1278
      %1527 = vmatprep.subr.mxu0 %v1275
      %1528 = vmatpush1.msra.mxu0 %v1274
      %1529 = vmatprep.subr.mxu0 %v1271
      %1530 = vmatpush1.msra.mxu0 %v1270
      %1531 = vmatprep.subr.mxu0 %v1267
      %1532 = vmatpush1.msra.mxu0 %v1266
      %1533 = vmatprep.subr.mxu0 0.0
      %1534 = vmatpush2.msra.mxu0 0.0
      %1535 = vmatprep.subr.mxu0 0.0
      %1536 = vmatpush2.msra.mxu0 0.0
      %1537 = vmatprep.subr.mxu0 0.0
      %1538 = vmatpush2.msra.mxu0 0.0
      %1539 = vmatprep.subr.mxu0 0.0
      %1540 = vmatpush2.msra.mxu0 0.0
      %1541 = vmatprep.subr.mxu0 0.0
      %1542 = vmatpush2.msra.mxu0 0.0
      %1543 = vmatprep.subr.mxu0 0.0
      %1544 = vmatpush2.msra.mxu0 0.0
      %1545 = vmatprep.subr.mxu0 0.0
      %1546 = vmatpush2.msra.mxu0 0.0
      %1547 = vmatprep.subr.mxu0 0.0
      %1548 = vmatpush2.msra.mxu0 0.0
      %1549 = vmatprep.subr.mxu0 0.0
      %1550 = vmatpush2.msra.mxu0 0.0
      %1551 = vmatprep.subr.mxu0 0.0
      %1552 = vmatpush2.msra.mxu0 0.0
      %1553 = vmatprep.subr.mxu0 0.0
      %1554 = vmatpush2.msra.mxu0 0.0
      %1555 = vmatprep.subr.mxu0 0.0
      %1556 = vmatpush2.msra.mxu0 0.0
      %1557 = vmatprep.subr.mxu0 0.0
      %1558 = vmatpush2.msra.mxu0 0.0
      %1559 = vmatprep.subr.mxu0 0.0
      %1560 = vmatpush2.msra.mxu0 0.0
      %1561 = vmatprep.subr.mxu0 0.0
      %1562 = vmatpush2.msra.mxu0 0.0
      %1563 = vmatprep.subr.mxu0 0.0
      %1564 = vmatpush2.msra.mxu0 0.0
      %1565 = vmatprep.mubr.f32.mxu0 0.0
      %1566 = vmatmul.mubr.f32.gmra.mxu0 %v1490
      %v1567 = vpop.f32.mrf.mxu0
      %v1568 = vadd.f32 %v1378, %v1567
      %v1569 = vpop.f32.mrf.mxu0
      %v1570 = vadd.f32 %v1380, %v1569
      %1571 = vmatprep.mubr.f32.mxu0 0.0
      %1572 = vmatmul.mubr.f32.gmra.mxu0 %v1493
      %v1573 = vpop.f32.mrf.mxu0
      %v1574 = vadd.f32 %v1384, %v1573
      %v1575 = vpop.f32.mrf.mxu0
      %v1576 = vadd.f32 %v1386, %v1575
      %1577 = vmatprep.mubr.f32.mxu0 0.0
      %1578 = vmatmul.mubr.f32.gmra.mxu0 %v1496
      %v1579 = vpop.f32.mrf.mxu0
      %v1580 = vadd.f32 %v1390, %v1579
      %v1581 = vpop.f32.mrf.mxu0
      %v1582 = vadd.f32 %v1392, %v1581
      %1583 = vmatprep.mubr.f32.mxu0 0.0
      %1584 = vmatmul.mubr.f32.gmra.mxu0 %v1499
      %v1585 = vpop.f32.mrf.mxu0
      %v1586 = vadd.f32 %v1396, %v1585
      %v1587 = vpop.f32.mrf.mxu0
      %v1588 = vadd.f32 %v1398, %v1587
      %1589 = vdwg.mxu0
      %1590 = vmatprep.subr.mxu0 0.0
      %1591 = vmatpush1.msra.mxu0 0.0
      %1592 = vmatprep.subr.mxu0 0.0
      %1593 = vmatpush1.msra.mxu0 0.0
      %1594 = vmatprep.subr.mxu0 0.0
      %1595 = vmatpush1.msra.mxu0 0.0
      %1596 = vmatprep.subr.mxu0 0.0
      %1597 = vmatpush1.msra.mxu0 0.0
      %1598 = vmatprep.subr.mxu0 0.0
      %1599 = vmatpush1.msra.mxu0 0.0
      %1600 = vmatprep.subr.mxu0 0.0
      %1601 = vmatpush1.msra.mxu0 0.0
      %1602 = vmatprep.subr.mxu0 0.0
      %1603 = vmatpush1.msra.mxu0 0.0
      %1604 = vmatprep.subr.mxu0 0.0
      %1605 = vmatpush1.msra.mxu0 0.0
      %1606 = vmatprep.subr.mxu0 0.0
      %1607 = vmatpush1.msra.mxu0 0.0
      %1608 = vmatprep.subr.mxu0 0.0
      %1609 = vmatpush1.msra.mxu0 0.0
      %1610 = vmatprep.subr.mxu0 0.0
      %1611 = vmatpush1.msra.mxu0 0.0
      %1612 = vmatprep.subr.mxu0 0.0
      %1613 = vmatpush1.msra.mxu0 0.0
      %1614 = vmatprep.subr.mxu0 %v1281
      %1615 = vmatpush1.msra.mxu0 %v1280
      %1616 = vmatprep.subr.mxu0 %v1277
      %1617 = vmatpush1.msra.mxu0 %v1276
      %1618 = vmatprep.subr.mxu0 %v1273
      %1619 = vmatpush1.msra.mxu0 %v1272
      %1620 = vmatprep.subr.mxu0 %v1269
      %1621 = vmatpush1.msra.mxu0 %v1268
      %1622 = vmatprep.subr.mxu0 0.0
      %1623 = vmatpush2.msra.mxu0 0.0
      %1624 = vmatprep.subr.mxu0 0.0
      %1625 = vmatpush2.msra.mxu0 0.0
      %1626 = vmatprep.subr.mxu0 0.0
      %1627 = vmatpush2.msra.mxu0 0.0
      %1628 = vmatprep.subr.mxu0 0.0
      %1629 = vmatpush2.msra.mxu0 0.0
      %1630 = vmatprep.subr.mxu0 0.0
      %1631 = vmatpush2.msra.mxu0 0.0
      %1632 = vmatprep.subr.mxu0 0.0
      %1633 = vmatpush2.msra.mxu0 0.0
      %1634 = vmatprep.subr.mxu0 0.0
      %1635 = vmatpush2.msra.mxu0 0.0
      %1636 = vmatprep.subr.mxu0 0.0
      %1637 = vmatpush2.msra.mxu0 0.0
      %1638 = vmatprep.subr.mxu0 0.0
      %1639 = vmatpush2.msra.mxu0 0.0
      %1640 = vmatprep.subr.mxu0 0.0
      %1641 = vmatpush2.msra.mxu0 0.0
      %1642 = vmatprep.subr.mxu0 0.0
      %1643 = vmatpush2.msra.mxu0 0.0
      %1644 = vmatprep.subr.mxu0 0.0
      %1645 = vmatpush2.msra.mxu0 0.0
      %1646 = vmatprep.subr.mxu0 0.0
      %1647 = vmatpush2.msra.mxu0 0.0
      %1648 = vmatprep.subr.mxu0 0.0
      %1649 = vmatpush2.msra.mxu0 0.0
      %1650 = vmatprep.subr.mxu0 0.0
      %1651 = vmatpush2.msra.mxu0 0.0
      %1652 = vmatprep.subr.mxu0 0.0
      %1653 = vmatpush2.msra.mxu0 0.0
      %1654 = vmatprep.mubr.f32.mxu0 0.0
      %1655 = vmatmul.mubr.f32.gmra.mxu0 %v1490
      %v1656 = vpop.f32.mrf.mxu0
      %v1657 = vadd.f32 %v1467, %v1656
      %v1658 = vpop.f32.mrf.mxu0
      %v1659 = vadd.f32 %v1469, %v1658
      %1660 = vmatprep.mubr.f32.mxu0 0.0
      %1661 = vmatmul.mubr.f32.gmra.mxu0 %v1493
      %v1662 = vpop.f32.mrf.mxu0
      %v1663 = vadd.f32 %v1473, %v1662
      %v1664 = vpop.f32.mrf.mxu0
      %v1665 = vadd.f32 %v1475, %v1664
      %1666 = vmatprep.mubr.f32.mxu0 0.0
      %1667 = vmatmul.mubr.f32.gmra.mxu0 %v1496
      %v1668 = vpop.f32.mrf.mxu0
      %v1669 = vadd.f32 %v1479, %v1668
      %v1670 = vpop.f32.mrf.mxu0
      %v1671 = vadd.f32 %v1481, %v1670
      %1672 = vmatprep.mubr.f32.mxu0 0.0
      %1673 = vmatmul.mubr.f32.gmra.mxu0 %v1499
      %v1674 = vpop.f32.mrf.mxu0
      %v1675 = vadd.f32 %v1485, %v1674
      %v1676 = vpop.f32.mrf.mxu0
      %v1677 = vadd.f32 %v1487, %v1676
      %1678 = vdwg.mxu0
      %s1679 = scalar_lea.vmem %s3, 128
      %v1680 = vld [vmem:[%s1679] sm:$0xff]
      %v1681 = vld [vmem:[%s1679 + $0x8] sm:$0xff]
      %v1682 = vld [vmem:[%s1679 + $0x10] sm:$0xff]
      %v1683 = vld [vmem:[%s1679 + $0x18] sm:$0xff]
      %v1684 = vld [vmem:[%s1679 + $0x20] sm:$0xff]
      %v1685 = vld [vmem:[%s1679 + $0x28] sm:$0xff]
      %v1686 = vld [vmem:[%s1679 + $0x30] sm:$0xff]
      %v1687 = vld [vmem:[%s1679 + $0x38] sm:$0xff]
      %v1688 = vld [vmem:[%s1679 + $0x40] sm:$0xff]
      %v1689 = vld [vmem:[%s1679 + $0x48] sm:$0xff]
      %v1690 = vld [vmem:[%s1679 + $0x50] sm:$0xff]
      %v1691 = vld [vmem:[%s1679 + $0x58] sm:$0xff]
      %v1692 = vld [vmem:[%s1679 + $0x60] sm:$0xff]
      %v1693 = vld [vmem:[%s1679 + $0x68] sm:$0xff]
      %v1694 = vld [vmem:[%s1679 + $0x70] sm:$0xff]
      %v1695 = vld [vmem:[%s1679 + $0x78] sm:$0xff]
      %v1697 = vsel %vm1298, %v577, 0
      %v1700 = vsel %vm1298, %v582, 0
      %v1703 = vsel %vm1298, %v652, 0
      %v1706 = vsel %vm1298, %v657, 0
      %1708 = vmatprep.subr.mxu0 0.0
      %1709 = vmatpush1.msra.mxu0 0.0
      %1710 = vmatprep.subr.mxu0 0.0
      %1711 = vmatpush1.msra.mxu0 0.0
      %1712 = vmatprep.subr.mxu0 0.0
      %1713 = vmatpush1.msra.mxu0 0.0
      %1714 = vmatprep.subr.mxu0 0.0
      %1715 = vmatpush1.msra.mxu0 0.0
      %1716 = vmatprep.subr.mxu0 0.0
      %1717 = vmatpush1.msra.mxu0 0.0
      %1718 = vmatprep.subr.mxu0 0.0
      %1719 = vmatpush1.msra.mxu0 0.0
      %1720 = vmatprep.subr.mxu0 0.0
      %1721 = vmatpush1.msra.mxu0 0.0
      %1722 = vmatprep.subr.mxu0 0.0
      %1723 = vmatpush1.msra.mxu0 0.0
      %1724 = vmatprep.subr.mxu0 0.0
      %1725 = vmatpush1.msra.mxu0 0.0
      %1726 = vmatprep.subr.mxu0 0.0
      %1727 = vmatpush1.msra.mxu0 0.0
      %1728 = vmatprep.subr.mxu0 0.0
      %1729 = vmatpush1.msra.mxu0 0.0
      %1730 = vmatprep.subr.mxu0 0.0
      %1731 = vmatpush1.msra.mxu0 0.0
      %1732 = vmatprep.subr.mxu0 %v1693
      %1733 = vmatpush1.msra.mxu0 %v1692
      %1734 = vmatprep.subr.mxu0 %v1689
      %1735 = vmatpush1.msra.mxu0 %v1688
      %1736 = vmatprep.subr.mxu0 %v1685
      %1737 = vmatpush1.msra.mxu0 %v1684
      %1738 = vmatprep.subr.mxu0 %v1681
      %1739 = vmatpush1.msra.mxu0 %v1680
      %1740 = vmatprep.subr.mxu0 0.0
      %1741 = vmatpush2.msra.mxu0 0.0
      %1742 = vmatprep.subr.mxu0 0.0
      %1743 = vmatpush2.msra.mxu0 0.0
      %1744 = vmatprep.subr.mxu0 0.0
      %1745 = vmatpush2.msra.mxu0 0.0
      %1746 = vmatprep.subr.mxu0 0.0
      %1747 = vmatpush2.msra.mxu0 0.0
      %1748 = vmatprep.subr.mxu0 0.0
      %1749 = vmatpush2.msra.mxu0 0.0
      %1750 = vmatprep.subr.mxu0 0.0
      %1751 = vmatpush2.msra.mxu0 0.0
      %1752 = vmatprep.subr.mxu0 0.0
      %1753 = vmatpush2.msra.mxu0 0.0
      %1754 = vmatprep.subr.mxu0 0.0
      %1755 = vmatpush2.msra.mxu0 0.0
      %1756 = vmatprep.subr.mxu0 0.0
      %1757 = vmatpush2.msra.mxu0 0.0
      %1758 = vmatprep.subr.mxu0 0.0
      %1759 = vmatpush2.msra.mxu0 0.0
      %1760 = vmatprep.subr.mxu0 0.0
      %1761 = vmatpush2.msra.mxu0 0.0
      %1762 = vmatprep.subr.mxu0 0.0
      %1763 = vmatpush2.msra.mxu0 0.0
      %1764 = vmatprep.subr.mxu0 0.0
      %1765 = vmatpush2.msra.mxu0 0.0
      %1766 = vmatprep.subr.mxu0 0.0
      %1767 = vmatpush2.msra.mxu0 0.0
      %1768 = vmatprep.subr.mxu0 0.0
      %1769 = vmatpush2.msra.mxu0 0.0
      %1770 = vmatprep.subr.mxu0 0.0
      %1771 = vmatpush2.msra.mxu0 0.0
      %1772 = vmatprep.mubr.f32.mxu0 0.0
      %1773 = vmatmul.mubr.f32.gmra.mxu0 %v1697
      %v1774 = vpop.f32.mrf.mxu0
      %v1775 = vadd.f32 0.0, %v1774
      %v1776 = vpop.f32.mrf.mxu0
      %v1777 = vadd.f32 0.0, %v1776
      %1778 = vmatprep.mubr.f32.mxu0 0.0
      %1779 = vmatmul.mubr.f32.gmra.mxu0 %v1700
      %v1780 = vpop.f32.mrf.mxu0
      %v1781 = vadd.f32 0.0, %v1780
      %v1782 = vpop.f32.mrf.mxu0
      %v1783 = vadd.f32 0.0, %v1782
      %1784 = vmatprep.mubr.f32.mxu0 0.0
      %1785 = vmatmul.mubr.f32.gmra.mxu0 %v1703
      %v1786 = vpop.f32.mrf.mxu0
      %v1787 = vadd.f32 0.0, %v1786
      %v1788 = vpop.f32.mrf.mxu0
      %v1789 = vadd.f32 0.0, %v1788
      %1790 = vmatprep.mubr.f32.mxu0 0.0
      %1791 = vmatmul.mubr.f32.gmra.mxu0 %v1706
      %v1792 = vpop.f32.mrf.mxu0
      %v1793 = vadd.f32 0.0, %v1792
      %v1794 = vpop.f32.mrf.mxu0
      %v1795 = vadd.f32 0.0, %v1794
      %1796 = vdwg.mxu0
      %1797 = vmatprep.subr.mxu0 0.0
      %1798 = vmatpush1.msra.mxu0 0.0
      %1799 = vmatprep.subr.mxu0 0.0
      %1800 = vmatpush1.msra.mxu0 0.0
      %1801 = vmatprep.subr.mxu0 0.0
      %1802 = vmatpush1.msra.mxu0 0.0
      %1803 = vmatprep.subr.mxu0 0.0
      %1804 = vmatpush1.msra.mxu0 0.0
      %1805 = vmatprep.subr.mxu0 0.0
      %1806 = vmatpush1.msra.mxu0 0.0
      %1807 = vmatprep.subr.mxu0 0.0
      %1808 = vmatpush1.msra.mxu0 0.0
      %1809 = vmatprep.subr.mxu0 0.0
      %1810 = vmatpush1.msra.mxu0 0.0
      %1811 = vmatprep.subr.mxu0 0.0
      %1812 = vmatpush1.msra.mxu0 0.0
      %1813 = vmatprep.subr.mxu0 0.0
      %1814 = vmatpush1.msra.mxu0 0.0
      %1815 = vmatprep.subr.mxu0 0.0
      %1816 = vmatpush1.msra.mxu0 0.0
      %1817 = vmatprep.subr.mxu0 0.0
      %1818 = vmatpush1.msra.mxu0 0.0
      %1819 = vmatprep.subr.mxu0 0.0
      %1820 = vmatpush1.msra.mxu0 0.0
      %1821 = vmatprep.subr.mxu0 %v1695
      %1822 = vmatpush1.msra.mxu0 %v1694
      %1823 = vmatprep.subr.mxu0 %v1691
      %1824 = vmatpush1.msra.mxu0 %v1690
      %1825 = vmatprep.subr.mxu0 %v1687
      %1826 = vmatpush1.msra.mxu0 %v1686
      %1827 = vmatprep.subr.mxu0 %v1683
      %1828 = vmatpush1.msra.mxu0 %v1682
      %1829 = vmatprep.subr.mxu0 0.0
      %1830 = vmatpush2.msra.mxu0 0.0
      %1831 = vmatprep.subr.mxu0 0.0
      %1832 = vmatpush2.msra.mxu0 0.0
      %1833 = vmatprep.subr.mxu0 0.0
      %1834 = vmatpush2.msra.mxu0 0.0
      %1835 = vmatprep.subr.mxu0 0.0
      %1836 = vmatpush2.msra.mxu0 0.0
      %1837 = vmatprep.subr.mxu0 0.0
      %1838 = vmatpush2.msra.mxu0 0.0
      %1839 = vmatprep.subr.mxu0 0.0
      %1840 = vmatpush2.msra.mxu0 0.0
      %1841 = vmatprep.subr.mxu0 0.0
      %1842 = vmatpush2.msra.mxu0 0.0
      %1843 = vmatprep.subr.mxu0 0.0
      %1844 = vmatpush2.msra.mxu0 0.0
      %1845 = vmatprep.subr.mxu0 0.0
      %1846 = vmatpush2.msra.mxu0 0.0
      %1847 = vmatprep.subr.mxu0 0.0
      %1848 = vmatpush2.msra.mxu0 0.0
      %1849 = vmatprep.subr.mxu0 0.0
      %1850 = vmatpush2.msra.mxu0 0.0
      %1851 = vmatprep.subr.mxu0 0.0
      %1852 = vmatpush2.msra.mxu0 0.0
      %1853 = vmatprep.subr.mxu0 0.0
      %1854 = vmatpush2.msra.mxu0 0.0
      %1855 = vmatprep.subr.mxu0 0.0
      %1856 = vmatpush2.msra.mxu0 0.0
      %1857 = vmatprep.subr.mxu0 0.0
      %1858 = vmatpush2.msra.mxu0 0.0
      %1859 = vmatprep.subr.mxu0 0.0
      %1860 = vmatpush2.msra.mxu0 0.0
      %1861 = vmatprep.mubr.f32.mxu0 0.0
      %1862 = vmatmul.mubr.f32.gmra.mxu0 %v1697
      %v1863 = vpop.f32.mrf.mxu0
      %v1864 = vadd.f32 0.0, %v1863
      %v1865 = vpop.f32.mrf.mxu0
      %v1866 = vadd.f32 0.0, %v1865
      %1867 = vmatprep.mubr.f32.mxu0 0.0
      %1868 = vmatmul.mubr.f32.gmra.mxu0 %v1700
      %v1869 = vpop.f32.mrf.mxu0
      %v1870 = vadd.f32 0.0, %v1869
      %v1871 = vpop.f32.mrf.mxu0
      %v1872 = vadd.f32 0.0, %v1871
      %1873 = vmatprep.mubr.f32.mxu0 0.0
      %1874 = vmatmul.mubr.f32.gmra.mxu0 %v1703
      %v1875 = vpop.f32.mrf.mxu0
      %v1876 = vadd.f32 0.0, %v1875
      %v1877 = vpop.f32.mrf.mxu0
      %v1878 = vadd.f32 0.0, %v1877
      %1879 = vmatprep.mubr.f32.mxu0 0.0
      %1880 = vmatmul.mubr.f32.gmra.mxu0 %v1706
      %v1881 = vpop.f32.mrf.mxu0
      %v1882 = vadd.f32 0.0, %v1881
      %v1883 = vpop.f32.mrf.mxu0
      %v1884 = vadd.f32 0.0, %v1883
      %1885 = vdwg.mxu0
      %v1886 = vadd.f32 %v1568, %v1775
      %v1887 = vadd.f32 %v1570, %v1777
      %v1888 = vadd.f32 %v1657, %v1864
      %v1889 = vadd.f32 %v1659, %v1866
      %v1890 = vadd.f32 %v1574, %v1781
      %v1891 = vadd.f32 %v1576, %v1783
      %v1892 = vadd.f32 %v1663, %v1870
      %v1893 = vadd.f32 %v1665, %v1872
      %v1894 = vadd.f32 %v1580, %v1787
      %v1895 = vadd.f32 %v1582, %v1789
      %v1896 = vadd.f32 %v1669, %v1876
      %v1897 = vadd.f32 %v1671, %v1878
      %v1898 = vadd.f32 %v1586, %v1793
      %v1899 = vadd.f32 %v1588, %v1795
      %v1900 = vadd.f32 %v1675, %v1882
      %v1901 = vadd.f32 %v1677, %v1884
      %s1902 = scalar_lea.vmem %s4, 128
      %v1903 = vld [vmem:[%s1902] sm:$0xff]
      %v1904 = vld [vmem:[%s1902 + $0x8] sm:$0xff]
      %v1905 = vld [vmem:[%s1902 + $0x10] sm:$0xff]
      %v1906 = vld [vmem:[%s1902 + $0x18] sm:$0xff]
      %v1907 = vld [vmem:[%s1902 + $0x20] sm:$0xff]
      %v1908 = vld [vmem:[%s1902 + $0x28] sm:$0xff]
      %v1909 = vld [vmem:[%s1902 + $0x30] sm:$0xff]
      %v1910 = vld [vmem:[%s1902 + $0x38] sm:$0xff]
      %v1911 = vld [vmem:[%s1902 + $0x40] sm:$0xff]
      %v1912 = vld [vmem:[%s1902 + $0x48] sm:$0xff]
      %v1913 = vld [vmem:[%s1902 + $0x50] sm:$0xff]
      %v1914 = vld [vmem:[%s1902 + $0x58] sm:$0xff]
      %v1915 = vld [vmem:[%s1902 + $0x60] sm:$0xff]
      %v1916 = vld [vmem:[%s1902 + $0x68] sm:$0xff]
      %v1917 = vld [vmem:[%s1902 + $0x70] sm:$0xff]
      %v1918 = vld [vmem:[%s1902 + $0x78] sm:$0xff]
      %v1920 = vsel %vm1298, %v1033, 0
      %v1923 = vsel %vm1298, %v1038, 0
      %v1926 = vsel %vm1298, %v1108, 0
      %v1929 = vsel %vm1298, %v1113, 0
      %1931 = vmatprep.subr.mxu0 0.0
      %1932 = vmatpush1.msra.mxu0 0.0
      %1933 = vmatprep.subr.mxu0 0.0
      %1934 = vmatpush1.msra.mxu0 0.0
      %1935 = vmatprep.subr.mxu0 0.0
      %1936 = vmatpush1.msra.mxu0 0.0
      %1937 = vmatprep.subr.mxu0 0.0
      %1938 = vmatpush1.msra.mxu0 0.0
      %1939 = vmatprep.subr.mxu0 0.0
      %1940 = vmatpush1.msra.mxu0 0.0
      %1941 = vmatprep.subr.mxu0 0.0
      %1942 = vmatpush1.msra.mxu0 0.0
      %1943 = vmatprep.subr.mxu0 0.0
      %1944 = vmatpush1.msra.mxu0 0.0
      %1945 = vmatprep.subr.mxu0 0.0
      %1946 = vmatpush1.msra.mxu0 0.0
      %1947 = vmatprep.subr.mxu0 0.0
      %1948 = vmatpush1.msra.mxu0 0.0
      %1949 = vmatprep.subr.mxu0 0.0
      %1950 = vmatpush1.msra.mxu0 0.0
      %1951 = vmatprep.subr.mxu0 0.0
      %1952 = vmatpush1.msra.mxu0 0.0
      %1953 = vmatprep.subr.mxu0 0.0
      %1954 = vmatpush1.msra.mxu0 0.0
      %1955 = vmatprep.subr.mxu0 %v1916
      %1956 = vmatpush1.msra.mxu0 %v1915
      %1957 = vmatprep.subr.mxu0 %v1912
      %1958 = vmatpush1.msra.mxu0 %v1911
      %1959 = vmatprep.subr.mxu0 %v1908
      %1960 = vmatpush1.msra.mxu0 %v1907
      %1961 = vmatprep.subr.mxu0 %v1904
      %1962 = vmatpush1.msra.mxu0 %v1903
      %1963 = vmatprep.subr.mxu0 0.0
      %1964 = vmatpush2.msra.mxu0 0.0
      %1965 = vmatprep.subr.mxu0 0.0
      %1966 = vmatpush2.msra.mxu0 0.0
      %1967 = vmatprep.subr.mxu0 0.0
      %1968 = vmatpush2.msra.mxu0 0.0
      %1969 = vmatprep.subr.mxu0 0.0
      %1970 = vmatpush2.msra.mxu0 0.0
      %1971 = vmatprep.subr.mxu0 0.0
      %1972 = vmatpush2.msra.mxu0 0.0
      %1973 = vmatprep.subr.mxu0 0.0
      %1974 = vmatpush2.msra.mxu0 0.0
      %1975 = vmatprep.subr.mxu0 0.0
      %1976 = vmatpush2.msra.mxu0 0.0
      %1977 = vmatprep.subr.mxu0 0.0
      %1978 = vmatpush2.msra.mxu0 0.0
      %1979 = vmatprep.subr.mxu0 0.0
      %1980 = vmatpush2.msra.mxu0 0.0
      %1981 = vmatprep.subr.mxu0 0.0
      %1982 = vmatpush2.msra.mxu0 0.0
      %1983 = vmatprep.subr.mxu0 0.0
      %1984 = vmatpush2.msra.mxu0 0.0
      %1985 = vmatprep.subr.mxu0 0.0
      %1986 = vmatpush2.msra.mxu0 0.0
      %1987 = vmatprep.subr.mxu0 0.0
      %1988 = vmatpush2.msra.mxu0 0.0
      %1989 = vmatprep.subr.mxu0 0.0
      %1990 = vmatpush2.msra.mxu0 0.0
      %1991 = vmatprep.subr.mxu0 0.0
      %1992 = vmatpush2.msra.mxu0 0.0
      %1993 = vmatprep.subr.mxu0 0.0
      %1994 = vmatpush2.msra.mxu0 0.0
      %1995 = vmatprep.mubr.f32.mxu0 0.0
      %1996 = vmatmul.mubr.f32.gmra.mxu0 %v1920
      %v1997 = vpop.f32.mrf.mxu0
      %v1998 = vadd.f32 0.0, %v1997
      %v1999 = vpop.f32.mrf.mxu0
      %v2000 = vadd.f32 0.0, %v1999
      %2001 = vmatprep.mubr.f32.mxu0 0.0
      %2002 = vmatmul.mubr.f32.gmra.mxu0 %v1923
      %v2003 = vpop.f32.mrf.mxu0
      %v2004 = vadd.f32 0.0, %v2003
      %v2005 = vpop.f32.mrf.mxu0
      %v2006 = vadd.f32 0.0, %v2005
      %2007 = vmatprep.mubr.f32.mxu0 0.0
      %2008 = vmatmul.mubr.f32.gmra.mxu0 %v1926
      %v2009 = vpop.f32.mrf.mxu0
      %v2010 = vadd.f32 0.0, %v2009
      %v2011 = vpop.f32.mrf.mxu0
      %v2012 = vadd.f32 0.0, %v2011
      %2013 = vmatprep.mubr.f32.mxu0 0.0
      %2014 = vmatmul.mubr.f32.gmra.mxu0 %v1929
      %v2015 = vpop.f32.mrf.mxu0
      %v2016 = vadd.f32 0.0, %v2015
      %v2017 = vpop.f32.mrf.mxu0
      %v2018 = vadd.f32 0.0, %v2017
      %2019 = vdwg.mxu0
      %2020 = vmatprep.subr.mxu0 0.0
      %2021 = vmatpush1.msra.mxu0 0.0
      %2022 = vmatprep.subr.mxu0 0.0
      %2023 = vmatpush1.msra.mxu0 0.0
      %2024 = vmatprep.subr.mxu0 0.0
      %2025 = vmatpush1.msra.mxu0 0.0
      %2026 = vmatprep.subr.mxu0 0.0
      %2027 = vmatpush1.msra.mxu0 0.0
      %2028 = vmatprep.subr.mxu0 0.0
      %2029 = vmatpush1.msra.mxu0 0.0
      %2030 = vmatprep.subr.mxu0 0.0
      %2031 = vmatpush1.msra.mxu0 0.0
      %2032 = vmatprep.subr.mxu0 0.0
      %2033 = vmatpush1.msra.mxu0 0.0
      %2034 = vmatprep.subr.mxu0 0.0
      %2035 = vmatpush1.msra.mxu0 0.0
      %2036 = vmatprep.subr.mxu0 0.0
      %2037 = vmatpush1.msra.mxu0 0.0
      %2038 = vmatprep.subr.mxu0 0.0
      %2039 = vmatpush1.msra.mxu0 0.0
      %2040 = vmatprep.subr.mxu0 0.0
      %2041 = vmatpush1.msra.mxu0 0.0
      %2042 = vmatprep.subr.mxu0 0.0
      %2043 = vmatpush1.msra.mxu0 0.0
      %2044 = vmatprep.subr.mxu0 %v1918
      %2045 = vmatpush1.msra.mxu0 %v1917
      %2046 = vmatprep.subr.mxu0 %v1914
      %2047 = vmatpush1.msra.mxu0 %v1913
      %2048 = vmatprep.subr.mxu0 %v1910
      %2049 = vmatpush1.msra.mxu0 %v1909
      %2050 = vmatprep.subr.mxu0 %v1906
      %2051 = vmatpush1.msra.mxu0 %v1905
      %2052 = vmatprep.subr.mxu0 0.0
      %2053 = vmatpush2.msra.mxu0 0.0
      %2054 = vmatprep.subr.mxu0 0.0
      %2055 = vmatpush2.msra.mxu0 0.0
      %2056 = vmatprep.subr.mxu0 0.0
      %2057 = vmatpush2.msra.mxu0 0.0
      %2058 = vmatprep.subr.mxu0 0.0
      %2059 = vmatpush2.msra.mxu0 0.0
      %2060 = vmatprep.subr.mxu0 0.0
      %2061 = vmatpush2.msra.mxu0 0.0
      %2062 = vmatprep.subr.mxu0 0.0
      %2063 = vmatpush2.msra.mxu0 0.0
      %2064 = vmatprep.subr.mxu0 0.0
      %2065 = vmatpush2.msra.mxu0 0.0
      %2066 = vmatprep.subr.mxu0 0.0
      %2067 = vmatpush2.msra.mxu0 0.0
      %2068 = vmatprep.subr.mxu0 0.0
      %2069 = vmatpush2.msra.mxu0 0.0
      %2070 = vmatprep.subr.mxu0 0.0
      %2071 = vmatpush2.msra.mxu0 0.0
      %2072 = vmatprep.subr.mxu0 0.0
      %2073 = vmatpush2.msra.mxu0 0.0
      %2074 = vmatprep.subr.mxu0 0.0
      %2075 = vmatpush2.msra.mxu0 0.0
      %2076 = vmatprep.subr.mxu0 0.0
      %2077 = vmatpush2.msra.mxu0 0.0
      %2078 = vmatprep.subr.mxu0 0.0
      %2079 = vmatpush2.msra.mxu0 0.0
      %2080 = vmatprep.subr.mxu0 0.0
      %2081 = vmatpush2.msra.mxu0 0.0
      %2082 = vmatprep.subr.mxu0 0.0
      %2083 = vmatpush2.msra.mxu0 0.0
      %2084 = vmatprep.mubr.f32.mxu0 0.0
      %2085 = vmatmul.mubr.f32.gmra.mxu0 %v1920
      %v2086 = vpop.f32.mrf.mxu0
      %v2087 = vadd.f32 0.0, %v2086
      %v2088 = vpop.f32.mrf.mxu0
      %v2089 = vadd.f32 0.0, %v2088
      %2090 = vmatprep.mubr.f32.mxu0 0.0
      %2091 = vmatmul.mubr.f32.gmra.mxu0 %v1923
      %v2092 = vpop.f32.mrf.mxu0
      %v2093 = vadd.f32 0.0, %v2092
      %v2094 = vpop.f32.mrf.mxu0
      %v2095 = vadd.f32 0.0, %v2094
      %2096 = vmatprep.mubr.f32.mxu0 0.0
      %2097 = vmatmul.mubr.f32.gmra.mxu0 %v1926
      %v2098 = vpop.f32.mrf.mxu0
      %v2099 = vadd.f32 0.0, %v2098
      %v2100 = vpop.f32.mrf.mxu0
      %v2101 = vadd.f32 0.0, %v2100
      %2102 = vmatprep.mubr.f32.mxu0 0.0
      %2103 = vmatmul.mubr.f32.gmra.mxu0 %v1929
      %v2104 = vpop.f32.mrf.mxu0
      %v2105 = vadd.f32 0.0, %v2104
      %v2106 = vpop.f32.mrf.mxu0
      %v2107 = vadd.f32 0.0, %v2106
      %2108 = vdwg.mxu0
      %v2109 = vadd.f32 %v1886, %v1998
      %v2110 = vadd.f32 %v1887, %v2000
      %v2111 = vadd.f32 %v1888, %v2087
      %v2112 = vadd.f32 %v1889, %v2089
      %v2113 = vadd.f32 %v1890, %v2004
      %v2114 = vadd.f32 %v1891, %v2006
      %v2115 = vadd.f32 %v1892, %v2093
      %v2116 = vadd.f32 %v1893, %v2095
      %v2117 = vadd.f32 %v1894, %v2010
      %v2118 = vadd.f32 %v1895, %v2012
      %v2119 = vadd.f32 %v1896, %v2099
      %v2120 = vadd.f32 %v1897, %v2101
      %v2121 = vadd.f32 %v1898, %v2016
      %v2122 = vadd.f32 %v1899, %v2018
      %v2123 = vadd.f32 %v1900, %v2105
      %v2124 = vadd.f32 %v1901, %v2107
      %s2125 = scalar_lea.vmem %s3, 256
      %v2126 = vld [vmem:[%s2125] sm:$0xff]
      %v2127 = vld [vmem:[%s2125 + $0x8] sm:$0xff]
      %v2128 = vld [vmem:[%s2125 + $0x10] sm:$0xff]
      %v2129 = vld [vmem:[%s2125 + $0x18] sm:$0xff]
      %v2130 = vld [vmem:[%s2125 + $0x20] sm:$0xff]
      %v2131 = vld [vmem:[%s2125 + $0x28] sm:$0xff]
      %v2132 = vld [vmem:[%s2125 + $0x30] sm:$0xff]
      %v2133 = vld [vmem:[%s2125 + $0x38] sm:$0xff]
      %v2134 = vld [vmem:[%s2125 + $0x40] sm:$0xff]
      %v2135 = vld [vmem:[%s2125 + $0x48] sm:$0xff]
      %v2136 = vld [vmem:[%s2125 + $0x50] sm:$0xff]
      %v2137 = vld [vmem:[%s2125 + $0x58] sm:$0xff]
      %v2138 = vld [vmem:[%s2125 + $0x60] sm:$0xff]
      %v2139 = vld [vmem:[%s2125 + $0x68] sm:$0xff]
      %v2140 = vld [vmem:[%s2125 + $0x70] sm:$0xff]
      %v2141 = vld [vmem:[%s2125 + $0x78] sm:$0xff]
      %v2143 = vsel %vm1298, %v733, 0
      %v2146 = vsel %vm1298, %v738, 0
      %v2149 = vsel %vm1298, %v808, 0
      %v2152 = vsel %vm1298, %v813, 0
      %2154 = vmatprep.subr.mxu0 0.0
      %2155 = vmatpush1.msra.mxu0 0.0
      %2156 = vmatprep.subr.mxu0 0.0
      %2157 = vmatpush1.msra.mxu0 0.0
      %2158 = vmatprep.subr.mxu0 0.0
      %2159 = vmatpush1.msra.mxu0 0.0
      %2160 = vmatprep.subr.mxu0 0.0
      %2161 = vmatpush1.msra.mxu0 0.0
      %2162 = vmatprep.subr.mxu0 0.0
      %2163 = vmatpush1.msra.mxu0 0.0
      %2164 = vmatprep.subr.mxu0 0.0
      %2165 = vmatpush1.msra.mxu0 0.0
      %2166 = vmatprep.subr.mxu0 0.0
      %2167 = vmatpush1.msra.mxu0 0.0
      %2168 = vmatprep.subr.mxu0 0.0
      %2169 = vmatpush1.msra.mxu0 0.0
      %2170 = vmatprep.subr.mxu0 0.0
      %2171 = vmatpush1.msra.mxu0 0.0
      %2172 = vmatprep.subr.mxu0 0.0
      %2173 = vmatpush1.msra.mxu0 0.0
      %2174 = vmatprep.subr.mxu0 0.0
      %2175 = vmatpush1.msra.mxu0 0.0
      %2176 = vmatprep.subr.mxu0 0.0
      %2177 = vmatpush1.msra.mxu0 0.0
      %2178 = vmatprep.subr.mxu0 %v2139
      %2179 = vmatpush1.msra.mxu0 %v2138
      %2180 = vmatprep.subr.mxu0 %v2135
      %2181 = vmatpush1.msra.mxu0 %v2134
      %2182 = vmatprep.subr.mxu0 %v2131
      %2183 = vmatpush1.msra.mxu0 %v2130
      %2184 = vmatprep.subr.mxu0 %v2127
      %2185 = vmatpush1.msra.mxu0 %v2126
      %2186 = vmatprep.subr.mxu0 0.0
      %2187 = vmatpush2.msra.mxu0 0.0
      %2188 = vmatprep.subr.mxu0 0.0
      %2189 = vmatpush2.msra.mxu0 0.0
      %2190 = vmatprep.subr.mxu0 0.0
      %2191 = vmatpush2.msra.mxu0 0.0
      %2192 = vmatprep.subr.mxu0 0.0
      %2193 = vmatpush2.msra.mxu0 0.0
      %2194 = vmatprep.subr.mxu0 0.0
      %2195 = vmatpush2.msra.mxu0 0.0
      %2196 = vmatprep.subr.mxu0 0.0
      %2197 = vmatpush2.msra.mxu0 0.0
      %2198 = vmatprep.subr.mxu0 0.0
      %2199 = vmatpush2.msra.mxu0 0.0
      %2200 = vmatprep.subr.mxu0 0.0
      %2201 = vmatpush2.msra.mxu0 0.0
      %2202 = vmatprep.subr.mxu0 0.0
      %2203 = vmatpush2.msra.mxu0 0.0
      %2204 = vmatprep.subr.mxu0 0.0
      %2205 = vmatpush2.msra.mxu0 0.0
      %2206 = vmatprep.subr.mxu0 0.0
      %2207 = vmatpush2.msra.mxu0 0.0
      %2208 = vmatprep.subr.mxu0 0.0
      %2209 = vmatpush2.msra.mxu0 0.0
      %2210 = vmatprep.subr.mxu0 0.0
      %2211 = vmatpush2.msra.mxu0 0.0
      %2212 = vmatprep.subr.mxu0 0.0
      %2213 = vmatpush2.msra.mxu0 0.0
      %2214 = vmatprep.subr.mxu0 0.0
      %2215 = vmatpush2.msra.mxu0 0.0
      %2216 = vmatprep.subr.mxu0 0.0
      %2217 = vmatpush2.msra.mxu0 0.0
      %2218 = vmatprep.mubr.f32.mxu0 0.0
      %2219 = vmatmul.mubr.f32.gmra.mxu0 %v2143
      %v2220 = vpop.f32.mrf.mxu0
      %v2221 = vadd.f32 0.0, %v2220
      %v2222 = vpop.f32.mrf.mxu0
      %v2223 = vadd.f32 0.0, %v2222
      %2224 = vmatprep.mubr.f32.mxu0 0.0
      %2225 = vmatmul.mubr.f32.gmra.mxu0 %v2146
      %v2226 = vpop.f32.mrf.mxu0
      %v2227 = vadd.f32 0.0, %v2226
      %v2228 = vpop.f32.mrf.mxu0
      %v2229 = vadd.f32 0.0, %v2228
      %2230 = vmatprep.mubr.f32.mxu0 0.0
      %2231 = vmatmul.mubr.f32.gmra.mxu0 %v2149
      %v2232 = vpop.f32.mrf.mxu0
      %v2233 = vadd.f32 0.0, %v2232
      %v2234 = vpop.f32.mrf.mxu0
      %v2235 = vadd.f32 0.0, %v2234
      %2236 = vmatprep.mubr.f32.mxu0 0.0
      %2237 = vmatmul.mubr.f32.gmra.mxu0 %v2152
      %v2238 = vpop.f32.mrf.mxu0
      %v2239 = vadd.f32 0.0, %v2238
      %v2240 = vpop.f32.mrf.mxu0
      %v2241 = vadd.f32 0.0, %v2240
      %2242 = vdwg.mxu0
      %2243 = vmatprep.subr.mxu0 0.0
      %2244 = vmatpush1.msra.mxu0 0.0
      %2245 = vmatprep.subr.mxu0 0.0
      %2246 = vmatpush1.msra.mxu0 0.0
      %2247 = vmatprep.subr.mxu0 0.0
      %2248 = vmatpush1.msra.mxu0 0.0
      %2249 = vmatprep.subr.mxu0 0.0
      %2250 = vmatpush1.msra.mxu0 0.0
      %2251 = vmatprep.subr.mxu0 0.0
      %2252 = vmatpush1.msra.mxu0 0.0
      %2253 = vmatprep.subr.mxu0 0.0
      %2254 = vmatpush1.msra.mxu0 0.0
      %2255 = vmatprep.subr.mxu0 0.0
      %2256 = vmatpush1.msra.mxu0 0.0
      %2257 = vmatprep.subr.mxu0 0.0
      %2258 = vmatpush1.msra.mxu0 0.0
      %2259 = vmatprep.subr.mxu0 0.0
      %2260 = vmatpush1.msra.mxu0 0.0
      %2261 = vmatprep.subr.mxu0 0.0
      %2262 = vmatpush1.msra.mxu0 0.0
      %2263 = vmatprep.subr.mxu0 0.0
      %2264 = vmatpush1.msra.mxu0 0.0
      %2265 = vmatprep.subr.mxu0 0.0
      %2266 = vmatpush1.msra.mxu0 0.0
      %2267 = vmatprep.subr.mxu0 %v2141
      %2268 = vmatpush1.msra.mxu0 %v2140
      %2269 = vmatprep.subr.mxu0 %v2137
      %2270 = vmatpush1.msra.mxu0 %v2136
      %2271 = vmatprep.subr.mxu0 %v2133
      %2272 = vmatpush1.msra.mxu0 %v2132
      %2273 = vmatprep.subr.mxu0 %v2129
      %2274 = vmatpush1.msra.mxu0 %v2128
      %2275 = vmatprep.subr.mxu0 0.0
      %2276 = vmatpush2.msra.mxu0 0.0
      %2277 = vmatprep.subr.mxu0 0.0
      %2278 = vmatpush2.msra.mxu0 0.0
      %2279 = vmatprep.subr.mxu0 0.0
      %2280 = vmatpush2.msra.mxu0 0.0
      %2281 = vmatprep.subr.mxu0 0.0
      %2282 = vmatpush2.msra.mxu0 0.0
      %2283 = vmatprep.subr.mxu0 0.0
      %2284 = vmatpush2.msra.mxu0 0.0
      %2285 = vmatprep.subr.mxu0 0.0
      %2286 = vmatpush2.msra.mxu0 0.0
      %2287 = vmatprep.subr.mxu0 0.0
      %2288 = vmatpush2.msra.mxu0 0.0
      %2289 = vmatprep.subr.mxu0 0.0
      %2290 = vmatpush2.msra.mxu0 0.0
      %2291 = vmatprep.subr.mxu0 0.0
      %2292 = vmatpush2.msra.mxu0 0.0
      %2293 = vmatprep.subr.mxu0 0.0
      %2294 = vmatpush2.msra.mxu0 0.0
      %2295 = vmatprep.subr.mxu0 0.0
      %2296 = vmatpush2.msra.mxu0 0.0
      %2297 = vmatprep.subr.mxu0 0.0
      %2298 = vmatpush2.msra.mxu0 0.0
      %2299 = vmatprep.subr.mxu0 0.0
      %2300 = vmatpush2.msra.mxu0 0.0
      %2301 = vmatprep.subr.mxu0 0.0
      %2302 = vmatpush2.msra.mxu0 0.0
      %2303 = vmatprep.subr.mxu0 0.0
      %2304 = vmatpush2.msra.mxu0 0.0
      %2305 = vmatprep.subr.mxu0 0.0
      %2306 = vmatpush2.msra.mxu0 0.0
      %2307 = vmatprep.mubr.f32.mxu0 0.0
      %2308 = vmatmul.mubr.f32.gmra.mxu0 %v2143
      %v2309 = vpop.f32.mrf.mxu0
      %v2310 = vadd.f32 0.0, %v2309
      %v2311 = vpop.f32.mrf.mxu0
      %v2312 = vadd.f32 0.0, %v2311
      %2313 = vmatprep.mubr.f32.mxu0 0.0
      %2314 = vmatmul.mubr.f32.gmra.mxu0 %v2146
      %v2315 = vpop.f32.mrf.mxu0
      %v2316 = vadd.f32 0.0, %v2315
      %v2317 = vpop.f32.mrf.mxu0
      %v2318 = vadd.f32 0.0, %v2317
      %2319 = vmatprep.mubr.f32.mxu0 0.0
      %2320 = vmatmul.mubr.f32.gmra.mxu0 %v2149
      %v2321 = vpop.f32.mrf.mxu0
      %v2322 = vadd.f32 0.0, %v2321
      %v2323 = vpop.f32.mrf.mxu0
      %v2324 = vadd.f32 0.0, %v2323
      %2325 = vmatprep.mubr.f32.mxu0 0.0
      %2326 = vmatmul.mubr.f32.gmra.mxu0 %v2152
      %v2327 = vpop.f32.mrf.mxu0
      %v2328 = vadd.f32 0.0, %v2327
      %v2329 = vpop.f32.mrf.mxu0
      %v2330 = vadd.f32 0.0, %v2329
      %2331 = vdwg.mxu0
      %v2332 = vadd.f32 %v2109, %v2221
      %v2333 = vadd.f32 %v2110, %v2223
      %v2334 = vadd.f32 %v2111, %v2310
      %v2335 = vadd.f32 %v2112, %v2312
      %v2336 = vadd.f32 %v2113, %v2227
      %v2337 = vadd.f32 %v2114, %v2229
      %v2338 = vadd.f32 %v2115, %v2316
      %v2339 = vadd.f32 %v2116, %v2318
      %v2340 = vadd.f32 %v2117, %v2233
      %v2341 = vadd.f32 %v2118, %v2235
      %v2342 = vadd.f32 %v2119, %v2322
      %v2343 = vadd.f32 %v2120, %v2324
      %v2344 = vadd.f32 %v2121, %v2239
      %v2345 = vadd.f32 %v2122, %v2241
      %v2346 = vadd.f32 %v2123, %v2328
      %v2347 = vadd.f32 %v2124, %v2330
      %s2348 = scalar_lea.vmem %s4, 256
      %v2349 = vld [vmem:[%s2348] sm:$0xff]
      %v2350 = vld [vmem:[%s2348 + $0x8] sm:$0xff]
      %v2351 = vld [vmem:[%s2348 + $0x10] sm:$0xff]
      %v2352 = vld [vmem:[%s2348 + $0x18] sm:$0xff]
      %v2353 = vld [vmem:[%s2348 + $0x20] sm:$0xff]
      %v2354 = vld [vmem:[%s2348 + $0x28] sm:$0xff]
      %v2355 = vld [vmem:[%s2348 + $0x30] sm:$0xff]
      %v2356 = vld [vmem:[%s2348 + $0x38] sm:$0xff]
      %v2357 = vld [vmem:[%s2348 + $0x40] sm:$0xff]
      %v2358 = vld [vmem:[%s2348 + $0x48] sm:$0xff]
      %v2359 = vld [vmem:[%s2348 + $0x50] sm:$0xff]
      %v2360 = vld [vmem:[%s2348 + $0x58] sm:$0xff]
      %v2361 = vld [vmem:[%s2348 + $0x60] sm:$0xff]
      %v2362 = vld [vmem:[%s2348 + $0x68] sm:$0xff]
      %v2363 = vld [vmem:[%s2348 + $0x70] sm:$0xff]
      %v2364 = vld [vmem:[%s2348 + $0x78] sm:$0xff]
      %v2366 = vsel %vm1298, %v1183, 0
      %v2369 = vsel %vm1298, %v1188, 0
      %v2372 = vsel %vm1298, %v1258, 0
      %v2375 = vsel %vm1298, %v1263, 0
      %2377 = vmatprep.subr.mxu0 0.0
      %2378 = vmatpush1.msra.mxu0 0.0
      %2379 = vmatprep.subr.mxu0 0.0
      %2380 = vmatpush1.msra.mxu0 0.0
      %2381 = vmatprep.subr.mxu0 0.0
      %2382 = vmatpush1.msra.mxu0 0.0
      %2383 = vmatprep.subr.mxu0 0.0
      %2384 = vmatpush1.msra.mxu0 0.0
      %2385 = vmatprep.subr.mxu0 0.0
      %2386 = vmatpush1.msra.mxu0 0.0
      %2387 = vmatprep.subr.mxu0 0.0
      %2388 = vmatpush1.msra.mxu0 0.0
      %2389 = vmatprep.subr.mxu0 0.0
      %2390 = vmatpush1.msra.mxu0 0.0
      %2391 = vmatprep.subr.mxu0 0.0
      %2392 = vmatpush1.msra.mxu0 0.0
      %2393 = vmatprep.subr.mxu0 0.0
      %2394 = vmatpush1.msra.mxu0 0.0
      %2395 = vmatprep.subr.mxu0 0.0
      %2396 = vmatpush1.msra.mxu0 0.0
      %2397 = vmatprep.subr.mxu0 0.0
      %2398 = vmatpush1.msra.mxu0 0.0
      %2399 = vmatprep.subr.mxu0 0.0
      %2400 = vmatpush1.msra.mxu0 0.0
      %2401 = vmatprep.subr.mxu0 %v2362
      %2402 = vmatpush1.msra.mxu0 %v2361
      %2403 = vmatprep.subr.mxu0 %v2358
      %2404 = vmatpush1.msra.mxu0 %v2357
      %2405 = vmatprep.subr.mxu0 %v2354
      %2406 = vmatpush1.msra.mxu0 %v2353
      %2407 = vmatprep.subr.mxu0 %v2350
      %2408 = vmatpush1.msra.mxu0 %v2349
      %2409 = vmatprep.subr.mxu0 0.0
      %2410 = vmatpush2.msra.mxu0 0.0
      %2411 = vmatprep.subr.mxu0 0.0
      %2412 = vmatpush2.msra.mxu0 0.0
      %2413 = vmatprep.subr.mxu0 0.0
      %2414 = vmatpush2.msra.mxu0 0.0
      %2415 = vmatprep.subr.mxu0 0.0
      %2416 = vmatpush2.msra.mxu0 0.0
      %2417 = vmatprep.subr.mxu0 0.0
      %2418 = vmatpush2.msra.mxu0 0.0
      %2419 = vmatprep.subr.mxu0 0.0
      %2420 = vmatpush2.msra.mxu0 0.0
      %2421 = vmatprep.subr.mxu0 0.0
      %2422 = vmatpush2.msra.mxu0 0.0
      %2423 = vmatprep.subr.mxu0 0.0
      %2424 = vmatpush2.msra.mxu0 0.0
      %2425 = vmatprep.subr.mxu0 0.0
      %2426 = vmatpush2.msra.mxu0 0.0
      %2427 = vmatprep.subr.mxu0 0.0
      %2428 = vmatpush2.msra.mxu0 0.0
      %2429 = vmatprep.subr.mxu0 0.0
      %2430 = vmatpush2.msra.mxu0 0.0
      %2431 = vmatprep.subr.mxu0 0.0
      %2432 = vmatpush2.msra.mxu0 0.0
      %2433 = vmatprep.subr.mxu0 0.0
      %2434 = vmatpush2.msra.mxu0 0.0
      %2435 = vmatprep.subr.mxu0 0.0
      %2436 = vmatpush2.msra.mxu0 0.0
      %2437 = vmatprep.subr.mxu0 0.0
      %2438 = vmatpush2.msra.mxu0 0.0
      %2439 = vmatprep.subr.mxu0 0.0
      %2440 = vmatpush2.msra.mxu0 0.0
      %2441 = vmatprep.mubr.f32.mxu0 0.0
      %2442 = vmatmul.mubr.f32.gmra.mxu0 %v2366
      %v2443 = vpop.f32.mrf.mxu0
      %v2444 = vadd.f32 0.0, %v2443
      %v2445 = vpop.f32.mrf.mxu0
      %v2446 = vadd.f32 0.0, %v2445
      %2447 = vmatprep.mubr.f32.mxu0 0.0
      %2448 = vmatmul.mubr.f32.gmra.mxu0 %v2369
      %v2449 = vpop.f32.mrf.mxu0
      %v2450 = vadd.f32 0.0, %v2449
      %v2451 = vpop.f32.mrf.mxu0
      %v2452 = vadd.f32 0.0, %v2451
      %2453 = vmatprep.mubr.f32.mxu0 0.0
      %2454 = vmatmul.mubr.f32.gmra.mxu0 %v2372
      %v2455 = vpop.f32.mrf.mxu0
      %v2456 = vadd.f32 0.0, %v2455
      %v2457 = vpop.f32.mrf.mxu0
      %v2458 = vadd.f32 0.0, %v2457
      %2459 = vmatprep.mubr.f32.mxu0 0.0
      %2460 = vmatmul.mubr.f32.gmra.mxu0 %v2375
      %v2461 = vpop.f32.mrf.mxu0
      %v2462 = vadd.f32 0.0, %v2461
      %v2463 = vpop.f32.mrf.mxu0
      %v2464 = vadd.f32 0.0, %v2463
      %2465 = vdwg.mxu0
      %2466 = vmatprep.subr.mxu0 0.0
      %2467 = vmatpush1.msra.mxu0 0.0
      %2468 = vmatprep.subr.mxu0 0.0
      %2469 = vmatpush1.msra.mxu0 0.0
      %2470 = vmatprep.subr.mxu0 0.0
      %2471 = vmatpush1.msra.mxu0 0.0
      %2472 = vmatprep.subr.mxu0 0.0
      %2473 = vmatpush1.msra.mxu0 0.0
      %2474 = vmatprep.subr.mxu0 0.0
      %2475 = vmatpush1.msra.mxu0 0.0
      %2476 = vmatprep.subr.mxu0 0.0
      %2477 = vmatpush1.msra.mxu0 0.0
      %2478 = vmatprep.subr.mxu0 0.0
      %2479 = vmatpush1.msra.mxu0 0.0
      %2480 = vmatprep.subr.mxu0 0.0
      %2481 = vmatpush1.msra.mxu0 0.0
      %2482 = vmatprep.subr.mxu0 0.0
      %2483 = vmatpush1.msra.mxu0 0.0
      %2484 = vmatprep.subr.mxu0 0.0
      %2485 = vmatpush1.msra.mxu0 0.0
      %2486 = vmatprep.subr.mxu0 0.0
      %2487 = vmatpush1.msra.mxu0 0.0
      %2488 = vmatprep.subr.mxu0 0.0
      %2489 = vmatpush1.msra.mxu0 0.0
      %2490 = vmatprep.subr.mxu0 %v2364
      %2491 = vmatpush1.msra.mxu0 %v2363
      %2492 = vmatprep.subr.mxu0 %v2360
      %2493 = vmatpush1.msra.mxu0 %v2359
      %2494 = vmatprep.subr.mxu0 %v2356
      %2495 = vmatpush1.msra.mxu0 %v2355
      %2496 = vmatprep.subr.mxu0 %v2352
      %2497 = vmatpush1.msra.mxu0 %v2351
      %2498 = vmatprep.subr.mxu0 0.0
      %2499 = vmatpush2.msra.mxu0 0.0
      %2500 = vmatprep.subr.mxu0 0.0
      %2501 = vmatpush2.msra.mxu0 0.0
      %2502 = vmatprep.subr.mxu0 0.0
      %2503 = vmatpush2.msra.mxu0 0.0
      %2504 = vmatprep.subr.mxu0 0.0
      %2505 = vmatpush2.msra.mxu0 0.0
      %2506 = vmatprep.subr.mxu0 0.0
      %2507 = vmatpush2.msra.mxu0 0.0
      %2508 = vmatprep.subr.mxu0 0.0
      %2509 = vmatpush2.msra.mxu0 0.0
      %2510 = vmatprep.subr.mxu0 0.0
      %2511 = vmatpush2.msra.mxu0 0.0
      %2512 = vmatprep.subr.mxu0 0.0
      %2513 = vmatpush2.msra.mxu0 0.0
      %2514 = vmatprep.subr.mxu0 0.0
      %2515 = vmatpush2.msra.mxu0 0.0
      %2516 = vmatprep.subr.mxu0 0.0
      %2517 = vmatpush2.msra.mxu0 0.0
      %2518 = vmatprep.subr.mxu0 0.0
      %2519 = vmatpush2.msra.mxu0 0.0
      %2520 = vmatprep.subr.mxu0 0.0
      %2521 = vmatpush2.msra.mxu0 0.0
      %2522 = vmatprep.subr.mxu0 0.0
      %2523 = vmatpush2.msra.mxu0 0.0
      %2524 = vmatprep.subr.mxu0 0.0
      %2525 = vmatpush2.msra.mxu0 0.0
      %2526 = vmatprep.subr.mxu0 0.0
      %2527 = vmatpush2.msra.mxu0 0.0
      %2528 = vmatprep.subr.mxu0 0.0
      %2529 = vmatpush2.msra.mxu0 0.0
      %2530 = vmatprep.mubr.f32.mxu0 0.0
      %2531 = vmatmul.mubr.f32.gmra.mxu0 %v2366
      %v2532 = vpop.f32.mrf.mxu0
      %v2533 = vadd.f32 0.0, %v2532
      %v2534 = vpop.f32.mrf.mxu0
      %v2535 = vadd.f32 0.0, %v2534
      %2536 = vmatprep.mubr.f32.mxu0 0.0
      %2537 = vmatmul.mubr.f32.gmra.mxu0 %v2369
      %v2538 = vpop.f32.mrf.mxu0
      %v2539 = vadd.f32 0.0, %v2538
      %v2540 = vpop.f32.mrf.mxu0
      %v2541 = vadd.f32 0.0, %v2540
      %2542 = vmatprep.mubr.f32.mxu0 0.0
      %2543 = vmatmul.mubr.f32.gmra.mxu0 %v2372
      %v2544 = vpop.f32.mrf.mxu0
      %v2545 = vadd.f32 0.0, %v2544
      %v2546 = vpop.f32.mrf.mxu0
      %v2547 = vadd.f32 0.0, %v2546
      %2548 = vmatprep.mubr.f32.mxu0 0.0
      %2549 = vmatmul.mubr.f32.gmra.mxu0 %v2375
      %v2550 = vpop.f32.mrf.mxu0
      %v2551 = vadd.f32 0.0, %v2550
      %v2552 = vpop.f32.mrf.mxu0
      %v2553 = vadd.f32 0.0, %v2552
      %2554 = vdwg.mxu0
      %v2555 = vadd.f32 %v2332, %v2444
      %v2556 = vadd.f32 %v2333, %v2446
      %v2557 = vadd.f32 %v2334, %v2533
      %v2558 = vadd.f32 %v2335, %v2535
      %v2559 = vadd.f32 %v2336, %v2450
      %v2560 = vadd.f32 %v2337, %v2452
      %v2561 = vadd.f32 %v2338, %v2539
      %v2562 = vadd.f32 %v2339, %v2541
      %v2563 = vadd.f32 %v2340, %v2456
      %v2564 = vadd.f32 %v2341, %v2458
      %v2565 = vadd.f32 %v2342, %v2545
      %v2566 = vadd.f32 %v2343, %v2547
      %v2567 = vadd.f32 %v2344, %v2462
      %v2568 = vadd.f32 %v2345, %v2464
      %v2569 = vadd.f32 %v2346, %v2551
      %v2570 = vadd.f32 %v2347, %v2553
      %v2571 = vld [vmem:[%s5] sm:$0xff]
      %v2572 = vld [vmem:[%s5 + $0x8] sm:$0xff]
      %v2573 = vld [vmem:[%s5 + $0x10] sm:$0xff]
      %v2574 = vld [vmem:[%s5 + $0x18] sm:$0xff]
      %2576 = vset.pattern.permute.xlu0 0
      %2577 = vperm.xlu0 %2576, %v335
      %v2578 = vpop.permute.xlu0 %2577
      %2581 = vset.pattern.permute.xlu0 0
      %2582 = vperm.xlu0 %2581, %v336
      %v2583 = vpop.permute.xlu0 %2582
      %2586 = vset.pattern.permute.xlu0 0
      %2587 = vperm.xlu0 %2586, %v337
      %v2588 = vpop.permute.xlu0 %2587
      %2591 = vset.pattern.permute.xlu0 0
      %2592 = vperm.xlu0 %2591, %v338
      %v2593 = vpop.permute.xlu0 %2592
      %v2595 = vmul.f32 %v2555, %v2578
      %v2596 = vmul.f32 %v2559, %v2583
      %v2597 = vmul.f32 %v2563, %v2588
      %v2598 = vmul.f32 %v2567, %v2593
      %v2599 = vadd.f32 %v2571, %v2595
      %v2600 = vadd.f32 %v2572, %v2596
      %v2601 = vadd.f32 %v2573, %v2597
      %v2602 = vadd.f32 %v2574, %v2598
      %2603 = vset.pattern.permute.xlu0 1
      %2604 = vperm.xlu0 %2603, %v335
      %v2605 = vpop.permute.xlu0 %2604
      %2607 = vset.pattern.permute.xlu0 1
      %2608 = vperm.xlu0 %2607, %v336
      %v2609 = vpop.permute.xlu0 %2608
      %2611 = vset.pattern.permute.xlu0 1
      %2612 = vperm.xlu0 %2611, %v337
      %v2613 = vpop.permute.xlu0 %2612
      %2615 = vset.pattern.permute.xlu0 1
      %2616 = vperm.xlu0 %2615, %v338
      %v2617 = vpop.permute.xlu0 %2616
      %v2619 = vmul.f32 %v2555, %v2605
      %v2620 = vmul.f32 %v2559, %v2609
      %v2621 = vmul.f32 %v2563, %v2613
      %v2622 = vmul.f32 %v2567, %v2617
      %2627 = vrot.lane.b32.xlu0 %v2619, 64
      %v2628 = vpop.permute.xlu0 %2627
      %2629 = vrot.lane.b32.xlu0 %v2620, 64
      %v2630 = vpop.permute.xlu0 %2629
      %2631 = vrot.lane.b32.xlu0 %v2621, 64
      %v2632 = vpop.permute.xlu0 %2631
      %2633 = vrot.lane.b32.xlu0 %v2622, 64
      %v2634 = vpop.permute.xlu0 %2633
      %v2639 = vadd.f32 %v2599, %v2628
      %v2640 = vadd.f32 %v2600, %v2630
      %v2641 = vadd.f32 %v2601, %v2632
      %v2642 = vadd.f32 %v2602, %v2634
      %2643 = vset.pattern.permute.xlu0 2
      %2644 = vperm.xlu0 %2643, %v335
      %v2645 = vpop.permute.xlu0 %2644
      %2647 = vset.pattern.permute.xlu0 2
      %2648 = vperm.xlu0 %2647, %v336
      %v2649 = vpop.permute.xlu0 %2648
      %2651 = vset.pattern.permute.xlu0 2
      %2652 = vperm.xlu0 %2651, %v337
      %v2653 = vpop.permute.xlu0 %2652
      %2655 = vset.pattern.permute.xlu0 2
      %2656 = vperm.xlu0 %2655, %v338
      %v2657 = vpop.permute.xlu0 %2656
      %v2659 = vmul.f32 %v2556, %v2645
      %v2660 = vmul.f32 %v2560, %v2649
      %v2661 = vmul.f32 %v2564, %v2653
      %v2662 = vmul.f32 %v2568, %v2657
      %v2663 = vadd.f32 %v2639, %v2659
      %v2664 = vadd.f32 %v2640, %v2660
      %v2665 = vadd.f32 %v2641, %v2661
      %v2666 = vadd.f32 %v2642, %v2662
      %2667 = vset.pattern.permute.xlu0 3
      %2668 = vperm.xlu0 %2667, %v335
      %v2669 = vpop.permute.xlu0 %2668
      %2671 = vset.pattern.permute.xlu0 3
      %2672 = vperm.xlu0 %2671, %v336
      %v2673 = vpop.permute.xlu0 %2672
      %2675 = vset.pattern.permute.xlu0 3
      %2676 = vperm.xlu0 %2675, %v337
      %v2677 = vpop.permute.xlu0 %2676
      %2679 = vset.pattern.permute.xlu0 3
      %2680 = vperm.xlu0 %2679, %v338
      %v2681 = vpop.permute.xlu0 %2680
      %v2683 = vmul.f32 %v2556, %v2669
      %v2684 = vmul.f32 %v2560, %v2673
      %v2685 = vmul.f32 %v2564, %v2677
      %v2686 = vmul.f32 %v2568, %v2681
      %2691 = vrot.lane.b32.xlu0 %v2683, 64
      %v2692 = vpop.permute.xlu0 %2691
      %2693 = vrot.lane.b32.xlu0 %v2684, 64
      %v2694 = vpop.permute.xlu0 %2693
      %2695 = vrot.lane.b32.xlu0 %v2685, 64
      %v2696 = vpop.permute.xlu0 %2695
      %2697 = vrot.lane.b32.xlu0 %v2686, 64
      %v2698 = vpop.permute.xlu0 %2697
      %v2703 = vadd.f32 %v2663, %v2692
      %v2704 = vadd.f32 %v2664, %v2694
      %v2705 = vadd.f32 %v2665, %v2696
      %v2706 = vadd.f32 %v2666, %v2698
      %2707 = vset.pattern.permute.xlu0 4
      %2708 = vperm.xlu0 %2707, %v335
      %v2709 = vpop.permute.xlu0 %2708
      %2711 = vset.pattern.permute.xlu0 4
      %2712 = vperm.xlu0 %2711, %v336
      %v2713 = vpop.permute.xlu0 %2712
      %2715 = vset.pattern.permute.xlu0 4
      %2716 = vperm.xlu0 %2715, %v337
      %v2717 = vpop.permute.xlu0 %2716
      %2719 = vset.pattern.permute.xlu0 4
      %2720 = vperm.xlu0 %2719, %v338
      %v2721 = vpop.permute.xlu0 %2720
      %v2723 = vmul.f32 %v2557, %v2709
      %v2724 = vmul.f32 %v2561, %v2713
      %v2725 = vmul.f32 %v2565, %v2717
      %v2726 = vmul.f32 %v2569, %v2721
      %v2727 = vadd.f32 %v2703, %v2723
      %v2728 = vadd.f32 %v2704, %v2724
      %v2729 = vadd.f32 %v2705, %v2725
      %v2730 = vadd.f32 %v2706, %v2726
      %2731 = vset.pattern.permute.xlu0 5
      %2732 = vperm.xlu0 %2731, %v335
      %v2733 = vpop.permute.xlu0 %2732
      %2735 = vset.pattern.permute.xlu0 5
      %2736 = vperm.xlu0 %2735, %v336
      %v2737 = vpop.permute.xlu0 %2736
      %2739 = vset.pattern.permute.xlu0 5
      %2740 = vperm.xlu0 %2739, %v337
      %v2741 = vpop.permute.xlu0 %2740
      %2743 = vset.pattern.permute.xlu0 5
      %2744 = vperm.xlu0 %2743, %v338
      %v2745 = vpop.permute.xlu0 %2744
      %v2747 = vmul.f32 %v2557, %v2733
      %v2748 = vmul.f32 %v2561, %v2737
      %v2749 = vmul.f32 %v2565, %v2741
      %v2750 = vmul.f32 %v2569, %v2745
      %2755 = vrot.lane.b32.xlu0 %v2747, 64
      %v2756 = vpop.permute.xlu0 %2755
      %2757 = vrot.lane.b32.xlu0 %v2748, 64
      %v2758 = vpop.permute.xlu0 %2757
      %2759 = vrot.lane.b32.xlu0 %v2749, 64
      %v2760 = vpop.permute.xlu0 %2759
      %2761 = vrot.lane.b32.xlu0 %v2750, 64
      %v2762 = vpop.permute.xlu0 %2761
      %v2767 = vadd.f32 %v2727, %v2756
      %v2768 = vadd.f32 %v2728, %v2758
      %v2769 = vadd.f32 %v2729, %v2760
      %v2770 = vadd.f32 %v2730, %v2762
      %2771 = vset.pattern.permute.xlu0 6
      %2772 = vperm.xlu0 %2771, %v335
      %v2773 = vpop.permute.xlu0 %2772
      %2775 = vset.pattern.permute.xlu0 6
      %2776 = vperm.xlu0 %2775, %v336
      %v2777 = vpop.permute.xlu0 %2776
      %2779 = vset.pattern.permute.xlu0 6
      %2780 = vperm.xlu0 %2779, %v337
      %v2781 = vpop.permute.xlu0 %2780
      %2783 = vset.pattern.permute.xlu0 6
      %2784 = vperm.xlu0 %2783, %v338
      %v2785 = vpop.permute.xlu0 %2784
      %v2787 = vmul.f32 %v2558, %v2773
      %v2788 = vmul.f32 %v2562, %v2777
      %v2789 = vmul.f32 %v2566, %v2781
      %v2790 = vmul.f32 %v2570, %v2785
      %v2791 = vadd.f32 %v2767, %v2787
      %v2792 = vadd.f32 %v2768, %v2788
      %v2793 = vadd.f32 %v2769, %v2789
      %v2794 = vadd.f32 %v2770, %v2790
      %2795 = vset.pattern.permute.xlu0 7
      %2796 = vperm.xlu0 %2795, %v335
      %v2797 = vpop.permute.xlu0 %2796
      %2799 = vset.pattern.permute.xlu0 7
      %2800 = vperm.xlu0 %2799, %v336
      %v2801 = vpop.permute.xlu0 %2800
      %2803 = vset.pattern.permute.xlu0 7
      %2804 = vperm.xlu0 %2803, %v337
      %v2805 = vpop.permute.xlu0 %2804
      %2807 = vset.pattern.permute.xlu0 7
      %2808 = vperm.xlu0 %2807, %v338
      %v2809 = vpop.permute.xlu0 %2808
      %v2811 = vmul.f32 %v2558, %v2797
      %v2812 = vmul.f32 %v2562, %v2801
      %v2813 = vmul.f32 %v2566, %v2805
      %v2814 = vmul.f32 %v2570, %v2809
      %2819 = vrot.lane.b32.xlu0 %v2811, 64
      %v2820 = vpop.permute.xlu0 %2819
      %2821 = vrot.lane.b32.xlu0 %v2812, 64
      %v2822 = vpop.permute.xlu0 %2821
      %2823 = vrot.lane.b32.xlu0 %v2813, 64
      %v2824 = vpop.permute.xlu0 %2823
      %2825 = vrot.lane.b32.xlu0 %v2814, 64
      %v2826 = vpop.permute.xlu0 %2825
      %v2831 = vadd.f32 %v2791, %v2820
      %v2832 = vadd.f32 %v2792, %v2822
      %v2833 = vadd.f32 %v2793, %v2824
      %v2834 = vadd.f32 %v2794, %v2826
      %v2835 = vxor.u32 %v2831, 2147483648
      %v2836 = vxor.u32 %v2832, 2147483648
      %v2837 = vxor.u32 %v2833, 2147483648
      %v2838 = vxor.u32 %v2834, 2147483648
      %v2839 = vmul.f32 %v2835, 1.442695
      %v2840 = vpow.pop %v2839
      %v2841 = vmul.f32 %v2836, 1.442695
      %v2842 = vpow.pop %v2841
      %v2843 = vmul.f32 %v2837, 1.442695
      %v2844 = vpow.pop %v2843
      %v2845 = vmul.f32 %v2838, 1.442695
      %v2846 = vpow.pop %v2845
      %v2847 = vadd.f32 %v2840, 1.0
      %v2848 = vadd.f32 %v2842, 1.0
      %v2849 = vadd.f32 %v2844, 1.0
      %v2850 = vadd.f32 %v2846, 1.0
      %v2851 = vrcp.pop %v2847
      %v2852 = vmul.f32 1.0, %v2851
      %v2853 = vrcp.pop %v2848
      %v2854 = vmul.f32 1.0, %v2853
      %v2855 = vrcp.pop %v2849
      %v2856 = vmul.f32 1.0, %v2855
      %v2857 = vrcp.pop %v2850
      %v2858 = vmul.f32 1.0, %v2857
      %v2859 = vmul.f32 %v2852, %v331
      %v2860 = vmul.f32 %v2854, %v332
      %v2861 = vmul.f32 %v2856, %v333
      %v2862 = vmul.f32 %v2858, %v334
      %2863 = vmatprep.subr.mxu0 0.0
      %2864 = vmatpush1.msra.mxu0 0.0
      %2865 = vmatprep.subr.mxu0 0.0
      %2866 = vmatpush1.msra.mxu0 0.0
      %2867 = vmatprep.subr.mxu0 0.0
      %2868 = vmatpush1.msra.mxu0 0.0
      %2869 = vmatprep.subr.mxu0 0.0
      %2870 = vmatpush1.msra.mxu0 0.0
      %2871 = vmatprep.subr.mxu0 0.0
      %2872 = vmatpush1.msra.mxu0 0.0
      %2873 = vmatprep.subr.mxu0 0.0
      %2874 = vmatpush1.msra.mxu0 0.0
      %2875 = vmatprep.subr.mxu0 0.0
      %2876 = vmatpush1.msra.mxu0 0.0
      %2877 = vmatprep.subr.mxu0 0.0
      %2878 = vmatpush1.msra.mxu0 0.0
      %2879 = vmatprep.subr.mxu0 0.0
      %2880 = vmatpush1.msra.mxu0 0.0
      %2881 = vmatprep.subr.mxu0 0.0
      %2882 = vmatpush1.msra.mxu0 0.0
      %2883 = vmatprep.subr.mxu0 0.0
      %2884 = vmatpush1.msra.mxu0 0.0
      %2885 = vmatprep.subr.mxu0 0.0
      %2886 = vmatpush1.msra.mxu0 0.0
      %2887 = vmatprep.subr.mxu0 0.0
      %2888 = vmatpush1.msra.mxu0 0.0
      %2889 = vmatprep.subr.mxu0 0.0
      %2890 = vmatpush1.msra.mxu0 0.0
      %2891 = vmatprep.subr.mxu0 0.0
      %2892 = vmatpush1.msra.mxu0 %v2860
      %2893 = vmatprep.subr.mxu0 0.0
      %2894 = vmatpush1.msra.mxu0 %v2859
      %2895 = vmatprep.subr.mxu0 0.0
      %2896 = vmatpush2.msra.mxu0 0.0
      %2897 = vmatprep.subr.mxu0 0.0
      %2898 = vmatpush2.msra.mxu0 0.0
      %2899 = vmatprep.subr.mxu0 0.0
      %2900 = vmatpush2.msra.mxu0 0.0
      %2901 = vmatprep.subr.mxu0 0.0
      %2902 = vmatpush2.msra.mxu0 0.0
      %2903 = vmatprep.subr.mxu0 0.0
      %2904 = vmatpush2.msra.mxu0 0.0
      %2905 = vmatprep.subr.mxu0 0.0
      %2906 = vmatpush2.msra.mxu0 0.0
      %2907 = vmatprep.subr.mxu0 0.0
      %2908 = vmatpush2.msra.mxu0 0.0
      %2909 = vmatprep.subr.mxu0 0.0
      %2910 = vmatpush2.msra.mxu0 0.0
      %2911 = vmatprep.subr.mxu0 0.0
      %2912 = vmatpush2.msra.mxu0 0.0
      %2913 = vmatprep.subr.mxu0 0.0
      %2914 = vmatpush2.msra.mxu0 0.0
      %2915 = vmatprep.subr.mxu0 0.0
      %2916 = vmatpush2.msra.mxu0 0.0
      %2917 = vmatprep.subr.mxu0 0.0
      %2918 = vmatpush2.msra.mxu0 0.0
      %2919 = vmatprep.subr.mxu0 0.0
      %2920 = vmatpush2.msra.mxu0 0.0
      %2921 = vmatprep.subr.mxu0 0.0
      %2922 = vmatpush2.msra.mxu0 0.0
      %2923 = vmatprep.subr.mxu0 0.0
      %2924 = vmatpush2.msra.mxu0 0.0
      %2925 = vmatprep.subr.mxu0 0.0
      %2926 = vmatpush2.msra.mxu0 0.0
      %2927 = vmatprep.mubr.f32.mxu0 0.0
      %2928 = vmatmul.mubr.f32.gmra.mxu0 %v349
      %v2929 = vpop.f32.mrf.mxu0
      %v2930 = vadd.f32 0.0, %v2929
      %v2931 = vpop.f32.mrf.mxu0
      %2932 = vmatprep.mubr.f32.mxu0 0.0
      %2933 = vmatmul.mubr.f32.gmra.mxu0 %v352
      %v2934 = vpop.f32.mrf.mxu0
      %v2935 = vadd.f32 0.0, %v2934
      %v2936 = vpop.f32.mrf.mxu0
      %2937 = vdwg.mxu0
      %2938 = vmatprep.subr.mxu0 0.0
      %2939 = vmatpush1.msra.mxu0 0.0
      %2940 = vmatprep.subr.mxu0 0.0
      %2941 = vmatpush1.msra.mxu0 0.0
      %2942 = vmatprep.subr.mxu0 0.0
      %2943 = vmatpush1.msra.mxu0 0.0
      %2944 = vmatprep.subr.mxu0 0.0
      %2945 = vmatpush1.msra.mxu0 0.0
      %2946 = vmatprep.subr.mxu0 0.0
      %2947 = vmatpush1.msra.mxu0 0.0
      %2948 = vmatprep.subr.mxu0 0.0
      %2949 = vmatpush1.msra.mxu0 0.0
      %2950 = vmatprep.subr.mxu0 0.0
      %2951 = vmatpush1.msra.mxu0 0.0
      %2952 = vmatprep.subr.mxu0 0.0
      %2953 = vmatpush1.msra.mxu0 0.0
      %2954 = vmatprep.subr.mxu0 0.0
      %2955 = vmatpush1.msra.mxu0 0.0
      %2956 = vmatprep.subr.mxu0 0.0
      %2957 = vmatpush1.msra.mxu0 0.0
      %2958 = vmatprep.subr.mxu0 0.0
      %2959 = vmatpush1.msra.mxu0 0.0
      %2960 = vmatprep.subr.mxu0 0.0
      %2961 = vmatpush1.msra.mxu0 0.0
      %2962 = vmatprep.subr.mxu0 0.0
      %2963 = vmatpush1.msra.mxu0 0.0
      %2964 = vmatprep.subr.mxu0 0.0
      %2965 = vmatpush1.msra.mxu0 0.0
      %2966 = vmatprep.subr.mxu0 0.0
      %2967 = vmatpush1.msra.mxu0 %v2862
      %2968 = vmatprep.subr.mxu0 0.0
      %2969 = vmatpush1.msra.mxu0 %v2861
      %2970 = vmatprep.subr.mxu0 0.0
      %2971 = vmatpush2.msra.mxu0 0.0
      %2972 = vmatprep.subr.mxu0 0.0
      %2973 = vmatpush2.msra.mxu0 0.0
      %2974 = vmatprep.subr.mxu0 0.0
      %2975 = vmatpush2.msra.mxu0 0.0
      %2976 = vmatprep.subr.mxu0 0.0
      %2977 = vmatpush2.msra.mxu0 0.0
      %2978 = vmatprep.subr.mxu0 0.0
      %2979 = vmatpush2.msra.mxu0 0.0
      %2980 = vmatprep.subr.mxu0 0.0
      %2981 = vmatpush2.msra.mxu0 0.0
      %2982 = vmatprep.subr.mxu0 0.0
      %2983 = vmatpush2.msra.mxu0 0.0
      %2984 = vmatprep.subr.mxu0 0.0
      %2985 = vmatpush2.msra.mxu0 0.0
      %2986 = vmatprep.subr.mxu0 0.0
      %2987 = vmatpush2.msra.mxu0 0.0
      %2988 = vmatprep.subr.mxu0 0.0
      %2989 = vmatpush2.msra.mxu0 0.0
      %2990 = vmatprep.subr.mxu0 0.0
      %2991 = vmatpush2.msra.mxu0 0.0
      %2992 = vmatprep.subr.mxu0 0.0
      %2993 = vmatpush2.msra.mxu0 0.0
      %2994 = vmatprep.subr.mxu0 0.0
      %2995 = vmatpush2.msra.mxu0 0.0
      %2996 = vmatprep.subr.mxu0 0.0
      %2997 = vmatpush2.msra.mxu0 0.0
      %2998 = vmatprep.subr.mxu0 0.0
      %2999 = vmatpush2.msra.mxu0 0.0
      %3000 = vmatprep.subr.mxu0 0.0
      %3001 = vmatpush2.msra.mxu0 0.0
      %3002 = vmatprep.mubr.f32.mxu0 0.0
      %3003 = vmatmul.mubr.f32.gmra.mxu0 %v349
      %v3004 = vpop.f32.mrf.mxu0
      %v3005 = vadd.f32 0.0, %v3004
      %v3006 = vpop.f32.mrf.mxu0
      %3007 = vmatprep.mubr.f32.mxu0 0.0
      %3008 = vmatmul.mubr.f32.gmra.mxu0 %v352
      %v3009 = vpop.f32.mrf.mxu0
      %v3010 = vadd.f32 0.0, %v3009
      %v3011 = vpop.f32.mrf.mxu0
      %3012 = vdwg.mxu0
      %3013 = vmatprep.subr.mxu0 0.0
      %3014 = vmatpush1.msra.mxu0 0.0
      %3015 = vmatprep.subr.mxu0 0.0
      %3016 = vmatpush1.msra.mxu0 0.0
      %3017 = vmatprep.subr.mxu0 0.0
      %3018 = vmatpush1.msra.mxu0 0.0
      %3019 = vmatprep.subr.mxu0 0.0
      %3020 = vmatpush1.msra.mxu0 0.0
      %3021 = vmatprep.subr.mxu0 0.0
      %3022 = vmatpush1.msra.mxu0 0.0
      %3023 = vmatprep.subr.mxu0 0.0
      %3024 = vmatpush1.msra.mxu0 0.0
      %3025 = vmatprep.subr.mxu0 0.0
      %3026 = vmatpush1.msra.mxu0 0.0
      %3027 = vmatprep.subr.mxu0 0.0
      %3028 = vmatpush1.msra.mxu0 0.0
      %3029 = vmatprep.subr.mxu0 0.0
      %3030 = vmatpush1.msra.mxu0 0.0
      %3031 = vmatprep.subr.mxu0 0.0
      %3032 = vmatpush1.msra.mxu0 0.0
      %3033 = vmatprep.subr.mxu0 0.0
      %3034 = vmatpush1.msra.mxu0 0.0
      %3035 = vmatprep.subr.mxu0 0.0
      %3036 = vmatpush1.msra.mxu0 0.0
      %3037 = vmatprep.subr.mxu0 0.0
      %3038 = vmatpush1.msra.mxu0 0.0
      %3039 = vmatprep.subr.mxu0 0.0
      %3040 = vmatpush1.msra.mxu0 0.0
      %3041 = vmatprep.subr.mxu0 0.0
      %3042 = vmatpush1.msra.mxu0 %v2860
      %3043 = vmatprep.subr.mxu0 0.0
      %3044 = vmatpush1.msra.mxu0 %v2859
      %3045 = vmatprep.subr.mxu0 0.0
      %3046 = vmatpush2.msra.mxu0 0.0
      %3047 = vmatprep.subr.mxu0 0.0
      %3048 = vmatpush2.msra.mxu0 0.0
      %3049 = vmatprep.subr.mxu0 0.0
      %3050 = vmatpush2.msra.mxu0 0.0
      %3051 = vmatprep.subr.mxu0 0.0
      %3052 = vmatpush2.msra.mxu0 0.0
      %3053 = vmatprep.subr.mxu0 0.0
      %3054 = vmatpush2.msra.mxu0 0.0
      %3055 = vmatprep.subr.mxu0 0.0
      %3056 = vmatpush2.msra.mxu0 0.0
      %3057 = vmatprep.subr.mxu0 0.0
      %3058 = vmatpush2.msra.mxu0 0.0
      %3059 = vmatprep.subr.mxu0 0.0
      %3060 = vmatpush2.msra.mxu0 0.0
      %3061 = vmatprep.subr.mxu0 0.0
      %3062 = vmatpush2.msra.mxu0 0.0
      %3063 = vmatprep.subr.mxu0 0.0
      %3064 = vmatpush2.msra.mxu0 0.0
      %3065 = vmatprep.subr.mxu0 0.0
      %3066 = vmatpush2.msra.mxu0 0.0
      %3067 = vmatprep.subr.mxu0 0.0
      %3068 = vmatpush2.msra.mxu0 0.0
      %3069 = vmatprep.subr.mxu0 0.0
      %3070 = vmatpush2.msra.mxu0 0.0
      %3071 = vmatprep.subr.mxu0 0.0
      %3072 = vmatpush2.msra.mxu0 0.0
      %3073 = vmatprep.subr.mxu0 0.0
      %3074 = vmatpush2.msra.mxu0 0.0
      %3075 = vmatprep.subr.mxu0 0.0
      %3076 = vmatpush2.msra.mxu0 0.0
      %3077 = vmatprep.mubr.f32.mxu0 0.0
      %3078 = vmatmul.mubr.f32.gmra.mxu0 %v505
      %v3079 = vpop.f32.mrf.mxu0
      %v3080 = vadd.f32 0.0, %v3079
      %v3081 = vpop.f32.mrf.mxu0
      %3082 = vmatprep.mubr.f32.mxu0 0.0
      %3083 = vmatmul.mubr.f32.gmra.mxu0 %v508
      %v3084 = vpop.f32.mrf.mxu0
      %v3085 = vadd.f32 0.0, %v3084
      %v3086 = vpop.f32.mrf.mxu0
      %3087 = vdwg.mxu0
      %3088 = vmatprep.subr.mxu0 0.0
      %3089 = vmatpush1.msra.mxu0 0.0
      %3090 = vmatprep.subr.mxu0 0.0
      %3091 = vmatpush1.msra.mxu0 0.0
      %3092 = vmatprep.subr.mxu0 0.0
      %3093 = vmatpush1.msra.mxu0 0.0
      %3094 = vmatprep.subr.mxu0 0.0
      %3095 = vmatpush1.msra.mxu0 0.0
      %3096 = vmatprep.subr.mxu0 0.0
      %3097 = vmatpush1.msra.mxu0 0.0
      %3098 = vmatprep.subr.mxu0 0.0
      %3099 = vmatpush1.msra.mxu0 0.0
      %3100 = vmatprep.subr.mxu0 0.0
      %3101 = vmatpush1.msra.mxu0 0.0
      %3102 = vmatprep.subr.mxu0 0.0
      %3103 = vmatpush1.msra.mxu0 0.0
      %3104 = vmatprep.subr.mxu0 0.0
      %3105 = vmatpush1.msra.mxu0 0.0
      %3106 = vmatprep.subr.mxu0 0.0
      %3107 = vmatpush1.msra.mxu0 0.0
      %3108 = vmatprep.subr.mxu0 0.0
      %3109 = vmatpush1.msra.mxu0 0.0
      %3110 = vmatprep.subr.mxu0 0.0
      %3111 = vmatpush1.msra.mxu0 0.0
      %3112 = vmatprep.subr.mxu0 0.0
      %3113 = vmatpush1.msra.mxu0 0.0
      %3114 = vmatprep.subr.mxu0 0.0
      %3115 = vmatpush1.msra.mxu0 0.0
      %3116 = vmatprep.subr.mxu0 0.0
      %3117 = vmatpush1.msra.mxu0 %v2862
      %3118 = vmatprep.subr.mxu0 0.0
      %3119 = vmatpush1.msra.mxu0 %v2861
      %3120 = vmatprep.subr.mxu0 0.0
      %3121 = vmatpush2.msra.mxu0 0.0
      %3122 = vmatprep.subr.mxu0 0.0
      %3123 = vmatpush2.msra.mxu0 0.0
      %3124 = vmatprep.subr.mxu0 0.0
      %3125 = vmatpush2.msra.mxu0 0.0
      %3126 = vmatprep.subr.mxu0 0.0
      %3127 = vmatpush2.msra.mxu0 0.0
      %3128 = vmatprep.subr.mxu0 0.0
      %3129 = vmatpush2.msra.mxu0 0.0
      %3130 = vmatprep.subr.mxu0 0.0
      %3131 = vmatpush2.msra.mxu0 0.0
      %3132 = vmatprep.subr.mxu0 0.0
      %3133 = vmatpush2.msra.mxu0 0.0
      %3134 = vmatprep.subr.mxu0 0.0
      %3135 = vmatpush2.msra.mxu0 0.0
      %3136 = vmatprep.subr.mxu0 0.0
      %3137 = vmatpush2.msra.mxu0 0.0
      %3138 = vmatprep.subr.mxu0 0.0
      %3139 = vmatpush2.msra.mxu0 0.0
      %3140 = vmatprep.subr.mxu0 0.0
      %3141 = vmatpush2.msra.mxu0 0.0
      %3142 = vmatprep.subr.mxu0 0.0
      %3143 = vmatpush2.msra.mxu0 0.0
      %3144 = vmatprep.subr.mxu0 0.0
      %3145 = vmatpush2.msra.mxu0 0.0
      %3146 = vmatprep.subr.mxu0 0.0
      %3147 = vmatpush2.msra.mxu0 0.0
      %3148 = vmatprep.subr.mxu0 0.0
      %3149 = vmatpush2.msra.mxu0 0.0
      %3150 = vmatprep.subr.mxu0 0.0
      %3151 = vmatpush2.msra.mxu0 0.0
      %3152 = vmatprep.mubr.f32.mxu0 0.0
      %3153 = vmatmul.mubr.f32.gmra.mxu0 %v505
      %v3154 = vpop.f32.mrf.mxu0
      %v3155 = vadd.f32 0.0, %v3154
      %v3156 = vpop.f32.mrf.mxu0
      %3157 = vmatprep.mubr.f32.mxu0 0.0
      %3158 = vmatmul.mubr.f32.gmra.mxu0 %v508
      %v3159 = vpop.f32.mrf.mxu0
      %v3160 = vadd.f32 0.0, %v3159
      %v3161 = vpop.f32.mrf.mxu0
      %3162 = vdwg.mxu0
      %3163 = vmatprep.subr.mxu0 0.0
      %3164 = vmatpush1.msra.mxu0 0.0
      %3165 = vmatprep.subr.mxu0 0.0
      %3166 = vmatpush1.msra.mxu0 0.0
      %3167 = vmatprep.subr.mxu0 0.0
      %3168 = vmatpush1.msra.mxu0 0.0
      %3169 = vmatprep.subr.mxu0 0.0
      %3170 = vmatpush1.msra.mxu0 0.0
      %3171 = vmatprep.subr.mxu0 0.0
      %3172 = vmatpush1.msra.mxu0 0.0
      %3173 = vmatprep.subr.mxu0 0.0
      %3174 = vmatpush1.msra.mxu0 0.0
      %3175 = vmatprep.subr.mxu0 0.0
      %3176 = vmatpush1.msra.mxu0 0.0
      %3177 = vmatprep.subr.mxu0 0.0
      %3178 = vmatpush1.msra.mxu0 0.0
      %3179 = vmatprep.subr.mxu0 0.0
      %3180 = vmatpush1.msra.mxu0 0.0
      %3181 = vmatprep.subr.mxu0 0.0
      %3182 = vmatpush1.msra.mxu0 0.0
      %3183 = vmatprep.subr.mxu0 0.0
      %3184 = vmatpush1.msra.mxu0 0.0
      %3185 = vmatprep.subr.mxu0 0.0
      %3186 = vmatpush1.msra.mxu0 0.0
      %3187 = vmatprep.subr.mxu0 0.0
      %3188 = vmatpush1.msra.mxu0 0.0
      %3189 = vmatprep.subr.mxu0 0.0
      %3190 = vmatpush1.msra.mxu0 0.0
      %3191 = vmatprep.subr.mxu0 0.0
      %3192 = vmatpush1.msra.mxu0 %v2860
      %3193 = vmatprep.subr.mxu0 0.0
      %3194 = vmatpush1.msra.mxu0 %v2859
      %3195 = vmatprep.subr.mxu0 0.0
      %3196 = vmatpush2.msra.mxu0 0.0
      %3197 = vmatprep.subr.mxu0 0.0
      %3198 = vmatpush2.msra.mxu0 0.0
      %3199 = vmatprep.subr.mxu0 0.0
      %3200 = vmatpush2.msra.mxu0 0.0
      %3201 = vmatprep.subr.mxu0 0.0
      %3202 = vmatpush2.msra.mxu0 0.0
      %3203 = vmatprep.subr.mxu0 0.0
      %3204 = vmatpush2.msra.mxu0 0.0
      %3205 = vmatprep.subr.mxu0 0.0
      %3206 = vmatpush2.msra.mxu0 0.0
      %3207 = vmatprep.subr.mxu0 0.0
      %3208 = vmatpush2.msra.mxu0 0.0
      %3209 = vmatprep.subr.mxu0 0.0
      %3210 = vmatpush2.msra.mxu0 0.0
      %3211 = vmatprep.subr.mxu0 0.0
      %3212 = vmatpush2.msra.mxu0 0.0
      %3213 = vmatprep.subr.mxu0 0.0
      %3214 = vmatpush2.msra.mxu0 0.0
      %3215 = vmatprep.subr.mxu0 0.0
      %3216 = vmatpush2.msra.mxu0 0.0
      %3217 = vmatprep.subr.mxu0 0.0
      %3218 = vmatpush2.msra.mxu0 0.0
      %3219 = vmatprep.subr.mxu0 0.0
      %3220 = vmatpush2.msra.mxu0 0.0
      %3221 = vmatprep.subr.mxu0 0.0
      %3222 = vmatpush2.msra.mxu0 0.0
      %3223 = vmatprep.subr.mxu0 0.0
      %3224 = vmatpush2.msra.mxu0 0.0
      %3225 = vmatprep.subr.mxu0 0.0
      %3226 = vmatpush2.msra.mxu0 0.0
      %3227 = vmatprep.mubr.f32.mxu0 0.0
      %3228 = vmatmul.mubr.f32.gmra.mxu0 %v661
      %v3229 = vpop.f32.mrf.mxu0
      %v3230 = vadd.f32 0.0, %v3229
      %v3231 = vpop.f32.mrf.mxu0
      %3232 = vmatprep.mubr.f32.mxu0 0.0
      %3233 = vmatmul.mubr.f32.gmra.mxu0 %v664
      %v3234 = vpop.f32.mrf.mxu0
      %v3235 = vadd.f32 0.0, %v3234
      %v3236 = vpop.f32.mrf.mxu0
      %3237 = vdwg.mxu0
      %3238 = vmatprep.subr.mxu0 0.0
      %3239 = vmatpush1.msra.mxu0 0.0
      %3240 = vmatprep.subr.mxu0 0.0
      %3241 = vmatpush1.msra.mxu0 0.0
      %3242 = vmatprep.subr.mxu0 0.0
      %3243 = vmatpush1.msra.mxu0 0.0
      %3244 = vmatprep.subr.mxu0 0.0
      %3245 = vmatpush1.msra.mxu0 0.0
      %3246 = vmatprep.subr.mxu0 0.0
      %3247 = vmatpush1.msra.mxu0 0.0
      %3248 = vmatprep.subr.mxu0 0.0
      %3249 = vmatpush1.msra.mxu0 0.0
      %3250 = vmatprep.subr.mxu0 0.0
      %3251 = vmatpush1.msra.mxu0 0.0
      %3252 = vmatprep.subr.mxu0 0.0
      %3253 = vmatpush1.msra.mxu0 0.0
      %3254 = vmatprep.subr.mxu0 0.0
      %3255 = vmatpush1.msra.mxu0 0.0
      %3256 = vmatprep.subr.mxu0 0.0
      %3257 = vmatpush1.msra.mxu0 0.0
      %3258 = vmatprep.subr.mxu0 0.0
      %3259 = vmatpush1.msra.mxu0 0.0
      %3260 = vmatprep.subr.mxu0 0.0
      %3261 = vmatpush1.msra.mxu0 0.0
      %3262 = vmatprep.subr.mxu0 0.0
      %3263 = vmatpush1.msra.mxu0 0.0
      %3264 = vmatprep.subr.mxu0 0.0
      %3265 = vmatpush1.msra.mxu0 0.0
      %3266 = vmatprep.subr.mxu0 0.0
      %3267 = vmatpush1.msra.mxu0 %v2862
      %3268 = vmatprep.subr.mxu0 0.0
      %3269 = vmatpush1.msra.mxu0 %v2861
      %3270 = vmatprep.subr.mxu0 0.0
      %3271 = vmatpush2.msra.mxu0 0.0
      %3272 = vmatprep.subr.mxu0 0.0
      %3273 = vmatpush2.msra.mxu0 0.0
      %3274 = vmatprep.subr.mxu0 0.0
      %3275 = vmatpush2.msra.mxu0 0.0
      %3276 = vmatprep.subr.mxu0 0.0
      %3277 = vmatpush2.msra.mxu0 0.0
      %3278 = vmatprep.subr.mxu0 0.0
      %3279 = vmatpush2.msra.mxu0 0.0
      %3280 = vmatprep.subr.mxu0 0.0
      %3281 = vmatpush2.msra.mxu0 0.0
      %3282 = vmatprep.subr.mxu0 0.0
      %3283 = vmatpush2.msra.mxu0 0.0
      %3284 = vmatprep.subr.mxu0 0.0
      %3285 = vmatpush2.msra.mxu0 0.0
      %3286 = vmatprep.subr.mxu0 0.0
      %3287 = vmatpush2.msra.mxu0 0.0
      %3288 = vmatprep.subr.mxu0 0.0
      %3289 = vmatpush2.msra.mxu0 0.0
      %3290 = vmatprep.subr.mxu0 0.0
      %3291 = vmatpush2.msra.mxu0 0.0
      %3292 = vmatprep.subr.mxu0 0.0
      %3293 = vmatpush2.msra.mxu0 0.0
      %3294 = vmatprep.subr.mxu0 0.0
      %3295 = vmatpush2.msra.mxu0 0.0
      %3296 = vmatprep.subr.mxu0 0.0
      %3297 = vmatpush2.msra.mxu0 0.0
      %3298 = vmatprep.subr.mxu0 0.0
      %3299 = vmatpush2.msra.mxu0 0.0
      %3300 = vmatprep.subr.mxu0 0.0
      %3301 = vmatpush2.msra.mxu0 0.0
      %3302 = vmatprep.mubr.f32.mxu0 0.0
      %3303 = vmatmul.mubr.f32.gmra.mxu0 %v661
      %v3304 = vpop.f32.mrf.mxu0
      %v3305 = vadd.f32 0.0, %v3304
      %v3306 = vpop.f32.mrf.mxu0
      %3307 = vmatprep.mubr.f32.mxu0 0.0
      %3308 = vmatmul.mubr.f32.gmra.mxu0 %v664
      %v3309 = vpop.f32.mrf.mxu0
      %v3310 = vadd.f32 0.0, %v3309
      %v3311 = vpop.f32.mrf.mxu0
      %3312 = vdwg.mxu0
      %v3313 = vld [vmem:[%s6] sm:$0xff]
      %v3314 = vld [vmem:[%s6 + $0x8] sm:$0xff]
      %v3315 = vld [vmem:[%s6 + $0x10] sm:$0xff]
      %v3316 = vld [vmem:[%s6 + $0x18] sm:$0xff]
      %v3317 = vld [vmem:[%s6 + $0x20] sm:$0xff]
      %v3318 = vld [vmem:[%s6 + $0x28] sm:$0xff]
      %v3319 = vld [vmem:[%s6 + $0x30] sm:$0xff]
      %v3320 = vld [vmem:[%s6 + $0x38] sm:$0xff]
      %v3321 = vld [vmem:[%s7] sm:$0xff]
      %v3322 = vld [vmem:[%s7 + $0x8] sm:$0xff]
      %v3323 = vld [vmem:[%s7 + $0x10] sm:$0xff]
      %v3324 = vld [vmem:[%s7 + $0x18] sm:$0xff]
      %v3325 = vld [vmem:[%s7 + $0x20] sm:$0xff]
      %v3326 = vld [vmem:[%s7 + $0x28] sm:$0xff]
      %v3327 = vld [vmem:[%s7 + $0x30] sm:$0xff]
      %v3328 = vld [vmem:[%s7 + $0x38] sm:$0xff]
      %v3330 = vsel %vm1298, %v2930, 0
      %v3333 = vsel %vm1298, %v2935, 0
      %v3336 = vsel %vm1298, %v3005, 0
      %v3339 = vsel %vm1298, %v3010, 0
      %3341 = vmatprep.subr.mxu0 0.0
      %3342 = vmatpush1.msra.mxu0 0.0
      %3343 = vmatprep.subr.mxu0 0.0
      %3344 = vmatpush1.msra.mxu0 0.0
      %3345 = vmatprep.subr.mxu0 0.0
      %3346 = vmatpush1.msra.mxu0 0.0
      %3347 = vmatprep.subr.mxu0 0.0
      %3348 = vmatpush1.msra.mxu0 0.0
      %3349 = vmatprep.subr.mxu0 0.0
      %3350 = vmatpush1.msra.mxu0 0.0
      %3351 = vmatprep.subr.mxu0 0.0
      %3352 = vmatpush1.msra.mxu0 0.0
      %3353 = vmatprep.subr.mxu0 0.0
      %3354 = vmatpush1.msra.mxu0 0.0
      %3355 = vmatprep.subr.mxu0 0.0
      %3356 = vmatpush1.msra.mxu0 0.0
      %3357 = vmatprep.subr.mxu0 0.0
      %3358 = vmatpush1.msra.mxu0 0.0
      %3359 = vmatprep.subr.mxu0 0.0
      %3360 = vmatpush1.msra.mxu0 0.0
      %3361 = vmatprep.subr.mxu0 0.0
      %3362 = vmatpush1.msra.mxu0 0.0
      %3363 = vmatprep.subr.mxu0 0.0
      %3364 = vmatpush1.msra.mxu0 0.0
      %3365 = vmatprep.subr.mxu0 %v3328
      %3366 = vmatpush1.msra.mxu0 %v3327
      %3367 = vmatprep.subr.mxu0 %v3326
      %3368 = vmatpush1.msra.mxu0 %v3325
      %3369 = vmatprep.subr.mxu0 %v3324
      %3370 = vmatpush1.msra.mxu0 %v3323
      %3371 = vmatprep.subr.mxu0 %v3322
      %3372 = vmatpush1.msra.mxu0 %v3321
      %3373 = vmatprep.subr.mxu0 0.0
      %3374 = vmatpush2.msra.mxu0 0.0
      %3375 = vmatprep.subr.mxu0 0.0
      %3376 = vmatpush2.msra.mxu0 0.0
      %3377 = vmatprep.subr.mxu0 0.0
      %3378 = vmatpush2.msra.mxu0 0.0
      %3379 = vmatprep.subr.mxu0 0.0
      %3380 = vmatpush2.msra.mxu0 0.0
      %3381 = vmatprep.subr.mxu0 0.0
      %3382 = vmatpush2.msra.mxu0 0.0
      %3383 = vmatprep.subr.mxu0 0.0
      %3384 = vmatpush2.msra.mxu0 0.0
      %3385 = vmatprep.subr.mxu0 0.0
      %3386 = vmatpush2.msra.mxu0 0.0
      %3387 = vmatprep.subr.mxu0 0.0
      %3388 = vmatpush2.msra.mxu0 0.0
      %3389 = vmatprep.subr.mxu0 0.0
      %3390 = vmatpush2.msra.mxu0 0.0
      %3391 = vmatprep.subr.mxu0 0.0
      %3392 = vmatpush2.msra.mxu0 0.0
      %3393 = vmatprep.subr.mxu0 0.0
      %3394 = vmatpush2.msra.mxu0 0.0
      %3395 = vmatprep.subr.mxu0 0.0
      %3396 = vmatpush2.msra.mxu0 0.0
      %3397 = vmatprep.subr.mxu0 0.0
      %3398 = vmatpush2.msra.mxu0 0.0
      %3399 = vmatprep.subr.mxu0 0.0
      %3400 = vmatpush2.msra.mxu0 0.0
      %3401 = vmatprep.subr.mxu0 0.0
      %3402 = vmatpush2.msra.mxu0 0.0
      %3403 = vmatprep.subr.mxu0 0.0
      %3404 = vmatpush2.msra.mxu0 0.0
      %3405 = vmatprep.mubr.f32.mxu0 0.0
      %3406 = vmatmul.mubr.f32.gmra.mxu0 %v3330
      %v3407 = vpop.f32.mrf.mxu0
      %v3408 = vadd.f32 0.0, %v3407
      %v3409 = vpop.f32.mrf.mxu0
      %v3410 = vadd.f32 0.0, %v3409
      %3411 = vmatprep.mubr.f32.mxu0 0.0
      %3412 = vmatmul.mubr.f32.gmra.mxu0 %v3333
      %v3413 = vpop.f32.mrf.mxu0
      %v3414 = vadd.f32 0.0, %v3413
      %v3415 = vpop.f32.mrf.mxu0
      %v3416 = vadd.f32 0.0, %v3415
      %3417 = vmatprep.mubr.f32.mxu0 0.0
      %3418 = vmatmul.mubr.f32.gmra.mxu0 %v3336
      %v3419 = vpop.f32.mrf.mxu0
      %v3420 = vadd.f32 0.0, %v3419
      %v3421 = vpop.f32.mrf.mxu0
      %v3422 = vadd.f32 0.0, %v3421
      %3423 = vmatprep.mubr.f32.mxu0 0.0
      %3424 = vmatmul.mubr.f32.gmra.mxu0 %v3339
      %v3425 = vpop.f32.mrf.mxu0
      %v3426 = vadd.f32 0.0, %v3425
      %v3427 = vpop.f32.mrf.mxu0
      %v3428 = vadd.f32 0.0, %v3427
      %3429 = vdwg.mxu0
      %3430 = vmatprep.subr.mxu0 0.0
      %3431 = vmatpush1.msra.mxu0 0.0
      %3432 = vmatprep.subr.mxu0 0.0
      %3433 = vmatpush1.msra.mxu0 0.0
      %3434 = vmatprep.subr.mxu0 0.0
      %3435 = vmatpush1.msra.mxu0 0.0
      %3436 = vmatprep.subr.mxu0 0.0
      %3437 = vmatpush1.msra.mxu0 0.0
      %3438 = vmatprep.subr.mxu0 0.0
      %3439 = vmatpush1.msra.mxu0 0.0
      %3440 = vmatprep.subr.mxu0 0.0
      %3441 = vmatpush1.msra.mxu0 0.0
      %3442 = vmatprep.subr.mxu0 0.0
      %3443 = vmatpush1.msra.mxu0 0.0
      %3444 = vmatprep.subr.mxu0 0.0
      %3445 = vmatpush1.msra.mxu0 0.0
      %3446 = vmatprep.subr.mxu0 0.0
      %3447 = vmatpush1.msra.mxu0 0.0
      %3448 = vmatprep.subr.mxu0 0.0
      %3449 = vmatpush1.msra.mxu0 0.0
      %3450 = vmatprep.subr.mxu0 0.0
      %3451 = vmatpush1.msra.mxu0 0.0
      %3452 = vmatprep.subr.mxu0 0.0
      %3453 = vmatpush1.msra.mxu0 0.0
      %3454 = vmatprep.subr.mxu0 %v3320
      %3455 = vmatpush1.msra.mxu0 %v3319
      %3456 = vmatprep.subr.mxu0 %v3318
      %3457 = vmatpush1.msra.mxu0 %v3317
      %3458 = vmatprep.subr.mxu0 %v3316
      %3459 = vmatpush1.msra.mxu0 %v3315
      %3460 = vmatprep.subr.mxu0 %v3314
      %3461 = vmatpush1.msra.mxu0 %v3313
      %3462 = vmatprep.subr.mxu0 0.0
      %3463 = vmatpush2.msra.mxu0 0.0
      %3464 = vmatprep.subr.mxu0 0.0
      %3465 = vmatpush2.msra.mxu0 0.0
      %3466 = vmatprep.subr.mxu0 0.0
      %3467 = vmatpush2.msra.mxu0 0.0
      %3468 = vmatprep.subr.mxu0 0.0
      %3469 = vmatpush2.msra.mxu0 0.0
      %3470 = vmatprep.subr.mxu0 0.0
      %3471 = vmatpush2.msra.mxu0 0.0
      %3472 = vmatprep.subr.mxu0 0.0
      %3473 = vmatpush2.msra.mxu0 0.0
      %3474 = vmatprep.subr.mxu0 0.0
      %3475 = vmatpush2.msra.mxu0 0.0
      %3476 = vmatprep.subr.mxu0 0.0
      %3477 = vmatpush2.msra.mxu0 0.0
      %3478 = vmatprep.subr.mxu0 0.0
      %3479 = vmatpush2.msra.mxu0 0.0
      %3480 = vmatprep.subr.mxu0 0.0
      %3481 = vmatpush2.msra.mxu0 0.0
      %3482 = vmatprep.subr.mxu0 0.0
      %3483 = vmatpush2.msra.mxu0 0.0
      %3484 = vmatprep.subr.mxu0 0.0
      %3485 = vmatpush2.msra.mxu0 0.0
      %3486 = vmatprep.subr.mxu0 0.0
      %3487 = vmatpush2.msra.mxu0 0.0
      %3488 = vmatprep.subr.mxu0 0.0
      %3489 = vmatpush2.msra.mxu0 0.0
      %3490 = vmatprep.subr.mxu0 0.0
      %3491 = vmatpush2.msra.mxu0 0.0
      %3492 = vmatprep.subr.mxu0 0.0
      %3493 = vmatpush2.msra.mxu0 0.0
      %3494 = vmatprep.mubr.f32.mxu0 0.0
      %3495 = vmatmul.mubr.f32.gmra.mxu0 %v1490
      %v3496 = vpop.f32.mrf.mxu0
      %v3497 = vadd.f32 %v3408, %v3496
      %v3498 = vpop.f32.mrf.mxu0
      %v3499 = vadd.f32 %v3410, %v3498
      %3500 = vmatprep.mubr.f32.mxu0 0.0
      %3501 = vmatmul.mubr.f32.gmra.mxu0 %v1493
      %v3502 = vpop.f32.mrf.mxu0
      %v3503 = vadd.f32 %v3414, %v3502
      %v3504 = vpop.f32.mrf.mxu0
      %v3505 = vadd.f32 %v3416, %v3504
      %3506 = vmatprep.mubr.f32.mxu0 0.0
      %3507 = vmatmul.mubr.f32.gmra.mxu0 %v1496
      %v3508 = vpop.f32.mrf.mxu0
      %v3509 = vadd.f32 %v3420, %v3508
      %v3510 = vpop.f32.mrf.mxu0
      %v3511 = vadd.f32 %v3422, %v3510
      %3512 = vmatprep.mubr.f32.mxu0 0.0
      %3513 = vmatmul.mubr.f32.gmra.mxu0 %v1499
      %v3514 = vpop.f32.mrf.mxu0
      %v3515 = vadd.f32 %v3426, %v3514
      %v3516 = vpop.f32.mrf.mxu0
      %v3517 = vadd.f32 %v3428, %v3516
      %3518 = vdwg.mxu0
      %s3519 = scalar_lea.vmem %s6, 64
      %v3520 = vld [vmem:[%s3519] sm:$0xff]
      %v3521 = vld [vmem:[%s3519 + $0x8] sm:$0xff]
      %v3522 = vld [vmem:[%s3519 + $0x10] sm:$0xff]
      %v3523 = vld [vmem:[%s3519 + $0x18] sm:$0xff]
      %v3524 = vld [vmem:[%s3519 + $0x20] sm:$0xff]
      %v3525 = vld [vmem:[%s3519 + $0x28] sm:$0xff]
      %v3526 = vld [vmem:[%s3519 + $0x30] sm:$0xff]
      %v3527 = vld [vmem:[%s3519 + $0x38] sm:$0xff]
      %3528 = vmatprep.subr.mxu0 0.0
      %3529 = vmatpush1.msra.mxu0 0.0
      %3530 = vmatprep.subr.mxu0 0.0
      %3531 = vmatpush1.msra.mxu0 0.0
      %3532 = vmatprep.subr.mxu0 0.0
      %3533 = vmatpush1.msra.mxu0 0.0
      %3534 = vmatprep.subr.mxu0 0.0
      %3535 = vmatpush1.msra.mxu0 0.0
      %3536 = vmatprep.subr.mxu0 0.0
      %3537 = vmatpush1.msra.mxu0 0.0
      %3538 = vmatprep.subr.mxu0 0.0
      %3539 = vmatpush1.msra.mxu0 0.0
      %3540 = vmatprep.subr.mxu0 0.0
      %3541 = vmatpush1.msra.mxu0 0.0
      %3542 = vmatprep.subr.mxu0 0.0
      %3543 = vmatpush1.msra.mxu0 0.0
      %3544 = vmatprep.subr.mxu0 0.0
      %3545 = vmatpush1.msra.mxu0 0.0
      %3546 = vmatprep.subr.mxu0 0.0
      %3547 = vmatpush1.msra.mxu0 0.0
      %3548 = vmatprep.subr.mxu0 0.0
      %3549 = vmatpush1.msra.mxu0 0.0
      %3550 = vmatprep.subr.mxu0 0.0
      %3551 = vmatpush1.msra.mxu0 0.0
      %3552 = vmatprep.subr.mxu0 %v3527
      %3553 = vmatpush1.msra.mxu0 %v3526
      %3554 = vmatprep.subr.mxu0 %v3525
      %3555 = vmatpush1.msra.mxu0 %v3524
      %3556 = vmatprep.subr.mxu0 %v3523
      %3557 = vmatpush1.msra.mxu0 %v3522
      %3558 = vmatprep.subr.mxu0 %v3521
      %3559 = vmatpush1.msra.mxu0 %v3520
      %3560 = vmatprep.subr.mxu0 0.0
      %3561 = vmatpush2.msra.mxu0 0.0
      %3562 = vmatprep.subr.mxu0 0.0
      %3563 = vmatpush2.msra.mxu0 0.0
      %3564 = vmatprep.subr.mxu0 0.0
      %3565 = vmatpush2.msra.mxu0 0.0
      %3566 = vmatprep.subr.mxu0 0.0
      %3567 = vmatpush2.msra.mxu0 0.0
      %3568 = vmatprep.subr.mxu0 0.0
      %3569 = vmatpush2.msra.mxu0 0.0
      %3570 = vmatprep.subr.mxu0 0.0
      %3571 = vmatpush2.msra.mxu0 0.0
      %3572 = vmatprep.subr.mxu0 0.0
      %3573 = vmatpush2.msra.mxu0 0.0
      %3574 = vmatprep.subr.mxu0 0.0
      %3575 = vmatpush2.msra.mxu0 0.0
      %3576 = vmatprep.subr.mxu0 0.0
      %3577 = vmatpush2.msra.mxu0 0.0
      %3578 = vmatprep.subr.mxu0 0.0
      %3579 = vmatpush2.msra.mxu0 0.0
      %3580 = vmatprep.subr.mxu0 0.0
      %3581 = vmatpush2.msra.mxu0 0.0
      %3582 = vmatprep.subr.mxu0 0.0
      %3583 = vmatpush2.msra.mxu0 0.0
      %3584 = vmatprep.subr.mxu0 0.0
      %3585 = vmatpush2.msra.mxu0 0.0
      %3586 = vmatprep.subr.mxu0 0.0
      %3587 = vmatpush2.msra.mxu0 0.0
      %3588 = vmatprep.subr.mxu0 0.0
      %3589 = vmatpush2.msra.mxu0 0.0
      %3590 = vmatprep.subr.mxu0 0.0
      %3591 = vmatpush2.msra.mxu0 0.0
      %3592 = vmatprep.mubr.f32.mxu0 0.0
      %3593 = vmatmul.mubr.f32.gmra.mxu0 %v1697
      %v3594 = vpop.f32.mrf.mxu0
      %v3595 = vadd.f32 0.0, %v3594
      %v3596 = vpop.f32.mrf.mxu0
      %v3597 = vadd.f32 0.0, %v3596
      %3598 = vmatprep.mubr.f32.mxu0 0.0
      %3599 = vmatmul.mubr.f32.gmra.mxu0 %v1700
      %v3600 = vpop.f32.mrf.mxu0
      %v3601 = vadd.f32 0.0, %v3600
      %v3602 = vpop.f32.mrf.mxu0
      %v3603 = vadd.f32 0.0, %v3602
      %3604 = vmatprep.mubr.f32.mxu0 0.0
      %3605 = vmatmul.mubr.f32.gmra.mxu0 %v1703
      %v3606 = vpop.f32.mrf.mxu0
      %v3607 = vadd.f32 0.0, %v3606
      %v3608 = vpop.f32.mrf.mxu0
      %v3609 = vadd.f32 0.0, %v3608
      %3610 = vmatprep.mubr.f32.mxu0 0.0
      %3611 = vmatmul.mubr.f32.gmra.mxu0 %v1706
      %v3612 = vpop.f32.mrf.mxu0
      %v3613 = vadd.f32 0.0, %v3612
      %v3614 = vpop.f32.mrf.mxu0
      %v3615 = vadd.f32 0.0, %v3614
      %3616 = vdwg.mxu0
      %v3617 = vadd.f32 %v3497, %v3595
      %v3618 = vadd.f32 %v3499, %v3597
      %v3619 = vadd.f32 %v3503, %v3601
      %v3620 = vadd.f32 %v3505, %v3603
      %v3621 = vadd.f32 %v3509, %v3607
      %v3622 = vadd.f32 %v3511, %v3609
      %v3623 = vadd.f32 %v3515, %v3613
      %v3624 = vadd.f32 %v3517, %v3615
      %s3625 = scalar_lea.vmem %s7, 64
      %v3626 = vld [vmem:[%s3625] sm:$0xff]
      %v3627 = vld [vmem:[%s3625 + $0x8] sm:$0xff]
      %v3628 = vld [vmem:[%s3625 + $0x10] sm:$0xff]
      %v3629 = vld [vmem:[%s3625 + $0x18] sm:$0xff]
      %v3630 = vld [vmem:[%s3625 + $0x20] sm:$0xff]
      %v3631 = vld [vmem:[%s3625 + $0x28] sm:$0xff]
      %v3632 = vld [vmem:[%s3625 + $0x30] sm:$0xff]
      %v3633 = vld [vmem:[%s3625 + $0x38] sm:$0xff]
      %v3635 = vsel %vm1298, %v3080, 0
      %v3638 = vsel %vm1298, %v3085, 0
      %v3641 = vsel %vm1298, %v3155, 0
      %v3644 = vsel %vm1298, %v3160, 0
      %3646 = vmatprep.subr.mxu0 0.0
      %3647 = vmatpush1.msra.mxu0 0.0
      %3648 = vmatprep.subr.mxu0 0.0
      %3649 = vmatpush1.msra.mxu0 0.0
      %3650 = vmatprep.subr.mxu0 0.0
      %3651 = vmatpush1.msra.mxu0 0.0
      %3652 = vmatprep.subr.mxu0 0.0
      %3653 = vmatpush1.msra.mxu0 0.0
      %3654 = vmatprep.subr.mxu0 0.0
      %3655 = vmatpush1.msra.mxu0 0.0
      %3656 = vmatprep.subr.mxu0 0.0
      %3657 = vmatpush1.msra.mxu0 0.0
      %3658 = vmatprep.subr.mxu0 0.0
      %3659 = vmatpush1.msra.mxu0 0.0
      %3660 = vmatprep.subr.mxu0 0.0
      %3661 = vmatpush1.msra.mxu0 0.0
      %3662 = vmatprep.subr.mxu0 0.0
      %3663 = vmatpush1.msra.mxu0 0.0
      %3664 = vmatprep.subr.mxu0 0.0
      %3665 = vmatpush1.msra.mxu0 0.0
      %3666 = vmatprep.subr.mxu0 0.0
      %3667 = vmatpush1.msra.mxu0 0.0
      %3668 = vmatprep.subr.mxu0 0.0
      %3669 = vmatpush1.msra.mxu0 0.0
      %3670 = vmatprep.subr.mxu0 %v3633
      %3671 = vmatpush1.msra.mxu0 %v3632
      %3672 = vmatprep.subr.mxu0 %v3631
      %3673 = vmatpush1.msra.mxu0 %v3630
      %3674 = vmatprep.subr.mxu0 %v3629
      %3675 = vmatpush1.msra.mxu0 %v3628
      %3676 = vmatprep.subr.mxu0 %v3627
      %3677 = vmatpush1.msra.mxu0 %v3626
      %3678 = vmatprep.subr.mxu0 0.0
      %3679 = vmatpush2.msra.mxu0 0.0
      %3680 = vmatprep.subr.mxu0 0.0
      %3681 = vmatpush2.msra.mxu0 0.0
      %3682 = vmatprep.subr.mxu0 0.0
      %3683 = vmatpush2.msra.mxu0 0.0
      %3684 = vmatprep.subr.mxu0 0.0
      %3685 = vmatpush2.msra.mxu0 0.0
      %3686 = vmatprep.subr.mxu0 0.0
      %3687 = vmatpush2.msra.mxu0 0.0
      %3688 = vmatprep.subr.mxu0 0.0
      %3689 = vmatpush2.msra.mxu0 0.0
      %3690 = vmatprep.subr.mxu0 0.0
      %3691 = vmatpush2.msra.mxu0 0.0
      %3692 = vmatprep.subr.mxu0 0.0
      %3693 = vmatpush2.msra.mxu0 0.0
      %3694 = vmatprep.subr.mxu0 0.0
      %3695 = vmatpush2.msra.mxu0 0.0
      %3696 = vmatprep.subr.mxu0 0.0
      %3697 = vmatpush2.msra.mxu0 0.0
      %3698 = vmatprep.subr.mxu0 0.0
      %3699 = vmatpush2.msra.mxu0 0.0
      %3700 = vmatprep.subr.mxu0 0.0
      %3701 = vmatpush2.msra.mxu0 0.0
      %3702 = vmatprep.subr.mxu0 0.0
      %3703 = vmatpush2.msra.mxu0 0.0
      %3704 = vmatprep.subr.mxu0 0.0
      %3705 = vmatpush2.msra.mxu0 0.0
      %3706 = vmatprep.subr.mxu0 0.0
      %3707 = vmatpush2.msra.mxu0 0.0
      %3708 = vmatprep.subr.mxu0 0.0
      %3709 = vmatpush2.msra.mxu0 0.0
      %3710 = vmatprep.mubr.f32.mxu0 0.0
      %3711 = vmatmul.mubr.f32.gmra.mxu0 %v3635
      %v3712 = vpop.f32.mrf.mxu0
      %v3713 = vadd.f32 0.0, %v3712
      %v3714 = vpop.f32.mrf.mxu0
      %v3715 = vadd.f32 0.0, %v3714
      %3716 = vmatprep.mubr.f32.mxu0 0.0
      %3717 = vmatmul.mubr.f32.gmra.mxu0 %v3638
      %v3718 = vpop.f32.mrf.mxu0
      %v3719 = vadd.f32 0.0, %v3718
      %v3720 = vpop.f32.mrf.mxu0
      %v3721 = vadd.f32 0.0, %v3720
      %3722 = vmatprep.mubr.f32.mxu0 0.0
      %3723 = vmatmul.mubr.f32.gmra.mxu0 %v3641
      %v3724 = vpop.f32.mrf.mxu0
      %v3725 = vadd.f32 0.0, %v3724
      %v3726 = vpop.f32.mrf.mxu0
      %v3727 = vadd.f32 0.0, %v3726
      %3728 = vmatprep.mubr.f32.mxu0 0.0
      %3729 = vmatmul.mubr.f32.gmra.mxu0 %v3644
      %v3730 = vpop.f32.mrf.mxu0
      %v3731 = vadd.f32 0.0, %v3730
      %v3732 = vpop.f32.mrf.mxu0
      %v3733 = vadd.f32 0.0, %v3732
      %3734 = vdwg.mxu0
      %v3735 = vadd.f32 %v3617, %v3713
      %v3736 = vadd.f32 %v3618, %v3715
      %v3737 = vadd.f32 %v3619, %v3719
      %v3738 = vadd.f32 %v3620, %v3721
      %v3739 = vadd.f32 %v3621, %v3725
      %v3740 = vadd.f32 %v3622, %v3727
      %v3741 = vadd.f32 %v3623, %v3731
      %v3742 = vadd.f32 %v3624, %v3733
      %s3743 = scalar_lea.vmem %s6, 128
      %v3744 = vld [vmem:[%s3743] sm:$0xff]
      %v3745 = vld [vmem:[%s3743 + $0x8] sm:$0xff]
      %v3746 = vld [vmem:[%s3743 + $0x10] sm:$0xff]
      %v3747 = vld [vmem:[%s3743 + $0x18] sm:$0xff]
      %v3748 = vld [vmem:[%s3743 + $0x20] sm:$0xff]
      %v3749 = vld [vmem:[%s3743 + $0x28] sm:$0xff]
      %v3750 = vld [vmem:[%s3743 + $0x30] sm:$0xff]
      %v3751 = vld [vmem:[%s3743 + $0x38] sm:$0xff]
      %3752 = vmatprep.subr.mxu0 0.0
      %3753 = vmatpush1.msra.mxu0 0.0
      %3754 = vmatprep.subr.mxu0 0.0
      %3755 = vmatpush1.msra.mxu0 0.0
      %3756 = vmatprep.subr.mxu0 0.0
      %3757 = vmatpush1.msra.mxu0 0.0
      %3758 = vmatprep.subr.mxu0 0.0
      %3759 = vmatpush1.msra.mxu0 0.0
      %3760 = vmatprep.subr.mxu0 0.0
      %3761 = vmatpush1.msra.mxu0 0.0
      %3762 = vmatprep.subr.mxu0 0.0
      %3763 = vmatpush1.msra.mxu0 0.0
      %3764 = vmatprep.subr.mxu0 0.0
      %3765 = vmatpush1.msra.mxu0 0.0
      %3766 = vmatprep.subr.mxu0 0.0
      %3767 = vmatpush1.msra.mxu0 0.0
      %3768 = vmatprep.subr.mxu0 0.0
      %3769 = vmatpush1.msra.mxu0 0.0
      %3770 = vmatprep.subr.mxu0 0.0
      %3771 = vmatpush1.msra.mxu0 0.0
      %3772 = vmatprep.subr.mxu0 0.0
      %3773 = vmatpush1.msra.mxu0 0.0
      %3774 = vmatprep.subr.mxu0 0.0
      %3775 = vmatpush1.msra.mxu0 0.0
      %3776 = vmatprep.subr.mxu0 %v3751
      %3777 = vmatpush1.msra.mxu0 %v3750
      %3778 = vmatprep.subr.mxu0 %v3749
      %3779 = vmatpush1.msra.mxu0 %v3748
      %3780 = vmatprep.subr.mxu0 %v3747
      %3781 = vmatpush1.msra.mxu0 %v3746
      %3782 = vmatprep.subr.mxu0 %v3745
      %3783 = vmatpush1.msra.mxu0 %v3744
      %3784 = vmatprep.subr.mxu0 0.0
      %3785 = vmatpush2.msra.mxu0 0.0
      %3786 = vmatprep.subr.mxu0 0.0
      %3787 = vmatpush2.msra.mxu0 0.0
      %3788 = vmatprep.subr.mxu0 0.0
      %3789 = vmatpush2.msra.mxu0 0.0
      %3790 = vmatprep.subr.mxu0 0.0
      %3791 = vmatpush2.msra.mxu0 0.0
      %3792 = vmatprep.subr.mxu0 0.0
      %3793 = vmatpush2.msra.mxu0 0.0
      %3794 = vmatprep.subr.mxu0 0.0
      %3795 = vmatpush2.msra.mxu0 0.0
      %3796 = vmatprep.subr.mxu0 0.0
      %3797 = vmatpush2.msra.mxu0 0.0
      %3798 = vmatprep.subr.mxu0 0.0
      %3799 = vmatpush2.msra.mxu0 0.0
      %3800 = vmatprep.subr.mxu0 0.0
      %3801 = vmatpush2.msra.mxu0 0.0
      %3802 = vmatprep.subr.mxu0 0.0
      %3803 = vmatpush2.msra.mxu0 0.0
      %3804 = vmatprep.subr.mxu0 0.0
      %3805 = vmatpush2.msra.mxu0 0.0
      %3806 = vmatprep.subr.mxu0 0.0
      %3807 = vmatpush2.msra.mxu0 0.0
      %3808 = vmatprep.subr.mxu0 0.0
      %3809 = vmatpush2.msra.mxu0 0.0
      %3810 = vmatprep.subr.mxu0 0.0
      %3811 = vmatpush2.msra.mxu0 0.0
      %3812 = vmatprep.subr.mxu0 0.0
      %3813 = vmatpush2.msra.mxu0 0.0
      %3814 = vmatprep.subr.mxu0 0.0
      %3815 = vmatpush2.msra.mxu0 0.0
      %3816 = vmatprep.mubr.f32.mxu0 0.0
      %3817 = vmatmul.mubr.f32.gmra.mxu0 %v2143
      %v3818 = vpop.f32.mrf.mxu0
      %v3819 = vadd.f32 0.0, %v3818
      %v3820 = vpop.f32.mrf.mxu0
      %v3821 = vadd.f32 0.0, %v3820
      %3822 = vmatprep.mubr.f32.mxu0 0.0
      %3823 = vmatmul.mubr.f32.gmra.mxu0 %v2146
      %v3824 = vpop.f32.mrf.mxu0
      %v3825 = vadd.f32 0.0, %v3824
      %v3826 = vpop.f32.mrf.mxu0
      %v3827 = vadd.f32 0.0, %v3826
      %3828 = vmatprep.mubr.f32.mxu0 0.0
      %3829 = vmatmul.mubr.f32.gmra.mxu0 %v2149
      %v3830 = vpop.f32.mrf.mxu0
      %v3831 = vadd.f32 0.0, %v3830
      %v3832 = vpop.f32.mrf.mxu0
      %v3833 = vadd.f32 0.0, %v3832
      %3834 = vmatprep.mubr.f32.mxu0 0.0
      %3835 = vmatmul.mubr.f32.gmra.mxu0 %v2152
      %v3836 = vpop.f32.mrf.mxu0
      %v3837 = vadd.f32 0.0, %v3836
      %v3838 = vpop.f32.mrf.mxu0
      %v3839 = vadd.f32 0.0, %v3838
      %3840 = vdwg.mxu0
      %v3841 = vadd.f32 %v3735, %v3819
      %v3842 = vadd.f32 %v3736, %v3821
      %v3843 = vadd.f32 %v3737, %v3825
      %v3844 = vadd.f32 %v3738, %v3827
      %v3845 = vadd.f32 %v3739, %v3831
      %v3846 = vadd.f32 %v3740, %v3833
      %v3847 = vadd.f32 %v3741, %v3837
      %v3848 = vadd.f32 %v3742, %v3839
      %s3849 = scalar_lea.vmem %s7, 128
      %v3850 = vld [vmem:[%s3849] sm:$0xff]
      %v3851 = vld [vmem:[%s3849 + $0x8] sm:$0xff]
      %v3852 = vld [vmem:[%s3849 + $0x10] sm:$0xff]
      %v3853 = vld [vmem:[%s3849 + $0x18] sm:$0xff]
      %v3854 = vld [vmem:[%s3849 + $0x20] sm:$0xff]
      %v3855 = vld [vmem:[%s3849 + $0x28] sm:$0xff]
      %v3856 = vld [vmem:[%s3849 + $0x30] sm:$0xff]
      %v3857 = vld [vmem:[%s3849 + $0x38] sm:$0xff]
      %v3859 = vsel %vm1298, %v3230, 0
      %v3862 = vsel %vm1298, %v3235, 0
      %v3865 = vsel %vm1298, %v3305, 0
      %v3868 = vsel %vm1298, %v3310, 0
      %3870 = vmatprep.subr.mxu0 0.0
      %3871 = vmatpush1.msra.mxu0 0.0
      %3872 = vmatprep.subr.mxu0 0.0
      %3873 = vmatpush1.msra.mxu0 0.0
      %3874 = vmatprep.subr.mxu0 0.0
      %3875 = vmatpush1.msra.mxu0 0.0
      %3876 = vmatprep.subr.mxu0 0.0
      %3877 = vmatpush1.msra.mxu0 0.0
      %3878 = vmatprep.subr.mxu0 0.0
      %3879 = vmatpush1.msra.mxu0 0.0
      %3880 = vmatprep.subr.mxu0 0.0
      %3881 = vmatpush1.msra.mxu0 0.0
      %3882 = vmatprep.subr.mxu0 0.0
      %3883 = vmatpush1.msra.mxu0 0.0
      %3884 = vmatprep.subr.mxu0 0.0
      %3885 = vmatpush1.msra.mxu0 0.0
      %3886 = vmatprep.subr.mxu0 0.0
      %3887 = vmatpush1.msra.mxu0 0.0
      %3888 = vmatprep.subr.mxu0 0.0
      %3889 = vmatpush1.msra.mxu0 0.0
      %3890 = vmatprep.subr.mxu0 0.0
      %3891 = vmatpush1.msra.mxu0 0.0
      %3892 = vmatprep.subr.mxu0 0.0
      %3893 = vmatpush1.msra.mxu0 0.0
      %3894 = vmatprep.subr.mxu0 %v3857
      %3895 = vmatpush1.msra.mxu0 %v3856
      %3896 = vmatprep.subr.mxu0 %v3855
      %3897 = vmatpush1.msra.mxu0 %v3854
      %3898 = vmatprep.subr.mxu0 %v3853
      %3899 = vmatpush1.msra.mxu0 %v3852
      %3900 = vmatprep.subr.mxu0 %v3851
      %3901 = vmatpush1.msra.mxu0 %v3850
      %3902 = vmatprep.subr.mxu0 0.0
      %3903 = vmatpush2.msra.mxu0 0.0
      %3904 = vmatprep.subr.mxu0 0.0
      %3905 = vmatpush2.msra.mxu0 0.0
      %3906 = vmatprep.subr.mxu0 0.0
      %3907 = vmatpush2.msra.mxu0 0.0
      %3908 = vmatprep.subr.mxu0 0.0
      %3909 = vmatpush2.msra.mxu0 0.0
      %3910 = vmatprep.subr.mxu0 0.0
      %3911 = vmatpush2.msra.mxu0 0.0
      %3912 = vmatprep.subr.mxu0 0.0
      %3913 = vmatpush2.msra.mxu0 0.0
      %3914 = vmatprep.subr.mxu0 0.0
      %3915 = vmatpush2.msra.mxu0 0.0
      %3916 = vmatprep.subr.mxu0 0.0
      %3917 = vmatpush2.msra.mxu0 0.0
      %3918 = vmatprep.subr.mxu0 0.0
      %3919 = vmatpush2.msra.mxu0 0.0
      %3920 = vmatprep.subr.mxu0 0.0
      %3921 = vmatpush2.msra.mxu0 0.0
      %3922 = vmatprep.subr.mxu0 0.0
      %3923 = vmatpush2.msra.mxu0 0.0
      %3924 = vmatprep.subr.mxu0 0.0
      %3925 = vmatpush2.msra.mxu0 0.0
      %3926 = vmatprep.subr.mxu0 0.0
      %3927 = vmatpush2.msra.mxu0 0.0
      %3928 = vmatprep.subr.mxu0 0.0
      %3929 = vmatpush2.msra.mxu0 0.0
      %3930 = vmatprep.subr.mxu0 0.0
      %3931 = vmatpush2.msra.mxu0 0.0
      %3932 = vmatprep.subr.mxu0 0.0
      %3933 = vmatpush2.msra.mxu0 0.0
      %3934 = vmatprep.mubr.f32.mxu0 0.0
      %3935 = vmatmul.mubr.f32.gmra.mxu0 %v3859
      %v3936 = vpop.f32.mrf.mxu0
      %v3937 = vadd.f32 0.0, %v3936
      %v3938 = vpop.f32.mrf.mxu0
      %v3939 = vadd.f32 0.0, %v3938
      %3940 = vmatprep.mubr.f32.mxu0 0.0
      %3941 = vmatmul.mubr.f32.gmra.mxu0 %v3862
      %v3942 = vpop.f32.mrf.mxu0
      %v3943 = vadd.f32 0.0, %v3942
      %v3944 = vpop.f32.mrf.mxu0
      %v3945 = vadd.f32 0.0, %v3944
      %3946 = vmatprep.mubr.f32.mxu0 0.0
      %3947 = vmatmul.mubr.f32.gmra.mxu0 %v3865
      %v3948 = vpop.f32.mrf.mxu0
      %v3949 = vadd.f32 0.0, %v3948
      %v3950 = vpop.f32.mrf.mxu0
      %v3951 = vadd.f32 0.0, %v3950
      %3952 = vmatprep.mubr.f32.mxu0 0.0
      %3953 = vmatmul.mubr.f32.gmra.mxu0 %v3868
      %v3954 = vpop.f32.mrf.mxu0
      %v3955 = vadd.f32 0.0, %v3954
      %v3956 = vpop.f32.mrf.mxu0
      %v3957 = vadd.f32 0.0, %v3956
      %3958 = vdwg.mxu0
      %v3959 = vadd.f32 %v3841, %v3937
      %v3960 = vadd.f32 %v3842, %v3939
      %v3961 = vadd.f32 %v3843, %v3943
      %v3962 = vadd.f32 %v3844, %v3945
      %v3963 = vadd.f32 %v3845, %v3949
      %v3964 = vadd.f32 %v3846, %v3951
      %v3965 = vadd.f32 %v3847, %v3955
      %v3966 = vadd.f32 %v3848, %v3957
      %v3967 = vld [vmem:[%s8] sm:$0xff]
      %v3968 = vld [vmem:[%s8 + $0x8] sm:$0xff]
      %v3969 = vld [vmem:[%s8 + $0x10] sm:$0xff]
      %v3970 = vld [vmem:[%s8 + $0x18] sm:$0xff]
      %v3971 = vmul.f32 %v3959, %v2578
      %v3972 = vmul.f32 %v3961, %v2583
      %v3973 = vmul.f32 %v3963, %v2588
      %v3974 = vmul.f32 %v3965, %v2593
      %v3975 = vadd.f32 %v3967, %v3971
      %v3976 = vadd.f32 %v3968, %v3972
      %v3977 = vadd.f32 %v3969, %v3973
      %v3978 = vadd.f32 %v3970, %v3974
      %v3979 = vmul.f32 %v3959, %v2605
      %v3980 = vmul.f32 %v3961, %v2609
      %v3981 = vmul.f32 %v3963, %v2613
      %v3982 = vmul.f32 %v3965, %v2617
      %3987 = vrot.lane.b32.xlu0 %v3979, 96
      %v3988 = vpop.permute.xlu0 %3987
      %3989 = vrot.lane.b32.xlu0 %v3980, 96
      %v3990 = vpop.permute.xlu0 %3989
      %3991 = vrot.lane.b32.xlu0 %v3981, 96
      %v3992 = vpop.permute.xlu0 %3991
      %3993 = vrot.lane.b32.xlu0 %v3982, 96
      %v3994 = vpop.permute.xlu0 %3993
      %v3999 = vadd.f32 %v3975, %v3988
      %v4000 = vadd.f32 %v3976, %v3990
      %v4001 = vadd.f32 %v3977, %v3992
      %v4002 = vadd.f32 %v3978, %v3994
      %v4003 = vmul.f32 %v3959, %v2645
      %v4004 = vmul.f32 %v3961, %v2649
      %v4005 = vmul.f32 %v3963, %v2653
      %v4006 = vmul.f32 %v3965, %v2657
      %4011 = vrot.lane.b32.xlu0 %v4003, 64
      %v4012 = vpop.permute.xlu0 %4011
      %4013 = vrot.lane.b32.xlu0 %v4004, 64
      %v4014 = vpop.permute.xlu0 %4013
      %4015 = vrot.lane.b32.xlu0 %v4005, 64
      %v4016 = vpop.permute.xlu0 %4015
      %4017 = vrot.lane.b32.xlu0 %v4006, 64
      %v4018 = vpop.permute.xlu0 %4017
      %v4023 = vadd.f32 %v3999, %v4012
      %v4024 = vadd.f32 %v4000, %v4014
      %v4025 = vadd.f32 %v4001, %v4016
      %v4026 = vadd.f32 %v4002, %v4018
      %v4027 = vmul.f32 %v3959, %v2669
      %v4028 = vmul.f32 %v3961, %v2673
      %v4029 = vmul.f32 %v3963, %v2677
      %v4030 = vmul.f32 %v3965, %v2681
      %4035 = vrot.lane.b32.xlu0 %v4027, 32
      %v4036 = vpop.permute.xlu0 %4035
      %4037 = vrot.lane.b32.xlu0 %v4028, 32
      %v4038 = vpop.permute.xlu0 %4037
      %4039 = vrot.lane.b32.xlu0 %v4029, 32
      %v4040 = vpop.permute.xlu0 %4039
      %4041 = vrot.lane.b32.xlu0 %v4030, 32
      %v4042 = vpop.permute.xlu0 %4041
      %v4047 = vadd.f32 %v4023, %v4036
      %v4048 = vadd.f32 %v4024, %v4038
      %v4049 = vadd.f32 %v4025, %v4040
      %v4050 = vadd.f32 %v4026, %v4042
      %v4051 = vmul.f32 %v3960, %v2709
      %v4052 = vmul.f32 %v3962, %v2713
      %v4053 = vmul.f32 %v3964, %v2717
      %v4054 = vmul.f32 %v3966, %v2721
      %v4055 = vadd.f32 %v4047, %v4051
      %v4056 = vadd.f32 %v4048, %v4052
      %v4057 = vadd.f32 %v4049, %v4053
      %v4058 = vadd.f32 %v4050, %v4054
      %v4059 = vmul.f32 %v3960, %v2733
      %v4060 = vmul.f32 %v3962, %v2737
      %v4061 = vmul.f32 %v3964, %v2741
      %v4062 = vmul.f32 %v3966, %v2745
      %4067 = vrot.lane.b32.xlu0 %v4059, 96
      %v4068 = vpop.permute.xlu0 %4067
      %4069 = vrot.lane.b32.xlu0 %v4060, 96
      %v4070 = vpop.permute.xlu0 %4069
      %4071 = vrot.lane.b32.xlu0 %v4061, 96
      %v4072 = vpop.permute.xlu0 %4071
      %4073 = vrot.lane.b32.xlu0 %v4062, 96
      %v4074 = vpop.permute.xlu0 %4073
      %v4079 = vadd.f32 %v4055, %v4068
      %v4080 = vadd.f32 %v4056, %v4070
      %v4081 = vadd.f32 %v4057, %v4072
      %v4082 = vadd.f32 %v4058, %v4074
      %v4083 = vmul.f32 %v3960, %v2773
      %v4084 = vmul.f32 %v3962, %v2777
      %v4085 = vmul.f32 %v3964, %v2781
      %v4086 = vmul.f32 %v3966, %v2785
      %4091 = vrot.lane.b32.xlu0 %v4083, 64
      %v4092 = vpop.permute.xlu0 %4091
      %4093 = vrot.lane.b32.xlu0 %v4084, 64
      %v4094 = vpop.permute.xlu0 %4093
      %4095 = vrot.lane.b32.xlu0 %v4085, 64
      %v4096 = vpop.permute.xlu0 %4095
      %4097 = vrot.lane.b32.xlu0 %v4086, 64
      %v4098 = vpop.permute.xlu0 %4097
      %v4103 = vadd.f32 %v4079, %v4092
      %v4104 = vadd.f32 %v4080, %v4094
      %v4105 = vadd.f32 %v4081, %v4096
      %v4106 = vadd.f32 %v4082, %v4098
      %v4107 = vmul.f32 %v3960, %v2797
      %v4108 = vmul.f32 %v3962, %v2801
      %v4109 = vmul.f32 %v3964, %v2805
      %v4110 = vmul.f32 %v3966, %v2809
      %4115 = vrot.lane.b32.xlu0 %v4107, 32
      %v4116 = vpop.permute.xlu0 %4115
      %4117 = vrot.lane.b32.xlu0 %v4108, 32
      %v4118 = vpop.permute.xlu0 %4117
      %4119 = vrot.lane.b32.xlu0 %v4109, 32
      %v4120 = vpop.permute.xlu0 %4119
      %4121 = vrot.lane.b32.xlu0 %v4110, 32
      %v4122 = vpop.permute.xlu0 %4121
      %v4127 = vadd.f32 %v4103, %v4116
      %v4128 = vadd.f32 %v4104, %v4118
      %v4129 = vadd.f32 %v4105, %v4120
      %v4130 = vadd.f32 %v4106, %v4122
      %v4131 = vtanh.pop %v4127
      %v4132 = vtanh.pop %v4128
      %v4133 = vtanh.pop %v4129
      %v4134 = vtanh.pop %v4130
      %4139 = vrot.lane.b32.xlu0 %v331, 32
      %v4140 = vpop.permute.xlu0 %4139
      %4141 = vrot.lane.b32.xlu0 %v332, 32
      %v4142 = vpop.permute.xlu0 %4141
      %4143 = vrot.lane.b32.xlu0 %v333, 32
      %v4144 = vpop.permute.xlu0 %4143
      %4145 = vrot.lane.b32.xlu0 %v334, 32
      %v4146 = vpop.permute.xlu0 %4145
      %v4151 = vmul.f32 %v2852, %v4140
      %v4152 = vmul.f32 %v2854, %v4142
      %v4153 = vmul.f32 %v2856, %v4144
      %v4154 = vmul.f32 %v2858, %v4146
      %v4155 = vsub.f32 1.0, %v2852
      %v4156 = vsub.f32 1.0, %v2854
      %v4157 = vsub.f32 1.0, %v2856
      %v4158 = vsub.f32 1.0, %v2858
      %4163 = vrot.lane.b32.xlu0 %v4131, 32
      %v4164 = vpop.permute.xlu0 %4163
      %4165 = vrot.lane.b32.xlu0 %v4132, 32
      %v4166 = vpop.permute.xlu0 %4165
      %4167 = vrot.lane.b32.xlu0 %v4133, 32
      %v4168 = vpop.permute.xlu0 %4167
      %4169 = vrot.lane.b32.xlu0 %v4134, 32
      %v4170 = vpop.permute.xlu0 %4169
      %v4175 = vmul.f32 %v4155, %v4164
      %v4176 = vmul.f32 %v4156, %v4166
      %v4177 = vmul.f32 %v4157, %v4168
      %v4178 = vmul.f32 %v4158, %v4170
      %v4179 = vadd.f32 %v4151, %v4175
      %v4180 = vadd.f32 %v4152, %v4176
      %v4181 = vadd.f32 %v4153, %v4177
      %v4182 = vadd.f32 %v4154, %v4178
      %4187 = vrot.lane.b32.xlu0 %v4179, 96
      %v4188 = vpop.permute.xlu0 %4187
      %4189 = vrot.lane.b32.xlu0 %v4180, 96
      %v4190 = vpop.permute.xlu0 %4189
      %4191 = vrot.lane.b32.xlu0 %v4181, 96
      %v4192 = vpop.permute.xlu0 %4191
      %4193 = vrot.lane.b32.xlu0 %v4182, 96
      %v4194 = vpop.permute.xlu0 %4193
      %4199 = vst.msk [vmem:[#allocation2] sm:$0xff] %vm1298, %v4188
      %4200 = vst.msk [vmem:[#allocation2 + $0x8] sm:$0xff] %vm1298, %v4190
      %4201 = vst.msk [vmem:[#allocation2 + $0x10] sm:$0xff] %vm1298, %v4192
      %4202 = vst.msk [vmem:[#allocation2 + $0x18] sm:$0xff] %vm1298, %v4194
      %4203 = vst.msk [vmem:[%s9] sm:$0xff] %vm1298, %v4188
      %4204 = vst.msk [vmem:[%s9 + $0x8] sm:$0xff] %vm1298, %v4190
      %4205 = vst.msk [vmem:[%s9 + $0x10] sm:$0xff] %vm1298, %v4192
      %4206 = vst.msk [vmem:[%s9 + $0x18] sm:$0xff] %vm1298, %v4194
      // Predicated region
      $region61: #{_lambda_.4} parent=55 // pred_check
        %p4207 = pneg %p227
      $region62: #{_lambda_.4} parent=55 // pred_check_branch
        %4209 = sbr.rel (%p4207) target = $region64
      $region63: #{_lambda_.4} parent=55 // pred_region
        _
      $region64: #{_lambda_.4} parent=55 // pred_fallthru
        _
      // Predicated region
      $region65: #{_lambda_.4} parent=55 // pred_check
        %p4210 = pneg %p227
      $region66: #{_lambda_.4} parent=55 // pred_check_branch
        %4212 = sbr.rel (%p4210) target = $region68
      $region67: #{_lambda_.4} parent=55 // pred_region
        _
      $region68: #{_lambda_.4} parent=55 // pred_fallthru
        _
    $region56: #{_lambda_.4} parent=5 // pred_fallthru
      _
    %p4213 = scmp.le.s32.totalorder 2, %s15
    // Predicated region
    $region69: #{_lambda_.4} parent=5 // pred_check
      %p4214 = pneg %p4213
    $region70: #{_lambda_.4} parent=5 // pred_check_branch
      %4216 = sbr.rel (%p4214) target = $region72
    $region71: #{_lambda_.4} parent=5 // pred_region
      %s4217 = ssub.s32 %s15, 2
    $region72: #{_lambda_.4} parent=5 // pred_fallthru
      _
  $region6: #{_lambda_.4} parent=0 // loop_footer
    %s19 = sadd.s32 1, %s15
  $region7: #{_lambda_.4} parent=0 // loop_footer_branch
    %14 = sbr.rel target = $region3
  $region8: #{_lambda_.4} parent=0 // loop_exit
    _

</llo_original>
